<compile_context>
chip_gen: v6e
topology: v6e:2x2x1
jax: 0.10.0
libtpu: 0.0.40
codegen_flags: <defaults>
</compile_context>

<pallas_src>
import math

import jax
import jax.numpy as jnp
from jax import lax
from jax.experimental import pallas as pl
from jax.experimental.pallas import tpu as pltpu

N_NODES = 64          # synthetic number of graph nodes
K_NN = 11             # k in update_knn (torch_cmspepr.knn_graph k=11, self excluded)
IN_NODE_NF = 7        # node feature dim after stripping the 3 coordinate columns
HIDDEN_NF = 128
OUT_NODE_NF = 4
N_LAYERS = 7


# --------------------------------------------------------------------------
# One grid step = one E_GCL layer (kNN rebuild + message + aggregation).
# Step 0 additionally commits embedding_in; every step recomputes the cheap
# embedding_out, and only the last step's value is written back to HBM.
# --------------------------------------------------------------------------
def _egnn_layer_kernel(xpad_ref, feats_ref,
                       emb_in_w_ref, emb_in_b_ref,
                       w1r_ref, w1s_ref, w1d_ref, b1_ref, w2_ref, b2_ref,
                       wc1_ref, bc1_ref, wc2_ref,
                       wn1_ref, bn1_ref, wn2_ref, bn2_ref,
                       emb_out_wh_ref, emb_out_wx_ref, emb_out_b_ref,
                       out_ref,
                       x_scr, hh_scr, sel_scr, rad_scr):
    n = xpad_ref.shape[0]            # 64 nodes
    h = hh_scr.shape[1]              # 128 hidden / padded-coord lanes
    k_nn = K_NN
    l = pl.program_id(0)

    def dotf(a, b):                  # f32 matmul (coordinate path / tiny matmuls)
        return jnp.dot(a, b, preferred_element_type=jnp.float32)

    def dotbf(a, b):                 # bf16 MXU operands, f32 accumulation
        return jnp.dot(a.astype(jnp.bfloat16), b.astype(jnp.bfloat16),
                       preferred_element_type=jnp.float32)

    def silu(v):
        return v * jax.nn.sigmoid(v)

    def bcast_dst(a):                # [n, d] -> [k_nn*n, d], row k*n+i = a[i]
        return jnp.tile(a, (k_nn, 1))

    # ---- embedding_in (tiny; recomputed each step, committed only at step 0) --
    hh0 = dotf(feats_ref[...], emb_in_w_ref[...]) + emb_in_b_ref[...]

    @pl.when(l == 0)
    def _():
        x_scr[...] = xpad_ref[...]       # lane-dense coord slab, lanes 3.. == 0
        hh_scr[...] = hh0

    x = x_scr[...]                       # [n, h] f32
    hh = hh_scr[...]                     # [n, h] f32

    # ---- kNN rebuild in VMEM: Gram trick + k masked row-min passes ----------
    xT = x.T                                                     # [h, n]
    gram = dotf(x, xT)                                           # [n, n] f32
    sq_col = jnp.sum(x * x, axis=1, keepdims=True)               # ||x_i||^2  [n,1]
    sq_row = jnp.sum(xT * xT, axis=0, keepdims=True)             # ||x_j||^2  [1,n]
    row_ids = lax.broadcasted_iota(jnp.int32, (n, n), 0)
    col_ids = lax.broadcasted_iota(jnp.int32, (n, n), 1)
    col_f = col_ids.astype(jnp.float32)
    d2 = sq_col + sq_row - 2.0 * gram
    d2 = jnp.where(row_ids == col_ids, jnp.float32(1e9), d2)     # remove self loop

    for k in range(k_nn):
        m = jnp.min(d2, axis=1, keepdims=True)                   # dist^2 to k-th NN
        rad_scr[pl.ds(k * n, n), :] = jnp.maximum(m, 0.0)        # radial (clamp >= 0)
        cand = jnp.where(d2 <= m, col_f, jnp.float32(n))         # tie-break: lowest idx
        first = jnp.min(cand, axis=1, keepdims=True)
        hit = col_f == first                                     # exactly one per row
        sel_scr[pl.ds(k * n, n), :] = hit.astype(sel_scr.dtype)
        d2 = jnp.where(hit, jnp.float32(1e30), d2)

    sel = sel_scr[...]                   # [k*n, n] one-hot selector (bf16, exact 0/1)
    radial = rad_scr[...]                # [k*n, 1] f32

    # ---- edge MLP over all k*n edges (hidden path in bf16) -------------------
    # cat([radial, hh_src, hh_dst]) @ W1 split; src term is transform-then-gather
    hhW_src = dotbf(hh, w1s_ref[0])                    # [n, h]
    dst_term = dotbf(hh, w1d_ref[0]) + b1_ref[0]       # [n, h]
    src_term = dotbf(sel, hhW_src)                     # exact one-hot row gather
    pre1 = radial * w1r_ref[0] + src_term + bcast_dst(dst_term)
    ef = silu(pre1)
    ef = silu(dotbf(ef, w2_ref[0]) + b2_ref[0])        # edge_feature  [k*n, h]

    # ---- coordinate path (kept f32 end-to-end) -------------------------------
    x_src = dotf(sel.astype(jnp.float32), x)           # exact gather of f32 coords
    coord_diff = x_src - bcast_dst(x)                  # src - dst, lanes 3.. == 0
    cm = silu(dotbf(ef, wc1_ref[0]) + bc1_ref[0])
    scale = jnp.sum(cm * wc2_ref[0], axis=1, keepdims=True)      # coord_mlp tail
    trans = jnp.clip(coord_diff * scale, -1000.0, 1000.0)

    # ---- aggregation over the k incoming edges per node ----------------------
    trans_mean = jnp.sum(trans.reshape(k_nn, n, h), axis=0) * (1.0 / k_nn)
    ef_sum = jnp.sum(ef.reshape(k_nn, n, h), axis=0)
    x_new = jnp.clip(x, -1000.0, 1000.0) + trans_mean            # zero lanes stay zero
    agg = jnp.concatenate([hh, ef_sum], axis=1)                  # [n, 2h]
    hmid = silu(dotbf(agg, wn1_ref[0]) + bn1_ref[0])             # fused K=256 matmul
    hh_new = hh + dotbf(hmid, wn2_ref[0]) + bn2_ref[0]           # residual

    x_scr[...] = x_new
    hh_scr[...] = hh_new

    # ---- embedding_out on cat([hh, x[:, :3]]) (coord W zero-padded to h rows) -
    # Written every step; constant output block => only final value hits HBM.
    out_ref[...] = (dotf(hh_new, emb_out_wh_ref[...])
                    + dotf(x_new, emb_out_wx_ref[...])
                    + emb_out_b_ref[...])


def egnn_forward_pallas(node_h, params):
    n = node_h.shape[0]
    # lane-dense coordinate slab: lanes 0..2 = coords/3330, lanes 3..127 = 0
    x_pad = jnp.zeros((n, HIDDEN_NF), jnp.float32).at[:, 0:3].set(
        node_h[:, 0:3].astype(jnp.float32) / 3330.0)
    feats = node_h[:, 3:].astype(jnp.float32)

    full_inputs = [x_pad, feats, params['emb_in_w'], params['emb_in_b']]
    layer_names = ('w1r', 'w1s', 'w1d', 'b1', 'w2', 'b2',
                   'wc1', 'bc1', 'wc2', 'wn1', 'bn1', 'wn2', 'bn2')
    layer_inputs = [params[k] for k in layer_names]
    tail_inputs = [params['emb_out_wh'], params['emb_out_wx'], params['emb_out_b']]
    inputs = full_inputs + layer_inputs + tail_inputs

    def full_spec(a):                 # same block every grid step -> fetched once
        nd = a.ndim
        return pl.BlockSpec(a.shape, lambda l, _nd=nd: (0,) * _nd)

    def layer_spec(a):                # one layer's slice per grid step (pipelined)
        nd = a.ndim
        return pl.BlockSpec((1,) + a.shape[1:],
                            lambda l, _nd=nd: (l,) + (0,) * (_nd - 1))

    in_specs = ([full_spec(a) for a in full_inputs]
                + [layer_spec(a) for a in layer_inputs]
                + [full_spec(a) for a in tail_inputs])

    H, K, L = HIDDEN_NF, K_NN, N_LAYERS
    per_layer_macs = (n * n * H                 # gram
                      + 2 * K * n * n * H       # x_src + transformed-src gathers
                      + 2 * K * n * H * H       # edge mlp w2 + coord mlp wc1
                      + 5 * n * H * H)          # w1s, w1d, wn1 (=2x), wn2
    macs = L * per_layer_macs + n * IN_NODE_NF * H + 2 * n * H * OUT_NODE_NF
    cost = pl.CostEstimate(
        flops=2 * macs,
        transcendentals=L * (3 * K * n * H + n * H),
        bytes_accessed=int(sum(a.size * a.dtype.itemsize for a in inputs)
                           + n * OUT_NODE_NF * 4))

    return pl.pallas_call(
        _egnn_layer_kernel,
        out_shape=jax.ShapeDtypeStruct((n, OUT_NODE_NF), jnp.float32),
        grid=(N_LAYERS,),
        in_specs=in_specs,
        out_specs=pl.BlockSpec((n, OUT_NODE_NF), lambda l: (0, 0)),
        scratch_shapes=[
            pltpu.VMEM((n, HIDDEN_NF), jnp.float32),        # x slab   (persists)
            pltpu.VMEM((n, HIDDEN_NF), jnp.float32),        # hh       (persists)
            pltpu.VMEM((K_NN * n, n), jnp.bfloat16),        # kNN one-hot selector
            pltpu.VMEM((K_NN * n, 1), jnp.float32),         # radial from kNN min
        ],
        compiler_params=pltpu.CompilerParams(
            dimension_semantics=("arbitrary",),             # layers are sequential
            vmem_limit_bytes=32 * 1024 * 1024),
        cost_estimate=cost,
    )(*inputs)


# --------------------------------------------------------------------------
# Parameter init (PyTorch nn.Linear default init; coord_mlp tail xavier*1e-3)
# --------------------------------------------------------------------------
def _init_linear(key, fan_in, fan_out):
    kw, kb = jax.random.split(key)
    bound = 1.0 / math.sqrt(fan_in)
    w = jax.random.uniform(kw, (fan_in, fan_out), jnp.float32, -bound, bound)
    b = jax.random.uniform(kb, (1, fan_out), jnp.float32, -bound, bound)
    return w, b


def init_params(key):
    keys = jax.random.split(key, 2 + N_LAYERS)
    emb_in_w, emb_in_b = _init_linear(keys[0], IN_NODE_NF, HIDDEN_NF)
    emb_out_w, emb_out_b = _init_linear(keys[1], HIDDEN_NF + 3, OUT_NODE_NF)

    names = ('w1r', 'w1s', 'w1d', 'b1', 'w2', 'b2', 'wc1', 'bc1', 'wc2',
             'wn1', 'bn1', 'wn2', 'bn2')
    per = {k: [] for k in names}
    for i in range(N_LAYERS):
        lk = jax.random.split(keys[2 + i], 6)
        w1, b1 = _init_linear(lk[0], 2 * HIDDEN_NF + 1, HIDDEN_NF)   # edge_mlp l1
        w2, b2 = _init_linear(lk[1], HIDDEN_NF, HIDDEN_NF)           # edge_mlp l2
        wc1, bc1 = _init_linear(lk[2], HIDDEN_NF, HIDDEN_NF)         # coord_mlp l1
        xav = 0.001 * math.sqrt(6.0 / (HIDDEN_NF + 1))               # xavier gain 1e-3
        wc2 = jax.random.uniform(lk[3], (1, HIDDEN_NF), jnp.float32, -xav, xav)
        wn1, bn1 = _init_linear(lk[4], 2 * HIDDEN_NF, HIDDEN_NF)     # node_mlp l1
        wn2, bn2 = _init_linear(lk[5], HIDDEN_NF, HIDDEN_NF)         # node_mlp l2
        per['w1r'].append(w1[0:1, :])                 # radial row of edge-MLP W1
        per['w1s'].append(w1[1:1 + HIDDEN_NF, :])     # src-feature rows
        per['w1d'].append(w1[1 + HIDDEN_NF:, :])      # dst-feature rows
        per['b1'].append(b1)
        per['w2'].append(w2);   per['b2'].append(b2)
        per['wc1'].append(wc1); per['bc1'].append(bc1); per['wc2'].append(wc2)
        per['wn1'].append(wn1)                        # fused [hh | ef_sum] weight
        per['bn1'].append(bn1)
        per['wn2'].append(wn2); per['bn2'].append(bn2)
    stacked = {k: jnp.stack(v, axis=0) for k, v in per.items()}      # leading dim = layer
    # Large hidden-feature matrices stored bf16 (MXU operands, halved DMA bytes);
    # scalar rows / biases / coord-path weights stay f32.
    for k in ('w1s', 'w1d', 'w2', 'wc1', 'wn1', 'wn2'):
        stacked[k] = stacked[k].astype(jnp.bfloat16)

    # split embedding_out for the lane-dense coord slab: rows 0..H-1 -> hh,
    # rows H..H+2 -> coords (zero-padded to H rows so x_pad's extra lanes are inert)
    emb_out_wh = emb_out_w[:HIDDEN_NF, :]
    emb_out_wx = jnp.zeros((HIDDEN_NF, OUT_NODE_NF), jnp.float32).at[0:3, :].set(
        emb_out_w[HIDDEN_NF:, :])

    return dict(emb_in_w=emb_in_w, emb_in_b=emb_in_b,
                emb_out_wh=emb_out_wh, emb_out_wx=emb_out_wx, emb_out_b=emb_out_b,
                **stacked)


@jax.jit
def egnn_forward(node_h, params):
    # node_h: [N, 3 + IN_NODE_NF]; columns 0:3 are raw coordinates
    return egnn_forward_pallas(node_h, params)


if __name__ == "__main__":
    key = jax.random.PRNGKey(0)
    kp, kd = jax.random.split(key)
    params = init_params(kp)
    node_h = jax.random.normal(kd, (N_NODES, 3 + IN_NODE_NF), jnp.float32)
    node_h = node_h.at[:, 0:3].multiply(500.0)      # coordinate-scale columns
    out = egnn_forward(node_h, params)
    out = jax.block_until_ready(out)
    assert out.shape == (N_NODES, OUT_NODE_NF)
    assert not bool(jnp.isnan(out).any())           # assert_no_nans equivalent
    print("KERNEL_OK")
</pallas_src>

<mosaic_0001>
module attributes {stable_mosaic.version = 11 : i64} {
  func.func @_egnn_layer_kernel(%arg0: i32, %arg1: memref<64x128xf32, #tpu.memory_space<vmem>>, %arg2: memref<64x7xf32, #tpu.memory_space<vmem>>, %arg3: memref<7x128xf32, #tpu.memory_space<vmem>>, %arg4: memref<1x128xf32, #tpu.memory_space<vmem>>, %arg5: memref<1x1x128xf32, #tpu.memory_space<vmem>>, %arg6: memref<1x128x128xbf16, #tpu.memory_space<vmem>>, %arg7: memref<1x128x128xbf16, #tpu.memory_space<vmem>>, %arg8: memref<1x1x128xf32, #tpu.memory_space<vmem>>, %arg9: memref<1x128x128xbf16, #tpu.memory_space<vmem>>, %arg10: memref<1x1x128xf32, #tpu.memory_space<vmem>>, %arg11: memref<1x128x128xbf16, #tpu.memory_space<vmem>>, %arg12: memref<1x1x128xf32, #tpu.memory_space<vmem>>, %arg13: memref<1x1x128xf32, #tpu.memory_space<vmem>>, %arg14: memref<1x256x128xbf16, #tpu.memory_space<vmem>>, %arg15: memref<1x1x128xf32, #tpu.memory_space<vmem>>, %arg16: memref<1x128x128xbf16, #tpu.memory_space<vmem>>, %arg17: memref<1x1x128xf32, #tpu.memory_space<vmem>>, %arg18: memref<128x4xf32, #tpu.memory_space<vmem>>, %arg19: memref<128x4xf32, #tpu.memory_space<vmem>>, %arg20: memref<1x4xf32, #tpu.memory_space<vmem>>, %arg21: memref<64x4xf32, #tpu.memory_space<vmem>>, %arg22: memref<64x128xf32, #tpu.memory_space<vmem>>, %arg23: memref<64x128xf32, #tpu.memory_space<vmem>>, %arg24: memref<704x64xbf16, #tpu.memory_space<vmem>>, %arg25: memref<704x1xf32, #tpu.memory_space<vmem>>) attributes {dimension_semantics = [#tpu.dimension_semantics<arbitrary>], iteration_bounds = array<i64: 7>, scalar_prefetch = 0 : i64, scratch_operands = 4 : i64, tpu.core_type = #tpu.core_type<tc>, window_params = [{pipeline_mode = #tpu.pipeline_mode<synchronous>, transform_indices = @transform_0, window_bounds = array<i64: 64, 128>}, {pipeline_mode = #tpu.pipeline_mode<synchronous>, transform_indices = @transform_1, window_bounds = array<i64: 64, 7>}, {pipeline_mode = #tpu.pipeline_mode<synchronous>, transform_indices = @transform_2, window_bounds = array<i64: 7, 128>}, {pipeline_mode = #tpu.pipeline_mode<synchronous>, transform_indices = @transform_3, window_bounds = array<i64: 1, 128>}, {transform_indices = @transform_4, window_bounds = array<i64: 1, 1, 128>}, {transform_indices = @transform_5, window_bounds = array<i64: 1, 128, 128>}, {transform_indices = @transform_6, window_bounds = array<i64: 1, 128, 128>}, {transform_indices = @transform_7, window_bounds = array<i64: 1, 1, 128>}, {transform_indices = @transform_8, window_bounds = array<i64: 1, 128, 128>}, {transform_indices = @transform_9, window_bounds = array<i64: 1, 1, 128>}, {transform_indices = @transform_10, window_bounds = array<i64: 1, 128, 128>}, {transform_indices = @transform_11, window_bounds = array<i64: 1, 1, 128>}, {transform_indices = @transform_12, window_bounds = array<i64: 1, 1, 128>}, {transform_indices = @transform_13, window_bounds = array<i64: 1, 256, 128>}, {transform_indices = @transform_14, window_bounds = array<i64: 1, 1, 128>}, {transform_indices = @transform_15, window_bounds = array<i64: 1, 128, 128>}, {transform_indices = @transform_16, window_bounds = array<i64: 1, 1, 128>}, {pipeline_mode = #tpu.pipeline_mode<synchronous>, transform_indices = @transform_17, window_bounds = array<i64: 128, 4>}, {pipeline_mode = #tpu.pipeline_mode<synchronous>, transform_indices = @transform_18, window_bounds = array<i64: 128, 4>}, {pipeline_mode = #tpu.pipeline_mode<synchronous>, transform_indices = @transform_19, window_bounds = array<i64: 1, 4>}, {pipeline_mode = #tpu.pipeline_mode<synchronous>, transform_indices = @transform_20, window_bounds = array<i64: 64, 4>}]} {
    %c0 = arith.constant 0 : index
    %c0_0 = arith.constant 0 : index
    %0 = vector.load %arg2[%c0, %c0_0] : memref<64x7xf32, #tpu.memory_space<vmem>>, vector<64x7xf32>
    %c0_1 = arith.constant 0 : index
    %c0_2 = arith.constant 0 : index
    %1 = vector.load %arg3[%c0_1, %c0_2] : memref<7x128xf32, #tpu.memory_space<vmem>>, vector<7x128xf32>
    %cst = arith.constant dense<0.000000e+00> : vector<64x128xf32>
    %2 = tpu.matmul %0, %1, %cst {dimension_numbers = #tpu.dot_dimension_numbers<[1], [0], [0], [1], [0, 0, 1, 1], [], []>} : vector<64x7xf32>, vector<7x128xf32>, vector<64x128xf32> -> vector<64x128xf32>
    %c0_3 = arith.constant 0 : index
    %c0_4 = arith.constant 0 : index
    %3 = vector.load %arg4[%c0_3, %c0_4] : memref<1x128xf32, #tpu.memory_space<vmem>>, vector<1x128xf32>
    %4 = vector.broadcast %3 : vector<1x128xf32> to vector<64x128xf32>
    %5 = arith.addf %2, %4 : vector<64x128xf32>
    %c0_i32 = arith.constant 0 : i32
    %6 = arith.cmpi eq, %arg0, %c0_i32 : i32
    %7 = arith.extui %6 : i1 to i32
    %c0_i32_5 = arith.constant 0 : i32
    %8 = arith.cmpi ne, %7, %c0_i32_5 : i32
    scf.if %8 {
      %c0_180 = arith.constant 0 : index
      %c0_181 = arith.constant 0 : index
      %358 = vector.load %arg1[%c0_180, %c0_181] : memref<64x128xf32, #tpu.memory_space<vmem>>, vector<64x128xf32>
      %c0_182 = arith.constant 0 : index
      %c0_183 = arith.constant 0 : index
      %359 = vector.load %arg22[%c0_182, %c0_183] : memref<64x128xf32, #tpu.memory_space<vmem>>, vector<64x128xf32>
      tpu.vector_store %arg22[%c0_182, %c0_183], %358 {strides = array<i32>} : memref<64x128xf32, #tpu.memory_space<vmem>>, vector<64x128xf32>,
      %c0_184 = arith.constant 0 : index
      %c0_185 = arith.constant 0 : index
      %360 = vector.load %arg23[%c0_184, %c0_185] : memref<64x128xf32, #tpu.memory_space<vmem>>, vector<64x128xf32>
      tpu.vector_store %arg23[%c0_184, %c0_185], %5 {strides = array<i32>} : memref<64x128xf32, #tpu.memory_space<vmem>>, vector<64x128xf32>,
    } else {
    }
    %c0_6 = arith.constant 0 : index
    %c0_7 = arith.constant 0 : index
    %9 = vector.load %arg22[%c0_6, %c0_7] : memref<64x128xf32, #tpu.memory_space<vmem>>, vector<64x128xf32>
    %c0_8 = arith.constant 0 : index
    %c0_9 = arith.constant 0 : index
    %10 = vector.load %arg23[%c0_8, %c0_9] : memref<64x128xf32, #tpu.memory_space<vmem>>, vector<64x128xf32>
    %11 = tpu.transpose %9, [1, 0] : vector<64x128xf32> -> vector<128x64xf32>
    %cst_10 = arith.constant dense<0.000000e+00> : vector<64x64xf32>
    %12 = tpu.matmul %9, %11, %cst_10 {dimension_numbers = #tpu.dot_dimension_numbers<[1], [0], [0], [1], [0, 0, 1, 1], [], []>} : vector<64x128xf32>, vector<128x64xf32>, vector<64x64xf32> -> vector<64x64xf32>
    %13 = arith.mulf %9, %9 : vector<64x128xf32>
    %cst_11 = arith.constant dense<0.000000e+00> : vector<64xf32>
    %14 = vector.multi_reduction <add>, %13, %cst_11 [1] : vector<64x128xf32> to vector<64xf32>
    %15 = vector.shape_cast %14 : vector<64xf32> to vector<64x1xf32>
    %16 = arith.mulf %11, %11 : vector<128x64xf32>
    %cst_12 = arith.constant dense<0.000000e+00> : vector<64xf32>
    %17 = vector.multi_reduction <add>, %16, %cst_12 [0] : vector<128x64xf32> to vector<64xf32>
    %18 = vector.shape_cast %17 : vector<64xf32> to vector<1x64xf32>
    %19 = tpu.iota {dimensions = array<i32: 0>} : vector<64x64xi32>
    %20 = tpu.iota {dimensions = array<i32: 1>} : vector<64x64xi32>
    %21 = arith.sitofp %20 : vector<64x64xi32> to vector<64x64xf32>
    %22 = vector.broadcast %15 : vector<64x1xf32> to vector<64x64xf32>
    %23 = vector.broadcast %18 : vector<1x64xf32> to vector<64x64xf32>
    %24 = arith.addf %22, %23 : vector<64x64xf32>
    %cst_13 = arith.constant 2.000000e+00 : f32
    %25 = vector.broadcast %cst_13 : f32 to vector<64x64xf32>
    %26 = arith.mulf %25, %12 : vector<64x64xf32>
    %27 = arith.subf %24, %26 : vector<64x64xf32>
    %28 = arith.cmpi eq, %19, %20 : vector<64x64xi32>
    %cst_14 = arith.constant 1.000000e+09 : f32
    %29 = vector.broadcast %cst_14 : f32 to vector<64x64xf32>
    %30 = arith.select %28, %29, %27 : vector<64x64xi1>, vector<64x64xf32>
    %cst_15 = arith.constant dense<0x7F800000> : vector<64xf32>
    %31 = vector.multi_reduction <minimumf>, %30, %cst_15 [1] : vector<64x64xf32> to vector<64xf32>
    %32 = vector.shape_cast %31 : vector<64xf32> to vector<64x1xf32>
    %cst_16 = arith.constant 0.000000e+00 : f32
    %33 = vector.broadcast %cst_16 : f32 to vector<64x1xf32>
    %34 = arith.maximumf %32, %33 : vector<64x1xf32>
    %c0_17 = arith.constant 0 : index
    %c0_18 = arith.constant 0 : index
    %35 = vector.load %arg25[%c0_17, %c0_18] : memref<704x1xf32, #tpu.memory_space<vmem>>, vector<64x1xf32>
    tpu.vector_store %arg25[%c0_17, %c0_18], %34 {strides = array<i32>} : memref<704x1xf32, #tpu.memory_space<vmem>>, vector<64x1xf32>,
    %36 = vector.broadcast %32 : vector<64x1xf32> to vector<64x64xf32>
    %37 = arith.cmpf ole, %30, %36 : vector<64x64xf32>
    %cst_19 = arith.constant 6.400000e+01 : f32
    %38 = vector.broadcast %cst_19 : f32 to vector<64x64xf32>
    %39 = arith.select %37, %21, %38 : vector<64x64xi1>, vector<64x64xf32>
    %cst_20 = arith.constant dense<0x7F800000> : vector<64xf32>
    %40 = vector.multi_reduction <minimumf>, %39, %cst_20 [1] : vector<64x64xf32> to vector<64xf32>
    %41 = vector.shape_cast %40 : vector<64xf32> to vector<64x1xf32>
    %42 = vector.broadcast %41 : vector<64x1xf32> to vector<64x64xf32>
    %43 = arith.cmpf oeq, %21, %42 : vector<64x64xf32>
    %44 = arith.extui %43 : vector<64x64xi1> to vector<64x64xi32>
    %45 = arith.sitofp %44 : vector<64x64xi32> to vector<64x64xf32>
    %46 = arith.truncf %45 : vector<64x64xf32> to vector<64x64xbf16>
    %c0_21 = arith.constant 0 : index
    %c0_22 = arith.constant 0 : index
    %47 = vector.load %arg24[%c0_21, %c0_22] : memref<704x64xbf16, #tpu.memory_space<vmem>>, vector<64x64xbf16>
    tpu.vector_store %arg24[%c0_21, %c0_22], %46 {strides = array<i32>} : memref<704x64xbf16, #tpu.memory_space<vmem>>, vector<64x64xbf16>,
    %cst_23 = arith.constant 1.000000e+30 : f32
    %48 = vector.broadcast %cst_23 : f32 to vector<64x64xf32>
    %49 = arith.select %43, %48, %30 : vector<64x64xi1>, vector<64x64xf32>
    %cst_24 = arith.constant dense<0x7F800000> : vector<64xf32>
    %50 = vector.multi_reduction <minimumf>, %49, %cst_24 [1] : vector<64x64xf32> to vector<64xf32>
    %51 = vector.shape_cast %50 : vector<64xf32> to vector<64x1xf32>
    %cst_25 = arith.constant 0.000000e+00 : f32
    %52 = vector.broadcast %cst_25 : f32 to vector<64x1xf32>
    %53 = arith.maximumf %51, %52 : vector<64x1xf32>
    %c64 = arith.constant 64 : index
    %c0_26 = arith.constant 0 : index
    %54 = vector.load %arg25[%c64, %c0_26] : memref<704x1xf32, #tpu.memory_space<vmem>>, vector<64x1xf32>
    tpu.vector_store %arg25[%c64, %c0_26], %53 {strides = array<i32>} : memref<704x1xf32, #tpu.memory_space<vmem>>, vector<64x1xf32>,
    %55 = vector.broadcast %51 : vector<64x1xf32> to vector<64x64xf32>
    %56 = arith.cmpf ole, %49, %55 : vector<64x64xf32>
    %cst_27 = arith.constant 6.400000e+01 : f32
    %57 = vector.broadcast %cst_27 : f32 to vector<64x64xf32>
    %58 = arith.select %56, %21, %57 : vector<64x64xi1>, vector<64x64xf32>
    %cst_28 = arith.constant dense<0x7F800000> : vector<64xf32>
    %59 = vector.multi_reduction <minimumf>, %58, %cst_28 [1] : vector<64x64xf32> to vector<64xf32>
    %60 = vector.shape_cast %59 : vector<64xf32> to vector<64x1xf32>
    %61 = vector.broadcast %60 : vector<64x1xf32> to vector<64x64xf32>
    %62 = arith.cmpf oeq, %21, %61 : vector<64x64xf32>
    %63 = arith.extui %62 : vector<64x64xi1> to vector<64x64xi32>
    %64 = arith.sitofp %63 : vector<64x64xi32> to vector<64x64xf32>
    %65 = arith.truncf %64 : vector<64x64xf32> to vector<64x64xbf16>
    %c64_29 = arith.constant 64 : index
    %c0_30 = arith.constant 0 : index
    %66 = vector.load %arg24[%c64_29, %c0_30] : memref<704x64xbf16, #tpu.memory_space<vmem>>, vector<64x64xbf16>
    tpu.vector_store %arg24[%c64_29, %c0_30], %65 {strides = array<i32>} : memref<704x64xbf16, #tpu.memory_space<vmem>>, vector<64x64xbf16>,
    %cst_31 = arith.constant 1.000000e+30 : f32
    %67 = vector.broadcast %cst_31 : f32 to vector<64x64xf32>
    %68 = arith.select %62, %67, %49 : vector<64x64xi1>, vector<64x64xf32>
    %cst_32 = arith.constant dense<0x7F800000> : vector<64xf32>
    %69 = vector.multi_reduction <minimumf>, %68, %cst_32 [1] : vector<64x64xf32> to vector<64xf32>
    %70 = vector.shape_cast %69 : vector<64xf32> to vector<64x1xf32>
    %cst_33 = arith.constant 0.000000e+00 : f32
    %71 = vector.broadcast %cst_33 : f32 to vector<64x1xf32>
    %72 = arith.maximumf %70, %71 : vector<64x1xf32>
    %c128 = arith.constant 128 : index
    %c0_34 = arith.constant 0 : index
    %73 = vector.load %arg25[%c128, %c0_34] : memref<704x1xf32, #tpu.memory_space<vmem>>, vector<64x1xf32>
    tpu.vector_store %arg25[%c128, %c0_34], %72 {strides = array<i32>} : memref<704x1xf32, #tpu.memory_space<vmem>>, vector<64x1xf32>,
    %74 = vector.broadcast %70 : vector<64x1xf32> to vector<64x64xf32>
    %75 = arith.cmpf ole, %68, %74 : vector<64x64xf32>
    %cst_35 = arith.constant 6.400000e+01 : f32
    %76 = vector.broadcast %cst_35 : f32 to vector<64x64xf32>
    %77 = arith.select %75, %21, %76 : vector<64x64xi1>, vector<64x64xf32>
    %cst_36 = arith.constant dense<0x7F800000> : vector<64xf32>
    %78 = vector.multi_reduction <minimumf>, %77, %cst_36 [1] : vector<64x64xf32> to vector<64xf32>
    %79 = vector.shape_cast %78 : vector<64xf32> to vector<64x1xf32>
    %80 = vector.broadcast %79 : vector<64x1xf32> to vector<64x64xf32>
    %81 = arith.cmpf oeq, %21, %80 : vector<64x64xf32>
    %82 = arith.extui %81 : vector<64x64xi1> to vector<64x64xi32>
    %83 = arith.sitofp %82 : vector<64x64xi32> to vector<64x64xf32>
    %84 = arith.truncf %83 : vector<64x64xf32> to vector<64x64xbf16>
    %c128_37 = arith.constant 128 : index
    %c0_38 = arith.constant 0 : index
    %85 = vector.load %arg24[%c128_37, %c0_38] : memref<704x64xbf16, #tpu.memory_space<vmem>>, vector<64x64xbf16>
    tpu.vector_store %arg24[%c128_37, %c0_38], %84 {strides = array<i32>} : memref<704x64xbf16, #tpu.memory_space<vmem>>, vector<64x64xbf16>,
    %cst_39 = arith.constant 1.000000e+30 : f32
    %86 = vector.broadcast %cst_39 : f32 to vector<64x64xf32>
    %87 = arith.select %81, %86, %68 : vector<64x64xi1>, vector<64x64xf32>
    %cst_40 = arith.constant dense<0x7F800000> : vector<64xf32>
    %88 = vector.multi_reduction <minimumf>, %87, %cst_40 [1] : vector<64x64xf32> to vector<64xf32>
    %89 = vector.shape_cast %88 : vector<64xf32> to vector<64x1xf32>
    %cst_41 = arith.constant 0.000000e+00 : f32
    %90 = vector.broadcast %cst_41 : f32 to vector<64x1xf32>
    %91 = arith.maximumf %89, %90 : vector<64x1xf32>
    %c192 = arith.constant 192 : index
    %c0_42 = arith.constant 0 : index
    %92 = vector.load %arg25[%c192, %c0_42] : memref<704x1xf32, #tpu.memory_space<vmem>>, vector<64x1xf32>
    tpu.vector_store %arg25[%c192, %c0_42], %91 {strides = array<i32>} : memref<704x1xf32, #tpu.memory_space<vmem>>, vector<64x1xf32>,
    %93 = vector.broadcast %89 : vector<64x1xf32> to vector<64x64xf32>
    %94 = arith.cmpf ole, %87, %93 : vector<64x64xf32>
    %cst_43 = arith.constant 6.400000e+01 : f32
    %95 = vector.broadcast %cst_43 : f32 to vector<64x64xf32>
    %96 = arith.select %94, %21, %95 : vector<64x64xi1>, vector<64x64xf32>
    %cst_44 = arith.constant dense<0x7F800000> : vector<64xf32>
    %97 = vector.multi_reduction <minimumf>, %96, %cst_44 [1] : vector<64x64xf32> to vector<64xf32>
    %98 = vector.shape_cast %97 : vector<64xf32> to vector<64x1xf32>
    %99 = vector.broadcast %98 : vector<64x1xf32> to vector<64x64xf32>
    %100 = arith.cmpf oeq, %21, %99 : vector<64x64xf32>
    %101 = arith.extui %100 : vector<64x64xi1> to vector<64x64xi32>
    %102 = arith.sitofp %101 : vector<64x64xi32> to vector<64x64xf32>
    %103 = arith.truncf %102 : vector<64x64xf32> to vector<64x64xbf16>
    %c192_45 = arith.constant 192 : index
    %c0_46 = arith.constant 0 : index
    %104 = vector.load %arg24[%c192_45, %c0_46] : memref<704x64xbf16, #tpu.memory_space<vmem>>, vector<64x64xbf16>
    tpu.vector_store %arg24[%c192_45, %c0_46], %103 {strides = array<i32>} : memref<704x64xbf16, #tpu.memory_space<vmem>>, vector<64x64xbf16>,
    %cst_47 = arith.constant 1.000000e+30 : f32
    %105 = vector.broadcast %cst_47 : f32 to vector<64x64xf32>
    %106 = arith.select %100, %105, %87 : vector<64x64xi1>, vector<64x64xf32>
    %cst_48 = arith.constant dense<0x7F800000> : vector<64xf32>
    %107 = vector.multi_reduction <minimumf>, %106, %cst_48 [1] : vector<64x64xf32> to vector<64xf32>
    %108 = vector.shape_cast %107 : vector<64xf32> to vector<64x1xf32>
    %cst_49 = arith.constant 0.000000e+00 : f32
    %109 = vector.broadcast %cst_49 : f32 to vector<64x1xf32>
    %110 = arith.maximumf %108, %109 : vector<64x1xf32>
    %c256 = arith.constant 256 : index
    %c0_50 = arith.constant 0 : index
    %111 = vector.load %arg25[%c256, %c0_50] : memref<704x1xf32, #tpu.memory_space<vmem>>, vector<64x1xf32>
    tpu.vector_store %arg25[%c256, %c0_50], %110 {strides = array<i32>} : memref<704x1xf32, #tpu.memory_space<vmem>>, vector<64x1xf32>,
    %112 = vector.broadcast %108 : vector<64x1xf32> to vector<64x64xf32>
    %113 = arith.cmpf ole, %106, %112 : vector<64x64xf32>
    %cst_51 = arith.constant 6.400000e+01 : f32
    %114 = vector.broadcast %cst_51 : f32 to vector<64x64xf32>
    %115 = arith.select %113, %21, %114 : vector<64x64xi1>, vector<64x64xf32>
    %cst_52 = arith.constant dense<0x7F800000> : vector<64xf32>
    %116 = vector.multi_reduction <minimumf>, %115, %cst_52 [1] : vector<64x64xf32> to vector<64xf32>
    %117 = vector.shape_cast %116 : vector<64xf32> to vector<64x1xf32>
    %118 = vector.broadcast %117 : vector<64x1xf32> to vector<64x64xf32>
    %119 = arith.cmpf oeq, %21, %118 : vector<64x64xf32>
    %120 = arith.extui %119 : vector<64x64xi1> to vector<64x64xi32>
    %121 = arith.sitofp %120 : vector<64x64xi32> to vector<64x64xf32>
    %122 = arith.truncf %121 : vector<64x64xf32> to vector<64x64xbf16>
    %c256_53 = arith.constant 256 : index
    %c0_54 = arith.constant 0 : index
    %123 = vector.load %arg24[%c256_53, %c0_54] : memref<704x64xbf16, #tpu.memory_space<vmem>>, vector<64x64xbf16>
    tpu.vector_store %arg24[%c256_53, %c0_54], %122 {strides = array<i32>} : memref<704x64xbf16, #tpu.memory_space<vmem>>, vector<64x64xbf16>,
    %cst_55 = arith.constant 1.000000e+30 : f32
    %124 = vector.broadcast %cst_55 : f32 to vector<64x64xf32>
    %125 = arith.select %119, %124, %106 : vector<64x64xi1>, vector<64x64xf32>
    %cst_56 = arith.constant dense<0x7F800000> : vector<64xf32>
    %126 = vector.multi_reduction <minimumf>, %125, %cst_56 [1] : vector<64x64xf32> to vector<64xf32>
    %127 = vector.shape_cast %126 : vector<64xf32> to vector<64x1xf32>
    %cst_57 = arith.constant 0.000000e+00 : f32
    %128 = vector.broadcast %cst_57 : f32 to vector<64x1xf32>
    %129 = arith.maximumf %127, %128 : vector<64x1xf32>
    %c320 = arith.constant 320 : index
    %c0_58 = arith.constant 0 : index
    %130 = vector.load %arg25[%c320, %c0_58] : memref<704x1xf32, #tpu.memory_space<vmem>>, vector<64x1xf32>
    tpu.vector_store %arg25[%c320, %c0_58], %129 {strides = array<i32>} : memref<704x1xf32, #tpu.memory_space<vmem>>, vector<64x1xf32>,
    %131 = vector.broadcast %127 : vector<64x1xf32> to vector<64x64xf32>
    %132 = arith.cmpf ole, %125, %131 : vector<64x64xf32>
    %cst_59 = arith.constant 6.400000e+01 : f32
    %133 = vector.broadcast %cst_59 : f32 to vector<64x64xf32>
    %134 = arith.select %132, %21, %133 : vector<64x64xi1>, vector<64x64xf32>
    %cst_60 = arith.constant dense<0x7F800000> : vector<64xf32>
    %135 = vector.multi_reduction <minimumf>, %134, %cst_60 [1] : vector<64x64xf32> to vector<64xf32>
    %136 = vector.shape_cast %135 : vector<64xf32> to vector<64x1xf32>
    %137 = vector.broadcast %136 : vector<64x1xf32> to vector<64x64xf32>
    %138 = arith.cmpf oeq, %21, %137 : vector<64x64xf32>
    %139 = arith.extui %138 : vector<64x64xi1> to vector<64x64xi32>
    %140 = arith.sitofp %139 : vector<64x64xi32> to vector<64x64xf32>
    %141 = arith.truncf %140 : vector<64x64xf32> to vector<64x64xbf16>
    %c320_61 = arith.constant 320 : index
    %c0_62 = arith.constant 0 : index
    %142 = vector.load %arg24[%c320_61, %c0_62] : memref<704x64xbf16, #tpu.memory_space<vmem>>, vector<64x64xbf16>
    tpu.vector_store %arg24[%c320_61, %c0_62], %141 {strides = array<i32>} : memref<704x64xbf16, #tpu.memory_space<vmem>>, vector<64x64xbf16>,
    %cst_63 = arith.constant 1.000000e+30 : f32
    %143 = vector.broadcast %cst_63 : f32 to vector<64x64xf32>
    %144 = arith.select %138, %143, %125 : vector<64x64xi1>, vector<64x64xf32>
    %cst_64 = arith.constant dense<0x7F800000> : vector<64xf32>
    %145 = vector.multi_reduction <minimumf>, %144, %cst_64 [1] : vector<64x64xf32> to vector<64xf32>
    %146 = vector.shape_cast %145 : vector<64xf32> to vector<64x1xf32>
    %cst_65 = arith.constant 0.000000e+00 : f32
    %147 = vector.broadcast %cst_65 : f32 to vector<64x1xf32>
    %148 = arith.maximumf %146, %147 : vector<64x1xf32>
    %c384 = arith.constant 384 : index
    %c0_66 = arith.constant 0 : index
    %149 = vector.load %arg25[%c384, %c0_66] : memref<704x1xf32, #tpu.memory_space<vmem>>, vector<64x1xf32>
    tpu.vector_store %arg25[%c384, %c0_66], %148 {strides = array<i32>} : memref<704x1xf32, #tpu.memory_space<vmem>>, vector<64x1xf32>,
    %150 = vector.broadcast %146 : vector<64x1xf32> to vector<64x64xf32>
    %151 = arith.cmpf ole, %144, %150 : vector<64x64xf32>
    %cst_67 = arith.constant 6.400000e+01 : f32
    %152 = vector.broadcast %cst_67 : f32 to vector<64x64xf32>
    %153 = arith.select %151, %21, %152 : vector<64x64xi1>, vector<64x64xf32>
    %cst_68 = arith.constant dense<0x7F800000> : vector<64xf32>
    %154 = vector.multi_reduction <minimumf>, %153, %cst_68 [1] : vector<64x64xf32> to vector<64xf32>
    %155 = vector.shape_cast %154 : vector<64xf32> to vector<64x1xf32>
    %156 = vector.broadcast %155 : vector<64x1xf32> to vector<64x64xf32>
    %157 = arith.cmpf oeq, %21, %156 : vector<64x64xf32>
    %158 = arith.extui %157 : vector<64x64xi1> to vector<64x64xi32>
    %159 = arith.sitofp %158 : vector<64x64xi32> to vector<64x64xf32>
    %160 = arith.truncf %159 : vector<64x64xf32> to vector<64x64xbf16>
    %c384_69 = arith.constant 384 : index
    %c0_70 = arith.constant 0 : index
    %161 = vector.load %arg24[%c384_69, %c0_70] : memref<704x64xbf16, #tpu.memory_space<vmem>>, vector<64x64xbf16>
    tpu.vector_store %arg24[%c384_69, %c0_70], %160 {strides = array<i32>} : memref<704x64xbf16, #tpu.memory_space<vmem>>, vector<64x64xbf16>,
    %cst_71 = arith.constant 1.000000e+30 : f32
    %162 = vector.broadcast %cst_71 : f32 to vector<64x64xf32>
    %163 = arith.select %157, %162, %144 : vector<64x64xi1>, vector<64x64xf32>
    %cst_72 = arith.constant dense<0x7F800000> : vector<64xf32>
    %164 = vector.multi_reduction <minimumf>, %163, %cst_72 [1] : vector<64x64xf32> to vector<64xf32>
    %165 = vector.shape_cast %164 : vector<64xf32> to vector<64x1xf32>
    %cst_73 = arith.constant 0.000000e+00 : f32
    %166 = vector.broadcast %cst_73 : f32 to vector<64x1xf32>
    %167 = arith.maximumf %165, %166 : vector<64x1xf32>
    %c448 = arith.constant 448 : index
    %c0_74 = arith.constant 0 : index
    %168 = vector.load %arg25[%c448, %c0_74] : memref<704x1xf32, #tpu.memory_space<vmem>>, vector<64x1xf32>
    tpu.vector_store %arg25[%c448, %c0_74], %167 {strides = array<i32>} : memref<704x1xf32, #tpu.memory_space<vmem>>, vector<64x1xf32>,
    %169 = vector.broadcast %165 : vector<64x1xf32> to vector<64x64xf32>
    %170 = arith.cmpf ole, %163, %169 : vector<64x64xf32>
    %cst_75 = arith.constant 6.400000e+01 : f32
    %171 = vector.broadcast %cst_75 : f32 to vector<64x64xf32>
    %172 = arith.select %170, %21, %171 : vector<64x64xi1>, vector<64x64xf32>
    %cst_76 = arith.constant dense<0x7F800000> : vector<64xf32>
    %173 = vector.multi_reduction <minimumf>, %172, %cst_76 [1] : vector<64x64xf32> to vector<64xf32>
    %174 = vector.shape_cast %173 : vector<64xf32> to vector<64x1xf32>
    %175 = vector.broadcast %174 : vector<64x1xf32> to vector<64x64xf32>
    %176 = arith.cmpf oeq, %21, %175 : vector<64x64xf32>
    %177 = arith.extui %176 : vector<64x64xi1> to vector<64x64xi32>
    %178 = arith.sitofp %177 : vector<64x64xi32> to vector<64x64xf32>
    %179 = arith.truncf %178 : vector<64x64xf32> to vector<64x64xbf16>
    %c448_77 = arith.constant 448 : index
    %c0_78 = arith.constant 0 : index
    %180 = vector.load %arg24[%c448_77, %c0_78] : memref<704x64xbf16, #tpu.memory_space<vmem>>, vector<64x64xbf16>
    tpu.vector_store %arg24[%c448_77, %c0_78], %179 {strides = array<i32>} : memref<704x64xbf16, #tpu.memory_space<vmem>>, vector<64x64xbf16>,
    %cst_79 = arith.constant 1.000000e+30 : f32
    %181 = vector.broadcast %cst_79 : f32 to vector<64x64xf32>
    %182 = arith.select %176, %181, %163 : vector<64x64xi1>, vector<64x64xf32>
    %cst_80 = arith.constant dense<0x7F800000> : vector<64xf32>
    %183 = vector.multi_reduction <minimumf>, %182, %cst_80 [1] : vector<64x64xf32> to vector<64xf32>
    %184 = vector.shape_cast %183 : vector<64xf32> to vector<64x1xf32>
    %cst_81 = arith.constant 0.000000e+00 : f32
    %185 = vector.broadcast %cst_81 : f32 to vector<64x1xf32>
    %186 = arith.maximumf %184, %185 : vector<64x1xf32>
    %c512 = arith.constant 512 : index
    %c0_82 = arith.constant 0 : index
    %187 = vector.load %arg25[%c512, %c0_82] : memref<704x1xf32, #tpu.memory_space<vmem>>, vector<64x1xf32>
    tpu.vector_store %arg25[%c512, %c0_82], %186 {strides = array<i32>} : memref<704x1xf32, #tpu.memory_space<vmem>>, vector<64x1xf32>,
    %188 = vector.broadcast %184 : vector<64x1xf32> to vector<64x64xf32>
    %189 = arith.cmpf ole, %182, %188 : vector<64x64xf32>
    %cst_83 = arith.constant 6.400000e+01 : f32
    %190 = vector.broadcast %cst_83 : f32 to vector<64x64xf32>
    %191 = arith.select %189, %21, %190 : vector<64x64xi1>, vector<64x64xf32>
    %cst_84 = arith.constant dense<0x7F800000> : vector<64xf32>
    %192 = vector.multi_reduction <minimumf>, %191, %cst_84 [1] : vector<64x64xf32> to vector<64xf32>
    %193 = vector.shape_cast %192 : vector<64xf32> to vector<64x1xf32>
    %194 = vector.broadcast %193 : vector<64x1xf32> to vector<64x64xf32>
    %195 = arith.cmpf oeq, %21, %194 : vector<64x64xf32>
    %196 = arith.extui %195 : vector<64x64xi1> to vector<64x64xi32>
    %197 = arith.sitofp %196 : vector<64x64xi32> to vector<64x64xf32>
    %198 = arith.truncf %197 : vector<64x64xf32> to vector<64x64xbf16>
    %c512_85 = arith.constant 512 : index
    %c0_86 = arith.constant 0 : index
    %199 = vector.load %arg24[%c512_85, %c0_86] : memref<704x64xbf16, #tpu.memory_space<vmem>>, vector<64x64xbf16>
    tpu.vector_store %arg24[%c512_85, %c0_86], %198 {strides = array<i32>} : memref<704x64xbf16, #tpu.memory_space<vmem>>, vector<64x64xbf16>,
    %cst_87 = arith.constant 1.000000e+30 : f32
    %200 = vector.broadcast %cst_87 : f32 to vector<64x64xf32>
    %201 = arith.select %195, %200, %182 : vector<64x64xi1>, vector<64x64xf32>
    %cst_88 = arith.constant dense<0x7F800000> : vector<64xf32>
    %202 = vector.multi_reduction <minimumf>, %201, %cst_88 [1] : vector<64x64xf32> to vector<64xf32>
    %203 = vector.shape_cast %202 : vector<64xf32> to vector<64x1xf32>
    %cst_89 = arith.constant 0.000000e+00 : f32
    %204 = vector.broadcast %cst_89 : f32 to vector<64x1xf32>
    %205 = arith.maximumf %203, %204 : vector<64x1xf32>
    %c576 = arith.constant 576 : index
    %c0_90 = arith.constant 0 : index
    %206 = vector.load %arg25[%c576, %c0_90] : memref<704x1xf32, #tpu.memory_space<vmem>>, vector<64x1xf32>
    tpu.vector_store %arg25[%c576, %c0_90], %205 {strides = array<i32>} : memref<704x1xf32, #tpu.memory_space<vmem>>, vector<64x1xf32>,
    %207 = vector.broadcast %203 : vector<64x1xf32> to vector<64x64xf32>
    %208 = arith.cmpf ole, %201, %207 : vector<64x64xf32>
    %cst_91 = arith.constant 6.400000e+01 : f32
    %209 = vector.broadcast %cst_91 : f32 to vector<64x64xf32>
    %210 = arith.select %208, %21, %209 : vector<64x64xi1>, vector<64x64xf32>
    %cst_92 = arith.constant dense<0x7F800000> : vector<64xf32>
    %211 = vector.multi_reduction <minimumf>, %210, %cst_92 [1] : vector<64x64xf32> to vector<64xf32>
    %212 = vector.shape_cast %211 : vector<64xf32> to vector<64x1xf32>
    %213 = vector.broadcast %212 : vector<64x1xf32> to vector<64x64xf32>
    %214 = arith.cmpf oeq, %21, %213 : vector<64x64xf32>
    %215 = arith.extui %214 : vector<64x64xi1> to vector<64x64xi32>
    %216 = arith.sitofp %215 : vector<64x64xi32> to vector<64x64xf32>
    %217 = arith.truncf %216 : vector<64x64xf32> to vector<64x64xbf16>
    %c576_93 = arith.constant 576 : index
    %c0_94 = arith.constant 0 : index
    %218 = vector.load %arg24[%c576_93, %c0_94] : memref<704x64xbf16, #tpu.memory_space<vmem>>, vector<64x64xbf16>
    tpu.vector_store %arg24[%c576_93, %c0_94], %217 {strides = array<i32>} : memref<704x64xbf16, #tpu.memory_space<vmem>>, vector<64x64xbf16>,
    %cst_95 = arith.constant 1.000000e+30 : f32
    %219 = vector.broadcast %cst_95 : f32 to vector<64x64xf32>
    %220 = arith.select %214, %219, %201 : vector<64x64xi1>, vector<64x64xf32>
    %cst_96 = arith.constant dense<0x7F800000> : vector<64xf32>
    %221 = vector.multi_reduction <minimumf>, %220, %cst_96 [1] : vector<64x64xf32> to vector<64xf32>
    %222 = vector.shape_cast %221 : vector<64xf32> to vector<64x1xf32>
    %cst_97 = arith.constant 0.000000e+00 : f32
    %223 = vector.broadcast %cst_97 : f32 to vector<64x1xf32>
    %224 = arith.maximumf %222, %223 : vector<64x1xf32>
    %c640 = arith.constant 640 : index
    %c0_98 = arith.constant 0 : index
    %225 = vector.load %arg25[%c640, %c0_98] : memref<704x1xf32, #tpu.memory_space<vmem>>, vector<64x1xf32>
    tpu.vector_store %arg25[%c640, %c0_98], %224 {strides = array<i32>} : memref<704x1xf32, #tpu.memory_space<vmem>>, vector<64x1xf32>,
    %226 = vector.broadcast %222 : vector<64x1xf32> to vector<64x64xf32>
    %227 = arith.cmpf ole, %220, %226 : vector<64x64xf32>
    %cst_99 = arith.constant 6.400000e+01 : f32
    %228 = vector.broadcast %cst_99 : f32 to vector<64x64xf32>
    %229 = arith.select %227, %21, %228 : vector<64x64xi1>, vector<64x64xf32>
    %cst_100 = arith.constant dense<0x7F800000> : vector<64xf32>
    %230 = vector.multi_reduction <minimumf>, %229, %cst_100 [1] : vector<64x64xf32> to vector<64xf32>
    %231 = vector.shape_cast %230 : vector<64xf32> to vector<64x1xf32>
    %232 = vector.broadcast %231 : vector<64x1xf32> to vector<64x64xf32>
    %233 = arith.cmpf oeq, %21, %232 : vector<64x64xf32>
    %234 = arith.extui %233 : vector<64x64xi1> to vector<64x64xi32>
    %235 = arith.sitofp %234 : vector<64x64xi32> to vector<64x64xf32>
    %236 = arith.truncf %235 : vector<64x64xf32> to vector<64x64xbf16>
    %c640_101 = arith.constant 640 : index
    %c0_102 = arith.constant 0 : index
    %237 = vector.load %arg24[%c640_101, %c0_102] : memref<704x64xbf16, #tpu.memory_space<vmem>>, vector<64x64xbf16>
    tpu.vector_store %arg24[%c640_101, %c0_102], %236 {strides = array<i32>} : memref<704x64xbf16, #tpu.memory_space<vmem>>, vector<64x64xbf16>,
    %c0_103 = arith.constant 0 : index
    %c0_104 = arith.constant 0 : index
    %238 = vector.load %arg24[%c0_103, %c0_104] : memref<704x64xbf16, #tpu.memory_space<vmem>>, vector<704x64xbf16>
    %c0_105 = arith.constant 0 : index
    %c0_106 = arith.constant 0 : index
    %239 = vector.load %arg25[%c0_105, %c0_106] : memref<704x1xf32, #tpu.memory_space<vmem>>, vector<704x1xf32>
    %c0_107 = arith.constant 0 : index
    %c0_108 = arith.constant 0 : index
    %c0_109 = arith.constant 0 : index
    %240 = vector.load %arg6[%c0_107, %c0_108, %c0_109] : memref<1x128x128xbf16, #tpu.memory_space<vmem>>, vector<1x128x128xbf16>
    %241 = vector.shape_cast %240 : vector<1x128x128xbf16> to vector<128x128xbf16>
    %242 = arith.truncf %10 : vector<64x128xf32> to vector<64x128xbf16>
    %cst_110 = arith.constant dense<0.000000e+00> : vector<64x128xf32>
    %243 = tpu.matmul %242, %241, %cst_110 {dimension_numbers = #tpu.dot_dimension_numbers<[1], [0], [0], [1], [0, 0, 1, 1], [], []>} : vector<64x128xbf16>, vector<128x128xbf16>, vector<64x128xf32> -> vector<64x128xf32>
    %c0_111 = arith.constant 0 : index
    %c0_112 = arith.constant 0 : index
    %c0_113 = arith.constant 0 : index
    %244 = vector.load %arg7[%c0_111, %c0_112, %c0_113] : memref<1x128x128xbf16, #tpu.memory_space<vmem>>, vector<1x128x128xbf16>
    %245 = vector.shape_cast %244 : vector<1x128x128xbf16> to vector<128x128xbf16>
    %246 = arith.truncf %10 : vector<64x128xf32> to vector<64x128xbf16>
    %cst_114 = arith.constant dense<0.000000e+00> : vector<64x128xf32>
    %247 = tpu.matmul %246, %245, %cst_114 {dimension_numbers = #tpu.dot_dimension_numbers<[1], [0], [0], [1], [0, 0, 1, 1], [], []>} : vector<64x128xbf16>, vector<128x128xbf16>, vector<64x128xf32> -> vector<64x128xf32>
    %c0_115 = arith.constant 0 : index
    %c0_116 = arith.constant 0 : index
    %c0_117 = arith.constant 0 : index
    %248 = vector.load %arg8[%c0_115, %c0_116, %c0_117] : memref<1x1x128xf32, #tpu.memory_space<vmem>>, vector<1x1x128xf32>
    %249 = vector.shape_cast %248 : vector<1x1x128xf32> to vector<1x128xf32>
    %250 = vector.broadcast %249 : vector<1x128xf32> to vector<64x128xf32>
    %251 = arith.addf %247, %250 : vector<64x128xf32>
    %252 = arith.truncf %243 : vector<64x128xf32> to vector<64x128xbf16>
    %cst_118 = arith.constant dense<0.000000e+00> : vector<704x128xf32>
    %253 = tpu.matmul %238, %252, %cst_118 {dimension_numbers = #tpu.dot_dimension_numbers<[1], [0], [0], [1], [0, 0, 1, 1], [], []>} : vector<704x64xbf16>, vector<64x128xbf16>, vector<704x128xf32> -> vector<704x128xf32>
    %c0_119 = arith.constant 0 : index
    %c0_120 = arith.constant 0 : index
    %c0_121 = arith.constant 0 : index
    %254 = vector.load %arg5[%c0_119, %c0_120, %c0_121] : memref<1x1x128xf32, #tpu.memory_space<vmem>>, vector<1x1x128xf32>
    %255 = vector.shape_cast %254 : vector<1x1x128xf32> to vector<1x128xf32>
    %256 = vector.broadcast %239 : vector<704x1xf32> to vector<704x128xf32>
    %257 = vector.broadcast %255 : vector<1x128xf32> to vector<704x128xf32>
    %258 = arith.mulf %256, %257 : vector<704x128xf32>
    %259 = arith.addf %258, %253 : vector<704x128xf32>
    %260 = tpu.concatenate %251, %251, %251, %251, %251, %251, %251, %251, %251, %251, %251 in 0 : vector<64x128xf32>, vector<64x128xf32>, vector<64x128xf32>, vector<64x128xf32>, vector<64x128xf32>, vector<64x128xf32>, vector<64x128xf32>, vector<64x128xf32>, vector<64x128xf32>, vector<64x128xf32>, vector<64x128xf32> -> vector<704x128xf32>
    %261 = arith.addf %259, %260 : vector<704x128xf32>
    %262 = arith.negf %261 : vector<704x128xf32>
    %263 = math.exp %262 : vector<704x128xf32>
    %cst_122 = arith.constant 1.000000e+00 : f32
    %264 = vector.broadcast %cst_122 : f32 to vector<704x128xf32>
    %265 = arith.addf %264, %263 : vector<704x128xf32>
    %266 = arith.divf %264, %265 : vector<704x128xf32>
    %267 = arith.mulf %261, %266 : vector<704x128xf32>
    %c0_123 = arith.constant 0 : index
    %c0_124 = arith.constant 0 : index
    %c0_125 = arith.constant 0 : index
    %268 = vector.load %arg9[%c0_123, %c0_124, %c0_125] : memref<1x128x128xbf16, #tpu.memory_space<vmem>>, vector<1x128x128xbf16>
    %269 = vector.shape_cast %268 : vector<1x128x128xbf16> to vector<128x128xbf16>
    %270 = arith.truncf %267 : vector<704x128xf32> to vector<704x128xbf16>
    %cst_126 = arith.constant dense<0.000000e+00> : vector<704x128xf32>
    %271 = tpu.matmul %270, %269, %cst_126 {dimension_numbers = #tpu.dot_dimension_numbers<[1], [0], [0], [1], [0, 0, 1, 1], [], []>} : vector<704x128xbf16>, vector<128x128xbf16>, vector<704x128xf32> -> vector<704x128xf32>
    %c0_127 = arith.constant 0 : index
    %c0_128 = arith.constant 0 : index
    %c0_129 = arith.constant 0 : index
    %272 = vector.load %arg10[%c0_127, %c0_128, %c0_129] : memref<1x1x128xf32, #tpu.memory_space<vmem>>, vector<1x1x128xf32>
    %273 = vector.shape_cast %272 : vector<1x1x128xf32> to vector<1x128xf32>
    %274 = vector.broadcast %273 : vector<1x128xf32> to vector<704x128xf32>
    %275 = arith.addf %271, %274 : vector<704x128xf32>
    %276 = arith.negf %275 : vector<704x128xf32>
    %277 = math.exp %276 : vector<704x128xf32>
    %cst_130 = arith.constant 1.000000e+00 : f32
    %278 = vector.broadcast %cst_130 : f32 to vector<704x128xf32>
    %279 = arith.addf %278, %277 : vector<704x128xf32>
    %280 = arith.divf %278, %279 : vector<704x128xf32>
    %281 = arith.mulf %275, %280 : vector<704x128xf32>
    %282 = arith.extf %238 : vector<704x64xbf16> to vector<704x64xf32>
    %cst_131 = arith.constant dense<0.000000e+00> : vector<704x128xf32>
    %283 = tpu.matmul %282, %9, %cst_131 {dimension_numbers = #tpu.dot_dimension_numbers<[1], [0], [0], [1], [0, 0, 1, 1], [], []>} : vector<704x64xf32>, vector<64x128xf32>, vector<704x128xf32> -> vector<704x128xf32>
    %284 = tpu.concatenate %9, %9, %9, %9, %9, %9, %9, %9, %9, %9, %9 in 0 : vector<64x128xf32>, vector<64x128xf32>, vector<64x128xf32>, vector<64x128xf32>, vector<64x128xf32>, vector<64x128xf32>, vector<64x128xf32>, vector<64x128xf32>, vector<64x128xf32>, vector<64x128xf32>, vector<64x128xf32> -> vector<704x128xf32>
    %285 = arith.subf %283, %284 : vector<704x128xf32>
    %c0_132 = arith.constant 0 : index
    %c0_133 = arith.constant 0 : index
    %c0_134 = arith.constant 0 : index
    %286 = vector.load %arg11[%c0_132, %c0_133, %c0_134] : memref<1x128x128xbf16, #tpu.memory_space<vmem>>, vector<1x128x128xbf16>
    %287 = vector.shape_cast %286 : vector<1x128x128xbf16> to vector<128x128xbf16>
    %288 = arith.truncf %281 : vector<704x128xf32> to vector<704x128xbf16>
    %cst_135 = arith.constant dense<0.000000e+00> : vector<704x128xf32>
    %289 = tpu.matmul %288, %287, %cst_135 {dimension_numbers = #tpu.dot_dimension_numbers<[1], [0], [0], [1], [0, 0, 1, 1], [], []>} : vector<704x128xbf16>, vector<128x128xbf16>, vector<704x128xf32> -> vector<704x128xf32>
    %c0_136 = arith.constant 0 : index
    %c0_137 = arith.constant 0 : index
    %c0_138 = arith.constant 0 : index
    %290 = vector.load %arg12[%c0_136, %c0_137, %c0_138] : memref<1x1x128xf32, #tpu.memory_space<vmem>>, vector<1x1x128xf32>
    %291 = vector.shape_cast %290 : vector<1x1x128xf32> to vector<1x128xf32>
    %292 = vector.broadcast %291 : vector<1x128xf32> to vector<704x128xf32>
    %293 = arith.addf %289, %292 : vector<704x128xf32>
    %294 = arith.negf %293 : vector<704x128xf32>
    %295 = math.exp %294 : vector<704x128xf32>
    %cst_139 = arith.constant 1.000000e+00 : f32
    %296 = vector.broadcast %cst_139 : f32 to vector<704x128xf32>
    %297 = arith.addf %296, %295 : vector<704x128xf32>
    %298 = arith.divf %296, %297 : vector<704x128xf32>
    %299 = arith.mulf %293, %298 : vector<704x128xf32>
    %c0_140 = arith.constant 0 : index
    %c0_141 = arith.constant 0 : index
    %c0_142 = arith.constant 0 : index
    %300 = vector.load %arg13[%c0_140, %c0_141, %c0_142] : memref<1x1x128xf32, #tpu.memory_space<vmem>>, vector<1x1x128xf32>
    %301 = vector.shape_cast %300 : vector<1x1x128xf32> to vector<1x128xf32>
    %302 = vector.broadcast %301 : vector<1x128xf32> to vector<704x128xf32>
    %303 = arith.mulf %299, %302 : vector<704x128xf32>
    %cst_143 = arith.constant dense<0.000000e+00> : vector<704xf32>
    %304 = vector.multi_reduction <add>, %303, %cst_143 [1] : vector<704x128xf32> to vector<704xf32>
    %305 = vector.shape_cast %304 : vector<704xf32> to vector<704x1xf32>
    %306 = vector.broadcast %305 : vector<704x1xf32> to vector<704x128xf32>
    %307 = arith.mulf %285, %306 : vector<704x128xf32>
    %cst_144 = arith.constant -1.000000e+03 : f32
    %cst_145 = arith.constant 1.000000e+03 : f32
    %308 = vector.broadcast %cst_144 : f32 to vector<704x128xf32>
    %309 = arith.maximumf %308, %307 : vector<704x128xf32>
    %310 = vector.broadcast %cst_145 : f32 to vector<704x128xf32>
    %311 = arith.minimumf %310, %309 : vector<704x128xf32>
    %312 = vector.shape_cast %311 : vector<704x128xf32> to vector<11x64x128xf32>
    %cst_146 = arith.constant dense<0.000000e+00> : vector<64x128xf32>
    %313 = vector.multi_reduction <add>, %312, %cst_146 [0] : vector<11x64x128xf32> to vector<64x128xf32>
    %cst_147 = arith.constant 0.0909090936 : f32
    %314 = vector.broadcast %cst_147 : f32 to vector<64x128xf32>
    %315 = arith.mulf %313, %314 : vector<64x128xf32>
    %316 = vector.shape_cast %281 : vector<704x128xf32> to vector<11x64x128xf32>
    %cst_148 = arith.constant dense<0.000000e+00> : vector<64x128xf32>
    %317 = vector.multi_reduction <add>, %316, %cst_148 [0] : vector<11x64x128xf32> to vector<64x128xf32>
    %cst_149 = arith.constant -1.000000e+03 : f32
    %cst_150 = arith.constant 1.000000e+03 : f32
    %318 = vector.broadcast %cst_149 : f32 to vector<64x128xf32>
    %319 = arith.maximumf %318, %9 : vector<64x128xf32>
    %320 = vector.broadcast %cst_150 : f32 to vector<64x128xf32>
    %321 = arith.minimumf %320, %319 : vector<64x128xf32>
    %322 = arith.addf %321, %315 : vector<64x128xf32>
    %323 = tpu.concatenate %10, %317 in 1 : vector<64x128xf32>, vector<64x128xf32> -> vector<64x256xf32>
    %c0_151 = arith.constant 0 : index
    %c0_152 = arith.constant 0 : index
    %c0_153 = arith.constant 0 : index
    %324 = vector.load %arg14[%c0_151, %c0_152, %c0_153] : memref<1x256x128xbf16, #tpu.memory_space<vmem>>, vector<1x256x128xbf16>
    %325 = vector.shape_cast %324 : vector<1x256x128xbf16> to vector<256x128xbf16>
    %326 = arith.truncf %323 : vector<64x256xf32> to vector<64x256xbf16>
    %cst_154 = arith.constant dense<0.000000e+00> : vector<64x128xf32>
    %327 = tpu.matmul %326, %325, %cst_154 {dimension_numbers = #tpu.dot_dimension_numbers<[1], [0], [0], [1], [0, 0, 1, 1], [], []>} : vector<64x256xbf16>, vector<256x128xbf16>, vector<64x128xf32> -> vector<64x128xf32>
    %c0_155 = arith.constant 0 : index
    %c0_156 = arith.constant 0 : index
    %c0_157 = arith.constant 0 : index
    %328 = vector.load %arg15[%c0_155, %c0_156, %c0_157] : memref<1x1x128xf32, #tpu.memory_space<vmem>>, vector<1x1x128xf32>
    %329 = vector.shape_cast %328 : vector<1x1x128xf32> to vector<1x128xf32>
    %330 = vector.broadcast %329 : vector<1x128xf32> to vector<64x128xf32>
    %331 = arith.addf %327, %330 : vector<64x128xf32>
    %332 = arith.negf %331 : vector<64x128xf32>
    %333 = math.exp %332 : vector<64x128xf32>
    %cst_158 = arith.constant 1.000000e+00 : f32
    %334 = vector.broadcast %cst_158 : f32 to vector<64x128xf32>
    %335 = arith.addf %334, %333 : vector<64x128xf32>
    %336 = arith.divf %334, %335 : vector<64x128xf32>
    %337 = arith.mulf %331, %336 : vector<64x128xf32>
    %c0_159 = arith.constant 0 : index
    %c0_160 = arith.constant 0 : index
    %c0_161 = arith.constant 0 : index
    %338 = vector.load %arg16[%c0_159, %c0_160, %c0_161] : memref<1x128x128xbf16, #tpu.memory_space<vmem>>, vector<1x128x128xbf16>
    %339 = vector.shape_cast %338 : vector<1x128x128xbf16> to vector<128x128xbf16>
    %340 = arith.truncf %337 : vector<64x128xf32> to vector<64x128xbf16>
    %cst_162 = arith.constant dense<0.000000e+00> : vector<64x128xf32>
    %341 = tpu.matmul %340, %339, %cst_162 {dimension_numbers = #tpu.dot_dimension_numbers<[1], [0], [0], [1], [0, 0, 1, 1], [], []>} : vector<64x128xbf16>, vector<128x128xbf16>, vector<64x128xf32> -> vector<64x128xf32>
    %342 = arith.addf %10, %341 : vector<64x128xf32>
    %c0_163 = arith.constant 0 : index
    %c0_164 = arith.constant 0 : index
    %c0_165 = arith.constant 0 : index
    %343 = vector.load %arg17[%c0_163, %c0_164, %c0_165] : memref<1x1x128xf32, #tpu.memory_space<vmem>>, vector<1x1x128xf32>
    %344 = vector.shape_cast %343 : vector<1x1x128xf32> to vector<1x128xf32>
    %345 = vector.broadcast %344 : vector<1x128xf32> to vector<64x128xf32>
    %346 = arith.addf %342, %345 : vector<64x128xf32>
    %c0_166 = arith.constant 0 : index
    %c0_167 = arith.constant 0 : index
    %347 = vector.load %arg22[%c0_166, %c0_167] : memref<64x128xf32, #tpu.memory_space<vmem>>, vector<64x128xf32>
    tpu.vector_store %arg22[%c0_166, %c0_167], %322 {strides = array<i32>} : memref<64x128xf32, #tpu.memory_space<vmem>>, vector<64x128xf32>,
    %c0_168 = arith.constant 0 : index
    %c0_169 = arith.constant 0 : index
    %348 = vector.load %arg23[%c0_168, %c0_169] : memref<64x128xf32, #tpu.memory_space<vmem>>, vector<64x128xf32>
    tpu.vector_store %arg23[%c0_168, %c0_169], %346 {strides = array<i32>} : memref<64x128xf32, #tpu.memory_space<vmem>>, vector<64x128xf32>,
    %c0_170 = arith.constant 0 : index
    %c0_171 = arith.constant 0 : index
    %349 = vector.load %arg18[%c0_170, %c0_171] : memref<128x4xf32, #tpu.memory_space<vmem>>, vector<128x4xf32>
    %cst_172 = arith.constant dense<0.000000e+00> : vector<64x4xf32>
    %350 = tpu.matmul %346, %349, %cst_172 {dimension_numbers = #tpu.dot_dimension_numbers<[1], [0], [0], [1], [0, 0, 1, 1], [], []>} : vector<64x128xf32>, vector<128x4xf32>, vector<64x4xf32> -> vector<64x4xf32>
    %c0_173 = arith.constant 0 : index
    %c0_174 = arith.constant 0 : index
    %351 = vector.load %arg19[%c0_173, %c0_174] : memref<128x4xf32, #tpu.memory_space<vmem>>, vector<128x4xf32>
    %cst_175 = arith.constant dense<0.000000e+00> : vector<64x4xf32>
    %352 = tpu.matmul %322, %351, %cst_175 {dimension_numbers = #tpu.dot_dimension_numbers<[1], [0], [0], [1], [0, 0, 1, 1], [], []>} : vector<64x128xf32>, vector<128x4xf32>, vector<64x4xf32> -> vector<64x4xf32>
    %353 = arith.addf %350, %352 : vector<64x4xf32>
    %c0_176 = arith.constant 0 : index
    %c0_177 = arith.constant 0 : index
    %354 = vector.load %arg20[%c0_176, %c0_177] : memref<1x4xf32, #tpu.memory_space<vmem>>, vector<1x4xf32>
    %355 = vector.broadcast %354 : vector<1x4xf32> to vector<64x4xf32>
    %356 = arith.addf %353, %355 : vector<64x4xf32>
    %c0_178 = arith.constant 0 : index
    %c0_179 = arith.constant 0 : index
    %357 = vector.load %arg21[%c0_178, %c0_179] : memref<64x4xf32, #tpu.memory_space<vmem>>, vector<64x4xf32>
    tpu.vector_store %arg21[%c0_178, %c0_179], %356 {strides = array<i32>} : memref<64x4xf32, #tpu.memory_space<vmem>>, vector<64x4xf32>,
    return
  }
  func.func @transform_0(%arg0: i32) -> (i32, i32) {
    %c0_i32 = arith.constant 0 : i32
    %c0_i32_0 = arith.constant 0 : i32
    %c0_i32_1 = arith.constant 0 : i32
    return %c0_i32, %c0_i32_0 : i32, i32
  }
  func.func @transform_1(%arg0: i32) -> (i32, i32) {
    %c0_i32 = arith.constant 0 : i32
    %c0_i32_0 = arith.constant 0 : i32
    %c0_i32_1 = arith.constant 0 : i32
    return %c0_i32, %c0_i32_0 : i32, i32
  }
  func.func @transform_2(%arg0: i32) -> (i32, i32) {
    %c0_i32 = arith.constant 0 : i32
    %c0_i32_0 = arith.constant 0 : i32
    %c0_i32_1 = arith.constant 0 : i32
    return %c0_i32, %c0_i32_0 : i32, i32
  }
  func.func @transform_3(%arg0: i32) -> (i32, i32) {
    %c0_i32 = arith.constant 0 : i32
    %c0_i32_0 = arith.constant 0 : i32
    %c0_i32_1 = arith.constant 0 : i32
    return %c0_i32, %c0_i32_0 : i32, i32
  }
  func.func @transform_4(%arg0: i32) -> (i32, i32, i32) {
    %c0_i32 = arith.constant 0 : i32
    %c0_i32_0 = arith.constant 0 : i32
    %c0_i32_1 = arith.constant 0 : i32
    return %arg0, %c0_i32, %c0_i32_0 : i32, i32, i32
  }
  func.func @transform_5(%arg0: i32) -> (i32, i32, i32) {
    %c0_i32 = arith.constant 0 : i32
    %c0_i32_0 = arith.constant 0 : i32
    %c0_i32_1 = arith.constant 0 : i32
    return %arg0, %c0_i32, %c0_i32_0 : i32, i32, i32
  }
  func.func @transform_6(%arg0: i32) -> (i32, i32, i32) {
    %c0_i32 = arith.constant 0 : i32
    %c0_i32_0 = arith.constant 0 : i32
    %c0_i32_1 = arith.constant 0 : i32
    return %arg0, %c0_i32, %c0_i32_0 : i32, i32, i32
  }
  func.func @transform_7(%arg0: i32) -> (i32, i32, i32) {
    %c0_i32 = arith.constant 0 : i32
    %c0_i32_0 = arith.constant 0 : i32
    %c0_i32_1 = arith.constant 0 : i32
    return %arg0, %c0_i32, %c0_i32_0 : i32, i32, i32
  }
  func.func @transform_8(%arg0: i32) -> (i32, i32, i32) {
    %c0_i32 = arith.constant 0 : i32
    %c0_i32_0 = arith.constant 0 : i32
    %c0_i32_1 = arith.constant 0 : i32
    return %arg0, %c0_i32, %c0_i32_0 : i32, i32, i32
  }
  func.func @transform_9(%arg0: i32) -> (i32, i32, i32) {
    %c0_i32 = arith.constant 0 : i32
    %c0_i32_0 = arith.constant 0 : i32
    %c0_i32_1 = arith.constant 0 : i32
    return %arg0, %c0_i32, %c0_i32_0 : i32, i32, i32
  }
  func.func @transform_10(%arg0: i32) -> (i32, i32, i32) {
    %c0_i32 = arith.constant 0 : i32
    %c0_i32_0 = arith.constant 0 : i32
    %c0_i32_1 = arith.constant 0 : i32
    return %arg0, %c0_i32, %c0_i32_0 : i32, i32, i32
  }
  func.func @transform_11(%arg0: i32) -> (i32, i32, i32) {
    %c0_i32 = arith.constant 0 : i32
    %c0_i32_0 = arith.constant 0 : i32
    %c0_i32_1 = arith.constant 0 : i32
    return %arg0, %c0_i32, %c0_i32_0 : i32, i32, i32
  }
  func.func @transform_12(%arg0: i32) -> (i32, i32, i32) {
    %c0_i32 = arith.constant 0 : i32
    %c0_i32_0 = arith.constant 0 : i32
    %c0_i32_1 = arith.constant 0 : i32
    return %arg0, %c0_i32, %c0_i32_0 : i32, i32, i32
  }
  func.func @transform_13(%arg0: i32) -> (i32, i32, i32) {
    %c0_i32 = arith.constant 0 : i32
    %c0_i32_0 = arith.constant 0 : i32
    %c0_i32_1 = arith.constant 0 : i32
    return %arg0, %c0_i32, %c0_i32_0 : i32, i32, i32
  }
  func.func @transform_14(%arg0: i32) -> (i32, i32, i32) {
    %c0_i32 = arith.constant 0 : i32
    %c0_i32_0 = arith.constant 0 : i32
    %c0_i32_1 = arith.constant 0 : i32
    return %arg0, %c0_i32, %c0_i32_0 : i32, i32, i32
  }
  func.func @transform_15(%arg0: i32) -> (i32, i32, i32) {
    %c0_i32 = arith.constant 0 : i32
    %c0_i32_0 = arith.constant 0 : i32
    %c0_i32_1 = arith.constant 0 : i32
    return %arg0, %c0_i32, %c0_i32_0 : i32, i32, i32
  }
  func.func @transform_16(%arg0: i32) -> (i32, i32, i32) {
    %c0_i32 = arith.constant 0 : i32
    %c0_i32_0 = arith.constant 0 : i32
    %c0_i32_1 = arith.constant 0 : i32
    return %arg0, %c0_i32, %c0_i32_0 : i32, i32, i32
  }
  func.func @transform_17(%arg0: i32) -> (i32, i32) {
    %c0_i32 = arith.constant 0 : i32
    %c0_i32_0 = arith.constant 0 : i32
    %c0_i32_1 = arith.constant 0 : i32
    return %c0_i32, %c0_i32_0 : i32, i32
  }
  func.func @transform_18(%arg0: i32) -> (i32, i32) {
    %c0_i32 = arith.constant 0 : i32
    %c0_i32_0 = arith.constant 0 : i32
    %c0_i32_1 = arith.constant 0 : i32
    return %c0_i32, %c0_i32_0 : i32, i32
  }
  func.func @transform_19(%arg0: i32) -> (i32, i32) {
    %c0_i32 = arith.constant 0 : i32
    %c0_i32_0 = arith.constant 0 : i32
    %c0_i32_1 = arith.constant 0 : i32
    return %c0_i32, %c0_i32_0 : i32, i32
  }
  func.func @transform_20(%arg0: i32) -> (i32, i32) {
    %c0_i32 = arith.constant 0 : i32
    %c0_i32_0 = arith.constant 0 : i32
    %c0_i32_1 = arith.constant 0 : i32
    return %c0_i32, %c0_i32_0 : i32, i32
  }
}

</mosaic_0001>

<llo_original>
// kernel: egnn_forward.1
$region0: #{egnn_forward.1}
  #allocation0 [shape = 'u32[]', space=smem, size = 0x4, offset = 0x4, fixed_abs, tag = 'smem constant byte address 0x4 - core index']
  #allocation1 [shape = 'u32[144,128]{1,0:T(1,128)}', space=vmem, size = 0x12000, scoped, tag = 'internal scratch']
  #allocation2 [shape = 'f32[64,128]{1,0:T(8,128)}', space=vmem, size = 0x8000, scoped, tag = 'scratch operand']
  #allocation3 [shape = 'f32[64,128]{1,0:T(8,128)}', space=vmem, size = 0x8000, scoped, tag = 'scratch operand']
  #allocation4 [shape = 'bf16[704,64]{1,0:T(8,128)(2,1)}', space=vmem, size = 0x2c000, scoped, tag = 'scratch operand']
  #allocation5 [shape = 'f32[704,1]{1,0:T(8,128)}', space=vmem, size = 0x58000, scoped, tag = 'scratch operand']
  %s0 = inlined_call_operand.vmem [shape: f32[64,128], index: 0, kind: input, shape index: {}]
  %s1 = inlined_call_operand.vmem [shape: f32[64,7], index: 1, kind: input, shape index: {}]
  %s2 = inlined_call_operand.vmem [shape: f32[7,128], index: 2, kind: input, shape index: {}]
  %s3 = inlined_call_operand.vmem [shape: f32[1,128], index: 3, kind: input, shape index: {}]
  %s4 = inlined_call_operand.vmem [shape: f32[7,1,128], index: 4, kind: input, shape index: {}]
  %s5 = inlined_call_operand.vmem [shape: bf16[7,128,128], index: 5, kind: input, shape index: {}]
  %s6 = inlined_call_operand.hbm [shape: bf16[7,128,128], index: 6, kind: input, shape index: {}]
  %s7 = inlined_call_operand.vmem [shape: f32[7,1,128], index: 7, kind: input, shape index: {}]
  %s8 = inlined_call_operand.hbm [shape: bf16[7,128,128], index: 8, kind: input, shape index: {}]
  %s9 = inlined_call_operand.vmem [shape: f32[7,1,128], index: 9, kind: input, shape index: {}]
  %s10 = inlined_call_operand.hbm [shape: bf16[7,128,128], index: 10, kind: input, shape index: {}]
  %s11 = inlined_call_operand.vmem [shape: f32[7,1,128], index: 11, kind: input, shape index: {}]
  %s12 = inlined_call_operand.vmem [shape: f32[7,1,128], index: 12, kind: input, shape index: {}]
  %s13 = inlined_call_operand.hbm [shape: bf16[7,256,128], index: 13, kind: input, shape index: {}]
  %s14 = inlined_call_operand.vmem [shape: f32[7,1,128], index: 14, kind: input, shape index: {}]
  %s15 = inlined_call_operand.hbm [shape: bf16[7,128,128], index: 15, kind: input, shape index: {}]
  %s16 = inlined_call_operand.vmem [shape: f32[7,1,128], index: 16, kind: input, shape index: {}]
  %s17 = inlined_call_operand.vmem [shape: f32[128,4], index: 17, kind: input, shape index: {}]
  %s18 = inlined_call_operand.vmem [shape: f32[128,4], index: 18, kind: input, shape index: {}]
  %s19 = inlined_call_operand.vmem [shape: f32[1,4], index: 19, kind: input, shape index: {}]
  %s20 = inlined_call_operand.vmem [shape: f32[64,4], index: 20, kind: output, shape index: {}]
  %s21 = sld [smem:[#allocation0]]
  $region137: #{egnn_forward.1} parent=0
    _
  %s23 = ssub.s32 1, %s21
  %s24 = scalar_select 0, %s23, %s21
  $region1: #{egnn_forward.1} parent=0
    #allocation6 [shape = 'u8[65536]{0}', space=vmem, size = 0x10000, scoped, tag = 'input window, operand 6']
    #allocation7 [shape = 's32[2]{0}', space=sflag, size = 0x8, scoped, tag = 'scoped memory for egnn_forward.1']
    #allocation8 [shape = 'u8[65536]{0}', space=vmem, size = 0x10000, scoped, tag = 'input window, operand 8']
    #allocation9 [shape = 's32[2]{0}', space=sflag, size = 0x8, scoped, tag = 'scoped memory for egnn_forward.1']
    #allocation10 [shape = 'u8[65536]{0}', space=vmem, size = 0x10000, scoped, tag = 'input window, operand 10']
    #allocation11 [shape = 'u8[131072]{0}', space=vmem, size = 0x20000, scoped, tag = 'input window, operand 13']
    #allocation12 [shape = 's32[2]{0}', space=sflag, size = 0x8, scoped, tag = 'scoped memory for egnn_forward.1']
    #allocation13 [shape = 'u8[65536]{0}', space=vmem, size = 0x10000, scoped, tag = 'input window, operand 15']
    %25 = vsyncpa [#allocation7], 0
    %s26 = scalar_lea.sflag [#allocation7], 1
    %27 = vsyncpa %s26, 0
    %28 = vsyncpa [#allocation9], 0
    %s29 = scalar_lea.sflag [#allocation9], 1
    %30 = vsyncpa %s29, 0
    %31 = vsyncpa [#allocation12], 0
    %s32 = scalar_lea.sflag [#allocation12], 1
    %33 = vsyncpa %s32, 0
    loop: start=0, step=1, limit=9
    $region2: #{egnn_forward.1} parent=1 // loop_pre_header
      _
    $region3: #{egnn_forward.1} parent=1 // loop_header
      %s35 = sphi 0, %s39
      %p36 = scmp.ge.s32.totalorder %s35, 9
      %s43 = sphi 0, %s43
      %s45 = sphi 0, %s43
      %s46 = sphi 0, %s45
      %s60 = sphi 0, %s46
      %s64 = sphi 0, %s64
      %s66 = sphi 0, %s64
      %s67 = sphi 0, %s66
      %s81 = sphi 0, %s67
      %s85 = sphi 0, %s85
      %s87 = sphi 0, %s85
      %s88 = sphi 0, %s87
      %s102 = sphi 0, %s88
      %s106 = sphi 0, %s106
      %s108 = sphi 0, %s106
      %s109 = sphi 0, %s108
      %s123 = sphi 0, %s109
      %s129 = sphi 0, %s131
      %s132 = sphi 0, %s129
      %s133 = sphi 0, %s132
      %s149 = sphi 0, %s133
      %s155 = sphi 0, %s157
      %s158 = sphi 0, %s155
      %s159 = sphi 0, %s158
      %s175 = sphi 0, %s159
      %s181 = sphi 0, %s183
      %s184 = sphi 0, %s181
      %s185 = sphi 0, %s184
      %s201 = sphi 0, %s185
      %s207 = sphi 0, %s209
      %s210 = sphi 0, %s207
      %s211 = sphi 0, %s210
      %s227 = sphi 0, %s211
      %s233 = sphi 0, %s235
      %s236 = sphi 0, %s233
      %s237 = sphi 0, %s236
      %s253 = sphi 0, %s237
      %s259 = sphi 0, %s261
      %s262 = sphi 0, %s259
      %s263 = sphi 0, %s262
      %s279 = sphi 0, %s263
      %s285 = sphi 0, %s287
      %s288 = sphi 0, %s285
      %s289 = sphi 0, %s288
      %s305 = sphi 0, %s289
      %s311 = sphi 0, %s313
      %s314 = sphi 0, %s311
      %s315 = sphi 0, %s314
      %s331 = sphi 0, %s315
      %s337 = sphi 0, %s339
      %s340 = sphi 0, %s337
      %s341 = sphi 0, %s340
      %s357 = sphi 0, %s341
      %s363 = sphi 0, %s365
      %s366 = sphi 0, %s363
      %s367 = sphi 0, %s366
      %s383 = sphi 0, %s367
      %s389 = sphi 0, %s391
      %s392 = sphi 0, %s389
      %s393 = sphi 0, %s392
      %s409 = sphi 0, %s393
      %s415 = sphi 0, %s417
      %s418 = sphi 0, %s415
      %s419 = sphi 0, %s418
      %s435 = sphi 0, %s419
      %s441 = sphi 0, %s443
      %s444 = sphi 0, %s441
      %s445 = sphi 0, %s444
      %s461 = sphi 0, %s445
      %s465 = sphi 0, %s465
      %s467 = sphi 0, %s465
      %s468 = sphi 0, %s467
      %s482 = sphi 0, %s468
      %s486 = sphi 0, %s486
      %s488 = sphi 0, %s486
      %s489 = sphi 0, %s488
      %s503 = sphi 0, %s489
      %s507 = sphi 0, %s507
      %s509 = sphi 0, %s507
      %s510 = sphi 0, %s509
      %s524 = sphi 0, %s510
      %s528 = sphi 0, %s528
      %s530 = sphi 0, %s528
      %s531 = sphi 0, %s530
      %s545 = sphi 0, %s531
    $region4: #{egnn_forward.1} parent=1 // loop_header_branch
      %38 = sbr.rel (%p36) target = $region8
    $region5: #{egnn_forward.1} parent=1 // loop_body
      %s40 = ssub.s32 %s35, 1
      %s41 = ssub.s32 %s35, 2
      %s42 = sadd.s32 %s35, 1
      %s44 = sadd.s32 %s43, 1
      %p47 = scmp.eq.s32.totalorder %s35, 6
      %p48 = scmp.ne.s32.totalorder %s43, %s45
      %p49 = scmp.eq.s32.totalorder %s35, 0
      %p50 = por %p48, %p49
      %p51 = scmp.ne.s32.totalorder %s43, %s45
      %p52 = scmp.eq.s32.totalorder %s40, 6
      %p53 = por %p51, %p52
      %p54 = scmp.ne.s32.totalorder %s45, %s46
      %p55 = scmp.eq.s32.totalorder %s40, 0
      %p56 = por %p54, %p55
      %p57 = scmp.ne.s32.totalorder %s45, %s46
      %p58 = scmp.eq.s32.totalorder %s41, 6
      %p59 = por %p57, %p58
      %p61 = scmp.ne.s32.totalorder %s46, %s60
      %p62 = scmp.eq.s32.totalorder %s41, 0
      %p63 = por %p61, %p62
      %s65 = sadd.s32 %s64, 1
      %p68 = scmp.eq.s32.totalorder %s35, 6
      %p69 = scmp.ne.s32.totalorder %s64, %s66
      %p70 = scmp.eq.s32.totalorder %s35, 0
      %p71 = por %p69, %p70
      %p72 = scmp.ne.s32.totalorder %s64, %s66
      %p73 = scmp.eq.s32.totalorder %s40, 6
      %p74 = por %p72, %p73
      %p75 = scmp.ne.s32.totalorder %s66, %s67
      %p76 = scmp.eq.s32.totalorder %s40, 0
      %p77 = por %p75, %p76
      %p78 = scmp.ne.s32.totalorder %s66, %s67
      %p79 = scmp.eq.s32.totalorder %s41, 6
      %p80 = por %p78, %p79
      %p82 = scmp.ne.s32.totalorder %s67, %s81
      %p83 = scmp.eq.s32.totalorder %s41, 0
      %p84 = por %p82, %p83
      %s86 = sadd.s32 %s85, 1
      %p89 = scmp.eq.s32.totalorder %s35, 6
      %p90 = scmp.ne.s32.totalorder %s85, %s87
      %p91 = scmp.eq.s32.totalorder %s35, 0
      %p92 = por %p90, %p91
      %p93 = scmp.ne.s32.totalorder %s85, %s87
      %p94 = scmp.eq.s32.totalorder %s40, 6
      %p95 = por %p93, %p94
      %p96 = scmp.ne.s32.totalorder %s87, %s88
      %p97 = scmp.eq.s32.totalorder %s40, 0
      %p98 = por %p96, %p97
      %p99 = scmp.ne.s32.totalorder %s87, %s88
      %p100 = scmp.eq.s32.totalorder %s41, 6
      %p101 = por %p99, %p100
      %p103 = scmp.ne.s32.totalorder %s88, %s102
      %p104 = scmp.eq.s32.totalorder %s41, 0
      %p105 = por %p103, %p104
      %s107 = sadd.s32 %s106, 1
      %p110 = scmp.eq.s32.totalorder %s35, 6
      %p111 = scmp.ne.s32.totalorder %s106, %s108
      %p112 = scmp.eq.s32.totalorder %s35, 0
      %p113 = por %p111, %p112
      %p114 = scmp.ne.s32.totalorder %s106, %s108
      %p115 = scmp.eq.s32.totalorder %s40, 6
      %p116 = por %p114, %p115
      %p117 = scmp.ne.s32.totalorder %s108, %s109
      %p118 = scmp.eq.s32.totalorder %s40, 0
      %p119 = por %p117, %p118
      %p120 = scmp.ne.s32.totalorder %s108, %s109
      %p121 = scmp.eq.s32.totalorder %s41, 6
      %p122 = por %p120, %p121
      %p124 = scmp.ne.s32.totalorder %s109, %s123
      %p125 = scmp.eq.s32.totalorder %s41, 0
      %p126 = por %p124, %p125
      %s127 = ssub.s32 %s35, %s42
      %p128 = scmp.eq.s32.totalorder %s127, 0
      %s130 = sadd.s32 %s129, 1
      %s131 = scalar_select %p128, %s129, %s130
      %p134 = pneg %p128
      %p135 = scmp.eq.s32.totalorder %s35, 6
      %p136 = por %p134, %p135
      %p137 = scmp.ne.s32.totalorder %s129, %s132
      %p138 = scmp.eq.s32.totalorder %s35, 0
      %p139 = por %p137, %p138
      %p140 = scmp.ne.s32.totalorder %s129, %s132
      %p141 = scmp.eq.s32.totalorder %s40, 6
      %p142 = por %p140, %p141
      %p143 = scmp.ne.s32.totalorder %s132, %s133
      %p144 = scmp.eq.s32.totalorder %s40, 0
      %p145 = por %p143, %p144
      %p146 = scmp.ne.s32.totalorder %s132, %s133
      %p147 = scmp.eq.s32.totalorder %s41, 6
      %p148 = por %p146, %p147
      %p150 = scmp.ne.s32.totalorder %s133, %s149
      %p151 = scmp.eq.s32.totalorder %s41, 0
      %p152 = por %p150, %p151
      %s153 = ssub.s32 %s35, %s42
      %p154 = scmp.eq.s32.totalorder %s153, 0
      %s156 = sadd.s32 %s155, 1
      %s157 = scalar_select %p154, %s155, %s156
      %p160 = pneg %p154
      %p161 = scmp.eq.s32.totalorder %s35, 6
      %p162 = por %p160, %p161
      %p163 = scmp.ne.s32.totalorder %s155, %s158
      %p164 = scmp.eq.s32.totalorder %s35, 0
      %p165 = por %p163, %p164
      %p166 = scmp.ne.s32.totalorder %s155, %s158
      %p167 = scmp.eq.s32.totalorder %s40, 6
      %p168 = por %p166, %p167
      %p169 = scmp.ne.s32.totalorder %s158, %s159
      %p170 = scmp.eq.s32.totalorder %s40, 0
      %p171 = por %p169, %p170
      %p172 = scmp.ne.s32.totalorder %s158, %s159
      %p173 = scmp.eq.s32.totalorder %s41, 6
      %p174 = por %p172, %p173
      %p176 = scmp.ne.s32.totalorder %s159, %s175
      %p177 = scmp.eq.s32.totalorder %s41, 0
      %p178 = por %p176, %p177
      %s179 = ssub.s32 %s35, %s42
      %p180 = scmp.eq.s32.totalorder %s179, 0
      %s182 = sadd.s32 %s181, 1
      %s183 = scalar_select %p180, %s181, %s182
      %p186 = pneg %p180
      %p187 = scmp.eq.s32.totalorder %s35, 6
      %p188 = por %p186, %p187
      %p189 = scmp.ne.s32.totalorder %s181, %s184
      %p190 = scmp.eq.s32.totalorder %s35, 0
      %p191 = por %p189, %p190
      %p192 = scmp.ne.s32.totalorder %s181, %s184
      %p193 = scmp.eq.s32.totalorder %s40, 6
      %p194 = por %p192, %p193
      %p195 = scmp.ne.s32.totalorder %s184, %s185
      %p196 = scmp.eq.s32.totalorder %s40, 0
      %p197 = por %p195, %p196
      %p198 = scmp.ne.s32.totalorder %s184, %s185
      %p199 = scmp.eq.s32.totalorder %s41, 6
      %p200 = por %p198, %p199
      %p202 = scmp.ne.s32.totalorder %s185, %s201
      %p203 = scmp.eq.s32.totalorder %s41, 0
      %p204 = por %p202, %p203
      %s205 = ssub.s32 %s35, %s42
      %p206 = scmp.eq.s32.totalorder %s205, 0
      %s208 = sadd.s32 %s207, 1
      %s209 = scalar_select %p206, %s207, %s208
      %p212 = pneg %p206
      %p213 = scmp.eq.s32.totalorder %s35, 6
      %p214 = por %p212, %p213
      %p215 = scmp.ne.s32.totalorder %s207, %s210
      %p216 = scmp.eq.s32.totalorder %s35, 0
      %p217 = por %p215, %p216
      %p218 = scmp.ne.s32.totalorder %s207, %s210
      %p219 = scmp.eq.s32.totalorder %s40, 6
      %p220 = por %p218, %p219
      %p221 = scmp.ne.s32.totalorder %s210, %s211
      %p222 = scmp.eq.s32.totalorder %s40, 0
      %p223 = por %p221, %p222
      %p224 = scmp.ne.s32.totalorder %s210, %s211
      %p225 = scmp.eq.s32.totalorder %s41, 6
      %p226 = por %p224, %p225
      %p228 = scmp.ne.s32.totalorder %s211, %s227
      %p229 = scmp.eq.s32.totalorder %s41, 0
      %p230 = por %p228, %p229
      %s231 = ssub.s32 %s35, %s42
      %p232 = scmp.eq.s32.totalorder %s231, 0
      %s234 = sadd.s32 %s233, 1
      %s235 = scalar_select %p232, %s233, %s234
      %p238 = pneg %p232
      %p239 = scmp.eq.s32.totalorder %s35, 6
      %p240 = por %p238, %p239
      %p241 = scmp.ne.s32.totalorder %s233, %s236
      %p242 = scmp.eq.s32.totalorder %s35, 0
      %p243 = por %p241, %p242
      %p244 = scmp.ne.s32.totalorder %s233, %s236
      %p245 = scmp.eq.s32.totalorder %s40, 6
      %p246 = por %p244, %p245
      %p247 = scmp.ne.s32.totalorder %s236, %s237
      %p248 = scmp.eq.s32.totalorder %s40, 0
      %p249 = por %p247, %p248
      %p250 = scmp.ne.s32.totalorder %s236, %s237
      %p251 = scmp.eq.s32.totalorder %s41, 6
      %p252 = por %p250, %p251
      %p254 = scmp.ne.s32.totalorder %s237, %s253
      %p255 = scmp.eq.s32.totalorder %s41, 0
      %p256 = por %p254, %p255
      %s257 = ssub.s32 %s35, %s42
      %p258 = scmp.eq.s32.totalorder %s257, 0
      %s260 = sadd.s32 %s259, 1
      %s261 = scalar_select %p258, %s259, %s260
      %p264 = pneg %p258
      %p265 = scmp.eq.s32.totalorder %s35, 6
      %p266 = por %p264, %p265
      %p267 = scmp.ne.s32.totalorder %s259, %s262
      %p268 = scmp.eq.s32.totalorder %s35, 0
      %p269 = por %p267, %p268
      %p270 = scmp.ne.s32.totalorder %s259, %s262
      %p271 = scmp.eq.s32.totalorder %s40, 6
      %p272 = por %p270, %p271
      %p273 = scmp.ne.s32.totalorder %s262, %s263
      %p274 = scmp.eq.s32.totalorder %s40, 0
      %p275 = por %p273, %p274
      %p276 = scmp.ne.s32.totalorder %s262, %s263
      %p277 = scmp.eq.s32.totalorder %s41, 6
      %p278 = por %p276, %p277
      %p280 = scmp.ne.s32.totalorder %s263, %s279
      %p281 = scmp.eq.s32.totalorder %s41, 0
      %p282 = por %p280, %p281
      %s283 = ssub.s32 %s35, %s42
      %p284 = scmp.eq.s32.totalorder %s283, 0
      %s286 = sadd.s32 %s285, 1
      %s287 = scalar_select %p284, %s285, %s286
      %p290 = pneg %p284
      %p291 = scmp.eq.s32.totalorder %s35, 6
      %p292 = por %p290, %p291
      %p293 = scmp.ne.s32.totalorder %s285, %s288
      %p294 = scmp.eq.s32.totalorder %s35, 0
      %p295 = por %p293, %p294
      %p296 = scmp.ne.s32.totalorder %s285, %s288
      %p297 = scmp.eq.s32.totalorder %s40, 6
      %p298 = por %p296, %p297
      %p299 = scmp.ne.s32.totalorder %s288, %s289
      %p300 = scmp.eq.s32.totalorder %s40, 0
      %p301 = por %p299, %p300
      %p302 = scmp.ne.s32.totalorder %s288, %s289
      %p303 = scmp.eq.s32.totalorder %s41, 6
      %p304 = por %p302, %p303
      %p306 = scmp.ne.s32.totalorder %s289, %s305
      %p307 = scmp.eq.s32.totalorder %s41, 0
      %p308 = por %p306, %p307
      %s309 = ssub.s32 %s35, %s42
      %p310 = scmp.eq.s32.totalorder %s309, 0
      %s312 = sadd.s32 %s311, 1
      %s313 = scalar_select %p310, %s311, %s312
      %p316 = pneg %p310
      %p317 = scmp.eq.s32.totalorder %s35, 6
      %p318 = por %p316, %p317
      %p319 = scmp.ne.s32.totalorder %s311, %s314
      %p320 = scmp.eq.s32.totalorder %s35, 0
      %p321 = por %p319, %p320
      %p322 = scmp.ne.s32.totalorder %s311, %s314
      %p323 = scmp.eq.s32.totalorder %s40, 6
      %p324 = por %p322, %p323
      %p325 = scmp.ne.s32.totalorder %s314, %s315
      %p326 = scmp.eq.s32.totalorder %s40, 0
      %p327 = por %p325, %p326
      %p328 = scmp.ne.s32.totalorder %s314, %s315
      %p329 = scmp.eq.s32.totalorder %s41, 6
      %p330 = por %p328, %p329
      %p332 = scmp.ne.s32.totalorder %s315, %s331
      %p333 = scmp.eq.s32.totalorder %s41, 0
      %p334 = por %p332, %p333
      %s335 = ssub.s32 %s35, %s42
      %p336 = scmp.eq.s32.totalorder %s335, 0
      %s338 = sadd.s32 %s337, 1
      %s339 = scalar_select %p336, %s337, %s338
      %p342 = pneg %p336
      %p343 = scmp.eq.s32.totalorder %s35, 6
      %p344 = por %p342, %p343
      %p345 = scmp.ne.s32.totalorder %s337, %s340
      %p346 = scmp.eq.s32.totalorder %s35, 0
      %p347 = por %p345, %p346
      %p348 = scmp.ne.s32.totalorder %s337, %s340
      %p349 = scmp.eq.s32.totalorder %s40, 6
      %p350 = por %p348, %p349
      %p351 = scmp.ne.s32.totalorder %s340, %s341
      %p352 = scmp.eq.s32.totalorder %s40, 0
      %p353 = por %p351, %p352
      %p354 = scmp.ne.s32.totalorder %s340, %s341
      %p355 = scmp.eq.s32.totalorder %s41, 6
      %p356 = por %p354, %p355
      %p358 = scmp.ne.s32.totalorder %s341, %s357
      %p359 = scmp.eq.s32.totalorder %s41, 0
      %p360 = por %p358, %p359
      %s361 = ssub.s32 %s35, %s42
      %p362 = scmp.eq.s32.totalorder %s361, 0
      %s364 = sadd.s32 %s363, 1
      %s365 = scalar_select %p362, %s363, %s364
      %p368 = pneg %p362
      %p369 = scmp.eq.s32.totalorder %s35, 6
      %p370 = por %p368, %p369
      %p371 = scmp.ne.s32.totalorder %s363, %s366
      %p372 = scmp.eq.s32.totalorder %s35, 0
      %p373 = por %p371, %p372
      %p374 = scmp.ne.s32.totalorder %s363, %s366
      %p375 = scmp.eq.s32.totalorder %s40, 6
      %p376 = por %p374, %p375
      %p377 = scmp.ne.s32.totalorder %s366, %s367
      %p378 = scmp.eq.s32.totalorder %s40, 0
      %p379 = por %p377, %p378
      %p380 = scmp.ne.s32.totalorder %s366, %s367
      %p381 = scmp.eq.s32.totalorder %s41, 6
      %p382 = por %p380, %p381
      %p384 = scmp.ne.s32.totalorder %s367, %s383
      %p385 = scmp.eq.s32.totalorder %s41, 0
      %p386 = por %p384, %p385
      %s387 = ssub.s32 %s35, %s42
      %p388 = scmp.eq.s32.totalorder %s387, 0
      %s390 = sadd.s32 %s389, 1
      %s391 = scalar_select %p388, %s389, %s390
      %p394 = pneg %p388
      %p395 = scmp.eq.s32.totalorder %s35, 6
      %p396 = por %p394, %p395
      %p397 = scmp.ne.s32.totalorder %s389, %s392
      %p398 = scmp.eq.s32.totalorder %s35, 0
      %p399 = por %p397, %p398
      %p400 = scmp.ne.s32.totalorder %s389, %s392
      %p401 = scmp.eq.s32.totalorder %s40, 6
      %p402 = por %p400, %p401
      %p403 = scmp.ne.s32.totalorder %s392, %s393
      %p404 = scmp.eq.s32.totalorder %s40, 0
      %p405 = por %p403, %p404
      %p406 = scmp.ne.s32.totalorder %s392, %s393
      %p407 = scmp.eq.s32.totalorder %s41, 6
      %p408 = por %p406, %p407
      %p410 = scmp.ne.s32.totalorder %s393, %s409
      %p411 = scmp.eq.s32.totalorder %s41, 0
      %p412 = por %p410, %p411
      %s413 = ssub.s32 %s35, %s42
      %p414 = scmp.eq.s32.totalorder %s413, 0
      %s416 = sadd.s32 %s415, 1
      %s417 = scalar_select %p414, %s415, %s416
      %p420 = pneg %p414
      %p421 = scmp.eq.s32.totalorder %s35, 6
      %p422 = por %p420, %p421
      %p423 = scmp.ne.s32.totalorder %s415, %s418
      %p424 = scmp.eq.s32.totalorder %s35, 0
      %p425 = por %p423, %p424
      %p426 = scmp.ne.s32.totalorder %s415, %s418
      %p427 = scmp.eq.s32.totalorder %s40, 6
      %p428 = por %p426, %p427
      %p429 = scmp.ne.s32.totalorder %s418, %s419
      %p430 = scmp.eq.s32.totalorder %s40, 0
      %p431 = por %p429, %p430
      %p432 = scmp.ne.s32.totalorder %s418, %s419
      %p433 = scmp.eq.s32.totalorder %s41, 6
      %p434 = por %p432, %p433
      %p436 = scmp.ne.s32.totalorder %s419, %s435
      %p437 = scmp.eq.s32.totalorder %s41, 0
      %p438 = por %p436, %p437
      %s439 = ssub.s32 %s35, %s42
      %p440 = scmp.eq.s32.totalorder %s439, 0
      %s442 = sadd.s32 %s441, 1
      %s443 = scalar_select %p440, %s441, %s442
      %p446 = pneg %p440
      %p447 = scmp.eq.s32.totalorder %s35, 6
      %p448 = por %p446, %p447
      %p449 = scmp.ne.s32.totalorder %s441, %s444
      %p450 = scmp.eq.s32.totalorder %s35, 0
      %p451 = por %p449, %p450
      %p452 = scmp.ne.s32.totalorder %s441, %s444
      %p453 = scmp.eq.s32.totalorder %s40, 6
      %p454 = por %p452, %p453
      %p455 = scmp.ne.s32.totalorder %s444, %s445
      %p456 = scmp.eq.s32.totalorder %s40, 0
      %p457 = por %p455, %p456
      %p458 = scmp.ne.s32.totalorder %s444, %s445
      %p459 = scmp.eq.s32.totalorder %s41, 6
      %p460 = por %p458, %p459
      %p462 = scmp.ne.s32.totalorder %s445, %s461
      %p463 = scmp.eq.s32.totalorder %s41, 0
      %p464 = por %p462, %p463
      %s466 = sadd.s32 %s465, 1
      %p469 = scmp.eq.s32.totalorder %s35, 6
      %p470 = scmp.ne.s32.totalorder %s465, %s467
      %p471 = scmp.eq.s32.totalorder %s35, 0
      %p472 = por %p470, %p471
      %p473 = scmp.ne.s32.totalorder %s465, %s467
      %p474 = scmp.eq.s32.totalorder %s40, 6
      %p475 = por %p473, %p474
      %p476 = scmp.ne.s32.totalorder %s467, %s468
      %p477 = scmp.eq.s32.totalorder %s40, 0
      %p478 = por %p476, %p477
      %p479 = scmp.ne.s32.totalorder %s467, %s468
      %p480 = scmp.eq.s32.totalorder %s41, 6
      %p481 = por %p479, %p480
      %p483 = scmp.ne.s32.totalorder %s468, %s482
      %p484 = scmp.eq.s32.totalorder %s41, 0
      %p485 = por %p483, %p484
      %s487 = sadd.s32 %s486, 1
      %p490 = scmp.eq.s32.totalorder %s35, 6
      %p491 = scmp.ne.s32.totalorder %s486, %s488
      %p492 = scmp.eq.s32.totalorder %s35, 0
      %p493 = por %p491, %p492
      %p494 = scmp.ne.s32.totalorder %s486, %s488
      %p495 = scmp.eq.s32.totalorder %s40, 6
      %p496 = por %p494, %p495
      %p497 = scmp.ne.s32.totalorder %s488, %s489
      %p498 = scmp.eq.s32.totalorder %s40, 0
      %p499 = por %p497, %p498
      %p500 = scmp.ne.s32.totalorder %s488, %s489
      %p501 = scmp.eq.s32.totalorder %s41, 6
      %p502 = por %p500, %p501
      %p504 = scmp.ne.s32.totalorder %s489, %s503
      %p505 = scmp.eq.s32.totalorder %s41, 0
      %p506 = por %p504, %p505
      %s508 = sadd.s32 %s507, 1
      %p511 = scmp.eq.s32.totalorder %s35, 6
      %p512 = scmp.ne.s32.totalorder %s507, %s509
      %p513 = scmp.eq.s32.totalorder %s35, 0
      %p514 = por %p512, %p513
      %p515 = scmp.ne.s32.totalorder %s507, %s509
      %p516 = scmp.eq.s32.totalorder %s40, 6
      %p517 = por %p515, %p516
      %p518 = scmp.ne.s32.totalorder %s509, %s510
      %p519 = scmp.eq.s32.totalorder %s40, 0
      %p520 = por %p518, %p519
      %p521 = scmp.ne.s32.totalorder %s509, %s510
      %p522 = scmp.eq.s32.totalorder %s41, 6
      %p523 = por %p521, %p522
      %p525 = scmp.ne.s32.totalorder %s510, %s524
      %p526 = scmp.eq.s32.totalorder %s41, 0
      %p527 = por %p525, %p526
      %s529 = sadd.s32 %s528, 1
      %p532 = scmp.eq.s32.totalorder %s35, 6
      %p533 = scmp.ne.s32.totalorder %s528, %s530
      %p534 = scmp.eq.s32.totalorder %s35, 0
      %p535 = por %p533, %p534
      %p536 = scmp.ne.s32.totalorder %s528, %s530
      %p537 = scmp.eq.s32.totalorder %s40, 6
      %p538 = por %p536, %p537
      %p539 = scmp.ne.s32.totalorder %s530, %s531
      %p540 = scmp.eq.s32.totalorder %s40, 0
      %p541 = por %p539, %p540
      %p542 = scmp.ne.s32.totalorder %s530, %s531
      %p543 = scmp.eq.s32.totalorder %s41, 6
      %p544 = por %p542, %p543
      %p546 = scmp.ne.s32.totalorder %s531, %s545
      %p547 = scmp.eq.s32.totalorder %s41, 0
      %p548 = por %p546, %p547
      %p549 = scmp.le.s32.totalorder 1, %s35
      %p550 = scmp.lt.s32.totalorder %s35, 8
      %p551 = pnand %p549, %p550
      %p552 = pneg %p551
      // Predicated region
      $region9: #{egnn_forward.1} parent=5 // pred_check
        _
      $region10: #{egnn_forward.1} parent=5 // pred_check_branch
        %554 = sbr.rel (%p551) target = $region12
      $region11: #{egnn_forward.1} parent=5 // pred_region
        %s555 = ssub.s32 %s35, 1
        // Predicated region
        $region13: #{egnn_forward.1} parent=11 // pred_check
          %p556 = pneg %p56
        $region14: #{egnn_forward.1} parent=11 // pred_check_branch
          %558 = sbr.rel (%p556) target = $region16
        $region15: #{egnn_forward.1} parent=11 // pred_region
          _
        $region16: #{egnn_forward.1} parent=11 // pred_fallthru
          _
        // Predicated region
        $region17: #{egnn_forward.1} parent=11 // pred_check
          %p559 = pneg %p77
        $region18: #{egnn_forward.1} parent=11 // pred_check_branch
          %561 = sbr.rel (%p559) target = $region20
        $region19: #{egnn_forward.1} parent=11 // pred_region
          _
        $region20: #{egnn_forward.1} parent=11 // pred_fallthru
          _
        // Predicated region
        $region21: #{egnn_forward.1} parent=11 // pred_check
          %p562 = pneg %p98
        $region22: #{egnn_forward.1} parent=11 // pred_check_branch
          %564 = sbr.rel (%p562) target = $region24
        $region23: #{egnn_forward.1} parent=11 // pred_region
          _
        $region24: #{egnn_forward.1} parent=11 // pred_fallthru
          _
        // Predicated region
        $region25: #{egnn_forward.1} parent=11 // pred_check
          %p565 = pneg %p119
        $region26: #{egnn_forward.1} parent=11 // pred_check_branch
          %567 = sbr.rel (%p565) target = $region28
        $region27: #{egnn_forward.1} parent=11 // pred_region
          _
        $region28: #{egnn_forward.1} parent=11 // pred_fallthru
          _
        // Predicated region
        $region29: #{egnn_forward.1} parent=11 // pred_check
          %p568 = pneg %p478
        $region30: #{egnn_forward.1} parent=11 // pred_check_branch
          %570 = sbr.rel (%p568) target = $region32
        $region31: #{egnn_forward.1} parent=11 // pred_region
          _
        $region32: #{egnn_forward.1} parent=11 // pred_fallthru
          _
        // Predicated region
        $region33: #{egnn_forward.1} parent=11 // pred_check
          %p571 = pneg %p499
        $region34: #{egnn_forward.1} parent=11 // pred_check_branch
          %573 = sbr.rel (%p571) target = $region36
        $region35: #{egnn_forward.1} parent=11 // pred_region
          _
        $region36: #{egnn_forward.1} parent=11 // pred_fallthru
          _
        // Predicated region
        $region37: #{egnn_forward.1} parent=11 // pred_check
          %p574 = pneg %p520
        $region38: #{egnn_forward.1} parent=11 // pred_check_branch
          %576 = sbr.rel (%p574) target = $region40
        $region39: #{egnn_forward.1} parent=11 // pred_region
          _
        $region40: #{egnn_forward.1} parent=11 // pred_fallthru
          _
      $region12: #{egnn_forward.1} parent=5 // pred_fallthru
        _
      %p577 = scmp.lt.s32.totalorder %s35, 7
      // Predicated region
      $region41: #{egnn_forward.1} parent=5 // pred_check
        %p578 = pneg %p577
      $region42: #{egnn_forward.1} parent=5 // pred_check_branch
        %580 = sbr.rel (%p578) target = $region44
      $region43: #{egnn_forward.1} parent=5 // pred_region
        // Predicated region
        $region45: #{egnn_forward.1} parent=43 // pred_check
          %p581 = pneg %p139
        $region46: #{egnn_forward.1} parent=43 // pred_check_branch
          %583 = sbr.rel (%p581) target = $region48
        $region47: #{egnn_forward.1} parent=43 // pred_region
          %p584 = scmp.lt.s32.totalorder %s35, 6
          %s585 = scalar_select %p584, %s35, 6
          %s586 = scalar_lea.vmem %s4, %s585
        $region48: #{egnn_forward.1} parent=43 // pred_fallthru
          _
        // Predicated region
        $region49: #{egnn_forward.1} parent=43 // pred_check
          %p587 = pneg %p165
        $region50: #{egnn_forward.1} parent=43 // pred_check_branch
          %589 = sbr.rel (%p587) target = $region52
        $region51: #{egnn_forward.1} parent=43 // pred_region
          %p590 = scmp.lt.s32.totalorder %s35, 6
          %s591 = scalar_select %p590, %s35, 6
          %s592 = smul.addr %s591, 16
          %s593 = smul.addr %s592, 4
          %s594 = scalar_lea.vmem %s5, %s593
        $region52: #{egnn_forward.1} parent=43 // pred_fallthru
          _
        // Predicated region
        $region53: #{egnn_forward.1} parent=43 // pred_check
          %p595 = pneg %p191
        $region54: #{egnn_forward.1} parent=43 // pred_check_branch
          %597 = sbr.rel (%p595) target = $region56
        $region55: #{egnn_forward.1} parent=43 // pred_region
          %s598 = sand.u32 %s181, 1
          %s599 = scalar_lea.sflag [#allocation7], %s598
          %s600 = sand.u32 %s181, 1
          %s601 = smul.addr %s600, 64
          %s602 = scalar_lea.vmem [#allocation6], %s601
          %s604 = ssub.s32 1024, 1024
          %605 = vsyncadd %s599, %s604
          %s606 = smul.addr %s35, 16
          %s607 = smul.addr %s606, 64
          %s608 = scalar_lea.hbm %s6, %s607
          %s609 = sshll.u32 %s602, 4
          %s610 = int_to_ptr.vmem [resolvable:$true] %s609
          %615 = dma.hbm_to_vmem [thread:$0]  %s608, 1024, %s610, %s599, 64, 64, 4
        $region56: #{egnn_forward.1} parent=43 // pred_fallthru
          _
        // Predicated region
        $region57: #{egnn_forward.1} parent=43 // pred_check
          %p616 = pneg %p217
        $region58: #{egnn_forward.1} parent=43 // pred_check_branch
          %618 = sbr.rel (%p616) target = $region60
        $region59: #{egnn_forward.1} parent=43 // pred_region
          %p619 = scmp.lt.s32.totalorder %s35, 6
          %s620 = scalar_select %p619, %s35, 6
          %s621 = scalar_lea.vmem %s7, %s620
        $region60: #{egnn_forward.1} parent=43 // pred_fallthru
          _
        // Predicated region
        $region61: #{egnn_forward.1} parent=43 // pred_check
          %p622 = pneg %p243
        $region62: #{egnn_forward.1} parent=43 // pred_check_branch
          %624 = sbr.rel (%p622) target = $region64
        $region63: #{egnn_forward.1} parent=43 // pred_region
          %s625 = sand.u32 %s35, 1
          %s626 = scalar_lea.sflag [#allocation9], %s625
          %s627 = sand.u32 %s233, 1
          %s628 = smul.addr %s627, 64
          %s629 = scalar_lea.vmem [#allocation8], %s628
          %s631 = ssub.s32 1024, 1024
          %632 = vsyncadd %s626, %s631
          %s633 = smul.addr %s35, 16
          %s634 = smul.addr %s633, 64
          %s635 = scalar_lea.hbm %s8, %s634
          %s636 = sshll.u32 %s629, 4
          %s637 = int_to_ptr.vmem [resolvable:$true] %s636
          %642 = dma.hbm_to_vmem [thread:$0]  %s635, 1024, %s637, %s626, 64, 64, 4
        $region64: #{egnn_forward.1} parent=43 // pred_fallthru
          _
        // Predicated region
        $region65: #{egnn_forward.1} parent=43 // pred_check
          %p643 = pneg %p269
        $region66: #{egnn_forward.1} parent=43 // pred_check_branch
          %645 = sbr.rel (%p643) target = $region68
        $region67: #{egnn_forward.1} parent=43 // pred_region
          %p646 = scmp.lt.s32.totalorder %s35, 6
          %s647 = scalar_select %p646, %s35, 6
          %s648 = scalar_lea.vmem %s9, %s647
        $region68: #{egnn_forward.1} parent=43 // pred_fallthru
          _
        // Predicated region
        $region69: #{egnn_forward.1} parent=43 // pred_check
          %p649 = pneg %p295
        $region70: #{egnn_forward.1} parent=43 // pred_check_branch
          %651 = sbr.rel (%p649) target = $region72
        $region71: #{egnn_forward.1} parent=43 // pred_region
          %s652 = sand.u32 %s35, 1
          %s653 = scalar_lea.sflag [#allocation9], %s652
          %s654 = sand.u32 %s285, 1
          %s655 = smul.addr %s654, 64
          %s656 = scalar_lea.vmem [#allocation10], %s655
          %s658 = ssub.s32 1024, 1024
          %659 = vsyncadd %s653, %s658
          %s660 = smul.addr %s35, 16
          %s661 = smul.addr %s660, 64
          %s662 = scalar_lea.hbm %s10, %s661
          %s663 = sshll.u32 %s656, 4
          %s664 = int_to_ptr.vmem [resolvable:$true] %s663
          %669 = dma.hbm_to_vmem [thread:$0]  %s662, 1024, %s664, %s653, 64, 64, 4
        $region72: #{egnn_forward.1} parent=43 // pred_fallthru
          _
        // Predicated region
        $region73: #{egnn_forward.1} parent=43 // pred_check
          %p670 = pneg %p321
        $region74: #{egnn_forward.1} parent=43 // pred_check_branch
          %672 = sbr.rel (%p670) target = $region76
        $region75: #{egnn_forward.1} parent=43 // pred_region
          %p673 = scmp.lt.s32.totalorder %s35, 6
          %s674 = scalar_select %p673, %s35, 6
          %s675 = scalar_lea.vmem %s11, %s674
        $region76: #{egnn_forward.1} parent=43 // pred_fallthru
          _
        // Predicated region
        $region77: #{egnn_forward.1} parent=43 // pred_check
          %p676 = pneg %p347
        $region78: #{egnn_forward.1} parent=43 // pred_check_branch
          %678 = sbr.rel (%p676) target = $region80
        $region79: #{egnn_forward.1} parent=43 // pred_region
          %p679 = scmp.lt.s32.totalorder %s35, 6
          %s680 = scalar_select %p679, %s35, 6
          %s681 = scalar_lea.vmem %s12, %s680
        $region80: #{egnn_forward.1} parent=43 // pred_fallthru
          _
        // Predicated region
        $region81: #{egnn_forward.1} parent=43 // pred_check
          %p682 = pneg %p373
        $region82: #{egnn_forward.1} parent=43 // pred_check_branch
          %684 = sbr.rel (%p682) target = $region84
        $region83: #{egnn_forward.1} parent=43 // pred_region
          %s685 = sand.u32 %s35, 1
          %s686 = scalar_lea.sflag [#allocation12], %s685
          %s687 = sand.u32 %s363, 1
          %s688 = smul.addr %s687, 128
          %s689 = scalar_lea.vmem [#allocation11], %s688
          %s691 = ssub.s32 2048, 2048
          %692 = vsyncadd %s686, %s691
          %s693 = smul.addr %s35, 32
          %s694 = smul.addr %s693, 64
          %s695 = scalar_lea.hbm %s13, %s694
          %s696 = sshll.u32 %s689, 4
          %s697 = int_to_ptr.vmem [resolvable:$true] %s696
          %702 = dma.hbm_to_vmem [thread:$0]  %s695, 2048, %s697, %s686, 64, 64, 4
        $region84: #{egnn_forward.1} parent=43 // pred_fallthru
          _
        // Predicated region
        $region85: #{egnn_forward.1} parent=43 // pred_check
          %p703 = pneg %p399
        $region86: #{egnn_forward.1} parent=43 // pred_check_branch
          %705 = sbr.rel (%p703) target = $region88
        $region87: #{egnn_forward.1} parent=43 // pred_region
          %p706 = scmp.lt.s32.totalorder %s35, 6
          %s707 = scalar_select %p706, %s35, 6
          %s708 = scalar_lea.vmem %s14, %s707
        $region88: #{egnn_forward.1} parent=43 // pred_fallthru
          _
        // Predicated region
        $region89: #{egnn_forward.1} parent=43 // pred_check
          %p709 = pneg %p425
        $region90: #{egnn_forward.1} parent=43 // pred_check_branch
          %711 = sbr.rel (%p709) target = $region92
        $region91: #{egnn_forward.1} parent=43 // pred_region
          %s712 = sand.u32 %s35, 1
          %s713 = scalar_lea.sflag [#allocation12], %s712
          %s714 = sand.u32 %s415, 1
          %s715 = smul.addr %s714, 64
          %s716 = scalar_lea.vmem [#allocation13], %s715
          %s718 = ssub.s32 1024, 1024
          %719 = vsyncadd %s713, %s718
          %s720 = smul.addr %s35, 16
          %s721 = smul.addr %s720, 64
          %s722 = scalar_lea.hbm %s15, %s721
          %s723 = sshll.u32 %s716, 4
          %s724 = int_to_ptr.vmem [resolvable:$true] %s723
          %729 = dma.hbm_to_vmem [thread:$0]  %s722, 1024, %s724, %s713, 64, 64, 4
        $region92: #{egnn_forward.1} parent=43 // pred_fallthru
          _
        // Predicated region
        $region93: #{egnn_forward.1} parent=43 // pred_check
          %p730 = pneg %p451
        $region94: #{egnn_forward.1} parent=43 // pred_check_branch
          %732 = sbr.rel (%p730) target = $region96
        $region95: #{egnn_forward.1} parent=43 // pred_region
          %p733 = scmp.lt.s32.totalorder %s35, 6
          %s734 = scalar_select %p733, %s35, 6
          %s735 = scalar_lea.vmem %s16, %s734
        $region96: #{egnn_forward.1} parent=43 // pred_fallthru
          _
      $region44: #{egnn_forward.1} parent=5 // pred_fallthru
        _
      %p736 = scmp.le.s32.totalorder 1, %s35
      %p737 = scmp.lt.s32.totalorder %s35, 8
      %p738 = pnand %p736, %p737
      %p739 = pneg %p738
      // Predicated region
      $region97: #{egnn_forward.1} parent=5 // pred_check
        _
      $region98: #{egnn_forward.1} parent=5 // pred_check_branch
        %741 = sbr.rel (%p738) target = $region100
      $region99: #{egnn_forward.1} parent=5 // pred_region
        %s742 = ssub.s32 %s35, 1
        %s743 = sand.u32 %s184, 1
        %s744 = scalar_lea.sflag [#allocation7], %s743
        %s745 = sand.u32 %s184, 1
        %s746 = smul.addr %s745, 64
        %s747 = scalar_lea.vmem [#allocation6], %s746
        // Predicated region
        $region101: #{egnn_forward.1} parent=99 // pred_check
          %p748 = pneg %p197
        $region102: #{egnn_forward.1} parent=99 // pred_check_branch
          %750 = sbr.rel (%p748) target = $region104
        $region103: #{egnn_forward.1} parent=99 // pred_region
          %751 = dma.done %s744, 1024
        $region104: #{egnn_forward.1} parent=99 // pred_fallthru
          _
        %s752 = sand.u32 %s40, 1
        %s753 = scalar_lea.sflag [#allocation9], %s752
        %s754 = sand.u32 %s236, 1
        %s755 = smul.addr %s754, 64
        %s756 = scalar_lea.vmem [#allocation8], %s755
        // Predicated region
        $region105: #{egnn_forward.1} parent=99 // pred_check
          %p757 = pneg %p249
        $region106: #{egnn_forward.1} parent=99 // pred_check_branch
          %759 = sbr.rel (%p757) target = $region108
        $region107: #{egnn_forward.1} parent=99 // pred_region
          %760 = dma.done %s753, 1024
        $region108: #{egnn_forward.1} parent=99 // pred_fallthru
          _
        %s761 = sand.u32 %s40, 1
        %s762 = scalar_lea.sflag [#allocation9], %s761
        %s763 = sand.u32 %s288, 1
        %s764 = smul.addr %s763, 64
        %s765 = scalar_lea.vmem [#allocation10], %s764
        // Predicated region
        $region109: #{egnn_forward.1} parent=99 // pred_check
          %p766 = pneg %p301
        $region110: #{egnn_forward.1} parent=99 // pred_check_branch
          %768 = sbr.rel (%p766) target = $region112
        $region111: #{egnn_forward.1} parent=99 // pred_region
          %769 = dma.done %s762, 1024
        $region112: #{egnn_forward.1} parent=99 // pred_fallthru
          _
        %s770 = sand.u32 %s40, 1
        %s771 = scalar_lea.sflag [#allocation12], %s770
        %s772 = sand.u32 %s366, 1
        %s773 = smul.addr %s772, 128
        %s774 = scalar_lea.vmem [#allocation11], %s773
        // Predicated region
        $region113: #{egnn_forward.1} parent=99 // pred_check
          %p775 = pneg %p379
        $region114: #{egnn_forward.1} parent=99 // pred_check_branch
          %777 = sbr.rel (%p775) target = $region116
        $region115: #{egnn_forward.1} parent=99 // pred_region
          %778 = dma.done %s771, 2048
        $region116: #{egnn_forward.1} parent=99 // pred_fallthru
          _
        %s779 = sand.u32 %s40, 1
        %s780 = scalar_lea.sflag [#allocation12], %s779
        %s781 = sand.u32 %s418, 1
        %s782 = smul.addr %s781, 64
        %s783 = scalar_lea.vmem [#allocation13], %s782
        // Predicated region
        $region117: #{egnn_forward.1} parent=99 // pred_check
          %p784 = pneg %p431
        $region118: #{egnn_forward.1} parent=99 // pred_check_branch
          %786 = sbr.rel (%p784) target = $region120
        $region119: #{egnn_forward.1} parent=99 // pred_region
          %787 = dma.done %s780, 1024
        $region120: #{egnn_forward.1} parent=99 // pred_fallthru
          _
        %p788 = pneg %p56
        %p789 = pneg %p53
        %p790 = pneg %p77
        %p791 = pneg %p74
        %p792 = pneg %p98
        %p793 = pneg %p95
        %p794 = pneg %p119
        %p795 = pneg %p116
        %p796 = scmp.lt.s32.totalorder %s40, 6
        %s797 = scalar_select %p796, %s40, 6
        %s798 = scalar_lea.vmem %s4, %s797
        %p799 = pneg %p145
        %p800 = pneg %p142
        %p801 = scmp.lt.s32.totalorder %s40, 6
        %s802 = scalar_select %p801, %s40, 6
        %s803 = smul.addr %s802, 16
        %s804 = smul.addr %s803, 4
        %s805 = scalar_lea.vmem %s5, %s804
        %p806 = pneg %p171
        %p807 = pneg %p168
        %s808 = sand.u32 %s184, 1
        %s809 = scalar_lea.sflag [#allocation7], %s808
        %s810 = sand.u32 %s184, 1
        %s811 = smul.addr %s810, 64
        %s812 = scalar_lea.vmem [#allocation6], %s811
        %p813 = pneg %p197
        %p814 = pneg %p194
        %p815 = scmp.lt.s32.totalorder %s40, 6
        %s816 = scalar_select %p815, %s40, 6
        %s817 = scalar_lea.vmem %s7, %s816
        %p818 = pneg %p223
        %p819 = pneg %p220
        %s820 = sand.u32 %s40, 1
        %s821 = scalar_lea.sflag [#allocation9], %s820
        %s822 = sand.u32 %s236, 1
        %s823 = smul.addr %s822, 64
        %s824 = scalar_lea.vmem [#allocation8], %s823
        %p825 = pneg %p249
        %p826 = pneg %p246
        %p827 = scmp.lt.s32.totalorder %s40, 6
        %s828 = scalar_select %p827, %s40, 6
        %s829 = scalar_lea.vmem %s9, %s828
        %p830 = pneg %p275
        %p831 = pneg %p272
        %s832 = sand.u32 %s40, 1
        %s833 = scalar_lea.sflag [#allocation9], %s832
        %s834 = sand.u32 %s288, 1
        %s835 = smul.addr %s834, 64
        %s836 = scalar_lea.vmem [#allocation10], %s835
        %p837 = pneg %p301
        %p838 = pneg %p298
        %p839 = scmp.lt.s32.totalorder %s40, 6
        %s840 = scalar_select %p839, %s40, 6
        %s841 = scalar_lea.vmem %s11, %s840
        %p842 = pneg %p327
        %p843 = pneg %p324
        %p844 = scmp.lt.s32.totalorder %s40, 6
        %s845 = scalar_select %p844, %s40, 6
        %s846 = scalar_lea.vmem %s12, %s845
        %p847 = pneg %p353
        %p848 = pneg %p350
        %s849 = sand.u32 %s40, 1
        %s850 = scalar_lea.sflag [#allocation12], %s849
        %s851 = sand.u32 %s366, 1
        %s852 = smul.addr %s851, 128
        %s853 = scalar_lea.vmem [#allocation11], %s852
        %p854 = pneg %p379
        %p855 = pneg %p376
        %p856 = scmp.lt.s32.totalorder %s40, 6
        %s857 = scalar_select %p856, %s40, 6
        %s858 = scalar_lea.vmem %s14, %s857
        %p859 = pneg %p405
        %p860 = pneg %p402
        %s861 = sand.u32 %s40, 1
        %s862 = scalar_lea.sflag [#allocation12], %s861
        %s863 = sand.u32 %s418, 1
        %s864 = smul.addr %s863, 64
        %s865 = scalar_lea.vmem [#allocation13], %s864
        %p866 = pneg %p431
        %p867 = pneg %p428
        %p868 = scmp.lt.s32.totalorder %s40, 6
        %s869 = scalar_select %p868, %s40, 6
        %s870 = scalar_lea.vmem %s16, %s869
        %p871 = pneg %p457
        %p872 = pneg %p454
        %p873 = pneg %p478
        %p874 = pneg %p475
        %p875 = pneg %p499
        %p876 = pneg %p496
        %p877 = pneg %p520
        %p878 = pneg %p517
        %p879 = pneg %p541
        %p880 = pneg %p538
        %p881 = scmp.lt.s32.totalorder %s40, 6
        %s882 = scalar_select %p881, %s40, 6
        %s883 = scalar_lea.vmem %s4, %s882
        %p884 = scmp.lt.s32.totalorder %s40, 6
        %s885 = scalar_select %p884, %s40, 6
        %s886 = smul.addr %s885, 16
        %s887 = smul.addr %s886, 4
        %s888 = scalar_lea.vmem %s5, %s887
        %p889 = scmp.lt.s32.totalorder %s40, 6
        %s890 = scalar_select %p889, %s40, 6
        %s891 = scalar_lea.vmem %s7, %s890
        %p892 = scmp.lt.s32.totalorder %s40, 6
        %s893 = scalar_select %p892, %s40, 6
        %s894 = scalar_lea.vmem %s9, %s893
        %p895 = scmp.lt.s32.totalorder %s40, 6
        %s896 = scalar_select %p895, %s40, 6
        %s897 = scalar_lea.vmem %s11, %s896
        %p898 = scmp.lt.s32.totalorder %s40, 6
        %s899 = scalar_select %p898, %s40, 6
        %s900 = scalar_lea.vmem %s12, %s899
        %p901 = scmp.lt.s32.totalorder %s40, 6
        %s902 = scalar_select %p901, %s40, 6
        %s903 = scalar_lea.vmem %s14, %s902
        %p904 = scmp.lt.s32.totalorder %s40, 6
        %s905 = scalar_select %p904, %s40, 6
        %s906 = scalar_lea.vmem %s16, %s905
        %v908 = vld [vmem:[%s1] sm:$0xff]
        %v909 = vld [vmem:[%s1 + $0x8] sm:$0xff]
        %v910 = vld [vmem:[%s1 + $0x10] sm:$0xff]
        %v911 = vld [vmem:[%s1 + $0x18] sm:$0xff]
        %v912 = vld [vmem:[%s1 + $0x20] sm:$0xff]
        %v913 = vld [vmem:[%s1 + $0x28] sm:$0xff]
        %v914 = vld [vmem:[%s1 + $0x30] sm:$0xff]
        %v915 = vld [vmem:[%s1 + $0x38] sm:$0xff]
        %v916 = vld [vmem:[%s2] sm:$0x7f]
        %v917 = vld [vmem:[%s3] sm:$0x1]
        %v919 = vlaneseq
        %v920 = vshrl.u32 %v919, 7
        %v921 = vsub.s32 0, %v920
        %v922 = vrot.slane %v917, %v921
        %vm924 = vcmask 56320
        %v926 = vsel %vm924, %v908, 0
        %v929 = vsel %vm924, %v909, 0
        %v932 = vsel %vm924, %v910, 0
        %v935 = vsel %vm924, %v911, 0
        %v938 = vsel %vm924, %v912, 0
        %v941 = vsel %vm924, %v913, 0
        %v944 = vsel %vm924, %v914, 0
        %v947 = vsel %vm924, %v915, 0
        %vm949 = vcmask 1046528
        %v951 = vsel %vm949, %v916, 0
        %953 = vmatprep.subr.mxu0 0.0
        %954 = vmatpush1.msra.mxu0 0.0
        %955 = vmatprep.subr.mxu0 0.0
        %956 = vmatpush1.msra.mxu0 0.0
        %957 = vmatprep.subr.mxu0 0.0
        %958 = vmatpush1.msra.mxu0 0.0
        %959 = vmatprep.subr.mxu0 0.0
        %960 = vmatpush1.msra.mxu0 0.0
        %961 = vmatprep.subr.mxu0 0.0
        %962 = vmatpush1.msra.mxu0 0.0
        %963 = vmatprep.subr.mxu0 0.0
        %964 = vmatpush1.msra.mxu0 0.0
        %965 = vmatprep.subr.mxu0 0.0
        %966 = vmatpush1.msra.mxu0 0.0
        %967 = vmatprep.subr.mxu0 0.0
        %968 = vmatpush1.msra.mxu0 0.0
        %969 = vmatprep.subr.mxu0 0.0
        %970 = vmatpush1.msra.mxu0 0.0
        %971 = vmatprep.subr.mxu0 0.0
        %972 = vmatpush1.msra.mxu0 0.0
        %973 = vmatprep.subr.mxu0 0.0
        %974 = vmatpush1.msra.mxu0 0.0
        %975 = vmatprep.subr.mxu0 0.0
        %976 = vmatpush1.msra.mxu0 0.0
        %977 = vmatprep.subr.mxu0 0.0
        %978 = vmatpush1.msra.mxu0 0.0
        %979 = vmatprep.subr.mxu0 0.0
        %980 = vmatpush1.msra.mxu0 0.0
        %981 = vmatprep.subr.mxu0 0.0
        %982 = vmatpush1.msra.mxu0 0.0
        %983 = vmatprep.subr.mxu0 0.0
        %984 = vmatpush1.msra.mxu0 %v951
        %985 = vmatprep.subr.mxu0 0.0
        %986 = vmatpush2.msra.mxu0 0.0
        %987 = vmatprep.subr.mxu0 0.0
        %988 = vmatpush2.msra.mxu0 0.0
        %989 = vmatprep.subr.mxu0 0.0
        %990 = vmatpush2.msra.mxu0 0.0
        %991 = vmatprep.subr.mxu0 0.0
        %992 = vmatpush2.msra.mxu0 0.0
        %993 = vmatprep.subr.mxu0 0.0
        %994 = vmatpush2.msra.mxu0 0.0
        %995 = vmatprep.subr.mxu0 0.0
        %996 = vmatpush2.msra.mxu0 0.0
        %997 = vmatprep.subr.mxu0 0.0
        %998 = vmatpush2.msra.mxu0 0.0
        %999 = vmatprep.subr.mxu0 0.0
        %1000 = vmatpush2.msra.mxu0 0.0
        %1001 = vmatprep.subr.mxu0 0.0
        %1002 = vmatpush2.msra.mxu0 0.0
        %1003 = vmatprep.subr.mxu0 0.0
        %1004 = vmatpush2.msra.mxu0 0.0
        %1005 = vmatprep.subr.mxu0 0.0
        %1006 = vmatpush2.msra.mxu0 0.0
        %1007 = vmatprep.subr.mxu0 0.0
        %1008 = vmatpush2.msra.mxu0 0.0
        %1009 = vmatprep.subr.mxu0 0.0
        %1010 = vmatpush2.msra.mxu0 0.0
        %1011 = vmatprep.subr.mxu0 0.0
        %1012 = vmatpush2.msra.mxu0 0.0
        %1013 = vmatprep.subr.mxu0 0.0
        %1014 = vmatpush2.msra.mxu0 0.0
        %1015 = vmatprep.subr.mxu0 0.0
        %1016 = vmatpush2.msra.mxu0 0.0
        %1017 = vmatprep.mubr.f32.mxu0 0.0
        %1018 = vmatmul.mubr.f32.gmra.mxu0 %v926
        %v1019 = vpop.f32.mrf.mxu0
        %v1020 = vadd.f32 %v922, %v1019
        %v1021 = vpop.f32.mrf.mxu0
        %1022 = vmatprep.mubr.f32.mxu0 0.0
        %1023 = vmatmul.mubr.f32.gmra.mxu0 %v929
        %v1024 = vpop.f32.mrf.mxu0
        %v1025 = vadd.f32 %v922, %v1024
        %v1026 = vpop.f32.mrf.mxu0
        %1027 = vmatprep.mubr.f32.mxu0 0.0
        %1028 = vmatmul.mubr.f32.gmra.mxu0 %v932
        %v1029 = vpop.f32.mrf.mxu0
        %v1030 = vadd.f32 %v922, %v1029
        %v1031 = vpop.f32.mrf.mxu0
        %1032 = vmatprep.mubr.f32.mxu0 0.0
        %1033 = vmatmul.mubr.f32.gmra.mxu0 %v935
        %v1034 = vpop.f32.mrf.mxu0
        %v1035 = vadd.f32 %v922, %v1034
        %v1036 = vpop.f32.mrf.mxu0
        %1037 = vmatprep.mubr.f32.mxu0 0.0
        %1038 = vmatmul.mubr.f32.gmra.mxu0 %v938
        %v1039 = vpop.f32.mrf.mxu0
        %v1040 = vadd.f32 %v922, %v1039
        %v1041 = vpop.f32.mrf.mxu0
        %1042 = vmatprep.mubr.f32.mxu0 0.0
        %1043 = vmatmul.mubr.f32.gmra.mxu0 %v941
        %v1044 = vpop.f32.mrf.mxu0
        %v1045 = vadd.f32 %v922, %v1044
        %v1046 = vpop.f32.mrf.mxu0
        %1047 = vmatprep.mubr.f32.mxu0 0.0
        %1048 = vmatmul.mubr.f32.gmra.mxu0 %v944
        %v1049 = vpop.f32.mrf.mxu0
        %v1050 = vadd.f32 %v922, %v1049
        %v1051 = vpop.f32.mrf.mxu0
        %1052 = vmatprep.mubr.f32.mxu0 0.0
        %1053 = vmatmul.mubr.f32.gmra.mxu0 %v947
        %v1054 = vpop.f32.mrf.mxu0
        %v1055 = vadd.f32 %v922, %v1054
        %v1056 = vpop.f32.mrf.mxu0
        %1057 = vdwg.mxu0
        %p1058 = scmp.eq.s32.totalorder %s40, 0
        // Predicated region
        $region121: #{egnn_forward.1} parent=99 // pred_check
          %p1059 = pneg %p1058
        $region122: #{egnn_forward.1} parent=99 // pred_check_branch
          %1061 = sbr.rel (%p1059) target = $region124
        $region123: #{egnn_forward.1} parent=99 // pred_region
          %v1062 = vld [vmem:[%s0] sm:$0xff]
          %v1063 = vld [vmem:[%s0 + $0x8] sm:$0xff]
          %v1064 = vld [vmem:[%s0 + $0x10] sm:$0xff]
          %v1065 = vld [vmem:[%s0 + $0x18] sm:$0xff]
          %v1066 = vld [vmem:[%s0 + $0x20] sm:$0xff]
          %v1067 = vld [vmem:[%s0 + $0x28] sm:$0xff]
          %v1068 = vld [vmem:[%s0 + $0x30] sm:$0xff]
          %v1069 = vld [vmem:[%s0 + $0x38] sm:$0xff]
          %1070 = vst [vmem:[#allocation2] sm:$0xff] %v1062
          %1071 = vst [vmem:[#allocation2 + $0x8] sm:$0xff] %v1063
          %1072 = vst [vmem:[#allocation2 + $0x10] sm:$0xff] %v1064
          %1073 = vst [vmem:[#allocation2 + $0x18] sm:$0xff] %v1065
          %1074 = vst [vmem:[#allocation2 + $0x20] sm:$0xff] %v1066
          %1075 = vst [vmem:[#allocation2 + $0x28] sm:$0xff] %v1067
          %1076 = vst [vmem:[#allocation2 + $0x30] sm:$0xff] %v1068
          %1077 = vst [vmem:[#allocation2 + $0x38] sm:$0xff] %v1069
          %1078 = vst [vmem:[#allocation3] sm:$0xff] %v1020
          %1079 = vst [vmem:[#allocation3 + $0x8] sm:$0xff] %v1025
          %1080 = vst [vmem:[#allocation3 + $0x10] sm:$0xff] %v1030
          %1081 = vst [vmem:[#allocation3 + $0x18] sm:$0xff] %v1035
          %1082 = vst [vmem:[#allocation3 + $0x20] sm:$0xff] %v1040
          %1083 = vst [vmem:[#allocation3 + $0x28] sm:$0xff] %v1045
          %1084 = vst [vmem:[#allocation3 + $0x30] sm:$0xff] %v1050
          %1085 = vst [vmem:[#allocation3 + $0x38] sm:$0xff] %v1055
        $region124: #{egnn_forward.1} parent=99 // pred_fallthru
          _
        %v1086 = vld [vmem:[#allocation2] sm:$0xff]
        %v1087 = vld [vmem:[#allocation2 + $0x8] sm:$0xff]
        %v1088 = vld [vmem:[#allocation2 + $0x10] sm:$0xff]
        %v1089 = vld [vmem:[#allocation2 + $0x18] sm:$0xff]
        %v1090 = vld [vmem:[#allocation2 + $0x20] sm:$0xff]
        %v1091 = vld [vmem:[#allocation2 + $0x28] sm:$0xff]
        %v1092 = vld [vmem:[#allocation2 + $0x30] sm:$0xff]
        %v1093 = vld [vmem:[#allocation2 + $0x38] sm:$0xff]
        %v1094 = vld [vmem:[#allocation3] sm:$0xff]
        %v1095 = vld [vmem:[#allocation3 + $0x8] sm:$0xff]
        %v1096 = vld [vmem:[#allocation3 + $0x10] sm:$0xff]
        %v1097 = vld [vmem:[#allocation3 + $0x18] sm:$0xff]
        %v1098 = vld [vmem:[#allocation3 + $0x20] sm:$0xff]
        %v1099 = vld [vmem:[#allocation3 + $0x28] sm:$0xff]
        %v1100 = vld [vmem:[#allocation3 + $0x30] sm:$0xff]
        %v1101 = vld [vmem:[#allocation3 + $0x38] sm:$0xff]
        %1102 = vxpose.xlu0.b32.start [1/16] %v1086, 128
        %1103 = vxpose.xlu0.b32.cont [2/16] %v1087, 128
        %1104 = vxpose.xlu0.b32.cont [3/16] %v1088, 128
        %1105 = vxpose.xlu0.b32.cont [4/16] %v1089, 128
        %1106 = vxpose.xlu0.b32.cont [5/16] %v1090, 128
        %1107 = vxpose.xlu0.b32.cont [6/16] %v1091, 128
        %1108 = vxpose.xlu0.b32.cont [7/16] %v1092, 128
        %1109 = vxpose.xlu0.b32.cont [8/16] %v1093, 128
        %1110 = vxpose.xlu0.b32.cont [9/16] 0.0, 128
        %1111 = vxpose.xlu0.b32.cont [10/16] 0.0, 128
        %1112 = vxpose.xlu0.b32.cont [11/16] 0.0, 128
        %1113 = vxpose.xlu0.b32.cont [12/16] 0.0, 128
        %1114 = vxpose.xlu0.b32.cont [13/16] 0.0, 128
        %1115 = vxpose.xlu0.b32.cont [14/16] 0.0, 128
        %1116 = vxpose.xlu0.b32.cont [15/16] 0.0, 128
        %1117 = vxpose.xlu0.b32.end [16/16] 0.0, 128
        %v1118 = vpop.trf.xlu0
        %v1119 = vpop.trf.xlu0
        %v1120 = vpop.trf.xlu0
        %v1121 = vpop.trf.xlu0
        %v1122 = vpop.trf.xlu0
        %v1123 = vpop.trf.xlu0
        %v1124 = vpop.trf.xlu0
        %v1125 = vpop.trf.xlu0
        %v1126 = vpop.trf.xlu0
        %v1127 = vpop.trf.xlu0
        %v1128 = vpop.trf.xlu0
        %v1129 = vpop.trf.xlu0
        %v1130 = vpop.trf.xlu0
        %v1131 = vpop.trf.xlu0
        %v1132 = vpop.trf.xlu0
        %v1133 = vpop.trf.xlu0
        %1134 = vmatprep.subr.mxu0 0.0
        %1135 = vmatpush1.msra.mxu0 %v1133
        %1136 = vmatprep.subr.mxu0 0.0
        %1137 = vmatpush1.msra.mxu0 %v1132
        %1138 = vmatprep.subr.mxu0 0.0
        %1139 = vmatpush1.msra.mxu0 %v1131
        %1140 = vmatprep.subr.mxu0 0.0
        %1141 = vmatpush1.msra.mxu0 %v1130
        %1142 = vmatprep.subr.mxu0 0.0
        %1143 = vmatpush1.msra.mxu0 %v1129
        %1144 = vmatprep.subr.mxu0 0.0
        %1145 = vmatpush1.msra.mxu0 %v1128
        %1146 = vmatprep.subr.mxu0 0.0
        %1147 = vmatpush1.msra.mxu0 %v1127
        %1148 = vmatprep.subr.mxu0 0.0
        %1149 = vmatpush1.msra.mxu0 %v1126
        %1150 = vmatprep.subr.mxu0 0.0
        %1151 = vmatpush1.msra.mxu0 %v1125
        %1152 = vmatprep.subr.mxu0 0.0
        %1153 = vmatpush1.msra.mxu0 %v1124
        %1154 = vmatprep.subr.mxu0 0.0
        %1155 = vmatpush1.msra.mxu0 %v1123
        %1156 = vmatprep.subr.mxu0 0.0
        %1157 = vmatpush1.msra.mxu0 %v1122
        %1158 = vmatprep.subr.mxu0 0.0
        %1159 = vmatpush1.msra.mxu0 %v1121
        %1160 = vmatprep.subr.mxu0 0.0
        %1161 = vmatpush1.msra.mxu0 %v1120
        %1162 = vmatprep.subr.mxu0 0.0
        %1163 = vmatpush1.msra.mxu0 %v1119
        %1164 = vmatprep.subr.mxu0 0.0
        %1165 = vmatpush1.msra.mxu0 %v1118
        %1166 = vmatprep.subr.mxu0 0.0
        %1167 = vmatpush2.msra.mxu0 0.0
        %1168 = vmatprep.subr.mxu0 0.0
        %1169 = vmatpush2.msra.mxu0 0.0
        %1170 = vmatprep.subr.mxu0 0.0
        %1171 = vmatpush2.msra.mxu0 0.0
        %1172 = vmatprep.subr.mxu0 0.0
        %1173 = vmatpush2.msra.mxu0 0.0
        %1174 = vmatprep.subr.mxu0 0.0
        %1175 = vmatpush2.msra.mxu0 0.0
        %1176 = vmatprep.subr.mxu0 0.0
        %1177 = vmatpush2.msra.mxu0 0.0
        %1178 = vmatprep.subr.mxu0 0.0
        %1179 = vmatpush2.msra.mxu0 0.0
        %1180 = vmatprep.subr.mxu0 0.0
        %1181 = vmatpush2.msra.mxu0 0.0
        %1182 = vmatprep.subr.mxu0 0.0
        %1183 = vmatpush2.msra.mxu0 0.0
        %1184 = vmatprep.subr.mxu0 0.0
        %1185 = vmatpush2.msra.mxu0 0.0
        %1186 = vmatprep.subr.mxu0 0.0
        %1187 = vmatpush2.msra.mxu0 0.0
        %1188 = vmatprep.subr.mxu0 0.0
        %1189 = vmatpush2.msra.mxu0 0.0
        %1190 = vmatprep.subr.mxu0 0.0
        %1191 = vmatpush2.msra.mxu0 0.0
        %1192 = vmatprep.subr.mxu0 0.0
        %1193 = vmatpush2.msra.mxu0 0.0
        %1194 = vmatprep.subr.mxu0 0.0
        %1195 = vmatpush2.msra.mxu0 0.0
        %1196 = vmatprep.subr.mxu0 0.0
        %1197 = vmatpush2.msra.mxu0 0.0
        %1198 = vmatprep.mubr.f32.mxu0 0.0
        %1199 = vmatmul.mubr.f32.gmra.mxu0 %v1086
        %v1200 = vpop.f32.mrf.mxu0
        %v1201 = vadd.f32 0.0, %v1200
        %v1202 = vpop.f32.mrf.mxu0
        %1203 = vmatprep.mubr.f32.mxu0 0.0
        %1204 = vmatmul.mubr.f32.gmra.mxu0 %v1087
        %v1205 = vpop.f32.mrf.mxu0
        %v1206 = vadd.f32 0.0, %v1205
        %v1207 = vpop.f32.mrf.mxu0
        %1208 = vmatprep.mubr.f32.mxu0 0.0
        %1209 = vmatmul.mubr.f32.gmra.mxu0 %v1088
        %v1210 = vpop.f32.mrf.mxu0
        %v1211 = vadd.f32 0.0, %v1210
        %v1212 = vpop.f32.mrf.mxu0
        %1213 = vmatprep.mubr.f32.mxu0 0.0
        %1214 = vmatmul.mubr.f32.gmra.mxu0 %v1089
        %v1215 = vpop.f32.mrf.mxu0
        %v1216 = vadd.f32 0.0, %v1215
        %v1217 = vpop.f32.mrf.mxu0
        %1218 = vmatprep.mubr.f32.mxu0 0.0
        %1219 = vmatmul.mubr.f32.gmra.mxu0 %v1090
        %v1220 = vpop.f32.mrf.mxu0
        %v1221 = vadd.f32 0.0, %v1220
        %v1222 = vpop.f32.mrf.mxu0
        %1223 = vmatprep.mubr.f32.mxu0 0.0
        %1224 = vmatmul.mubr.f32.gmra.mxu0 %v1091
        %v1225 = vpop.f32.mrf.mxu0
        %v1226 = vadd.f32 0.0, %v1225
        %v1227 = vpop.f32.mrf.mxu0
        %1228 = vmatprep.mubr.f32.mxu0 0.0
        %1229 = vmatmul.mubr.f32.gmra.mxu0 %v1092
        %v1230 = vpop.f32.mrf.mxu0
        %v1231 = vadd.f32 0.0, %v1230
        %v1232 = vpop.f32.mrf.mxu0
        %1233 = vmatprep.mubr.f32.mxu0 0.0
        %1234 = vmatmul.mubr.f32.gmra.mxu0 %v1093
        %v1235 = vpop.f32.mrf.mxu0
        %v1236 = vadd.f32 0.0, %v1235
        %v1237 = vpop.f32.mrf.mxu0
        %1238 = vdwg.mxu0
        %v1239 = vmul.f32 %v1086, %v1086
        %v1240 = vmul.f32 %v1087, %v1087
        %v1241 = vmul.f32 %v1088, %v1088
        %v1242 = vmul.f32 %v1089, %v1089
        %v1243 = vmul.f32 %v1090, %v1090
        %v1244 = vmul.f32 %v1091, %v1091
        %v1245 = vmul.f32 %v1092, %v1092
        %v1246 = vmul.f32 %v1093, %v1093
        %1247 = vadd.xlane.f32.xlu0 %v1239
        %v1248 = vpop.xlane.xlu0 %1247
        %1249 = vadd.xlane.f32.xlu0 %v1240
        %v1250 = vpop.xlane.xlu0 %1249
        %1251 = vadd.xlane.f32.xlu0 %v1241
        %v1252 = vpop.xlane.xlu0 %1251
        %1253 = vadd.xlane.f32.xlu0 %v1242
        %v1254 = vpop.xlane.xlu0 %1253
        %1255 = vadd.xlane.f32.xlu0 %v1243
        %v1256 = vpop.xlane.xlu0 %1255
        %1257 = vadd.xlane.f32.xlu0 %v1244
        %v1258 = vpop.xlane.xlu0 %1257
        %1259 = vadd.xlane.f32.xlu0 %v1245
        %v1260 = vpop.xlane.xlu0 %1259
        %1261 = vadd.xlane.f32.xlu0 %v1246
        %v1262 = vpop.xlane.xlu0 %1261
        %v1263 = vmul.f32 %v1118, %v1118
        %v1264 = vmul.f32 %v1119, %v1119
        %v1265 = vmul.f32 %v1120, %v1120
        %v1266 = vmul.f32 %v1121, %v1121
        %v1267 = vmul.f32 %v1122, %v1122
        %v1268 = vmul.f32 %v1123, %v1123
        %v1269 = vmul.f32 %v1124, %v1124
        %v1270 = vmul.f32 %v1125, %v1125
        %v1271 = vmul.f32 %v1126, %v1126
        %v1272 = vmul.f32 %v1127, %v1127
        %v1273 = vmul.f32 %v1128, %v1128
        %v1274 = vmul.f32 %v1129, %v1129
        %v1275 = vmul.f32 %v1130, %v1130
        %v1276 = vmul.f32 %v1131, %v1131
        %v1277 = vmul.f32 %v1132, %v1132
        %v1278 = vmul.f32 %v1133, %v1133
        %vm1279 = vcmask 523264
        %v1280 = vsel %vm1279, %v1263, 0.0
        %v1281 = vsel %vm1279, %v1264, 0.0
        %v1282 = vadd.f32 %v1280, %v1281
        %v1283 = vsel %vm1279, %v1265, 0.0
        %v1284 = vadd.f32 %v1282, %v1283
        %v1285 = vsel %vm1279, %v1266, 0.0
        %v1286 = vadd.f32 %v1284, %v1285
        %v1287 = vsel %vm1279, %v1267, 0.0
        %v1288 = vadd.f32 %v1286, %v1287
        %v1289 = vsel %vm1279, %v1268, 0.0
        %v1290 = vadd.f32 %v1288, %v1289
        %v1291 = vsel %vm1279, %v1269, 0.0
        %v1292 = vadd.f32 %v1290, %v1291
        %v1293 = vsel %vm1279, %v1270, 0.0
        %v1294 = vadd.f32 %v1292, %v1293
        %v1295 = vsel %vm1279, %v1271, 0.0
        %v1296 = vadd.f32 %v1294, %v1295
        %v1297 = vsel %vm1279, %v1272, 0.0
        %v1298 = vadd.f32 %v1296, %v1297
        %v1299 = vsel %vm1279, %v1273, 0.0
        %v1300 = vadd.f32 %v1298, %v1299
        %v1301 = vsel %vm1279, %v1274, 0.0
        %v1302 = vadd.f32 %v1300, %v1301
        %v1303 = vsel %vm1279, %v1275, 0.0
        %v1304 = vadd.f32 %v1302, %v1303
        %v1305 = vsel %vm1279, %v1276, 0.0
        %v1306 = vadd.f32 %v1304, %v1305
        %v1307 = vsel %vm1279, %v1277, 0.0
        %v1308 = vadd.f32 %v1306, %v1307
        %v1309 = vsel %vm1279, %v1278, 0.0
        %v1310 = vadd.f32 %v1308, %v1309
        %v1311 = vrot.slane %v1310, 4
        %v1312 = vadd.f32 %v1310, %v1311
        %v1313 = vrot.slane %v1312, 2
        %v1314 = vadd.f32 %v1312, %v1313
        %v1315 = vrot.slane %v1314, 1
        %v1316 = vadd.f32 %v1314, %v1315
        %v1317 = vlaneseq
        %v1318 = vshrl.u32 %v1317, 7
        %v1319 = vadd.s32 %v1318, 8
        %v1320 = vadd.s32 %v1318, 16
        %v1321 = vadd.s32 %v1318, 24
        %v1322 = vadd.s32 %v1318, 32
        %v1323 = vadd.s32 %v1318, 40
        %v1324 = vadd.s32 %v1318, 48
        %v1325 = vadd.s32 %v1318, 56
        %v1326 = vlaneseq
        %v1327 = vand.u32 %v1326, 127
        %v1328 = vcvt.s32.f32 %v1327
        %v1329 = vadd.f32 %v1248, %v1316
        %v1330 = vadd.f32 %v1250, %v1316
        %v1331 = vadd.f32 %v1252, %v1316
        %v1332 = vadd.f32 %v1254, %v1316
        %v1333 = vadd.f32 %v1256, %v1316
        %v1334 = vadd.f32 %v1258, %v1316
        %v1335 = vadd.f32 %v1260, %v1316
        %v1336 = vadd.f32 %v1262, %v1316
        %v1337 = vmul.f32 %v1201, 2.0
        %v1338 = vmul.f32 %v1206, 2.0
        %v1339 = vmul.f32 %v1211, 2.0
        %v1340 = vmul.f32 %v1216, 2.0
        %v1341 = vmul.f32 %v1221, 2.0
        %v1342 = vmul.f32 %v1226, 2.0
        %v1343 = vmul.f32 %v1231, 2.0
        %v1344 = vmul.f32 %v1236, 2.0
        %v1345 = vsub.f32 %v1329, %v1337
        %v1346 = vsub.f32 %v1330, %v1338
        %v1347 = vsub.f32 %v1331, %v1339
        %v1348 = vsub.f32 %v1332, %v1340
        %v1349 = vsub.f32 %v1333, %v1341
        %v1350 = vsub.f32 %v1334, %v1342
        %v1351 = vsub.f32 %v1335, %v1343
        %v1352 = vsub.f32 %v1336, %v1344
        %vm1353 = vcmp.eq.s32.totalorder %v1318, %v1327
        %vm1354 = vcmp.eq.s32.totalorder %v1319, %v1327
        %vm1355 = vcmp.eq.s32.totalorder %v1320, %v1327
        %vm1356 = vcmp.eq.s32.totalorder %v1321, %v1327
        %vm1357 = vcmp.eq.s32.totalorder %v1322, %v1327
        %vm1358 = vcmp.eq.s32.totalorder %v1323, %v1327
        %vm1359 = vcmp.eq.s32.totalorder %v1324, %v1327
        %vm1360 = vcmp.eq.s32.totalorder %v1325, %v1327
        %v1361 = vsel %vm1353, 1e+09, %v1345
        %v1362 = vsel %vm1354, 1e+09, %v1346
        %v1363 = vsel %vm1355, 1e+09, %v1347
        %v1364 = vsel %vm1356, 1e+09, %v1348
        %v1365 = vsel %vm1357, 1e+09, %v1349
        %v1366 = vsel %vm1358, 1e+09, %v1350
        %v1367 = vsel %vm1359, 1e+09, %v1351
        %v1368 = vsel %vm1360, 1e+09, %v1352
        %v1369 = vsel %vm1279, %v1361, inf
        %1370 = vmin.xlane.f32.xlu0 %v1369
        %v1371 = vpop.xlane.xlu0 %1370
        %v1372 = vsel %vm1279, %v1362, inf
        %1373 = vmin.xlane.f32.xlu0 %v1372
        %v1374 = vpop.xlane.xlu0 %1373
        %v1375 = vsel %vm1279, %v1363, inf
        %1376 = vmin.xlane.f32.xlu0 %v1375
        %v1377 = vpop.xlane.xlu0 %1376
        %v1378 = vsel %vm1279, %v1364, inf
        %1379 = vmin.xlane.f32.xlu0 %v1378
        %v1380 = vpop.xlane.xlu0 %1379
        %v1381 = vsel %vm1279, %v1365, inf
        %1382 = vmin.xlane.f32.xlu0 %v1381
        %v1383 = vpop.xlane.xlu0 %1382
        %v1384 = vsel %vm1279, %v1366, inf
        %1385 = vmin.xlane.f32.xlu0 %v1384
        %v1386 = vpop.xlane.xlu0 %1385
        %v1387 = vsel %vm1279, %v1367, inf
        %1388 = vmin.xlane.f32.xlu0 %v1387
        %v1389 = vpop.xlane.xlu0 %1388
        %v1390 = vsel %vm1279, %v1368, inf
        %1391 = vmin.xlane.f32.xlu0 %v1390
        %v1392 = vpop.xlane.xlu0 %1391
        %v1393 = vmax.f32 %v1371, 0.0
        %v1394 = vmax.f32 %v1374, 0.0
        %v1395 = vmax.f32 %v1377, 0.0
        %v1396 = vmax.f32 %v1380, 0.0
        %v1397 = vmax.f32 %v1383, 0.0
        %v1398 = vmax.f32 %v1386, 0.0
        %v1399 = vmax.f32 %v1389, 0.0
        %v1400 = vmax.f32 %v1392, 0.0
        %vm1401 = vcmask 7168
        %1402 = vst.msk [vmem:[#allocation5] sm:$0xff] %vm1401, %v1393
        %1403 = vst.msk [vmem:[#allocation5 + $0x8] sm:$0xff] %vm1401, %v1394
        %1404 = vst.msk [vmem:[#allocation5 + $0x10] sm:$0xff] %vm1401, %v1395
        %1405 = vst.msk [vmem:[#allocation5 + $0x18] sm:$0xff] %vm1401, %v1396
        %1406 = vst.msk [vmem:[#allocation5 + $0x20] sm:$0xff] %vm1401, %v1397
        %1407 = vst.msk [vmem:[#allocation5 + $0x28] sm:$0xff] %vm1401, %v1398
        %1408 = vst.msk [vmem:[#allocation5 + $0x30] sm:$0xff] %vm1401, %v1399
        %1409 = vst.msk [vmem:[#allocation5 + $0x38] sm:$0xff] %vm1401, %v1400
        %vm1410 = vcmp.le.f32.partialorder %v1361, %v1371
        %vm1411 = vcmp.le.f32.partialorder %v1362, %v1374
        %vm1412 = vcmp.le.f32.partialorder %v1363, %v1377
        %vm1413 = vcmp.le.f32.partialorder %v1364, %v1380
        %vm1414 = vcmp.le.f32.partialorder %v1365, %v1383
        %vm1415 = vcmp.le.f32.partialorder %v1366, %v1386
        %vm1416 = vcmp.le.f32.partialorder %v1367, %v1389
        %vm1417 = vcmp.le.f32.partialorder %v1368, %v1392
        %v1418 = vsel %vm1410, %v1328, 64.0
        %v1419 = vsel %vm1411, %v1328, 64.0
        %v1420 = vsel %vm1412, %v1328, 64.0
        %v1421 = vsel %vm1413, %v1328, 64.0
        %v1422 = vsel %vm1414, %v1328, 64.0
        %v1423 = vsel %vm1415, %v1328, 64.0
        %v1424 = vsel %vm1416, %v1328, 64.0
        %v1425 = vsel %vm1417, %v1328, 64.0
        %v1426 = vsel %vm1279, %v1418, inf
        %1427 = vmin.xlane.f32.xlu0 %v1426
        %v1428 = vpop.xlane.xlu0 %1427
        %v1429 = vsel %vm1279, %v1419, inf
        %1430 = vmin.xlane.f32.xlu0 %v1429
        %v1431 = vpop.xlane.xlu0 %1430
        %v1432 = vsel %vm1279, %v1420, inf
        %1433 = vmin.xlane.f32.xlu0 %v1432
        %v1434 = vpop.xlane.xlu0 %1433
        %v1435 = vsel %vm1279, %v1421, inf
        %1436 = vmin.xlane.f32.xlu0 %v1435
        %v1437 = vpop.xlane.xlu0 %1436
        %v1438 = vsel %vm1279, %v1422, inf
        %1439 = vmin.xlane.f32.xlu0 %v1438
        %v1440 = vpop.xlane.xlu0 %1439
        %v1441 = vsel %vm1279, %v1423, inf
        %1442 = vmin.xlane.f32.xlu0 %v1441
        %v1443 = vpop.xlane.xlu0 %1442
        %v1444 = vsel %vm1279, %v1424, inf
        %1445 = vmin.xlane.f32.xlu0 %v1444
        %v1446 = vpop.xlane.xlu0 %1445
        %v1447 = vsel %vm1279, %v1425, inf
        %1448 = vmin.xlane.f32.xlu0 %v1447
        %v1449 = vpop.xlane.xlu0 %1448
        %vm1450 = vcmp.eq.f32.partialorder %v1328, %v1428
        %vm1451 = vcmp.eq.f32.partialorder %v1328, %v1431
        %vm1452 = vcmp.eq.f32.partialorder %v1328, %v1434
        %vm1453 = vcmp.eq.f32.partialorder %v1328, %v1437
        %vm1454 = vcmp.eq.f32.partialorder %v1328, %v1440
        %vm1455 = vcmp.eq.f32.partialorder %v1328, %v1443
        %vm1456 = vcmp.eq.f32.partialorder %v1328, %v1446
        %vm1457 = vcmp.eq.f32.partialorder %v1328, %v1449
        %v1458 = vsel %vm1450, 1, 0
        %v1459 = vsel %vm1451, 1, 0
        %v1460 = vsel %vm1452, 1, 0
        %v1461 = vsel %vm1453, 1, 0
        %v1462 = vsel %vm1454, 1, 0
        %v1463 = vsel %vm1455, 1, 0
        %v1464 = vsel %vm1456, 1, 0
        %v1465 = vsel %vm1457, 1, 0
        %v1466 = vcvt.s32.f32 %v1458
        %v1467 = vcvt.s32.f32 %v1459
        %v1468 = vcvt.s32.f32 %v1460
        %v1469 = vcvt.s32.f32 %v1461
        %v1470 = vcvt.s32.f32 %v1462
        %v1471 = vcvt.s32.f32 %v1463
        %v1472 = vcvt.s32.f32 %v1464
        %v1473 = vcvt.s32.f32 %v1465
        %v1474 = vpack.c.bf16 %v1467, %v1466
        %v1475 = vpack.c.bf16 %v1469, %v1468
        %v1476 = vpack.c.bf16 %v1471, %v1470
        %v1477 = vpack.c.bf16 %v1473, %v1472
        %v1482 = vunpack.c.l.b16 %v1474
        %v1483 = vunpack.c.h.b16 %v1474
        %v1484 = vunpack.c.l.b16 %v1475
        %v1485 = vunpack.c.h.b16 %v1475
        %v1486 = vunpack.c.l.b16 %v1476
        %v1487 = vunpack.c.h.b16 %v1476
        %v1488 = vunpack.c.l.b16 %v1477
        %v1489 = vunpack.c.h.b16 %v1477
        %v1490 = vpack.c.b16 %v1482, %v1482
        %v1491 = vpack.c.b16 %v1483, %v1483
        %v1492 = vpack.c.b16 %v1484, %v1484
        %v1493 = vpack.c.b16 %v1485, %v1485
        %v1494 = vpack.c.b16 %v1486, %v1486
        %v1495 = vpack.c.b16 %v1487, %v1487
        %v1496 = vpack.c.b16 %v1488, %v1488
        %v1497 = vpack.c.b16 %v1489, %v1489
        %vm1506 = vcmask 519168
        %1507 = vst.msk [vmem:[#allocation4] sm:$0xf] %vm1506, %v1490
        %1508 = vst.msk [vmem:[#allocation4 + $0x4] sm:$0xf] %vm1506, %v1491
        %1509 = vst.msk [vmem:[#allocation4 + $0x8] sm:$0xf] %vm1506, %v1492
        %1510 = vst.msk [vmem:[#allocation4 + $0xc] sm:$0xf] %vm1506, %v1493
        %1511 = vst.msk [vmem:[#allocation4 + $0x10] sm:$0xf] %vm1506, %v1494
        %1512 = vst.msk [vmem:[#allocation4 + $0x14] sm:$0xf] %vm1506, %v1495
        %1513 = vst.msk [vmem:[#allocation4 + $0x18] sm:$0xf] %vm1506, %v1496
        %1514 = vst.msk [vmem:[#allocation4 + $0x1c] sm:$0xf] %vm1506, %v1497
        %v1515 = vsel %vm1450, 1e+30, %v1361
        %v1516 = vsel %vm1451, 1e+30, %v1362
        %v1517 = vsel %vm1452, 1e+30, %v1363
        %v1518 = vsel %vm1453, 1e+30, %v1364
        %v1519 = vsel %vm1454, 1e+30, %v1365
        %v1520 = vsel %vm1455, 1e+30, %v1366
        %v1521 = vsel %vm1456, 1e+30, %v1367
        %v1522 = vsel %vm1457, 1e+30, %v1368
        %v1523 = vsel %vm1279, %v1515, inf
        %1524 = vmin.xlane.f32.xlu0 %v1523
        %v1525 = vpop.xlane.xlu0 %1524
        %v1526 = vsel %vm1279, %v1516, inf
        %1527 = vmin.xlane.f32.xlu0 %v1526
        %v1528 = vpop.xlane.xlu0 %1527
        %v1529 = vsel %vm1279, %v1517, inf
        %1530 = vmin.xlane.f32.xlu0 %v1529
        %v1531 = vpop.xlane.xlu0 %1530
        %v1532 = vsel %vm1279, %v1518, inf
        %1533 = vmin.xlane.f32.xlu0 %v1532
        %v1534 = vpop.xlane.xlu0 %1533
        %v1535 = vsel %vm1279, %v1519, inf
        %1536 = vmin.xlane.f32.xlu0 %v1535
        %v1537 = vpop.xlane.xlu0 %1536
        %v1538 = vsel %vm1279, %v1520, inf
        %1539 = vmin.xlane.f32.xlu0 %v1538
        %v1540 = vpop.xlane.xlu0 %1539
        %v1541 = vsel %vm1279, %v1521, inf
        %1542 = vmin.xlane.f32.xlu0 %v1541
        %v1543 = vpop.xlane.xlu0 %1542
        %v1544 = vsel %vm1279, %v1522, inf
        %1545 = vmin.xlane.f32.xlu0 %v1544
        %v1546 = vpop.xlane.xlu0 %1545
        %v1547 = vmax.f32 %v1525, 0.0
        %v1548 = vmax.f32 %v1528, 0.0
        %v1549 = vmax.f32 %v1531, 0.0
        %v1550 = vmax.f32 %v1534, 0.0
        %v1551 = vmax.f32 %v1537, 0.0
        %v1552 = vmax.f32 %v1540, 0.0
        %v1553 = vmax.f32 %v1543, 0.0
        %v1554 = vmax.f32 %v1546, 0.0
        %1555 = vst.msk [vmem:[#allocation5 + $0x40] sm:$0xff] %vm1401, %v1547
        %1556 = vst.msk [vmem:[#allocation5 + $0x48] sm:$0xff] %vm1401, %v1548
        %1557 = vst.msk [vmem:[#allocation5 + $0x50] sm:$0xff] %vm1401, %v1549
        %1558 = vst.msk [vmem:[#allocation5 + $0x58] sm:$0xff] %vm1401, %v1550
        %1559 = vst.msk [vmem:[#allocation5 + $0x60] sm:$0xff] %vm1401, %v1551
        %1560 = vst.msk [vmem:[#allocation5 + $0x68] sm:$0xff] %vm1401, %v1552
        %1561 = vst.msk [vmem:[#allocation5 + $0x70] sm:$0xff] %vm1401, %v1553
        %1562 = vst.msk [vmem:[#allocation5 + $0x78] sm:$0xff] %vm1401, %v1554
        %vm1563 = vcmp.le.f32.partialorder %v1515, %v1525
        %vm1564 = vcmp.le.f32.partialorder %v1516, %v1528
        %vm1565 = vcmp.le.f32.partialorder %v1517, %v1531
        %vm1566 = vcmp.le.f32.partialorder %v1518, %v1534
        %vm1567 = vcmp.le.f32.partialorder %v1519, %v1537
        %vm1568 = vcmp.le.f32.partialorder %v1520, %v1540
        %vm1569 = vcmp.le.f32.partialorder %v1521, %v1543
        %vm1570 = vcmp.le.f32.partialorder %v1522, %v1546
        %v1571 = vsel %vm1563, %v1328, 64.0
        %v1572 = vsel %vm1564, %v1328, 64.0
        %v1573 = vsel %vm1565, %v1328, 64.0
        %v1574 = vsel %vm1566, %v1328, 64.0
        %v1575 = vsel %vm1567, %v1328, 64.0
        %v1576 = vsel %vm1568, %v1328, 64.0
        %v1577 = vsel %vm1569, %v1328, 64.0
        %v1578 = vsel %vm1570, %v1328, 64.0
        %v1579 = vsel %vm1279, %v1571, inf
        %1580 = vmin.xlane.f32.xlu0 %v1579
        %v1581 = vpop.xlane.xlu0 %1580
        %v1582 = vsel %vm1279, %v1572, inf
        %1583 = vmin.xlane.f32.xlu0 %v1582
        %v1584 = vpop.xlane.xlu0 %1583
        %v1585 = vsel %vm1279, %v1573, inf
        %1586 = vmin.xlane.f32.xlu0 %v1585
        %v1587 = vpop.xlane.xlu0 %1586
        %v1588 = vsel %vm1279, %v1574, inf
        %1589 = vmin.xlane.f32.xlu0 %v1588
        %v1590 = vpop.xlane.xlu0 %1589
        %v1591 = vsel %vm1279, %v1575, inf
        %1592 = vmin.xlane.f32.xlu0 %v1591
        %v1593 = vpop.xlane.xlu0 %1592
        %v1594 = vsel %vm1279, %v1576, inf
        %1595 = vmin.xlane.f32.xlu0 %v1594
        %v1596 = vpop.xlane.xlu0 %1595
        %v1597 = vsel %vm1279, %v1577, inf
        %1598 = vmin.xlane.f32.xlu0 %v1597
        %v1599 = vpop.xlane.xlu0 %1598
        %v1600 = vsel %vm1279, %v1578, inf
        %1601 = vmin.xlane.f32.xlu0 %v1600
        %v1602 = vpop.xlane.xlu0 %1601
        %vm1603 = vcmp.eq.f32.partialorder %v1328, %v1581
        %vm1604 = vcmp.eq.f32.partialorder %v1328, %v1584
        %vm1605 = vcmp.eq.f32.partialorder %v1328, %v1587
        %vm1606 = vcmp.eq.f32.partialorder %v1328, %v1590
        %vm1607 = vcmp.eq.f32.partialorder %v1328, %v1593
        %vm1608 = vcmp.eq.f32.partialorder %v1328, %v1596
        %vm1609 = vcmp.eq.f32.partialorder %v1328, %v1599
        %vm1610 = vcmp.eq.f32.partialorder %v1328, %v1602
        %v1611 = vsel %vm1603, 1, 0
        %v1612 = vsel %vm1604, 1, 0
        %v1613 = vsel %vm1605, 1, 0
        %v1614 = vsel %vm1606, 1, 0
        %v1615 = vsel %vm1607, 1, 0
        %v1616 = vsel %vm1608, 1, 0
        %v1617 = vsel %vm1609, 1, 0
        %v1618 = vsel %vm1610, 1, 0
        %v1619 = vcvt.s32.f32 %v1611
        %v1620 = vcvt.s32.f32 %v1612
        %v1621 = vcvt.s32.f32 %v1613
        %v1622 = vcvt.s32.f32 %v1614
        %v1623 = vcvt.s32.f32 %v1615
        %v1624 = vcvt.s32.f32 %v1616
        %v1625 = vcvt.s32.f32 %v1617
        %v1626 = vcvt.s32.f32 %v1618
        %v1627 = vpack.c.bf16 %v1620, %v1619
        %v1628 = vpack.c.bf16 %v1622, %v1621
        %v1629 = vpack.c.bf16 %v1624, %v1623
        %v1630 = vpack.c.bf16 %v1626, %v1625
        %v1635 = vunpack.c.l.b16 %v1627
        %v1636 = vunpack.c.h.b16 %v1627
        %v1637 = vunpack.c.l.b16 %v1628
        %v1638 = vunpack.c.h.b16 %v1628
        %v1639 = vunpack.c.l.b16 %v1629
        %v1640 = vunpack.c.h.b16 %v1629
        %v1641 = vunpack.c.l.b16 %v1630
        %v1642 = vunpack.c.h.b16 %v1630
        %v1643 = vpack.c.b16 %v1635, %v1635
        %v1644 = vpack.c.b16 %v1636, %v1636
        %v1645 = vpack.c.b16 %v1637, %v1637
        %v1646 = vpack.c.b16 %v1638, %v1638
        %v1647 = vpack.c.b16 %v1639, %v1639
        %v1648 = vpack.c.b16 %v1640, %v1640
        %v1649 = vpack.c.b16 %v1641, %v1641
        %v1650 = vpack.c.b16 %v1642, %v1642
        %1659 = vst.msk [vmem:[#allocation4 + $0x20] sm:$0xf] %vm1506, %v1643
        %1660 = vst.msk [vmem:[#allocation4 + $0x24] sm:$0xf] %vm1506, %v1644
        %1661 = vst.msk [vmem:[#allocation4 + $0x28] sm:$0xf] %vm1506, %v1645
        %1662 = vst.msk [vmem:[#allocation4 + $0x2c] sm:$0xf] %vm1506, %v1646
        %1663 = vst.msk [vmem:[#allocation4 + $0x30] sm:$0xf] %vm1506, %v1647
        %1664 = vst.msk [vmem:[#allocation4 + $0x34] sm:$0xf] %vm1506, %v1648
        %1665 = vst.msk [vmem:[#allocation4 + $0x38] sm:$0xf] %vm1506, %v1649
        %1666 = vst.msk [vmem:[#allocation4 + $0x3c] sm:$0xf] %vm1506, %v1650
        %v1667 = vsel %vm1603, 1e+30, %v1515
        %v1668 = vsel %vm1604, 1e+30, %v1516
        %v1669 = vsel %vm1605, 1e+30, %v1517
        %v1670 = vsel %vm1606, 1e+30, %v1518
        %v1671 = vsel %vm1607, 1e+30, %v1519
        %v1672 = vsel %vm1608, 1e+30, %v1520
        %v1673 = vsel %vm1609, 1e+30, %v1521
        %v1674 = vsel %vm1610, 1e+30, %v1522
        %v1675 = vsel %vm1279, %v1667, inf
        %1676 = vmin.xlane.f32.xlu0 %v1675
        %v1677 = vpop.xlane.xlu0 %1676
        %v1678 = vsel %vm1279, %v1668, inf
        %1679 = vmin.xlane.f32.xlu0 %v1678
        %v1680 = vpop.xlane.xlu0 %1679
        %v1681 = vsel %vm1279, %v1669, inf
        %1682 = vmin.xlane.f32.xlu0 %v1681
        %v1683 = vpop.xlane.xlu0 %1682
        %v1684 = vsel %vm1279, %v1670, inf
        %1685 = vmin.xlane.f32.xlu0 %v1684
        %v1686 = vpop.xlane.xlu0 %1685
        %v1687 = vsel %vm1279, %v1671, inf
        %1688 = vmin.xlane.f32.xlu0 %v1687
        %v1689 = vpop.xlane.xlu0 %1688
        %v1690 = vsel %vm1279, %v1672, inf
        %1691 = vmin.xlane.f32.xlu0 %v1690
        %v1692 = vpop.xlane.xlu0 %1691
        %v1693 = vsel %vm1279, %v1673, inf
        %1694 = vmin.xlane.f32.xlu0 %v1693
        %v1695 = vpop.xlane.xlu0 %1694
        %v1696 = vsel %vm1279, %v1674, inf
        %1697 = vmin.xlane.f32.xlu0 %v1696
        %v1698 = vpop.xlane.xlu0 %1697
        %v1699 = vmax.f32 %v1677, 0.0
        %v1700 = vmax.f32 %v1680, 0.0
        %v1701 = vmax.f32 %v1683, 0.0
        %v1702 = vmax.f32 %v1686, 0.0
        %v1703 = vmax.f32 %v1689, 0.0
        %v1704 = vmax.f32 %v1692, 0.0
        %v1705 = vmax.f32 %v1695, 0.0
        %v1706 = vmax.f32 %v1698, 0.0
        %1707 = vst.msk [vmem:[#allocation5 + $0x80] sm:$0xff] %vm1401, %v1699
        %1708 = vst.msk [vmem:[#allocation5 + $0x88] sm:$0xff] %vm1401, %v1700
        %1709 = vst.msk [vmem:[#allocation5 + $0x90] sm:$0xff] %vm1401, %v1701
        %1710 = vst.msk [vmem:[#allocation5 + $0x98] sm:$0xff] %vm1401, %v1702
        %1711 = vst.msk [vmem:[#allocation5 + $0xa0] sm:$0xff] %vm1401, %v1703
        %1712 = vst.msk [vmem:[#allocation5 + $0xa8] sm:$0xff] %vm1401, %v1704
        %1713 = vst.msk [vmem:[#allocation5 + $0xb0] sm:$0xff] %vm1401, %v1705
        %1714 = vst.msk [vmem:[#allocation5 + $0xb8] sm:$0xff] %vm1401, %v1706
        %vm1715 = vcmp.le.f32.partialorder %v1667, %v1677
        %vm1716 = vcmp.le.f32.partialorder %v1668, %v1680
        %vm1717 = vcmp.le.f32.partialorder %v1669, %v1683
        %vm1718 = vcmp.le.f32.partialorder %v1670, %v1686
        %vm1719 = vcmp.le.f32.partialorder %v1671, %v1689
        %vm1720 = vcmp.le.f32.partialorder %v1672, %v1692
        %vm1721 = vcmp.le.f32.partialorder %v1673, %v1695
        %vm1722 = vcmp.le.f32.partialorder %v1674, %v1698
        %v1723 = vsel %vm1715, %v1328, 64.0
        %v1724 = vsel %vm1716, %v1328, 64.0
        %v1725 = vsel %vm1717, %v1328, 64.0
        %v1726 = vsel %vm1718, %v1328, 64.0
        %v1727 = vsel %vm1719, %v1328, 64.0
        %v1728 = vsel %vm1720, %v1328, 64.0
        %v1729 = vsel %vm1721, %v1328, 64.0
        %v1730 = vsel %vm1722, %v1328, 64.0
        %v1731 = vsel %vm1279, %v1723, inf
        %1732 = vmin.xlane.f32.xlu0 %v1731
        %v1733 = vpop.xlane.xlu0 %1732
        %v1734 = vsel %vm1279, %v1724, inf
        %1735 = vmin.xlane.f32.xlu0 %v1734
        %v1736 = vpop.xlane.xlu0 %1735
        %v1737 = vsel %vm1279, %v1725, inf
        %1738 = vmin.xlane.f32.xlu0 %v1737
        %v1739 = vpop.xlane.xlu0 %1738
        %v1740 = vsel %vm1279, %v1726, inf
        %1741 = vmin.xlane.f32.xlu0 %v1740
        %v1742 = vpop.xlane.xlu0 %1741
        %v1743 = vsel %vm1279, %v1727, inf
        %1744 = vmin.xlane.f32.xlu0 %v1743
        %v1745 = vpop.xlane.xlu0 %1744
        %v1746 = vsel %vm1279, %v1728, inf
        %1747 = vmin.xlane.f32.xlu0 %v1746
        %v1748 = vpop.xlane.xlu0 %1747
        %v1749 = vsel %vm1279, %v1729, inf
        %1750 = vmin.xlane.f32.xlu0 %v1749
        %v1751 = vpop.xlane.xlu0 %1750
        %v1752 = vsel %vm1279, %v1730, inf
        %1753 = vmin.xlane.f32.xlu0 %v1752
        %v1754 = vpop.xlane.xlu0 %1753
        %vm1755 = vcmp.eq.f32.partialorder %v1328, %v1733
        %vm1756 = vcmp.eq.f32.partialorder %v1328, %v1736
        %vm1757 = vcmp.eq.f32.partialorder %v1328, %v1739
        %vm1758 = vcmp.eq.f32.partialorder %v1328, %v1742
        %vm1759 = vcmp.eq.f32.partialorder %v1328, %v1745
        %vm1760 = vcmp.eq.f32.partialorder %v1328, %v1748
        %vm1761 = vcmp.eq.f32.partialorder %v1328, %v1751
        %vm1762 = vcmp.eq.f32.partialorder %v1328, %v1754
        %v1763 = vsel %vm1755, 1, 0
        %v1764 = vsel %vm1756, 1, 0
        %v1765 = vsel %vm1757, 1, 0
        %v1766 = vsel %vm1758, 1, 0
        %v1767 = vsel %vm1759, 1, 0
        %v1768 = vsel %vm1760, 1, 0
        %v1769 = vsel %vm1761, 1, 0
        %v1770 = vsel %vm1762, 1, 0
        %v1771 = vcvt.s32.f32 %v1763
        %v1772 = vcvt.s32.f32 %v1764
        %v1773 = vcvt.s32.f32 %v1765
        %v1774 = vcvt.s32.f32 %v1766
        %v1775 = vcvt.s32.f32 %v1767
        %v1776 = vcvt.s32.f32 %v1768
        %v1777 = vcvt.s32.f32 %v1769
        %v1778 = vcvt.s32.f32 %v1770
        %v1779 = vpack.c.bf16 %v1772, %v1771
        %v1780 = vpack.c.bf16 %v1774, %v1773
        %v1781 = vpack.c.bf16 %v1776, %v1775
        %v1782 = vpack.c.bf16 %v1778, %v1777
        %v1787 = vunpack.c.l.b16 %v1779
        %v1788 = vunpack.c.h.b16 %v1779
        %v1789 = vunpack.c.l.b16 %v1780
        %v1790 = vunpack.c.h.b16 %v1780
        %v1791 = vunpack.c.l.b16 %v1781
        %v1792 = vunpack.c.h.b16 %v1781
        %v1793 = vunpack.c.l.b16 %v1782
        %v1794 = vunpack.c.h.b16 %v1782
        %v1795 = vpack.c.b16 %v1787, %v1787
        %v1796 = vpack.c.b16 %v1788, %v1788
        %v1797 = vpack.c.b16 %v1789, %v1789
        %v1798 = vpack.c.b16 %v1790, %v1790
        %v1799 = vpack.c.b16 %v1791, %v1791
        %v1800 = vpack.c.b16 %v1792, %v1792
        %v1801 = vpack.c.b16 %v1793, %v1793
        %v1802 = vpack.c.b16 %v1794, %v1794
        %1811 = vst.msk [vmem:[#allocation4 + $0x40] sm:$0xf] %vm1506, %v1795
        %1812 = vst.msk [vmem:[#allocation4 + $0x44] sm:$0xf] %vm1506, %v1796
        %1813 = vst.msk [vmem:[#allocation4 + $0x48] sm:$0xf] %vm1506, %v1797
        %1814 = vst.msk [vmem:[#allocation4 + $0x4c] sm:$0xf] %vm1506, %v1798
        %1815 = vst.msk [vmem:[#allocation4 + $0x50] sm:$0xf] %vm1506, %v1799
        %1816 = vst.msk [vmem:[#allocation4 + $0x54] sm:$0xf] %vm1506, %v1800
        %1817 = vst.msk [vmem:[#allocation4 + $0x58] sm:$0xf] %vm1506, %v1801
        %1818 = vst.msk [vmem:[#allocation4 + $0x5c] sm:$0xf] %vm1506, %v1802
        %v1819 = vsel %vm1755, 1e+30, %v1667
        %v1820 = vsel %vm1756, 1e+30, %v1668
        %v1821 = vsel %vm1757, 1e+30, %v1669
        %v1822 = vsel %vm1758, 1e+30, %v1670
        %v1823 = vsel %vm1759, 1e+30, %v1671
        %v1824 = vsel %vm1760, 1e+30, %v1672
        %v1825 = vsel %vm1761, 1e+30, %v1673
        %v1826 = vsel %vm1762, 1e+30, %v1674
        %v1827 = vsel %vm1279, %v1819, inf
        %1828 = vmin.xlane.f32.xlu0 %v1827
        %v1829 = vpop.xlane.xlu0 %1828
        %v1830 = vsel %vm1279, %v1820, inf
        %1831 = vmin.xlane.f32.xlu0 %v1830
        %v1832 = vpop.xlane.xlu0 %1831
        %v1833 = vsel %vm1279, %v1821, inf
        %1834 = vmin.xlane.f32.xlu0 %v1833
        %v1835 = vpop.xlane.xlu0 %1834
        %v1836 = vsel %vm1279, %v1822, inf
        %1837 = vmin.xlane.f32.xlu0 %v1836
        %v1838 = vpop.xlane.xlu0 %1837
        %v1839 = vsel %vm1279, %v1823, inf
        %1840 = vmin.xlane.f32.xlu0 %v1839
        %v1841 = vpop.xlane.xlu0 %1840
        %v1842 = vsel %vm1279, %v1824, inf
        %1843 = vmin.xlane.f32.xlu0 %v1842
        %v1844 = vpop.xlane.xlu0 %1843
        %v1845 = vsel %vm1279, %v1825, inf
        %1846 = vmin.xlane.f32.xlu0 %v1845
        %v1847 = vpop.xlane.xlu0 %1846
        %v1848 = vsel %vm1279, %v1826, inf
        %1849 = vmin.xlane.f32.xlu0 %v1848
        %v1850 = vpop.xlane.xlu0 %1849
        %v1851 = vmax.f32 %v1829, 0.0
        %v1852 = vmax.f32 %v1832, 0.0
        %v1853 = vmax.f32 %v1835, 0.0
        %v1854 = vmax.f32 %v1838, 0.0
        %v1855 = vmax.f32 %v1841, 0.0
        %v1856 = vmax.f32 %v1844, 0.0
        %v1857 = vmax.f32 %v1847, 0.0
        %v1858 = vmax.f32 %v1850, 0.0
        %1859 = vst.msk [vmem:[#allocation5 + $0xc0] sm:$0xff] %vm1401, %v1851
        %1860 = vst.msk [vmem:[#allocation5 + $0xc8] sm:$0xff] %vm1401, %v1852
        %1861 = vst.msk [vmem:[#allocation5 + $0xd0] sm:$0xff] %vm1401, %v1853
        %1862 = vst.msk [vmem:[#allocation5 + $0xd8] sm:$0xff] %vm1401, %v1854
        %1863 = vst.msk [vmem:[#allocation5 + $0xe0] sm:$0xff] %vm1401, %v1855
        %1864 = vst.msk [vmem:[#allocation5 + $0xe8] sm:$0xff] %vm1401, %v1856
        %1865 = vst.msk [vmem:[#allocation5 + $0xf0] sm:$0xff] %vm1401, %v1857
        %1866 = vst.msk [vmem:[#allocation5 + $0xf8] sm:$0xff] %vm1401, %v1858
        %vm1867 = vcmp.le.f32.partialorder %v1819, %v1829
        %vm1868 = vcmp.le.f32.partialorder %v1820, %v1832
        %vm1869 = vcmp.le.f32.partialorder %v1821, %v1835
        %vm1870 = vcmp.le.f32.partialorder %v1822, %v1838
        %vm1871 = vcmp.le.f32.partialorder %v1823, %v1841
        %vm1872 = vcmp.le.f32.partialorder %v1824, %v1844
        %vm1873 = vcmp.le.f32.partialorder %v1825, %v1847
        %vm1874 = vcmp.le.f32.partialorder %v1826, %v1850
        %v1875 = vsel %vm1867, %v1328, 64.0
        %v1876 = vsel %vm1868, %v1328, 64.0
        %v1877 = vsel %vm1869, %v1328, 64.0
        %v1878 = vsel %vm1870, %v1328, 64.0
        %v1879 = vsel %vm1871, %v1328, 64.0
        %v1880 = vsel %vm1872, %v1328, 64.0
        %v1881 = vsel %vm1873, %v1328, 64.0
        %v1882 = vsel %vm1874, %v1328, 64.0
        %v1883 = vsel %vm1279, %v1875, inf
        %1884 = vmin.xlane.f32.xlu0 %v1883
        %v1885 = vpop.xlane.xlu0 %1884
        %v1886 = vsel %vm1279, %v1876, inf
        %1887 = vmin.xlane.f32.xlu0 %v1886
        %v1888 = vpop.xlane.xlu0 %1887
        %v1889 = vsel %vm1279, %v1877, inf
        %1890 = vmin.xlane.f32.xlu0 %v1889
        %v1891 = vpop.xlane.xlu0 %1890
        %v1892 = vsel %vm1279, %v1878, inf
        %1893 = vmin.xlane.f32.xlu0 %v1892
        %v1894 = vpop.xlane.xlu0 %1893
        %v1895 = vsel %vm1279, %v1879, inf
        %1896 = vmin.xlane.f32.xlu0 %v1895
        %v1897 = vpop.xlane.xlu0 %1896
        %v1898 = vsel %vm1279, %v1880, inf
        %1899 = vmin.xlane.f32.xlu0 %v1898
        %v1900 = vpop.xlane.xlu0 %1899
        %v1901 = vsel %vm1279, %v1881, inf
        %1902 = vmin.xlane.f32.xlu0 %v1901
        %v1903 = vpop.xlane.xlu0 %1902
        %v1904 = vsel %vm1279, %v1882, inf
        %1905 = vmin.xlane.f32.xlu0 %v1904
        %v1906 = vpop.xlane.xlu0 %1905
        %vm1907 = vcmp.eq.f32.partialorder %v1328, %v1885
        %vm1908 = vcmp.eq.f32.partialorder %v1328, %v1888
        %vm1909 = vcmp.eq.f32.partialorder %v1328, %v1891
        %vm1910 = vcmp.eq.f32.partialorder %v1328, %v1894
        %vm1911 = vcmp.eq.f32.partialorder %v1328, %v1897
        %vm1912 = vcmp.eq.f32.partialorder %v1328, %v1900
        %vm1913 = vcmp.eq.f32.partialorder %v1328, %v1903
        %vm1914 = vcmp.eq.f32.partialorder %v1328, %v1906
        %v1915 = vsel %vm1907, 1, 0
        %v1916 = vsel %vm1908, 1, 0
        %v1917 = vsel %vm1909, 1, 0
        %v1918 = vsel %vm1910, 1, 0
        %v1919 = vsel %vm1911, 1, 0
        %v1920 = vsel %vm1912, 1, 0
        %v1921 = vsel %vm1913, 1, 0
        %v1922 = vsel %vm1914, 1, 0
        %v1923 = vcvt.s32.f32 %v1915
        %v1924 = vcvt.s32.f32 %v1916
        %v1925 = vcvt.s32.f32 %v1917
        %v1926 = vcvt.s32.f32 %v1918
        %v1927 = vcvt.s32.f32 %v1919
        %v1928 = vcvt.s32.f32 %v1920
        %v1929 = vcvt.s32.f32 %v1921
        %v1930 = vcvt.s32.f32 %v1922
        %v1931 = vpack.c.bf16 %v1924, %v1923
        %v1932 = vpack.c.bf16 %v1926, %v1925
        %v1933 = vpack.c.bf16 %v1928, %v1927
        %v1934 = vpack.c.bf16 %v1930, %v1929
        %v1939 = vunpack.c.l.b16 %v1931
        %v1940 = vunpack.c.h.b16 %v1931
        %v1941 = vunpack.c.l.b16 %v1932
        %v1942 = vunpack.c.h.b16 %v1932
        %v1943 = vunpack.c.l.b16 %v1933
        %v1944 = vunpack.c.h.b16 %v1933
        %v1945 = vunpack.c.l.b16 %v1934
        %v1946 = vunpack.c.h.b16 %v1934
        %v1947 = vpack.c.b16 %v1939, %v1939
        %v1948 = vpack.c.b16 %v1940, %v1940
        %v1949 = vpack.c.b16 %v1941, %v1941
        %v1950 = vpack.c.b16 %v1942, %v1942
        %v1951 = vpack.c.b16 %v1943, %v1943
        %v1952 = vpack.c.b16 %v1944, %v1944
        %v1953 = vpack.c.b16 %v1945, %v1945
        %v1954 = vpack.c.b16 %v1946, %v1946
        %1963 = vst.msk [vmem:[#allocation4 + $0x60] sm:$0xf] %vm1506, %v1947
        %1964 = vst.msk [vmem:[#allocation4 + $0x64] sm:$0xf] %vm1506, %v1948
        %1965 = vst.msk [vmem:[#allocation4 + $0x68] sm:$0xf] %vm1506, %v1949
        %1966 = vst.msk [vmem:[#allocation4 + $0x6c] sm:$0xf] %vm1506, %v1950
        %1967 = vst.msk [vmem:[#allocation4 + $0x70] sm:$0xf] %vm1506, %v1951
        %1968 = vst.msk [vmem:[#allocation4 + $0x74] sm:$0xf] %vm1506, %v1952
        %1969 = vst.msk [vmem:[#allocation4 + $0x78] sm:$0xf] %vm1506, %v1953
        %1970 = vst.msk [vmem:[#allocation4 + $0x7c] sm:$0xf] %vm1506, %v1954
        %v1971 = vsel %vm1907, 1e+30, %v1819
        %v1972 = vsel %vm1908, 1e+30, %v1820
        %v1973 = vsel %vm1909, 1e+30, %v1821
        %v1974 = vsel %vm1910, 1e+30, %v1822
        %v1975 = vsel %vm1911, 1e+30, %v1823
        %v1976 = vsel %vm1912, 1e+30, %v1824
        %v1977 = vsel %vm1913, 1e+30, %v1825
        %v1978 = vsel %vm1914, 1e+30, %v1826
        %v1979 = vsel %vm1279, %v1971, inf
        %1980 = vmin.xlane.f32.xlu0 %v1979
        %v1981 = vpop.xlane.xlu0 %1980
        %v1982 = vsel %vm1279, %v1972, inf
        %1983 = vmin.xlane.f32.xlu0 %v1982
        %v1984 = vpop.xlane.xlu0 %1983
        %v1985 = vsel %vm1279, %v1973, inf
        %1986 = vmin.xlane.f32.xlu0 %v1985
        %v1987 = vpop.xlane.xlu0 %1986
        %v1988 = vsel %vm1279, %v1974, inf
        %1989 = vmin.xlane.f32.xlu0 %v1988
        %v1990 = vpop.xlane.xlu0 %1989
        %v1991 = vsel %vm1279, %v1975, inf
        %1992 = vmin.xlane.f32.xlu0 %v1991
        %v1993 = vpop.xlane.xlu0 %1992
        %v1994 = vsel %vm1279, %v1976, inf
        %1995 = vmin.xlane.f32.xlu0 %v1994
        %v1996 = vpop.xlane.xlu0 %1995
        %v1997 = vsel %vm1279, %v1977, inf
        %1998 = vmin.xlane.f32.xlu0 %v1997
        %v1999 = vpop.xlane.xlu0 %1998
        %v2000 = vsel %vm1279, %v1978, inf
        %2001 = vmin.xlane.f32.xlu0 %v2000
        %v2002 = vpop.xlane.xlu0 %2001
        %v2003 = vmax.f32 %v1981, 0.0
        %v2004 = vmax.f32 %v1984, 0.0
        %v2005 = vmax.f32 %v1987, 0.0
        %v2006 = vmax.f32 %v1990, 0.0
        %v2007 = vmax.f32 %v1993, 0.0
        %v2008 = vmax.f32 %v1996, 0.0
        %v2009 = vmax.f32 %v1999, 0.0
        %v2010 = vmax.f32 %v2002, 0.0
        %2011 = vst.msk [vmem:[#allocation5 + $0x100] sm:$0xff] %vm1401, %v2003
        %2012 = vst.msk [vmem:[#allocation5 + $0x108] sm:$0xff] %vm1401, %v2004
        %2013 = vst.msk [vmem:[#allocation5 + $0x110] sm:$0xff] %vm1401, %v2005
        %2014 = vst.msk [vmem:[#allocation5 + $0x118] sm:$0xff] %vm1401, %v2006
        %2015 = vst.msk [vmem:[#allocation5 + $0x120] sm:$0xff] %vm1401, %v2007
        %2016 = vst.msk [vmem:[#allocation5 + $0x128] sm:$0xff] %vm1401, %v2008
        %2017 = vst.msk [vmem:[#allocation5 + $0x130] sm:$0xff] %vm1401, %v2009
        %2018 = vst.msk [vmem:[#allocation5 + $0x138] sm:$0xff] %vm1401, %v2010
        %vm2019 = vcmp.le.f32.partialorder %v1971, %v1981
        %vm2020 = vcmp.le.f32.partialorder %v1972, %v1984
        %vm2021 = vcmp.le.f32.partialorder %v1973, %v1987
        %vm2022 = vcmp.le.f32.partialorder %v1974, %v1990
        %vm2023 = vcmp.le.f32.partialorder %v1975, %v1993
        %vm2024 = vcmp.le.f32.partialorder %v1976, %v1996
        %vm2025 = vcmp.le.f32.partialorder %v1977, %v1999
        %vm2026 = vcmp.le.f32.partialorder %v1978, %v2002
        %v2027 = vsel %vm2019, %v1328, 64.0
        %v2028 = vsel %vm2020, %v1328, 64.0
        %v2029 = vsel %vm2021, %v1328, 64.0
        %v2030 = vsel %vm2022, %v1328, 64.0
        %v2031 = vsel %vm2023, %v1328, 64.0
        %v2032 = vsel %vm2024, %v1328, 64.0
        %v2033 = vsel %vm2025, %v1328, 64.0
        %v2034 = vsel %vm2026, %v1328, 64.0
        %v2035 = vsel %vm1279, %v2027, inf
        %2036 = vmin.xlane.f32.xlu0 %v2035
        %v2037 = vpop.xlane.xlu0 %2036
        %v2038 = vsel %vm1279, %v2028, inf
        %2039 = vmin.xlane.f32.xlu0 %v2038
        %v2040 = vpop.xlane.xlu0 %2039
        %v2041 = vsel %vm1279, %v2029, inf
        %2042 = vmin.xlane.f32.xlu0 %v2041
        %v2043 = vpop.xlane.xlu0 %2042
        %v2044 = vsel %vm1279, %v2030, inf
        %2045 = vmin.xlane.f32.xlu0 %v2044
        %v2046 = vpop.xlane.xlu0 %2045
        %v2047 = vsel %vm1279, %v2031, inf
        %2048 = vmin.xlane.f32.xlu0 %v2047
        %v2049 = vpop.xlane.xlu0 %2048
        %v2050 = vsel %vm1279, %v2032, inf
        %2051 = vmin.xlane.f32.xlu0 %v2050
        %v2052 = vpop.xlane.xlu0 %2051
        %v2053 = vsel %vm1279, %v2033, inf
        %2054 = vmin.xlane.f32.xlu0 %v2053
        %v2055 = vpop.xlane.xlu0 %2054
        %v2056 = vsel %vm1279, %v2034, inf
        %2057 = vmin.xlane.f32.xlu0 %v2056
        %v2058 = vpop.xlane.xlu0 %2057
        %vm2059 = vcmp.eq.f32.partialorder %v1328, %v2037
        %vm2060 = vcmp.eq.f32.partialorder %v1328, %v2040
        %vm2061 = vcmp.eq.f32.partialorder %v1328, %v2043
        %vm2062 = vcmp.eq.f32.partialorder %v1328, %v2046
        %vm2063 = vcmp.eq.f32.partialorder %v1328, %v2049
        %vm2064 = vcmp.eq.f32.partialorder %v1328, %v2052
        %vm2065 = vcmp.eq.f32.partialorder %v1328, %v2055
        %vm2066 = vcmp.eq.f32.partialorder %v1328, %v2058
        %v2067 = vsel %vm2059, 1, 0
        %v2068 = vsel %vm2060, 1, 0
        %v2069 = vsel %vm2061, 1, 0
        %v2070 = vsel %vm2062, 1, 0
        %v2071 = vsel %vm2063, 1, 0
        %v2072 = vsel %vm2064, 1, 0
        %v2073 = vsel %vm2065, 1, 0
        %v2074 = vsel %vm2066, 1, 0
        %v2075 = vcvt.s32.f32 %v2067
        %v2076 = vcvt.s32.f32 %v2068
        %v2077 = vcvt.s32.f32 %v2069
        %v2078 = vcvt.s32.f32 %v2070
        %v2079 = vcvt.s32.f32 %v2071
        %v2080 = vcvt.s32.f32 %v2072
        %v2081 = vcvt.s32.f32 %v2073
        %v2082 = vcvt.s32.f32 %v2074
        %v2083 = vpack.c.bf16 %v2076, %v2075
        %v2084 = vpack.c.bf16 %v2078, %v2077
        %v2085 = vpack.c.bf16 %v2080, %v2079
        %v2086 = vpack.c.bf16 %v2082, %v2081
        %v2091 = vunpack.c.l.b16 %v2083
        %v2092 = vunpack.c.h.b16 %v2083
        %v2093 = vunpack.c.l.b16 %v2084
        %v2094 = vunpack.c.h.b16 %v2084
        %v2095 = vunpack.c.l.b16 %v2085
        %v2096 = vunpack.c.h.b16 %v2085
        %v2097 = vunpack.c.l.b16 %v2086
        %v2098 = vunpack.c.h.b16 %v2086
        %v2099 = vpack.c.b16 %v2091, %v2091
        %v2100 = vpack.c.b16 %v2092, %v2092
        %v2101 = vpack.c.b16 %v2093, %v2093
        %v2102 = vpack.c.b16 %v2094, %v2094
        %v2103 = vpack.c.b16 %v2095, %v2095
        %v2104 = vpack.c.b16 %v2096, %v2096
        %v2105 = vpack.c.b16 %v2097, %v2097
        %v2106 = vpack.c.b16 %v2098, %v2098
        %2115 = vst.msk [vmem:[#allocation4 + $0x80] sm:$0xf] %vm1506, %v2099
        %2116 = vst.msk [vmem:[#allocation4 + $0x84] sm:$0xf] %vm1506, %v2100
        %2117 = vst.msk [vmem:[#allocation4 + $0x88] sm:$0xf] %vm1506, %v2101
        %2118 = vst.msk [vmem:[#allocation4 + $0x8c] sm:$0xf] %vm1506, %v2102
        %2119 = vst.msk [vmem:[#allocation4 + $0x90] sm:$0xf] %vm1506, %v2103
        %2120 = vst.msk [vmem:[#allocation4 + $0x94] sm:$0xf] %vm1506, %v2104
        %2121 = vst.msk [vmem:[#allocation4 + $0x98] sm:$0xf] %vm1506, %v2105
        %2122 = vst.msk [vmem:[#allocation4 + $0x9c] sm:$0xf] %vm1506, %v2106
        %v2123 = vsel %vm2059, 1e+30, %v1971
        %v2124 = vsel %vm2060, 1e+30, %v1972
        %v2125 = vsel %vm2061, 1e+30, %v1973
        %v2126 = vsel %vm2062, 1e+30, %v1974
        %v2127 = vsel %vm2063, 1e+30, %v1975
        %v2128 = vsel %vm2064, 1e+30, %v1976
        %v2129 = vsel %vm2065, 1e+30, %v1977
        %v2130 = vsel %vm2066, 1e+30, %v1978
        %v2131 = vsel %vm1279, %v2123, inf
        %2132 = vmin.xlane.f32.xlu0 %v2131
        %v2133 = vpop.xlane.xlu0 %2132
        %v2134 = vsel %vm1279, %v2124, inf
        %2135 = vmin.xlane.f32.xlu0 %v2134
        %v2136 = vpop.xlane.xlu0 %2135
        %v2137 = vsel %vm1279, %v2125, inf
        %2138 = vmin.xlane.f32.xlu0 %v2137
        %v2139 = vpop.xlane.xlu0 %2138
        %v2140 = vsel %vm1279, %v2126, inf
        %2141 = vmin.xlane.f32.xlu0 %v2140
        %v2142 = vpop.xlane.xlu0 %2141
        %v2143 = vsel %vm1279, %v2127, inf
        %2144 = vmin.xlane.f32.xlu0 %v2143
        %v2145 = vpop.xlane.xlu0 %2144
        %v2146 = vsel %vm1279, %v2128, inf
        %2147 = vmin.xlane.f32.xlu0 %v2146
        %v2148 = vpop.xlane.xlu0 %2147
        %v2149 = vsel %vm1279, %v2129, inf
        %2150 = vmin.xlane.f32.xlu0 %v2149
        %v2151 = vpop.xlane.xlu0 %2150
        %v2152 = vsel %vm1279, %v2130, inf
        %2153 = vmin.xlane.f32.xlu0 %v2152
        %v2154 = vpop.xlane.xlu0 %2153
        %v2155 = vmax.f32 %v2133, 0.0
        %v2156 = vmax.f32 %v2136, 0.0
        %v2157 = vmax.f32 %v2139, 0.0
        %v2158 = vmax.f32 %v2142, 0.0
        %v2159 = vmax.f32 %v2145, 0.0
        %v2160 = vmax.f32 %v2148, 0.0
        %v2161 = vmax.f32 %v2151, 0.0
        %v2162 = vmax.f32 %v2154, 0.0
        %2163 = vst.msk [vmem:[#allocation5 + $0x140] sm:$0xff] %vm1401, %v2155
        %2164 = vst.msk [vmem:[#allocation5 + $0x148] sm:$0xff] %vm1401, %v2156
        %2165 = vst.msk [vmem:[#allocation5 + $0x150] sm:$0xff] %vm1401, %v2157
        %2166 = vst.msk [vmem:[#allocation5 + $0x158] sm:$0xff] %vm1401, %v2158
        %2167 = vst.msk [vmem:[#allocation5 + $0x160] sm:$0xff] %vm1401, %v2159
        %2168 = vst.msk [vmem:[#allocation5 + $0x168] sm:$0xff] %vm1401, %v2160
        %2169 = vst.msk [vmem:[#allocation5 + $0x170] sm:$0xff] %vm1401, %v2161
        %2170 = vst.msk [vmem:[#allocation5 + $0x178] sm:$0xff] %vm1401, %v2162
        %vm2171 = vcmp.le.f32.partialorder %v2123, %v2133
        %vm2172 = vcmp.le.f32.partialorder %v2124, %v2136
        %vm2173 = vcmp.le.f32.partialorder %v2125, %v2139
        %vm2174 = vcmp.le.f32.partialorder %v2126, %v2142
        %vm2175 = vcmp.le.f32.partialorder %v2127, %v2145
        %vm2176 = vcmp.le.f32.partialorder %v2128, %v2148
        %vm2177 = vcmp.le.f32.partialorder %v2129, %v2151
        %vm2178 = vcmp.le.f32.partialorder %v2130, %v2154
        %v2179 = vsel %vm2171, %v1328, 64.0
        %v2180 = vsel %vm2172, %v1328, 64.0
        %v2181 = vsel %vm2173, %v1328, 64.0
        %v2182 = vsel %vm2174, %v1328, 64.0
        %v2183 = vsel %vm2175, %v1328, 64.0
        %v2184 = vsel %vm2176, %v1328, 64.0
        %v2185 = vsel %vm2177, %v1328, 64.0
        %v2186 = vsel %vm2178, %v1328, 64.0
        %v2187 = vsel %vm1279, %v2179, inf
        %2188 = vmin.xlane.f32.xlu0 %v2187
        %v2189 = vpop.xlane.xlu0 %2188
        %v2190 = vsel %vm1279, %v2180, inf
        %2191 = vmin.xlane.f32.xlu0 %v2190
        %v2192 = vpop.xlane.xlu0 %2191
        %v2193 = vsel %vm1279, %v2181, inf
        %2194 = vmin.xlane.f32.xlu0 %v2193
        %v2195 = vpop.xlane.xlu0 %2194
        %v2196 = vsel %vm1279, %v2182, inf
        %2197 = vmin.xlane.f32.xlu0 %v2196
        %v2198 = vpop.xlane.xlu0 %2197
        %v2199 = vsel %vm1279, %v2183, inf
        %2200 = vmin.xlane.f32.xlu0 %v2199
        %v2201 = vpop.xlane.xlu0 %2200
        %v2202 = vsel %vm1279, %v2184, inf
        %2203 = vmin.xlane.f32.xlu0 %v2202
        %v2204 = vpop.xlane.xlu0 %2203
        %v2205 = vsel %vm1279, %v2185, inf
        %2206 = vmin.xlane.f32.xlu0 %v2205
        %v2207 = vpop.xlane.xlu0 %2206
        %v2208 = vsel %vm1279, %v2186, inf
        %2209 = vmin.xlane.f32.xlu0 %v2208
        %v2210 = vpop.xlane.xlu0 %2209
        %vm2211 = vcmp.eq.f32.partialorder %v1328, %v2189
        %vm2212 = vcmp.eq.f32.partialorder %v1328, %v2192
        %vm2213 = vcmp.eq.f32.partialorder %v1328, %v2195
        %vm2214 = vcmp.eq.f32.partialorder %v1328, %v2198
        %vm2215 = vcmp.eq.f32.partialorder %v1328, %v2201
        %vm2216 = vcmp.eq.f32.partialorder %v1328, %v2204
        %vm2217 = vcmp.eq.f32.partialorder %v1328, %v2207
        %vm2218 = vcmp.eq.f32.partialorder %v1328, %v2210
        %v2219 = vsel %vm2211, 1, 0
        %v2220 = vsel %vm2212, 1, 0
        %v2221 = vsel %vm2213, 1, 0
        %v2222 = vsel %vm2214, 1, 0
        %v2223 = vsel %vm2215, 1, 0
        %v2224 = vsel %vm2216, 1, 0
        %v2225 = vsel %vm2217, 1, 0
        %v2226 = vsel %vm2218, 1, 0
        %v2227 = vcvt.s32.f32 %v2219
        %v2228 = vcvt.s32.f32 %v2220
        %v2229 = vcvt.s32.f32 %v2221
        %v2230 = vcvt.s32.f32 %v2222
        %v2231 = vcvt.s32.f32 %v2223
        %v2232 = vcvt.s32.f32 %v2224
        %v2233 = vcvt.s32.f32 %v2225
        %v2234 = vcvt.s32.f32 %v2226
        %v2235 = vpack.c.bf16 %v2228, %v2227
        %v2236 = vpack.c.bf16 %v2230, %v2229
        %v2237 = vpack.c.bf16 %v2232, %v2231
        %v2238 = vpack.c.bf16 %v2234, %v2233
        %v2243 = vunpack.c.l.b16 %v2235
        %v2244 = vunpack.c.h.b16 %v2235
        %v2245 = vunpack.c.l.b16 %v2236
        %v2246 = vunpack.c.h.b16 %v2236
        %v2247 = vunpack.c.l.b16 %v2237
        %v2248 = vunpack.c.h.b16 %v2237
        %v2249 = vunpack.c.l.b16 %v2238
        %v2250 = vunpack.c.h.b16 %v2238
        %v2251 = vpack.c.b16 %v2243, %v2243
        %v2252 = vpack.c.b16 %v2244, %v2244
        %v2253 = vpack.c.b16 %v2245, %v2245
        %v2254 = vpack.c.b16 %v2246, %v2246
        %v2255 = vpack.c.b16 %v2247, %v2247
        %v2256 = vpack.c.b16 %v2248, %v2248
        %v2257 = vpack.c.b16 %v2249, %v2249
        %v2258 = vpack.c.b16 %v2250, %v2250
        %2267 = vst.msk [vmem:[#allocation4 + $0xa0] sm:$0xf] %vm1506, %v2251
        %2268 = vst.msk [vmem:[#allocation4 + $0xa4] sm:$0xf] %vm1506, %v2252
        %2269 = vst.msk [vmem:[#allocation4 + $0xa8] sm:$0xf] %vm1506, %v2253
        %2270 = vst.msk [vmem:[#allocation4 + $0xac] sm:$0xf] %vm1506, %v2254
        %2271 = vst.msk [vmem:[#allocation4 + $0xb0] sm:$0xf] %vm1506, %v2255
        %2272 = vst.msk [vmem:[#allocation4 + $0xb4] sm:$0xf] %vm1506, %v2256
        %2273 = vst.msk [vmem:[#allocation4 + $0xb8] sm:$0xf] %vm1506, %v2257
        %2274 = vst.msk [vmem:[#allocation4 + $0xbc] sm:$0xf] %vm1506, %v2258
        %v2275 = vsel %vm2211, 1e+30, %v2123
        %v2276 = vsel %vm2212, 1e+30, %v2124
        %v2277 = vsel %vm2213, 1e+30, %v2125
        %v2278 = vsel %vm2214, 1e+30, %v2126
        %v2279 = vsel %vm2215, 1e+30, %v2127
        %v2280 = vsel %vm2216, 1e+30, %v2128
        %v2281 = vsel %vm2217, 1e+30, %v2129
        %v2282 = vsel %vm2218, 1e+30, %v2130
        %v2283 = vsel %vm1279, %v2275, inf
        %2284 = vmin.xlane.f32.xlu0 %v2283
        %v2285 = vpop.xlane.xlu0 %2284
        %v2286 = vsel %vm1279, %v2276, inf
        %2287 = vmin.xlane.f32.xlu0 %v2286
        %v2288 = vpop.xlane.xlu0 %2287
        %v2289 = vsel %vm1279, %v2277, inf
        %2290 = vmin.xlane.f32.xlu0 %v2289
        %v2291 = vpop.xlane.xlu0 %2290
        %v2292 = vsel %vm1279, %v2278, inf
        %2293 = vmin.xlane.f32.xlu0 %v2292
        %v2294 = vpop.xlane.xlu0 %2293
        %v2295 = vsel %vm1279, %v2279, inf
        %2296 = vmin.xlane.f32.xlu0 %v2295
        %v2297 = vpop.xlane.xlu0 %2296
        %v2298 = vsel %vm1279, %v2280, inf
        %2299 = vmin.xlane.f32.xlu0 %v2298
        %v2300 = vpop.xlane.xlu0 %2299
        %v2301 = vsel %vm1279, %v2281, inf
        %2302 = vmin.xlane.f32.xlu0 %v2301
        %v2303 = vpop.xlane.xlu0 %2302
        %v2304 = vsel %vm1279, %v2282, inf
        %2305 = vmin.xlane.f32.xlu0 %v2304
        %v2306 = vpop.xlane.xlu0 %2305
        %v2307 = vmax.f32 %v2285, 0.0
        %v2308 = vmax.f32 %v2288, 0.0
        %v2309 = vmax.f32 %v2291, 0.0
        %v2310 = vmax.f32 %v2294, 0.0
        %v2311 = vmax.f32 %v2297, 0.0
        %v2312 = vmax.f32 %v2300, 0.0
        %v2313 = vmax.f32 %v2303, 0.0
        %v2314 = vmax.f32 %v2306, 0.0
        %2315 = vst.msk [vmem:[#allocation5 + $0x180] sm:$0xff] %vm1401, %v2307
        %2316 = vst.msk [vmem:[#allocation5 + $0x188] sm:$0xff] %vm1401, %v2308
        %2317 = vst.msk [vmem:[#allocation5 + $0x190] sm:$0xff] %vm1401, %v2309
        %2318 = vst.msk [vmem:[#allocation5 + $0x198] sm:$0xff] %vm1401, %v2310
        %2319 = vst.msk [vmem:[#allocation5 + $0x1a0] sm:$0xff] %vm1401, %v2311
        %2320 = vst.msk [vmem:[#allocation5 + $0x1a8] sm:$0xff] %vm1401, %v2312
        %2321 = vst.msk [vmem:[#allocation5 + $0x1b0] sm:$0xff] %vm1401, %v2313
        %2322 = vst.msk [vmem:[#allocation5 + $0x1b8] sm:$0xff] %vm1401, %v2314
        %vm2323 = vcmp.le.f32.partialorder %v2275, %v2285
        %vm2324 = vcmp.le.f32.partialorder %v2276, %v2288
        %vm2325 = vcmp.le.f32.partialorder %v2277, %v2291
        %vm2326 = vcmp.le.f32.partialorder %v2278, %v2294
        %vm2327 = vcmp.le.f32.partialorder %v2279, %v2297
        %vm2328 = vcmp.le.f32.partialorder %v2280, %v2300
        %vm2329 = vcmp.le.f32.partialorder %v2281, %v2303
        %vm2330 = vcmp.le.f32.partialorder %v2282, %v2306
        %v2331 = vsel %vm2323, %v1328, 64.0
        %v2332 = vsel %vm2324, %v1328, 64.0
        %v2333 = vsel %vm2325, %v1328, 64.0
        %v2334 = vsel %vm2326, %v1328, 64.0
        %v2335 = vsel %vm2327, %v1328, 64.0
        %v2336 = vsel %vm2328, %v1328, 64.0
        %v2337 = vsel %vm2329, %v1328, 64.0
        %v2338 = vsel %vm2330, %v1328, 64.0
        %v2339 = vsel %vm1279, %v2331, inf
        %2340 = vmin.xlane.f32.xlu0 %v2339
        %v2341 = vpop.xlane.xlu0 %2340
        %v2342 = vsel %vm1279, %v2332, inf
        %2343 = vmin.xlane.f32.xlu0 %v2342
        %v2344 = vpop.xlane.xlu0 %2343
        %v2345 = vsel %vm1279, %v2333, inf
        %2346 = vmin.xlane.f32.xlu0 %v2345
        %v2347 = vpop.xlane.xlu0 %2346
        %v2348 = vsel %vm1279, %v2334, inf
        %2349 = vmin.xlane.f32.xlu0 %v2348
        %v2350 = vpop.xlane.xlu0 %2349
        %v2351 = vsel %vm1279, %v2335, inf
        %2352 = vmin.xlane.f32.xlu0 %v2351
        %v2353 = vpop.xlane.xlu0 %2352
        %v2354 = vsel %vm1279, %v2336, inf
        %2355 = vmin.xlane.f32.xlu0 %v2354
        %v2356 = vpop.xlane.xlu0 %2355
        %v2357 = vsel %vm1279, %v2337, inf
        %2358 = vmin.xlane.f32.xlu0 %v2357
        %v2359 = vpop.xlane.xlu0 %2358
        %v2360 = vsel %vm1279, %v2338, inf
        %2361 = vmin.xlane.f32.xlu0 %v2360
        %v2362 = vpop.xlane.xlu0 %2361
        %vm2363 = vcmp.eq.f32.partialorder %v1328, %v2341
        %vm2364 = vcmp.eq.f32.partialorder %v1328, %v2344
        %vm2365 = vcmp.eq.f32.partialorder %v1328, %v2347
        %vm2366 = vcmp.eq.f32.partialorder %v1328, %v2350
        %vm2367 = vcmp.eq.f32.partialorder %v1328, %v2353
        %vm2368 = vcmp.eq.f32.partialorder %v1328, %v2356
        %vm2369 = vcmp.eq.f32.partialorder %v1328, %v2359
        %vm2370 = vcmp.eq.f32.partialorder %v1328, %v2362
        %v2371 = vsel %vm2363, 1, 0
        %v2372 = vsel %vm2364, 1, 0
        %v2373 = vsel %vm2365, 1, 0
        %v2374 = vsel %vm2366, 1, 0
        %v2375 = vsel %vm2367, 1, 0
        %v2376 = vsel %vm2368, 1, 0
        %v2377 = vsel %vm2369, 1, 0
        %v2378 = vsel %vm2370, 1, 0
        %v2379 = vcvt.s32.f32 %v2371
        %v2380 = vcvt.s32.f32 %v2372
        %v2381 = vcvt.s32.f32 %v2373
        %v2382 = vcvt.s32.f32 %v2374
        %v2383 = vcvt.s32.f32 %v2375
        %v2384 = vcvt.s32.f32 %v2376
        %v2385 = vcvt.s32.f32 %v2377
        %v2386 = vcvt.s32.f32 %v2378
        %v2387 = vpack.c.bf16 %v2380, %v2379
        %v2388 = vpack.c.bf16 %v2382, %v2381
        %v2389 = vpack.c.bf16 %v2384, %v2383
        %v2390 = vpack.c.bf16 %v2386, %v2385
        %v2395 = vunpack.c.l.b16 %v2387
        %v2396 = vunpack.c.h.b16 %v2387
        %v2397 = vunpack.c.l.b16 %v2388
        %v2398 = vunpack.c.h.b16 %v2388
        %v2399 = vunpack.c.l.b16 %v2389
        %v2400 = vunpack.c.h.b16 %v2389
        %v2401 = vunpack.c.l.b16 %v2390
        %v2402 = vunpack.c.h.b16 %v2390
        %v2403 = vpack.c.b16 %v2395, %v2395
        %v2404 = vpack.c.b16 %v2396, %v2396
        %v2405 = vpack.c.b16 %v2397, %v2397
        %v2406 = vpack.c.b16 %v2398, %v2398
        %v2407 = vpack.c.b16 %v2399, %v2399
        %v2408 = vpack.c.b16 %v2400, %v2400
        %v2409 = vpack.c.b16 %v2401, %v2401
        %v2410 = vpack.c.b16 %v2402, %v2402
        %2419 = vst.msk [vmem:[#allocation4 + $0xc0] sm:$0xf] %vm1506, %v2403
        %2420 = vst.msk [vmem:[#allocation4 + $0xc4] sm:$0xf] %vm1506, %v2404
        %2421 = vst.msk [vmem:[#allocation4 + $0xc8] sm:$0xf] %vm1506, %v2405
        %2422 = vst.msk [vmem:[#allocation4 + $0xcc] sm:$0xf] %vm1506, %v2406
        %2423 = vst.msk [vmem:[#allocation4 + $0xd0] sm:$0xf] %vm1506, %v2407
        %2424 = vst.msk [vmem:[#allocation4 + $0xd4] sm:$0xf] %vm1506, %v2408
        %2425 = vst.msk [vmem:[#allocation4 + $0xd8] sm:$0xf] %vm1506, %v2409
        %2426 = vst.msk [vmem:[#allocation4 + $0xdc] sm:$0xf] %vm1506, %v2410
        %v2427 = vsel %vm2363, 1e+30, %v2275
        %v2428 = vsel %vm2364, 1e+30, %v2276
        %v2429 = vsel %vm2365, 1e+30, %v2277
        %v2430 = vsel %vm2366, 1e+30, %v2278
        %v2431 = vsel %vm2367, 1e+30, %v2279
        %v2432 = vsel %vm2368, 1e+30, %v2280
        %v2433 = vsel %vm2369, 1e+30, %v2281
        %v2434 = vsel %vm2370, 1e+30, %v2282
        %v2435 = vsel %vm1279, %v2427, inf
        %2436 = vmin.xlane.f32.xlu0 %v2435
        %v2437 = vpop.xlane.xlu0 %2436
        %v2438 = vsel %vm1279, %v2428, inf
        %2439 = vmin.xlane.f32.xlu0 %v2438
        %v2440 = vpop.xlane.xlu0 %2439
        %v2441 = vsel %vm1279, %v2429, inf
        %2442 = vmin.xlane.f32.xlu0 %v2441
        %v2443 = vpop.xlane.xlu0 %2442
        %v2444 = vsel %vm1279, %v2430, inf
        %2445 = vmin.xlane.f32.xlu0 %v2444
        %v2446 = vpop.xlane.xlu0 %2445
        %v2447 = vsel %vm1279, %v2431, inf
        %2448 = vmin.xlane.f32.xlu0 %v2447
        %v2449 = vpop.xlane.xlu0 %2448
        %v2450 = vsel %vm1279, %v2432, inf
        %2451 = vmin.xlane.f32.xlu0 %v2450
        %v2452 = vpop.xlane.xlu0 %2451
        %v2453 = vsel %vm1279, %v2433, inf
        %2454 = vmin.xlane.f32.xlu0 %v2453
        %v2455 = vpop.xlane.xlu0 %2454
        %v2456 = vsel %vm1279, %v2434, inf
        %2457 = vmin.xlane.f32.xlu0 %v2456
        %v2458 = vpop.xlane.xlu0 %2457
        %v2459 = vmax.f32 %v2437, 0.0
        %v2460 = vmax.f32 %v2440, 0.0
        %v2461 = vmax.f32 %v2443, 0.0
        %v2462 = vmax.f32 %v2446, 0.0
        %v2463 = vmax.f32 %v2449, 0.0
        %v2464 = vmax.f32 %v2452, 0.0
        %v2465 = vmax.f32 %v2455, 0.0
        %v2466 = vmax.f32 %v2458, 0.0
        %2467 = vst.msk [vmem:[#allocation5 + $0x1c0] sm:$0xff] %vm1401, %v2459
        %2468 = vst.msk [vmem:[#allocation5 + $0x1c8] sm:$0xff] %vm1401, %v2460
        %2469 = vst.msk [vmem:[#allocation5 + $0x1d0] sm:$0xff] %vm1401, %v2461
        %2470 = vst.msk [vmem:[#allocation5 + $0x1d8] sm:$0xff] %vm1401, %v2462
        %2471 = vst.msk [vmem:[#allocation5 + $0x1e0] sm:$0xff] %vm1401, %v2463
        %2472 = vst.msk [vmem:[#allocation5 + $0x1e8] sm:$0xff] %vm1401, %v2464
        %2473 = vst.msk [vmem:[#allocation5 + $0x1f0] sm:$0xff] %vm1401, %v2465
        %2474 = vst.msk [vmem:[#allocation5 + $0x1f8] sm:$0xff] %vm1401, %v2466
        %vm2475 = vcmp.le.f32.partialorder %v2427, %v2437
        %vm2476 = vcmp.le.f32.partialorder %v2428, %v2440
        %vm2477 = vcmp.le.f32.partialorder %v2429, %v2443
        %vm2478 = vcmp.le.f32.partialorder %v2430, %v2446
        %vm2479 = vcmp.le.f32.partialorder %v2431, %v2449
        %vm2480 = vcmp.le.f32.partialorder %v2432, %v2452
        %vm2481 = vcmp.le.f32.partialorder %v2433, %v2455
        %vm2482 = vcmp.le.f32.partialorder %v2434, %v2458
        %v2483 = vsel %vm2475, %v1328, 64.0
        %v2484 = vsel %vm2476, %v1328, 64.0
        %v2485 = vsel %vm2477, %v1328, 64.0
        %v2486 = vsel %vm2478, %v1328, 64.0
        %v2487 = vsel %vm2479, %v1328, 64.0
        %v2488 = vsel %vm2480, %v1328, 64.0
        %v2489 = vsel %vm2481, %v1328, 64.0
        %v2490 = vsel %vm2482, %v1328, 64.0
        %v2491 = vsel %vm1279, %v2483, inf
        %2492 = vmin.xlane.f32.xlu0 %v2491
        %v2493 = vpop.xlane.xlu0 %2492
        %v2494 = vsel %vm1279, %v2484, inf
        %2495 = vmin.xlane.f32.xlu0 %v2494
        %v2496 = vpop.xlane.xlu0 %2495
        %v2497 = vsel %vm1279, %v2485, inf
        %2498 = vmin.xlane.f32.xlu0 %v2497
        %v2499 = vpop.xlane.xlu0 %2498
        %v2500 = vsel %vm1279, %v2486, inf
        %2501 = vmin.xlane.f32.xlu0 %v2500
        %v2502 = vpop.xlane.xlu0 %2501
        %v2503 = vsel %vm1279, %v2487, inf
        %2504 = vmin.xlane.f32.xlu0 %v2503
        %v2505 = vpop.xlane.xlu0 %2504
        %v2506 = vsel %vm1279, %v2488, inf
        %2507 = vmin.xlane.f32.xlu0 %v2506
        %v2508 = vpop.xlane.xlu0 %2507
        %v2509 = vsel %vm1279, %v2489, inf
        %2510 = vmin.xlane.f32.xlu0 %v2509
        %v2511 = vpop.xlane.xlu0 %2510
        %v2512 = vsel %vm1279, %v2490, inf
        %2513 = vmin.xlane.f32.xlu0 %v2512
        %v2514 = vpop.xlane.xlu0 %2513
        %vm2515 = vcmp.eq.f32.partialorder %v1328, %v2493
        %vm2516 = vcmp.eq.f32.partialorder %v1328, %v2496
        %vm2517 = vcmp.eq.f32.partialorder %v1328, %v2499
        %vm2518 = vcmp.eq.f32.partialorder %v1328, %v2502
        %vm2519 = vcmp.eq.f32.partialorder %v1328, %v2505
        %vm2520 = vcmp.eq.f32.partialorder %v1328, %v2508
        %vm2521 = vcmp.eq.f32.partialorder %v1328, %v2511
        %vm2522 = vcmp.eq.f32.partialorder %v1328, %v2514
        %v2523 = vsel %vm2515, 1, 0
        %v2524 = vsel %vm2516, 1, 0
        %v2525 = vsel %vm2517, 1, 0
        %v2526 = vsel %vm2518, 1, 0
        %v2527 = vsel %vm2519, 1, 0
        %v2528 = vsel %vm2520, 1, 0
        %v2529 = vsel %vm2521, 1, 0
        %v2530 = vsel %vm2522, 1, 0
        %v2531 = vcvt.s32.f32 %v2523
        %v2532 = vcvt.s32.f32 %v2524
        %v2533 = vcvt.s32.f32 %v2525
        %v2534 = vcvt.s32.f32 %v2526
        %v2535 = vcvt.s32.f32 %v2527
        %v2536 = vcvt.s32.f32 %v2528
        %v2537 = vcvt.s32.f32 %v2529
        %v2538 = vcvt.s32.f32 %v2530
        %v2539 = vpack.c.bf16 %v2532, %v2531
        %v2540 = vpack.c.bf16 %v2534, %v2533
        %v2541 = vpack.c.bf16 %v2536, %v2535
        %v2542 = vpack.c.bf16 %v2538, %v2537
        %v2547 = vunpack.c.l.b16 %v2539
        %v2548 = vunpack.c.h.b16 %v2539
        %v2549 = vunpack.c.l.b16 %v2540
        %v2550 = vunpack.c.h.b16 %v2540
        %v2551 = vunpack.c.l.b16 %v2541
        %v2552 = vunpack.c.h.b16 %v2541
        %v2553 = vunpack.c.l.b16 %v2542
        %v2554 = vunpack.c.h.b16 %v2542
        %v2555 = vpack.c.b16 %v2547, %v2547
        %v2556 = vpack.c.b16 %v2548, %v2548
        %v2557 = vpack.c.b16 %v2549, %v2549
        %v2558 = vpack.c.b16 %v2550, %v2550
        %v2559 = vpack.c.b16 %v2551, %v2551
        %v2560 = vpack.c.b16 %v2552, %v2552
        %v2561 = vpack.c.b16 %v2553, %v2553
        %v2562 = vpack.c.b16 %v2554, %v2554
        %2571 = vst.msk [vmem:[#allocation4 + $0xe0] sm:$0xf] %vm1506, %v2555
        %2572 = vst.msk [vmem:[#allocation4 + $0xe4] sm:$0xf] %vm1506, %v2556
        %2573 = vst.msk [vmem:[#allocation4 + $0xe8] sm:$0xf] %vm1506, %v2557
        %2574 = vst.msk [vmem:[#allocation4 + $0xec] sm:$0xf] %vm1506, %v2558
        %2575 = vst.msk [vmem:[#allocation4 + $0xf0] sm:$0xf] %vm1506, %v2559
        %2576 = vst.msk [vmem:[#allocation4 + $0xf4] sm:$0xf] %vm1506, %v2560
        %2577 = vst.msk [vmem:[#allocation4 + $0xf8] sm:$0xf] %vm1506, %v2561
        %2578 = vst.msk [vmem:[#allocation4 + $0xfc] sm:$0xf] %vm1506, %v2562
        %v2579 = vsel %vm2515, 1e+30, %v2427
        %v2580 = vsel %vm2516, 1e+30, %v2428
        %v2581 = vsel %vm2517, 1e+30, %v2429
        %v2582 = vsel %vm2518, 1e+30, %v2430
        %v2583 = vsel %vm2519, 1e+30, %v2431
        %v2584 = vsel %vm2520, 1e+30, %v2432
        %v2585 = vsel %vm2521, 1e+30, %v2433
        %v2586 = vsel %vm2522, 1e+30, %v2434
        %v2587 = vsel %vm1279, %v2579, inf
        %2588 = vmin.xlane.f32.xlu0 %v2587
        %v2589 = vpop.xlane.xlu0 %2588
        %v2590 = vsel %vm1279, %v2580, inf
        %2591 = vmin.xlane.f32.xlu0 %v2590
        %v2592 = vpop.xlane.xlu0 %2591
        %v2593 = vsel %vm1279, %v2581, inf
        %2594 = vmin.xlane.f32.xlu0 %v2593
        %v2595 = vpop.xlane.xlu0 %2594
        %v2596 = vsel %vm1279, %v2582, inf
        %2597 = vmin.xlane.f32.xlu0 %v2596
        %v2598 = vpop.xlane.xlu0 %2597
        %v2599 = vsel %vm1279, %v2583, inf
        %2600 = vmin.xlane.f32.xlu0 %v2599
        %v2601 = vpop.xlane.xlu0 %2600
        %v2602 = vsel %vm1279, %v2584, inf
        %2603 = vmin.xlane.f32.xlu0 %v2602
        %v2604 = vpop.xlane.xlu0 %2603
        %v2605 = vsel %vm1279, %v2585, inf
        %2606 = vmin.xlane.f32.xlu0 %v2605
        %v2607 = vpop.xlane.xlu0 %2606
        %v2608 = vsel %vm1279, %v2586, inf
        %2609 = vmin.xlane.f32.xlu0 %v2608
        %v2610 = vpop.xlane.xlu0 %2609
        %v2611 = vmax.f32 %v2589, 0.0
        %v2612 = vmax.f32 %v2592, 0.0
        %v2613 = vmax.f32 %v2595, 0.0
        %v2614 = vmax.f32 %v2598, 0.0
        %v2615 = vmax.f32 %v2601, 0.0
        %v2616 = vmax.f32 %v2604, 0.0
        %v2617 = vmax.f32 %v2607, 0.0
        %v2618 = vmax.f32 %v2610, 0.0
        %2619 = vst.msk [vmem:[#allocation5 + $0x200] sm:$0xff] %vm1401, %v2611
        %2620 = vst.msk [vmem:[#allocation5 + $0x208] sm:$0xff] %vm1401, %v2612
        %2621 = vst.msk [vmem:[#allocation5 + $0x210] sm:$0xff] %vm1401, %v2613
        %2622 = vst.msk [vmem:[#allocation5 + $0x218] sm:$0xff] %vm1401, %v2614
        %2623 = vst.msk [vmem:[#allocation5 + $0x220] sm:$0xff] %vm1401, %v2615
        %2624 = vst.msk [vmem:[#allocation5 + $0x228] sm:$0xff] %vm1401, %v2616
        %2625 = vst.msk [vmem:[#allocation5 + $0x230] sm:$0xff] %vm1401, %v2617
        %2626 = vst.msk [vmem:[#allocation5 + $0x238] sm:$0xff] %vm1401, %v2618
        %vm2627 = vcmp.le.f32.partialorder %v2579, %v2589
        %vm2628 = vcmp.le.f32.partialorder %v2580, %v2592
        %vm2629 = vcmp.le.f32.partialorder %v2581, %v2595
        %vm2630 = vcmp.le.f32.partialorder %v2582, %v2598
        %vm2631 = vcmp.le.f32.partialorder %v2583, %v2601
        %vm2632 = vcmp.le.f32.partialorder %v2584, %v2604
        %vm2633 = vcmp.le.f32.partialorder %v2585, %v2607
        %vm2634 = vcmp.le.f32.partialorder %v2586, %v2610
        %v2635 = vsel %vm2627, %v1328, 64.0
        %v2636 = vsel %vm2628, %v1328, 64.0
        %v2637 = vsel %vm2629, %v1328, 64.0
        %v2638 = vsel %vm2630, %v1328, 64.0
        %v2639 = vsel %vm2631, %v1328, 64.0
        %v2640 = vsel %vm2632, %v1328, 64.0
        %v2641 = vsel %vm2633, %v1328, 64.0
        %v2642 = vsel %vm2634, %v1328, 64.0
        %v2643 = vsel %vm1279, %v2635, inf
        %2644 = vmin.xlane.f32.xlu0 %v2643
        %v2645 = vpop.xlane.xlu0 %2644
        %v2646 = vsel %vm1279, %v2636, inf
        %2647 = vmin.xlane.f32.xlu0 %v2646
        %v2648 = vpop.xlane.xlu0 %2647
        %v2649 = vsel %vm1279, %v2637, inf
        %2650 = vmin.xlane.f32.xlu0 %v2649
        %v2651 = vpop.xlane.xlu0 %2650
        %v2652 = vsel %vm1279, %v2638, inf
        %2653 = vmin.xlane.f32.xlu0 %v2652
        %v2654 = vpop.xlane.xlu0 %2653
        %v2655 = vsel %vm1279, %v2639, inf
        %2656 = vmin.xlane.f32.xlu0 %v2655
        %v2657 = vpop.xlane.xlu0 %2656
        %v2658 = vsel %vm1279, %v2640, inf
        %2659 = vmin.xlane.f32.xlu0 %v2658
        %v2660 = vpop.xlane.xlu0 %2659
        %v2661 = vsel %vm1279, %v2641, inf
        %2662 = vmin.xlane.f32.xlu0 %v2661
        %v2663 = vpop.xlane.xlu0 %2662
        %v2664 = vsel %vm1279, %v2642, inf
        %2665 = vmin.xlane.f32.xlu0 %v2664
        %v2666 = vpop.xlane.xlu0 %2665
        %vm2667 = vcmp.eq.f32.partialorder %v1328, %v2645
        %vm2668 = vcmp.eq.f32.partialorder %v1328, %v2648
        %vm2669 = vcmp.eq.f32.partialorder %v1328, %v2651
        %vm2670 = vcmp.eq.f32.partialorder %v1328, %v2654
        %vm2671 = vcmp.eq.f32.partialorder %v1328, %v2657
        %vm2672 = vcmp.eq.f32.partialorder %v1328, %v2660
        %vm2673 = vcmp.eq.f32.partialorder %v1328, %v2663
        %vm2674 = vcmp.eq.f32.partialorder %v1328, %v2666
        %v2675 = vsel %vm2667, 1, 0
        %v2676 = vsel %vm2668, 1, 0
        %v2677 = vsel %vm2669, 1, 0
        %v2678 = vsel %vm2670, 1, 0
        %v2679 = vsel %vm2671, 1, 0
        %v2680 = vsel %vm2672, 1, 0
        %v2681 = vsel %vm2673, 1, 0
        %v2682 = vsel %vm2674, 1, 0
        %v2683 = vcvt.s32.f32 %v2675
        %v2684 = vcvt.s32.f32 %v2676
        %v2685 = vcvt.s32.f32 %v2677
        %v2686 = vcvt.s32.f32 %v2678
        %v2687 = vcvt.s32.f32 %v2679
        %v2688 = vcvt.s32.f32 %v2680
        %v2689 = vcvt.s32.f32 %v2681
        %v2690 = vcvt.s32.f32 %v2682
        %v2691 = vpack.c.bf16 %v2684, %v2683
        %v2692 = vpack.c.bf16 %v2686, %v2685
        %v2693 = vpack.c.bf16 %v2688, %v2687
        %v2694 = vpack.c.bf16 %v2690, %v2689
        %v2699 = vunpack.c.l.b16 %v2691
        %v2700 = vunpack.c.h.b16 %v2691
        %v2701 = vunpack.c.l.b16 %v2692
        %v2702 = vunpack.c.h.b16 %v2692
        %v2703 = vunpack.c.l.b16 %v2693
        %v2704 = vunpack.c.h.b16 %v2693
        %v2705 = vunpack.c.l.b16 %v2694
        %v2706 = vunpack.c.h.b16 %v2694
        %v2707 = vpack.c.b16 %v2699, %v2699
        %v2708 = vpack.c.b16 %v2700, %v2700
        %v2709 = vpack.c.b16 %v2701, %v2701
        %v2710 = vpack.c.b16 %v2702, %v2702
        %v2711 = vpack.c.b16 %v2703, %v2703
        %v2712 = vpack.c.b16 %v2704, %v2704
        %v2713 = vpack.c.b16 %v2705, %v2705
        %v2714 = vpack.c.b16 %v2706, %v2706
        %2723 = vst.msk [vmem:[#allocation4 + $0x100] sm:$0xf] %vm1506, %v2707
        %2724 = vst.msk [vmem:[#allocation4 + $0x104] sm:$0xf] %vm1506, %v2708
        %2725 = vst.msk [vmem:[#allocation4 + $0x108] sm:$0xf] %vm1506, %v2709
        %2726 = vst.msk [vmem:[#allocation4 + $0x10c] sm:$0xf] %vm1506, %v2710
        %2727 = vst.msk [vmem:[#allocation4 + $0x110] sm:$0xf] %vm1506, %v2711
        %2728 = vst.msk [vmem:[#allocation4 + $0x114] sm:$0xf] %vm1506, %v2712
        %2729 = vst.msk [vmem:[#allocation4 + $0x118] sm:$0xf] %vm1506, %v2713
        %2730 = vst.msk [vmem:[#allocation4 + $0x11c] sm:$0xf] %vm1506, %v2714
        %v2731 = vsel %vm2667, 1e+30, %v2579
        %v2732 = vsel %vm2668, 1e+30, %v2580
        %v2733 = vsel %vm2669, 1e+30, %v2581
        %v2734 = vsel %vm2670, 1e+30, %v2582
        %v2735 = vsel %vm2671, 1e+30, %v2583
        %v2736 = vsel %vm2672, 1e+30, %v2584
        %v2737 = vsel %vm2673, 1e+30, %v2585
        %v2738 = vsel %vm2674, 1e+30, %v2586
        %v2739 = vsel %vm1279, %v2731, inf
        %2740 = vmin.xlane.f32.xlu0 %v2739
        %v2741 = vpop.xlane.xlu0 %2740
        %v2742 = vsel %vm1279, %v2732, inf
        %2743 = vmin.xlane.f32.xlu0 %v2742
        %v2744 = vpop.xlane.xlu0 %2743
        %v2745 = vsel %vm1279, %v2733, inf
        %2746 = vmin.xlane.f32.xlu0 %v2745
        %v2747 = vpop.xlane.xlu0 %2746
        %v2748 = vsel %vm1279, %v2734, inf
        %2749 = vmin.xlane.f32.xlu0 %v2748
        %v2750 = vpop.xlane.xlu0 %2749
        %v2751 = vsel %vm1279, %v2735, inf
        %2752 = vmin.xlane.f32.xlu0 %v2751
        %v2753 = vpop.xlane.xlu0 %2752
        %v2754 = vsel %vm1279, %v2736, inf
        %2755 = vmin.xlane.f32.xlu0 %v2754
        %v2756 = vpop.xlane.xlu0 %2755
        %v2757 = vsel %vm1279, %v2737, inf
        %2758 = vmin.xlane.f32.xlu0 %v2757
        %v2759 = vpop.xlane.xlu0 %2758
        %v2760 = vsel %vm1279, %v2738, inf
        %2761 = vmin.xlane.f32.xlu0 %v2760
        %v2762 = vpop.xlane.xlu0 %2761
        %v2763 = vmax.f32 %v2741, 0.0
        %v2764 = vmax.f32 %v2744, 0.0
        %v2765 = vmax.f32 %v2747, 0.0
        %v2766 = vmax.f32 %v2750, 0.0
        %v2767 = vmax.f32 %v2753, 0.0
        %v2768 = vmax.f32 %v2756, 0.0
        %v2769 = vmax.f32 %v2759, 0.0
        %v2770 = vmax.f32 %v2762, 0.0
        %2771 = vst.msk [vmem:[#allocation5 + $0x240] sm:$0xff] %vm1401, %v2763
        %2772 = vst.msk [vmem:[#allocation5 + $0x248] sm:$0xff] %vm1401, %v2764
        %2773 = vst.msk [vmem:[#allocation5 + $0x250] sm:$0xff] %vm1401, %v2765
        %2774 = vst.msk [vmem:[#allocation5 + $0x258] sm:$0xff] %vm1401, %v2766
        %2775 = vst.msk [vmem:[#allocation5 + $0x260] sm:$0xff] %vm1401, %v2767
        %2776 = vst.msk [vmem:[#allocation5 + $0x268] sm:$0xff] %vm1401, %v2768
        %2777 = vst.msk [vmem:[#allocation5 + $0x270] sm:$0xff] %vm1401, %v2769
        %2778 = vst.msk [vmem:[#allocation5 + $0x278] sm:$0xff] %vm1401, %v2770
        %vm2779 = vcmp.le.f32.partialorder %v2731, %v2741
        %vm2780 = vcmp.le.f32.partialorder %v2732, %v2744
        %vm2781 = vcmp.le.f32.partialorder %v2733, %v2747
        %vm2782 = vcmp.le.f32.partialorder %v2734, %v2750
        %vm2783 = vcmp.le.f32.partialorder %v2735, %v2753
        %vm2784 = vcmp.le.f32.partialorder %v2736, %v2756
        %vm2785 = vcmp.le.f32.partialorder %v2737, %v2759
        %vm2786 = vcmp.le.f32.partialorder %v2738, %v2762
        %v2787 = vsel %vm2779, %v1328, 64.0
        %v2788 = vsel %vm2780, %v1328, 64.0
        %v2789 = vsel %vm2781, %v1328, 64.0
        %v2790 = vsel %vm2782, %v1328, 64.0
        %v2791 = vsel %vm2783, %v1328, 64.0
        %v2792 = vsel %vm2784, %v1328, 64.0
        %v2793 = vsel %vm2785, %v1328, 64.0
        %v2794 = vsel %vm2786, %v1328, 64.0
        %v2795 = vsel %vm1279, %v2787, inf
        %2796 = vmin.xlane.f32.xlu0 %v2795
        %v2797 = vpop.xlane.xlu0 %2796
        %v2798 = vsel %vm1279, %v2788, inf
        %2799 = vmin.xlane.f32.xlu0 %v2798
        %v2800 = vpop.xlane.xlu0 %2799
        %v2801 = vsel %vm1279, %v2789, inf
        %2802 = vmin.xlane.f32.xlu0 %v2801
        %v2803 = vpop.xlane.xlu0 %2802
        %v2804 = vsel %vm1279, %v2790, inf
        %2805 = vmin.xlane.f32.xlu0 %v2804
        %v2806 = vpop.xlane.xlu0 %2805
        %v2807 = vsel %vm1279, %v2791, inf
        %2808 = vmin.xlane.f32.xlu0 %v2807
        %v2809 = vpop.xlane.xlu0 %2808
        %v2810 = vsel %vm1279, %v2792, inf
        %2811 = vmin.xlane.f32.xlu0 %v2810
        %v2812 = vpop.xlane.xlu0 %2811
        %v2813 = vsel %vm1279, %v2793, inf
        %2814 = vmin.xlane.f32.xlu0 %v2813
        %v2815 = vpop.xlane.xlu0 %2814
        %v2816 = vsel %vm1279, %v2794, inf
        %2817 = vmin.xlane.f32.xlu0 %v2816
        %v2818 = vpop.xlane.xlu0 %2817
        %vm2819 = vcmp.eq.f32.partialorder %v1328, %v2797
        %vm2820 = vcmp.eq.f32.partialorder %v1328, %v2800
        %vm2821 = vcmp.eq.f32.partialorder %v1328, %v2803
        %vm2822 = vcmp.eq.f32.partialorder %v1328, %v2806
        %vm2823 = vcmp.eq.f32.partialorder %v1328, %v2809
        %vm2824 = vcmp.eq.f32.partialorder %v1328, %v2812
        %vm2825 = vcmp.eq.f32.partialorder %v1328, %v2815
        %vm2826 = vcmp.eq.f32.partialorder %v1328, %v2818
        %v2827 = vsel %vm2819, 1, 0
        %v2828 = vsel %vm2820, 1, 0
        %v2829 = vsel %vm2821, 1, 0
        %v2830 = vsel %vm2822, 1, 0
        %v2831 = vsel %vm2823, 1, 0
        %v2832 = vsel %vm2824, 1, 0
        %v2833 = vsel %vm2825, 1, 0
        %v2834 = vsel %vm2826, 1, 0
        %v2835 = vcvt.s32.f32 %v2827
        %v2836 = vcvt.s32.f32 %v2828
        %v2837 = vcvt.s32.f32 %v2829
        %v2838 = vcvt.s32.f32 %v2830
        %v2839 = vcvt.s32.f32 %v2831
        %v2840 = vcvt.s32.f32 %v2832
        %v2841 = vcvt.s32.f32 %v2833
        %v2842 = vcvt.s32.f32 %v2834
        %v2843 = vpack.c.bf16 %v2836, %v2835
        %v2844 = vpack.c.bf16 %v2838, %v2837
        %v2845 = vpack.c.bf16 %v2840, %v2839
        %v2846 = vpack.c.bf16 %v2842, %v2841
        %v2851 = vunpack.c.l.b16 %v2843
        %v2852 = vunpack.c.h.b16 %v2843
        %v2853 = vunpack.c.l.b16 %v2844
        %v2854 = vunpack.c.h.b16 %v2844
        %v2855 = vunpack.c.l.b16 %v2845
        %v2856 = vunpack.c.h.b16 %v2845
        %v2857 = vunpack.c.l.b16 %v2846
        %v2858 = vunpack.c.h.b16 %v2846
        %v2859 = vpack.c.b16 %v2851, %v2851
        %v2860 = vpack.c.b16 %v2852, %v2852
        %v2861 = vpack.c.b16 %v2853, %v2853
        %v2862 = vpack.c.b16 %v2854, %v2854
        %v2863 = vpack.c.b16 %v2855, %v2855
        %v2864 = vpack.c.b16 %v2856, %v2856
        %v2865 = vpack.c.b16 %v2857, %v2857
        %v2866 = vpack.c.b16 %v2858, %v2858
        %2875 = vst.msk [vmem:[#allocation4 + $0x120] sm:$0xf] %vm1506, %v2859
        %2876 = vst.msk [vmem:[#allocation4 + $0x124] sm:$0xf] %vm1506, %v2860
        %2877 = vst.msk [vmem:[#allocation4 + $0x128] sm:$0xf] %vm1506, %v2861
        %2878 = vst.msk [vmem:[#allocation4 + $0x12c] sm:$0xf] %vm1506, %v2862
        %2879 = vst.msk [vmem:[#allocation4 + $0x130] sm:$0xf] %vm1506, %v2863
        %2880 = vst.msk [vmem:[#allocation4 + $0x134] sm:$0xf] %vm1506, %v2864
        %2881 = vst.msk [vmem:[#allocation4 + $0x138] sm:$0xf] %vm1506, %v2865
        %2882 = vst.msk [vmem:[#allocation4 + $0x13c] sm:$0xf] %vm1506, %v2866
        %v2883 = vsel %vm2819, 1e+30, %v2731
        %v2884 = vsel %vm2820, 1e+30, %v2732
        %v2885 = vsel %vm2821, 1e+30, %v2733
        %v2886 = vsel %vm2822, 1e+30, %v2734
        %v2887 = vsel %vm2823, 1e+30, %v2735
        %v2888 = vsel %vm2824, 1e+30, %v2736
        %v2889 = vsel %vm2825, 1e+30, %v2737
        %v2890 = vsel %vm2826, 1e+30, %v2738
        %v2891 = vsel %vm1279, %v2883, inf
        %2892 = vmin.xlane.f32.xlu0 %v2891
        %v2893 = vpop.xlane.xlu0 %2892
        %v2894 = vsel %vm1279, %v2884, inf
        %2895 = vmin.xlane.f32.xlu0 %v2894
        %v2896 = vpop.xlane.xlu0 %2895
        %v2897 = vsel %vm1279, %v2885, inf
        %2898 = vmin.xlane.f32.xlu0 %v2897
        %v2899 = vpop.xlane.xlu0 %2898
        %v2900 = vsel %vm1279, %v2886, inf
        %2901 = vmin.xlane.f32.xlu0 %v2900
        %v2902 = vpop.xlane.xlu0 %2901
        %v2903 = vsel %vm1279, %v2887, inf
        %2904 = vmin.xlane.f32.xlu0 %v2903
        %v2905 = vpop.xlane.xlu0 %2904
        %v2906 = vsel %vm1279, %v2888, inf
        %2907 = vmin.xlane.f32.xlu0 %v2906
        %v2908 = vpop.xlane.xlu0 %2907
        %v2909 = vsel %vm1279, %v2889, inf
        %2910 = vmin.xlane.f32.xlu0 %v2909
        %v2911 = vpop.xlane.xlu0 %2910
        %v2912 = vsel %vm1279, %v2890, inf
        %2913 = vmin.xlane.f32.xlu0 %v2912
        %v2914 = vpop.xlane.xlu0 %2913
        %v2915 = vmax.f32 %v2893, 0.0
        %v2916 = vmax.f32 %v2896, 0.0
        %v2917 = vmax.f32 %v2899, 0.0
        %v2918 = vmax.f32 %v2902, 0.0
        %v2919 = vmax.f32 %v2905, 0.0
        %v2920 = vmax.f32 %v2908, 0.0
        %v2921 = vmax.f32 %v2911, 0.0
        %v2922 = vmax.f32 %v2914, 0.0
        %2923 = vst.msk [vmem:[#allocation5 + $0x280] sm:$0xff] %vm1401, %v2915
        %2924 = vst.msk [vmem:[#allocation5 + $0x288] sm:$0xff] %vm1401, %v2916
        %2925 = vst.msk [vmem:[#allocation5 + $0x290] sm:$0xff] %vm1401, %v2917
        %2926 = vst.msk [vmem:[#allocation5 + $0x298] sm:$0xff] %vm1401, %v2918
        %2927 = vst.msk [vmem:[#allocation5 + $0x2a0] sm:$0xff] %vm1401, %v2919
        %2928 = vst.msk [vmem:[#allocation5 + $0x2a8] sm:$0xff] %vm1401, %v2920
        %2929 = vst.msk [vmem:[#allocation5 + $0x2b0] sm:$0xff] %vm1401, %v2921
        %2930 = vst.msk [vmem:[#allocation5 + $0x2b8] sm:$0xff] %vm1401, %v2922
        %vm2931 = vcmp.le.f32.partialorder %v2883, %v2893
        %vm2932 = vcmp.le.f32.partialorder %v2884, %v2896
        %vm2933 = vcmp.le.f32.partialorder %v2885, %v2899
        %vm2934 = vcmp.le.f32.partialorder %v2886, %v2902
        %vm2935 = vcmp.le.f32.partialorder %v2887, %v2905
        %vm2936 = vcmp.le.f32.partialorder %v2888, %v2908
        %vm2937 = vcmp.le.f32.partialorder %v2889, %v2911
        %vm2938 = vcmp.le.f32.partialorder %v2890, %v2914
        %v2939 = vsel %vm2931, %v1328, 64.0
        %v2940 = vsel %vm2932, %v1328, 64.0
        %v2941 = vsel %vm2933, %v1328, 64.0
        %v2942 = vsel %vm2934, %v1328, 64.0
        %v2943 = vsel %vm2935, %v1328, 64.0
        %v2944 = vsel %vm2936, %v1328, 64.0
        %v2945 = vsel %vm2937, %v1328, 64.0
        %v2946 = vsel %vm2938, %v1328, 64.0
        %v2947 = vsel %vm1279, %v2939, inf
        %2948 = vmin.xlane.f32.xlu0 %v2947
        %v2949 = vpop.xlane.xlu0 %2948
        %v2950 = vsel %vm1279, %v2940, inf
        %2951 = vmin.xlane.f32.xlu0 %v2950
        %v2952 = vpop.xlane.xlu0 %2951
        %v2953 = vsel %vm1279, %v2941, inf
        %2954 = vmin.xlane.f32.xlu0 %v2953
        %v2955 = vpop.xlane.xlu0 %2954
        %v2956 = vsel %vm1279, %v2942, inf
        %2957 = vmin.xlane.f32.xlu0 %v2956
        %v2958 = vpop.xlane.xlu0 %2957
        %v2959 = vsel %vm1279, %v2943, inf
        %2960 = vmin.xlane.f32.xlu0 %v2959
        %v2961 = vpop.xlane.xlu0 %2960
        %v2962 = vsel %vm1279, %v2944, inf
        %2963 = vmin.xlane.f32.xlu0 %v2962
        %v2964 = vpop.xlane.xlu0 %2963
        %v2965 = vsel %vm1279, %v2945, inf
        %2966 = vmin.xlane.f32.xlu0 %v2965
        %v2967 = vpop.xlane.xlu0 %2966
        %v2968 = vsel %vm1279, %v2946, inf
        %2969 = vmin.xlane.f32.xlu0 %v2968
        %v2970 = vpop.xlane.xlu0 %2969
        %vm2971 = vcmp.eq.f32.partialorder %v1328, %v2949
        %vm2972 = vcmp.eq.f32.partialorder %v1328, %v2952
        %vm2973 = vcmp.eq.f32.partialorder %v1328, %v2955
        %vm2974 = vcmp.eq.f32.partialorder %v1328, %v2958
        %vm2975 = vcmp.eq.f32.partialorder %v1328, %v2961
        %vm2976 = vcmp.eq.f32.partialorder %v1328, %v2964
        %vm2977 = vcmp.eq.f32.partialorder %v1328, %v2967
        %vm2978 = vcmp.eq.f32.partialorder %v1328, %v2970
        %v2979 = vsel %vm2971, 1, 0
        %v2980 = vsel %vm2972, 1, 0
        %v2981 = vsel %vm2973, 1, 0
        %v2982 = vsel %vm2974, 1, 0
        %v2983 = vsel %vm2975, 1, 0
        %v2984 = vsel %vm2976, 1, 0
        %v2985 = vsel %vm2977, 1, 0
        %v2986 = vsel %vm2978, 1, 0
        %v2987 = vcvt.s32.f32 %v2979
        %v2988 = vcvt.s32.f32 %v2980
        %v2989 = vcvt.s32.f32 %v2981
        %v2990 = vcvt.s32.f32 %v2982
        %v2991 = vcvt.s32.f32 %v2983
        %v2992 = vcvt.s32.f32 %v2984
        %v2993 = vcvt.s32.f32 %v2985
        %v2994 = vcvt.s32.f32 %v2986
        %v2995 = vpack.c.bf16 %v2988, %v2987
        %v2996 = vpack.c.bf16 %v2990, %v2989
        %v2997 = vpack.c.bf16 %v2992, %v2991
        %v2998 = vpack.c.bf16 %v2994, %v2993
        %v3003 = vunpack.c.l.b16 %v2995
        %v3004 = vunpack.c.h.b16 %v2995
        %v3005 = vunpack.c.l.b16 %v2996
        %v3006 = vunpack.c.h.b16 %v2996
        %v3007 = vunpack.c.l.b16 %v2997
        %v3008 = vunpack.c.h.b16 %v2997
        %v3009 = vunpack.c.l.b16 %v2998
        %v3010 = vunpack.c.h.b16 %v2998
        %v3011 = vpack.c.b16 %v3003, %v3003
        %v3012 = vpack.c.b16 %v3004, %v3004
        %v3013 = vpack.c.b16 %v3005, %v3005
        %v3014 = vpack.c.b16 %v3006, %v3006
        %v3015 = vpack.c.b16 %v3007, %v3007
        %v3016 = vpack.c.b16 %v3008, %v3008
        %v3017 = vpack.c.b16 %v3009, %v3009
        %v3018 = vpack.c.b16 %v3010, %v3010
        %3027 = vst.msk [vmem:[#allocation4 + $0x140] sm:$0xf] %vm1506, %v3011
        %3028 = vst.msk [vmem:[#allocation4 + $0x144] sm:$0xf] %vm1506, %v3012
        %3029 = vst.msk [vmem:[#allocation4 + $0x148] sm:$0xf] %vm1506, %v3013
        %3030 = vst.msk [vmem:[#allocation4 + $0x14c] sm:$0xf] %vm1506, %v3014
        %3031 = vst.msk [vmem:[#allocation4 + $0x150] sm:$0xf] %vm1506, %v3015
        %3032 = vst.msk [vmem:[#allocation4 + $0x154] sm:$0xf] %vm1506, %v3016
        %3033 = vst.msk [vmem:[#allocation4 + $0x158] sm:$0xf] %vm1506, %v3017
        %3034 = vst.msk [vmem:[#allocation4 + $0x15c] sm:$0xf] %vm1506, %v3018
        %v3035 = vld [vmem:[#allocation4] sm:$0xf]
        %v3036 = vld [vmem:[#allocation4 + $0x4] sm:$0xf]
        %v3037 = vld [vmem:[#allocation4 + $0x8] sm:$0xf]
        %v3038 = vld [vmem:[#allocation4 + $0xc] sm:$0xf]
        %v3039 = vld [vmem:[#allocation4 + $0x10] sm:$0xf]
        %v3040 = vld [vmem:[#allocation4 + $0x14] sm:$0xf]
        %v3041 = vld [vmem:[#allocation4 + $0x18] sm:$0xf]
        %v3042 = vld [vmem:[#allocation4 + $0x1c] sm:$0xf]
        %v3043 = vld [vmem:[#allocation4 + $0x20] sm:$0xf]
        %v3044 = vld [vmem:[#allocation4 + $0x24] sm:$0xf]
        %v3045 = vld [vmem:[#allocation4 + $0x28] sm:$0xf]
        %v3046 = vld [vmem:[#allocation4 + $0x2c] sm:$0xf]
        %v3047 = vld [vmem:[#allocation4 + $0x30] sm:$0xf]
        %v3048 = vld [vmem:[#allocation4 + $0x34] sm:$0xf]
        %v3049 = vld [vmem:[#allocation4 + $0x38] sm:$0xf]
        %v3050 = vld [vmem:[#allocation4 + $0x3c] sm:$0xf]
        %v3051 = vld [vmem:[#allocation4 + $0x40] sm:$0xf]
        %v3052 = vld [vmem:[#allocation4 + $0x44] sm:$0xf]
        %v3053 = vld [vmem:[#allocation4 + $0x48] sm:$0xf]
        %v3054 = vld [vmem:[#allocation4 + $0x4c] sm:$0xf]
        %v3055 = vld [vmem:[#allocation4 + $0x50] sm:$0xf]
        %v3056 = vld [vmem:[#allocation4 + $0x54] sm:$0xf]
        %v3057 = vld [vmem:[#allocation4 + $0x58] sm:$0xf]
        %v3058 = vld [vmem:[#allocation4 + $0x5c] sm:$0xf]
        %v3059 = vld [vmem:[#allocation4 + $0x60] sm:$0xf]
        %v3060 = vld [vmem:[#allocation4 + $0x64] sm:$0xf]
        %v3061 = vld [vmem:[#allocation4 + $0x68] sm:$0xf]
        %v3062 = vld [vmem:[#allocation4 + $0x6c] sm:$0xf]
        %v3063 = vld [vmem:[#allocation4 + $0x70] sm:$0xf]
        %v3064 = vld [vmem:[#allocation4 + $0x74] sm:$0xf]
        %v3065 = vld [vmem:[#allocation4 + $0x78] sm:$0xf]
        %v3066 = vld [vmem:[#allocation4 + $0x7c] sm:$0xf]
        %v3067 = vld [vmem:[#allocation4 + $0x80] sm:$0xf]
        %v3068 = vld [vmem:[#allocation4 + $0x84] sm:$0xf]
        %v3069 = vld [vmem:[#allocation4 + $0x88] sm:$0xf]
        %v3070 = vld [vmem:[#allocation4 + $0x8c] sm:$0xf]
        %v3071 = vld [vmem:[#allocation4 + $0x90] sm:$0xf]
        %v3072 = vld [vmem:[#allocation4 + $0x94] sm:$0xf]
        %v3073 = vld [vmem:[#allocation4 + $0x98] sm:$0xf]
        %v3074 = vld [vmem:[#allocation4 + $0x9c] sm:$0xf]
        %v3075 = vld [vmem:[#allocation4 + $0xa0] sm:$0xf]
        %v3076 = vld [vmem:[#allocation4 + $0xa4] sm:$0xf]
        %v3077 = vld [vmem:[#allocation4 + $0xa8] sm:$0xf]
        %v3078 = vld [vmem:[#allocation4 + $0xac] sm:$0xf]
        %v3079 = vld [vmem:[#allocation4 + $0xb0] sm:$0xf]
        %v3080 = vld [vmem:[#allocation4 + $0xb4] sm:$0xf]
        %v3081 = vld [vmem:[#allocation4 + $0xb8] sm:$0xf]
        %v3082 = vld [vmem:[#allocation4 + $0xbc] sm:$0xf]
        %v3083 = vld [vmem:[#allocation4 + $0xc0] sm:$0xf]
        %v3084 = vld [vmem:[#allocation4 + $0xc4] sm:$0xf]
        %v3085 = vld [vmem:[#allocation4 + $0xc8] sm:$0xf]
        %v3086 = vld [vmem:[#allocation4 + $0xcc] sm:$0xf]
        %v3087 = vld [vmem:[#allocation4 + $0xd0] sm:$0xf]
        %v3088 = vld [vmem:[#allocation4 + $0xd4] sm:$0xf]
        %v3089 = vld [vmem:[#allocation4 + $0xd8] sm:$0xf]
        %v3090 = vld [vmem:[#allocation4 + $0xdc] sm:$0xf]
        %v3091 = vld [vmem:[#allocation4 + $0xe0] sm:$0xf]
        %v3092 = vld [vmem:[#allocation4 + $0xe4] sm:$0xf]
        %v3093 = vld [vmem:[#allocation4 + $0xe8] sm:$0xf]
        %v3094 = vld [vmem:[#allocation4 + $0xec] sm:$0xf]
        %v3095 = vld [vmem:[#allocation4 + $0xf0] sm:$0xf]
        %v3096 = vld [vmem:[#allocation4 + $0xf4] sm:$0xf]
        %v3097 = vld [vmem:[#allocation4 + $0xf8] sm:$0xf]
        %v3098 = vld [vmem:[#allocation4 + $0xfc] sm:$0xf]
        %v3099 = vld [vmem:[#allocation4 + $0x100] sm:$0xf]
        %v3100 = vld [vmem:[#allocation4 + $0x104] sm:$0xf]
        %v3101 = vld [vmem:[#allocation4 + $0x108] sm:$0xf]
        %v3102 = vld [vmem:[#allocation4 + $0x10c] sm:$0xf]
        %v3103 = vld [vmem:[#allocation4 + $0x110] sm:$0xf]
        %v3104 = vld [vmem:[#allocation4 + $0x114] sm:$0xf]
        %v3105 = vld [vmem:[#allocation4 + $0x118] sm:$0xf]
        %v3106 = vld [vmem:[#allocation4 + $0x11c] sm:$0xf]
        %v3107 = vld [vmem:[#allocation4 + $0x120] sm:$0xf]
        %v3108 = vld [vmem:[#allocation4 + $0x124] sm:$0xf]
        %v3109 = vld [vmem:[#allocation4 + $0x128] sm:$0xf]
        %v3110 = vld [vmem:[#allocation4 + $0x12c] sm:$0xf]
        %v3111 = vld [vmem:[#allocation4 + $0x130] sm:$0xf]
        %v3112 = vld [vmem:[#allocation4 + $0x134] sm:$0xf]
        %v3113 = vld [vmem:[#allocation4 + $0x138] sm:$0xf]
        %v3114 = vld [vmem:[#allocation4 + $0x13c] sm:$0xf]
        %v3115 = vld [vmem:[#allocation4 + $0x140] sm:$0xf]
        %v3116 = vld [vmem:[#allocation4 + $0x144] sm:$0xf]
        %v3117 = vld [vmem:[#allocation4 + $0x148] sm:$0xf]
        %v3118 = vld [vmem:[#allocation4 + $0x14c] sm:$0xf]
        %v3119 = vld [vmem:[#allocation4 + $0x150] sm:$0xf]
        %v3120 = vld [vmem:[#allocation4 + $0x154] sm:$0xf]
        %v3121 = vld [vmem:[#allocation4 + $0x158] sm:$0xf]
        %v3122 = vld [vmem:[#allocation4 + $0x15c] sm:$0xf]
        %v3123 = vld [vmem:[#allocation5] sm:$0xff]
        %v3124 = vld [vmem:[#allocation5 + $0x8] sm:$0xff]
        %v3125 = vld [vmem:[#allocation5 + $0x10] sm:$0xff]
        %v3126 = vld [vmem:[#allocation5 + $0x18] sm:$0xff]
        %v3127 = vld [vmem:[#allocation5 + $0x20] sm:$0xff]
        %v3128 = vld [vmem:[#allocation5 + $0x28] sm:$0xff]
        %v3129 = vld [vmem:[#allocation5 + $0x30] sm:$0xff]
        %v3130 = vld [vmem:[#allocation5 + $0x38] sm:$0xff]
        %v3131 = vld [vmem:[#allocation5 + $0x40] sm:$0xff]
        %v3132 = vld [vmem:[#allocation5 + $0x48] sm:$0xff]
        %v3133 = vld [vmem:[#allocation5 + $0x50] sm:$0xff]
        %v3134 = vld [vmem:[#allocation5 + $0x58] sm:$0xff]
        %v3135 = vld [vmem:[#allocation5 + $0x60] sm:$0xff]
        %v3136 = vld [vmem:[#allocation5 + $0x68] sm:$0xff]
        %v3137 = vld [vmem:[#allocation5 + $0x70] sm:$0xff]
        %v3138 = vld [vmem:[#allocation5 + $0x78] sm:$0xff]
        %v3139 = vld [vmem:[#allocation5 + $0x80] sm:$0xff]
        %v3140 = vld [vmem:[#allocation5 + $0x88] sm:$0xff]
        %v3141 = vld [vmem:[#allocation5 + $0x90] sm:$0xff]
        %v3142 = vld [vmem:[#allocation5 + $0x98] sm:$0xff]
        %v3143 = vld [vmem:[#allocation5 + $0xa0] sm:$0xff]
        %v3144 = vld [vmem:[#allocation5 + $0xa8] sm:$0xff]
        %v3145 = vld [vmem:[#allocation5 + $0xb0] sm:$0xff]
        %v3146 = vld [vmem:[#allocation5 + $0xb8] sm:$0xff]
        %v3147 = vld [vmem:[#allocation5 + $0xc0] sm:$0xff]
        %v3148 = vld [vmem:[#allocation5 + $0xc8] sm:$0xff]
        %v3149 = vld [vmem:[#allocation5 + $0xd0] sm:$0xff]
        %v3150 = vld [vmem:[#allocation5 + $0xd8] sm:$0xff]
        %v3151 = vld [vmem:[#allocation5 + $0xe0] sm:$0xff]
        %v3152 = vld [vmem:[#allocation5 + $0xe8] sm:$0xff]
        %v3153 = vld [vmem:[#allocation5 + $0xf0] sm:$0xff]
        %v3154 = vld [vmem:[#allocation5 + $0xf8] sm:$0xff]
        %v3155 = vld [vmem:[#allocation5 + $0x100] sm:$0xff]
        %v3156 = vld [vmem:[#allocation5 + $0x108] sm:$0xff]
        %v3157 = vld [vmem:[#allocation5 + $0x110] sm:$0xff]
        %v3158 = vld [vmem:[#allocation5 + $0x118] sm:$0xff]
        %v3159 = vld [vmem:[#allocation5 + $0x120] sm:$0xff]
        %v3160 = vld [vmem:[#allocation5 + $0x128] sm:$0xff]
        %v3161 = vld [vmem:[#allocation5 + $0x130] sm:$0xff]
        %v3162 = vld [vmem:[#allocation5 + $0x138] sm:$0xff]
        %v3163 = vld [vmem:[#allocation5 + $0x140] sm:$0xff]
        %v3164 = vld [vmem:[#allocation5 + $0x148] sm:$0xff]
        %v3165 = vld [vmem:[#allocation5 + $0x150] sm:$0xff]
        %v3166 = vld [vmem:[#allocation5 + $0x158] sm:$0xff]
        %v3167 = vld [vmem:[#allocation5 + $0x160] sm:$0xff]
        %v3168 = vld [vmem:[#allocation5 + $0x168] sm:$0xff]
        %v3169 = vld [vmem:[#allocation5 + $0x170] sm:$0xff]
        %v3170 = vld [vmem:[#allocation5 + $0x178] sm:$0xff]
        %v3171 = vld [vmem:[#allocation5 + $0x180] sm:$0xff]
        %v3172 = vld [vmem:[#allocation5 + $0x188] sm:$0xff]
        %v3173 = vld [vmem:[#allocation5 + $0x190] sm:$0xff]
        %v3174 = vld [vmem:[#allocation5 + $0x198] sm:$0xff]
        %v3175 = vld [vmem:[#allocation5 + $0x1a0] sm:$0xff]
        %v3176 = vld [vmem:[#allocation5 + $0x1a8] sm:$0xff]
        %v3177 = vld [vmem:[#allocation5 + $0x1b0] sm:$0xff]
        %v3178 = vld [vmem:[#allocation5 + $0x1b8] sm:$0xff]
        %v3179 = vld [vmem:[#allocation5 + $0x1c0] sm:$0xff]
        %v3180 = vld [vmem:[#allocation5 + $0x1c8] sm:$0xff]
        %v3181 = vld [vmem:[#allocation5 + $0x1d0] sm:$0xff]
        %v3182 = vld [vmem:[#allocation5 + $0x1d8] sm:$0xff]
        %v3183 = vld [vmem:[#allocation5 + $0x1e0] sm:$0xff]
        %v3184 = vld [vmem:[#allocation5 + $0x1e8] sm:$0xff]
        %v3185 = vld [vmem:[#allocation5 + $0x1f0] sm:$0xff]
        %v3186 = vld [vmem:[#allocation5 + $0x1f8] sm:$0xff]
        %v3187 = vld [vmem:[#allocation5 + $0x200] sm:$0xff]
        %v3188 = vld [vmem:[#allocation5 + $0x208] sm:$0xff]
        %v3189 = vld [vmem:[#allocation5 + $0x210] sm:$0xff]
        %v3190 = vld [vmem:[#allocation5 + $0x218] sm:$0xff]
        %v3191 = vld [vmem:[#allocation5 + $0x220] sm:$0xff]
        %v3192 = vld [vmem:[#allocation5 + $0x228] sm:$0xff]
        %v3193 = vld [vmem:[#allocation5 + $0x230] sm:$0xff]
        %v3194 = vld [vmem:[#allocation5 + $0x238] sm:$0xff]
        %v3195 = vld [vmem:[#allocation5 + $0x240] sm:$0xff]
        %v3196 = vld [vmem:[#allocation5 + $0x248] sm:$0xff]
        %v3197 = vld [vmem:[#allocation5 + $0x250] sm:$0xff]
        %v3198 = vld [vmem:[#allocation5 + $0x258] sm:$0xff]
        %v3199 = vld [vmem:[#allocation5 + $0x260] sm:$0xff]
        %v3200 = vld [vmem:[#allocation5 + $0x268] sm:$0xff]
        %v3201 = vld [vmem:[#allocation5 + $0x270] sm:$0xff]
        %v3202 = vld [vmem:[#allocation5 + $0x278] sm:$0xff]
        %v3203 = vld [vmem:[#allocation5 + $0x280] sm:$0xff]
        %v3204 = vld [vmem:[#allocation5 + $0x288] sm:$0xff]
        %v3205 = vld [vmem:[#allocation5 + $0x290] sm:$0xff]
        %v3206 = vld [vmem:[#allocation5 + $0x298] sm:$0xff]
        %v3207 = vld [vmem:[#allocation5 + $0x2a0] sm:$0xff]
        %v3208 = vld [vmem:[#allocation5 + $0x2a8] sm:$0xff]
        %v3209 = vld [vmem:[#allocation5 + $0x2b0] sm:$0xff]
        %v3210 = vld [vmem:[#allocation5 + $0x2b8] sm:$0xff]
        %v3211 = vld [vmem:[%s888] sm:$0xf]
        %v3212 = vld [vmem:[%s888 + $0x4] sm:$0xf]
        %v3213 = vld [vmem:[%s888 + $0x8] sm:$0xf]
        %v3214 = vld [vmem:[%s888 + $0xc] sm:$0xf]
        %v3215 = vld [vmem:[%s888 + $0x10] sm:$0xf]
        %v3216 = vld [vmem:[%s888 + $0x14] sm:$0xf]
        %v3217 = vld [vmem:[%s888 + $0x18] sm:$0xf]
        %v3218 = vld [vmem:[%s888 + $0x1c] sm:$0xf]
        %v3219 = vld [vmem:[%s888 + $0x20] sm:$0xf]
        %v3220 = vld [vmem:[%s888 + $0x24] sm:$0xf]
        %v3221 = vld [vmem:[%s888 + $0x28] sm:$0xf]
        %v3222 = vld [vmem:[%s888 + $0x2c] sm:$0xf]
        %v3223 = vld [vmem:[%s888 + $0x30] sm:$0xf]
        %v3224 = vld [vmem:[%s888 + $0x34] sm:$0xf]
        %v3225 = vld [vmem:[%s888 + $0x38] sm:$0xf]
        %v3226 = vld [vmem:[%s888 + $0x3c] sm:$0xf]
        %v3227 = vpack.c.bf16 %v1095, %v1094
        %v3228 = vpack.c.bf16 %v1097, %v1096
        %v3229 = vpack.c.bf16 %v1099, %v1098
        %v3230 = vpack.c.bf16 %v1101, %v1100
        %v3247 = vunpack.c.l.b16 %v3211
        %v3248 = vunpack.c.l.b16 %v3212
        %v3249 = vunpack.c.l.b16 %v3213
        %v3250 = vunpack.c.l.b16 %v3214
        %v3251 = vunpack.c.l.b16 %v3215
        %v3252 = vunpack.c.l.b16 %v3216
        %v3253 = vunpack.c.l.b16 %v3217
        %v3254 = vunpack.c.l.b16 %v3218
        %v3255 = vunpack.c.l.b16 %v3219
        %v3256 = vunpack.c.l.b16 %v3220
        %v3257 = vunpack.c.l.b16 %v3221
        %v3258 = vunpack.c.l.b16 %v3222
        %v3259 = vunpack.c.l.b16 %v3223
        %v3260 = vunpack.c.l.b16 %v3224
        %v3261 = vunpack.c.l.b16 %v3225
        %v3262 = vunpack.c.l.b16 %v3226
        %v3263 = vpack.c.b16 %v3248, %v3247
        %v3264 = vpack.c.b16 %v3250, %v3249
        %v3265 = vpack.c.b16 %v3252, %v3251
        %v3266 = vpack.c.b16 %v3254, %v3253
        %v3267 = vpack.c.b16 %v3256, %v3255
        %v3268 = vpack.c.b16 %v3258, %v3257
        %v3269 = vpack.c.b16 %v3260, %v3259
        %v3270 = vpack.c.b16 %v3262, %v3261
        %3279 = vmatprep.subr.bf16.mxu0 0
        %3280 = vmatpush1.bf16.msra.mxu0 %v3270
        %3281 = vmatprep.subr.bf16.mxu0 0
        %3282 = vmatpush1.bf16.msra.mxu0 %v3269
        %3283 = vmatprep.subr.bf16.mxu0 0
        %3284 = vmatpush1.bf16.msra.mxu0 %v3268
        %3285 = vmatprep.subr.bf16.mxu0 0
        %3286 = vmatpush1.bf16.msra.mxu0 %v3267
        %3287 = vmatprep.subr.bf16.mxu0 0
        %3288 = vmatpush1.bf16.msra.mxu0 %v3266
        %3289 = vmatprep.subr.bf16.mxu0 0
        %3290 = vmatpush1.bf16.msra.mxu0 %v3265
        %3291 = vmatprep.subr.bf16.mxu0 0
        %3292 = vmatpush1.bf16.msra.mxu0 %v3264
        %3293 = vmatprep.subr.bf16.mxu0 0
        %3294 = vmatpush1.bf16.msra.mxu0 %v3263
        %3295 = vmatprep.subr.bf16.mxu0 0
        %3296 = vmatpush2.bf16.msra.mxu0 0
        %3297 = vmatprep.subr.bf16.mxu0 0
        %3298 = vmatpush2.bf16.msra.mxu0 0
        %3299 = vmatprep.subr.bf16.mxu0 0
        %3300 = vmatpush2.bf16.msra.mxu0 0
        %3301 = vmatprep.subr.bf16.mxu0 0
        %3302 = vmatpush2.bf16.msra.mxu0 0
        %3303 = vmatprep.subr.bf16.mxu0 0
        %3304 = vmatpush2.bf16.msra.mxu0 0
        %3305 = vmatprep.subr.bf16.mxu0 0
        %3306 = vmatpush2.bf16.msra.mxu0 0
        %3307 = vmatprep.subr.bf16.mxu0 0
        %3308 = vmatpush2.bf16.msra.mxu0 0
        %3309 = vmatprep.subr.bf16.mxu0 0
        %3310 = vmatpush2.bf16.msra.mxu0 0
        %3311 = vmatprep.mubr.bf16.mxu0 0
        %3312 = vmatmul.mubr.bf16.gmra.mxu0 %v3227
        %v3313 = vpop.f32.mrf.mxu0
        %v3314 = vadd.f32 0.0, %v3313
        %v3315 = vpop.f32.mrf.mxu0
        %v3316 = vpop.f32.mrf.mxu0
        %v3317 = vadd.f32 0.0, %v3316
        %v3318 = vpop.f32.mrf.mxu0
        %3319 = vmatprep.mubr.bf16.mxu0 0
        %3320 = vmatmul.mubr.bf16.gmra.mxu0 %v3228
        %v3321 = vpop.f32.mrf.mxu0
        %v3322 = vadd.f32 0.0, %v3321
        %v3323 = vpop.f32.mrf.mxu0
        %v3324 = vpop.f32.mrf.mxu0
        %v3325 = vadd.f32 0.0, %v3324
        %v3326 = vpop.f32.mrf.mxu0
        %3327 = vmatprep.mubr.bf16.mxu0 0
        %3328 = vmatmul.mubr.bf16.gmra.mxu0 %v3229
        %v3329 = vpop.f32.mrf.mxu0
        %v3330 = vadd.f32 0.0, %v3329
        %v3331 = vpop.f32.mrf.mxu0
        %v3332 = vpop.f32.mrf.mxu0
        %v3333 = vadd.f32 0.0, %v3332
        %v3334 = vpop.f32.mrf.mxu0
        %3335 = vmatprep.mubr.bf16.mxu0 0
        %3336 = vmatmul.mubr.bf16.gmra.mxu0 %v3230
        %v3337 = vpop.f32.mrf.mxu0
        %v3338 = vadd.f32 0.0, %v3337
        %v3339 = vpop.f32.mrf.mxu0
        %v3340 = vpop.f32.mrf.mxu0
        %v3341 = vadd.f32 0.0, %v3340
        %v3342 = vpop.f32.mrf.mxu0
        %3343 = vdwg.mxu0
        %v3344 = vld [vmem:[%s747] sm:$0xf]
        %v3345 = vld [vmem:[%s747 + $0x4] sm:$0xf]
        %v3346 = vld [vmem:[%s747 + $0x8] sm:$0xf]
        %v3347 = vld [vmem:[%s747 + $0xc] sm:$0xf]
        %v3348 = vld [vmem:[%s747 + $0x10] sm:$0xf]
        %v3349 = vld [vmem:[%s747 + $0x14] sm:$0xf]
        %v3350 = vld [vmem:[%s747 + $0x18] sm:$0xf]
        %v3351 = vld [vmem:[%s747 + $0x1c] sm:$0xf]
        %v3352 = vld [vmem:[%s747 + $0x20] sm:$0xf]
        %v3353 = vld [vmem:[%s747 + $0x24] sm:$0xf]
        %v3354 = vld [vmem:[%s747 + $0x28] sm:$0xf]
        %v3355 = vld [vmem:[%s747 + $0x2c] sm:$0xf]
        %v3356 = vld [vmem:[%s747 + $0x30] sm:$0xf]
        %v3357 = vld [vmem:[%s747 + $0x34] sm:$0xf]
        %v3358 = vld [vmem:[%s747 + $0x38] sm:$0xf]
        %v3359 = vld [vmem:[%s747 + $0x3c] sm:$0xf]
        %v3360 = vld [vmem:[%s891] sm:$0x1]
        %v3362 = vlaneseq
        %v3363 = vshrl.u32 %v3362, 7
        %v3364 = vsub.s32 0, %v3363
        %v3365 = vrot.slane %v3360, %v3364
        %v3383 = vunpack.c.l.b16 %v3344
        %v3384 = vunpack.c.l.b16 %v3345
        %v3385 = vunpack.c.l.b16 %v3346
        %v3386 = vunpack.c.l.b16 %v3347
        %v3387 = vunpack.c.l.b16 %v3348
        %v3388 = vunpack.c.l.b16 %v3349
        %v3389 = vunpack.c.l.b16 %v3350
        %v3390 = vunpack.c.l.b16 %v3351
        %v3391 = vunpack.c.l.b16 %v3352
        %v3392 = vunpack.c.l.b16 %v3353
        %v3393 = vunpack.c.l.b16 %v3354
        %v3394 = vunpack.c.l.b16 %v3355
        %v3395 = vunpack.c.l.b16 %v3356
        %v3396 = vunpack.c.l.b16 %v3357
        %v3397 = vunpack.c.l.b16 %v3358
        %v3398 = vunpack.c.l.b16 %v3359
        %v3399 = vpack.c.b16 %v3384, %v3383
        %v3400 = vpack.c.b16 %v3386, %v3385
        %v3401 = vpack.c.b16 %v3388, %v3387
        %v3402 = vpack.c.b16 %v3390, %v3389
        %v3403 = vpack.c.b16 %v3392, %v3391
        %v3404 = vpack.c.b16 %v3394, %v3393
        %v3405 = vpack.c.b16 %v3396, %v3395
        %v3406 = vpack.c.b16 %v3398, %v3397
        %3415 = vmatprep.subr.bf16.mxu0 0
        %3416 = vmatpush1.bf16.msra.mxu0 %v3406
        %3417 = vmatprep.subr.bf16.mxu0 0
        %3418 = vmatpush1.bf16.msra.mxu0 %v3405
        %3419 = vmatprep.subr.bf16.mxu0 0
        %3420 = vmatpush1.bf16.msra.mxu0 %v3404
        %3421 = vmatprep.subr.bf16.mxu0 0
        %3422 = vmatpush1.bf16.msra.mxu0 %v3403
        %3423 = vmatprep.subr.bf16.mxu0 0
        %3424 = vmatpush1.bf16.msra.mxu0 %v3402
        %3425 = vmatprep.subr.bf16.mxu0 0
        %3426 = vmatpush1.bf16.msra.mxu0 %v3401
        %3427 = vmatprep.subr.bf16.mxu0 0
        %3428 = vmatpush1.bf16.msra.mxu0 %v3400
        %3429 = vmatprep.subr.bf16.mxu0 0
        %3430 = vmatpush1.bf16.msra.mxu0 %v3399
        %3431 = vmatprep.subr.bf16.mxu0 0
        %3432 = vmatpush2.bf16.msra.mxu0 0
        %3433 = vmatprep.subr.bf16.mxu0 0
        %3434 = vmatpush2.bf16.msra.mxu0 0
        %3435 = vmatprep.subr.bf16.mxu0 0
        %3436 = vmatpush2.bf16.msra.mxu0 0
        %3437 = vmatprep.subr.bf16.mxu0 0
        %3438 = vmatpush2.bf16.msra.mxu0 0
        %3439 = vmatprep.subr.bf16.mxu0 0
        %3440 = vmatpush2.bf16.msra.mxu0 0
        %3441 = vmatprep.subr.bf16.mxu0 0
        %3442 = vmatpush2.bf16.msra.mxu0 0
        %3443 = vmatprep.subr.bf16.mxu0 0
        %3444 = vmatpush2.bf16.msra.mxu0 0
        %3445 = vmatprep.subr.bf16.mxu0 0
        %3446 = vmatpush2.bf16.msra.mxu0 0
        %3447 = vmatprep.mubr.bf16.mxu0 0
        %3448 = vmatmul.mubr.bf16.gmra.mxu0 %v3227
        %v3449 = vpop.f32.mrf.mxu0
        %v3450 = vadd.f32 %v3365, %v3449
        %v3451 = vpop.f32.mrf.mxu0
        %v3452 = vpop.f32.mrf.mxu0
        %v3453 = vadd.f32 %v3365, %v3452
        %v3454 = vpop.f32.mrf.mxu0
        %3455 = vmatprep.mubr.bf16.mxu0 0
        %3456 = vmatmul.mubr.bf16.gmra.mxu0 %v3228
        %v3457 = vpop.f32.mrf.mxu0
        %v3458 = vadd.f32 %v3365, %v3457
        %v3459 = vpop.f32.mrf.mxu0
        %v3460 = vpop.f32.mrf.mxu0
        %v3461 = vadd.f32 %v3365, %v3460
        %v3462 = vpop.f32.mrf.mxu0
        %3463 = vmatprep.mubr.bf16.mxu0 0
        %3464 = vmatmul.mubr.bf16.gmra.mxu0 %v3229
        %v3465 = vpop.f32.mrf.mxu0
        %v3466 = vadd.f32 %v3365, %v3465
        %v3467 = vpop.f32.mrf.mxu0
        %v3468 = vpop.f32.mrf.mxu0
        %v3469 = vadd.f32 %v3365, %v3468
        %v3470 = vpop.f32.mrf.mxu0
        %3471 = vmatprep.mubr.bf16.mxu0 0
        %3472 = vmatmul.mubr.bf16.gmra.mxu0 %v3230
        %v3473 = vpop.f32.mrf.mxu0
        %v3474 = vadd.f32 %v3365, %v3473
        %v3475 = vpop.f32.mrf.mxu0
        %v3476 = vpop.f32.mrf.mxu0
        %v3477 = vadd.f32 %v3365, %v3476
        %v3478 = vpop.f32.mrf.mxu0
        %3479 = vdwg.mxu0
        %v3480 = vpack.c.bf16 %v3317, %v3314
        %v3481 = vpack.c.bf16 %v3325, %v3322
        %v3482 = vpack.c.bf16 %v3333, %v3330
        %v3483 = vpack.c.bf16 %v3341, %v3338
        %v3572 = vunpack.c.l.b16 %v3035
        %v3573 = vunpack.c.l.b16 %v3036
        %v3574 = vunpack.c.l.b16 %v3037
        %v3575 = vunpack.c.l.b16 %v3038
        %v3576 = vunpack.c.l.b16 %v3039
        %v3577 = vunpack.c.l.b16 %v3040
        %v3578 = vunpack.c.l.b16 %v3041
        %v3579 = vunpack.c.l.b16 %v3042
        %v3580 = vunpack.c.l.b16 %v3043
        %v3581 = vunpack.c.l.b16 %v3044
        %v3582 = vunpack.c.l.b16 %v3045
        %v3583 = vunpack.c.l.b16 %v3046
        %v3584 = vunpack.c.l.b16 %v3047
        %v3585 = vunpack.c.l.b16 %v3048
        %v3586 = vunpack.c.l.b16 %v3049
        %v3587 = vunpack.c.l.b16 %v3050
        %v3588 = vunpack.c.l.b16 %v3051
        %v3589 = vunpack.c.l.b16 %v3052
        %v3590 = vunpack.c.l.b16 %v3053
        %v3591 = vunpack.c.l.b16 %v3054
        %v3592 = vunpack.c.l.b16 %v3055
        %v3593 = vunpack.c.l.b16 %v3056
        %v3594 = vunpack.c.l.b16 %v3057
        %v3595 = vunpack.c.l.b16 %v3058
        %v3596 = vunpack.c.l.b16 %v3059
        %v3597 = vunpack.c.l.b16 %v3060
        %v3598 = vunpack.c.l.b16 %v3061
        %v3599 = vunpack.c.l.b16 %v3062
        %v3600 = vunpack.c.l.b16 %v3063
        %v3601 = vunpack.c.l.b16 %v3064
        %v3602 = vunpack.c.l.b16 %v3065
        %v3603 = vunpack.c.l.b16 %v3066
        %v3604 = vunpack.c.l.b16 %v3067
        %v3605 = vunpack.c.l.b16 %v3068
        %v3606 = vunpack.c.l.b16 %v3069
        %v3607 = vunpack.c.l.b16 %v3070
        %v3608 = vunpack.c.l.b16 %v3071
        %v3609 = vunpack.c.l.b16 %v3072
        %v3610 = vunpack.c.l.b16 %v3073
        %v3611 = vunpack.c.l.b16 %v3074
        %v3612 = vunpack.c.l.b16 %v3075
        %v3613 = vunpack.c.l.b16 %v3076
        %v3614 = vunpack.c.l.b16 %v3077
        %v3615 = vunpack.c.l.b16 %v3078
        %v3616 = vunpack.c.l.b16 %v3079
        %v3617 = vunpack.c.l.b16 %v3080
        %v3618 = vunpack.c.l.b16 %v3081
        %v3619 = vunpack.c.l.b16 %v3082
        %v3620 = vunpack.c.l.b16 %v3083
        %v3621 = vunpack.c.l.b16 %v3084
        %v3622 = vunpack.c.l.b16 %v3085
        %v3623 = vunpack.c.l.b16 %v3086
        %v3624 = vunpack.c.l.b16 %v3087
        %v3625 = vunpack.c.l.b16 %v3088
        %v3626 = vunpack.c.l.b16 %v3089
        %v3627 = vunpack.c.l.b16 %v3090
        %v3628 = vunpack.c.l.b16 %v3091
        %v3629 = vunpack.c.l.b16 %v3092
        %v3630 = vunpack.c.l.b16 %v3093
        %v3631 = vunpack.c.l.b16 %v3094
        %v3632 = vunpack.c.l.b16 %v3095
        %v3633 = vunpack.c.l.b16 %v3096
        %v3634 = vunpack.c.l.b16 %v3097
        %v3635 = vunpack.c.l.b16 %v3098
        %v3636 = vunpack.c.l.b16 %v3099
        %v3637 = vunpack.c.l.b16 %v3100
        %v3638 = vunpack.c.l.b16 %v3101
        %v3639 = vunpack.c.l.b16 %v3102
        %v3640 = vunpack.c.l.b16 %v3103
        %v3641 = vunpack.c.l.b16 %v3104
        %v3642 = vunpack.c.l.b16 %v3105
        %v3643 = vunpack.c.l.b16 %v3106
        %v3644 = vunpack.c.l.b16 %v3107
        %v3645 = vunpack.c.l.b16 %v3108
        %v3646 = vunpack.c.l.b16 %v3109
        %v3647 = vunpack.c.l.b16 %v3110
        %v3648 = vunpack.c.l.b16 %v3111
        %v3649 = vunpack.c.l.b16 %v3112
        %v3650 = vunpack.c.l.b16 %v3113
        %v3651 = vunpack.c.l.b16 %v3114
        %v3652 = vunpack.c.l.b16 %v3115
        %v3653 = vunpack.c.l.b16 %v3116
        %v3654 = vunpack.c.l.b16 %v3117
        %v3655 = vunpack.c.l.b16 %v3118
        %v3656 = vunpack.c.l.b16 %v3119
        %v3657 = vunpack.c.l.b16 %v3120
        %v3658 = vunpack.c.l.b16 %v3121
        %v3659 = vunpack.c.l.b16 %v3122
        %v3660 = vpack.c.b16 %v3573, %v3572
        %v3661 = vpack.c.b16 %v3575, %v3574
        %v3662 = vpack.c.b16 %v3577, %v3576
        %v3663 = vpack.c.b16 %v3579, %v3578
        %v3664 = vpack.c.b16 %v3581, %v3580
        %v3665 = vpack.c.b16 %v3583, %v3582
        %v3666 = vpack.c.b16 %v3585, %v3584
        %v3667 = vpack.c.b16 %v3587, %v3586
        %v3668 = vpack.c.b16 %v3589, %v3588
        %v3669 = vpack.c.b16 %v3591, %v3590
        %v3670 = vpack.c.b16 %v3593, %v3592
        %v3671 = vpack.c.b16 %v3595, %v3594
        %v3672 = vpack.c.b16 %v3597, %v3596
        %v3673 = vpack.c.b16 %v3599, %v3598
        %v3674 = vpack.c.b16 %v3601, %v3600
        %v3675 = vpack.c.b16 %v3603, %v3602
        %v3676 = vpack.c.b16 %v3605, %v3604
        %v3677 = vpack.c.b16 %v3607, %v3606
        %v3678 = vpack.c.b16 %v3609, %v3608
        %v3679 = vpack.c.b16 %v3611, %v3610
        %v3680 = vpack.c.b16 %v3613, %v3612
        %v3681 = vpack.c.b16 %v3615, %v3614
        %v3682 = vpack.c.b16 %v3617, %v3616
        %v3683 = vpack.c.b16 %v3619, %v3618
        %v3684 = vpack.c.b16 %v3621, %v3620
        %v3685 = vpack.c.b16 %v3623, %v3622
        %v3686 = vpack.c.b16 %v3625, %v3624
        %v3687 = vpack.c.b16 %v3627, %v3626
        %v3688 = vpack.c.b16 %v3629, %v3628
        %v3689 = vpack.c.b16 %v3631, %v3630
        %v3690 = vpack.c.b16 %v3633, %v3632
        %v3691 = vpack.c.b16 %v3635, %v3634
        %v3692 = vpack.c.b16 %v3637, %v3636
        %v3693 = vpack.c.b16 %v3639, %v3638
        %v3694 = vpack.c.b16 %v3641, %v3640
        %v3695 = vpack.c.b16 %v3643, %v3642
        %v3696 = vpack.c.b16 %v3645, %v3644
        %v3697 = vpack.c.b16 %v3647, %v3646
        %v3698 = vpack.c.b16 %v3649, %v3648
        %v3699 = vpack.c.b16 %v3651, %v3650
        %v3700 = vpack.c.b16 %v3653, %v3652
        %v3701 = vpack.c.b16 %v3655, %v3654
        %v3702 = vpack.c.b16 %v3657, %v3656
        %v3703 = vpack.c.b16 %v3659, %v3658
        %v3705 = vsel %vm1279, %v3660, 0
        %v3708 = vsel %vm1279, %v3661, 0
        %v3711 = vsel %vm1279, %v3662, 0
        %v3714 = vsel %vm1279, %v3663, 0
        %v3717 = vsel %vm1279, %v3664, 0
        %v3720 = vsel %vm1279, %v3665, 0
        %v3723 = vsel %vm1279, %v3666, 0
        %v3726 = vsel %vm1279, %v3667, 0
        %v3729 = vsel %vm1279, %v3668, 0
        %v3732 = vsel %vm1279, %v3669, 0
        %v3735 = vsel %vm1279, %v3670, 0
        %v3738 = vsel %vm1279, %v3671, 0
        %v3741 = vsel %vm1279, %v3672, 0
        %v3744 = vsel %vm1279, %v3673, 0
        %v3747 = vsel %vm1279, %v3674, 0
        %v3750 = vsel %vm1279, %v3675, 0
        %v3753 = vsel %vm1279, %v3676, 0
        %v3756 = vsel %vm1279, %v3677, 0
        %v3759 = vsel %vm1279, %v3678, 0
        %v3762 = vsel %vm1279, %v3679, 0
        %v3765 = vsel %vm1279, %v3680, 0
        %v3768 = vsel %vm1279, %v3681, 0
        %v3771 = vsel %vm1279, %v3682, 0
        %v3774 = vsel %vm1279, %v3683, 0
        %v3777 = vsel %vm1279, %v3684, 0
        %v3780 = vsel %vm1279, %v3685, 0
        %v3783 = vsel %vm1279, %v3686, 0
        %v3786 = vsel %vm1279, %v3687, 0
        %v3789 = vsel %vm1279, %v3688, 0
        %v3792 = vsel %vm1279, %v3689, 0
        %v3795 = vsel %vm1279, %v3690, 0
        %v3798 = vsel %vm1279, %v3691, 0
        %v3801 = vsel %vm1279, %v3692, 0
        %v3804 = vsel %vm1279, %v3693, 0
        %v3807 = vsel %vm1279, %v3694, 0
        %v3810 = vsel %vm1279, %v3695, 0
        %v3813 = vsel %vm1279, %v3696, 0
        %v3816 = vsel %vm1279, %v3697, 0
        %v3819 = vsel %vm1279, %v3698, 0
        %v3822 = vsel %vm1279, %v3699, 0
        %v3825 = vsel %vm1279, %v3700, 0
        %v3828 = vsel %vm1279, %v3701, 0
        %v3831 = vsel %vm1279, %v3702, 0
        %v3834 = vsel %vm1279, %v3703, 0
        %3836 = vmatprep.subr.bf16.mxu0 0
        %3837 = vmatpush1.bf16.msra.mxu0 0
        %3838 = vmatprep.subr.bf16.mxu0 0
        %3839 = vmatpush1.bf16.msra.mxu0 0
        %3840 = vmatprep.subr.bf16.mxu0 0
        %3841 = vmatpush1.bf16.msra.mxu0 0
        %3842 = vmatprep.subr.bf16.mxu0 0
        %3843 = vmatpush1.bf16.msra.mxu0 0
        %3844 = vmatprep.subr.bf16.mxu0 0
        %3845 = vmatpush1.bf16.msra.mxu0 %v3483
        %3846 = vmatprep.subr.bf16.mxu0 0
        %3847 = vmatpush1.bf16.msra.mxu0 %v3482
        %3848 = vmatprep.subr.bf16.mxu0 0
        %3849 = vmatpush1.bf16.msra.mxu0 %v3481
        %3850 = vmatprep.subr.bf16.mxu0 0
        %3851 = vmatpush1.bf16.msra.mxu0 %v3480
        %3852 = vmatprep.subr.bf16.mxu0 0
        %3853 = vmatpush2.bf16.msra.mxu0 0
        %3854 = vmatprep.subr.bf16.mxu0 0
        %3855 = vmatpush2.bf16.msra.mxu0 0
        %3856 = vmatprep.subr.bf16.mxu0 0
        %3857 = vmatpush2.bf16.msra.mxu0 0
        %3858 = vmatprep.subr.bf16.mxu0 0
        %3859 = vmatpush2.bf16.msra.mxu0 0
        %3860 = vmatprep.subr.bf16.mxu0 0
        %3861 = vmatpush2.bf16.msra.mxu0 0
        %3862 = vmatprep.subr.bf16.mxu0 0
        %3863 = vmatpush2.bf16.msra.mxu0 0
        %3864 = vmatprep.subr.bf16.mxu0 0
        %3865 = vmatpush2.bf16.msra.mxu0 0
        %3866 = vmatprep.subr.bf16.mxu0 0
        %3867 = vmatpush2.bf16.msra.mxu0 0
        %3868 = vmatprep.mubr.bf16.mxu0 0
        %3869 = vmatmul.mubr.bf16.gmra.mxu0 %v3705
        %v3870 = vpop.f32.mrf.mxu0
        %v3871 = vadd.f32 0.0, %v3870
        %v3872 = vpop.f32.mrf.mxu0
        %v3873 = vpop.f32.mrf.mxu0
        %v3874 = vadd.f32 0.0, %v3873
        %v3875 = vpop.f32.mrf.mxu0
        %3876 = vmatprep.mubr.bf16.mxu0 0
        %3877 = vmatmul.mubr.bf16.gmra.mxu0 %v3708
        %v3878 = vpop.f32.mrf.mxu0
        %v3879 = vadd.f32 0.0, %v3878
        %v3880 = vpop.f32.mrf.mxu0
        %v3881 = vpop.f32.mrf.mxu0
        %v3882 = vadd.f32 0.0, %v3881
        %v3883 = vpop.f32.mrf.mxu0
        %3884 = vmatprep.mubr.bf16.mxu0 0
        %3885 = vmatmul.mubr.bf16.gmra.mxu0 %v3711
        %v3886 = vpop.f32.mrf.mxu0
        %v3887 = vadd.f32 0.0, %v3886
        %v3888 = vpop.f32.mrf.mxu0
        %v3889 = vpop.f32.mrf.mxu0
        %v3890 = vadd.f32 0.0, %v3889
        %v3891 = vpop.f32.mrf.mxu0
        %3892 = vmatprep.mubr.bf16.mxu0 0
        %3893 = vmatmul.mubr.bf16.gmra.mxu0 %v3714
        %v3894 = vpop.f32.mrf.mxu0
        %v3895 = vadd.f32 0.0, %v3894
        %v3896 = vpop.f32.mrf.mxu0
        %v3897 = vpop.f32.mrf.mxu0
        %v3898 = vadd.f32 0.0, %v3897
        %v3899 = vpop.f32.mrf.mxu0
        %3900 = vmatprep.mubr.bf16.mxu0 0
        %3901 = vmatmul.mubr.bf16.gmra.mxu0 %v3717
        %v3902 = vpop.f32.mrf.mxu0
        %v3903 = vadd.f32 0.0, %v3902
        %v3904 = vpop.f32.mrf.mxu0
        %v3905 = vpop.f32.mrf.mxu0
        %v3906 = vadd.f32 0.0, %v3905
        %v3907 = vpop.f32.mrf.mxu0
        %3908 = vmatprep.mubr.bf16.mxu0 0
        %3909 = vmatmul.mubr.bf16.gmra.mxu0 %v3720
        %v3910 = vpop.f32.mrf.mxu0
        %v3911 = vadd.f32 0.0, %v3910
        %v3912 = vpop.f32.mrf.mxu0
        %v3913 = vpop.f32.mrf.mxu0
        %v3914 = vadd.f32 0.0, %v3913
        %v3915 = vpop.f32.mrf.mxu0
        %3916 = vmatprep.mubr.bf16.mxu0 0
        %3917 = vmatmul.mubr.bf16.gmra.mxu0 %v3723
        %v3918 = vpop.f32.mrf.mxu0
        %v3919 = vadd.f32 0.0, %v3918
        %v3920 = vpop.f32.mrf.mxu0
        %v3921 = vpop.f32.mrf.mxu0
        %v3922 = vadd.f32 0.0, %v3921
        %v3923 = vpop.f32.mrf.mxu0
        %3924 = vmatprep.mubr.bf16.mxu0 0
        %3925 = vmatmul.mubr.bf16.gmra.mxu0 %v3726
        %v3926 = vpop.f32.mrf.mxu0
        %v3927 = vadd.f32 0.0, %v3926
        %v3928 = vpop.f32.mrf.mxu0
        %v3929 = vpop.f32.mrf.mxu0
        %v3930 = vadd.f32 0.0, %v3929
        %v3931 = vpop.f32.mrf.mxu0
        %3932 = vmatprep.mubr.bf16.mxu0 0
        %3933 = vmatmul.mubr.bf16.gmra.mxu0 %v3729
        %v3934 = vpop.f32.mrf.mxu0
        %v3935 = vadd.f32 0.0, %v3934
        %v3936 = vpop.f32.mrf.mxu0
        %v3937 = vpop.f32.mrf.mxu0
        %v3938 = vadd.f32 0.0, %v3937
        %v3939 = vpop.f32.mrf.mxu0
        %3940 = vmatprep.mubr.bf16.mxu0 0
        %3941 = vmatmul.mubr.bf16.gmra.mxu0 %v3732
        %v3942 = vpop.f32.mrf.mxu0
        %v3943 = vadd.f32 0.0, %v3942
        %v3944 = vpop.f32.mrf.mxu0
        %v3945 = vpop.f32.mrf.mxu0
        %v3946 = vadd.f32 0.0, %v3945
        %v3947 = vpop.f32.mrf.mxu0
        %3948 = vmatprep.mubr.bf16.mxu0 0
        %3949 = vmatmul.mubr.bf16.gmra.mxu0 %v3735
        %v3950 = vpop.f32.mrf.mxu0
        %v3951 = vadd.f32 0.0, %v3950
        %v3952 = vpop.f32.mrf.mxu0
        %v3953 = vpop.f32.mrf.mxu0
        %v3954 = vadd.f32 0.0, %v3953
        %v3955 = vpop.f32.mrf.mxu0
        %3956 = vmatprep.mubr.bf16.mxu0 0
        %3957 = vmatmul.mubr.bf16.gmra.mxu0 %v3738
        %v3958 = vpop.f32.mrf.mxu0
        %v3959 = vadd.f32 0.0, %v3958
        %v3960 = vpop.f32.mrf.mxu0
        %v3961 = vpop.f32.mrf.mxu0
        %v3962 = vadd.f32 0.0, %v3961
        %v3963 = vpop.f32.mrf.mxu0
        %3964 = vmatprep.mubr.bf16.mxu0 0
        %3965 = vmatmul.mubr.bf16.gmra.mxu0 %v3741
        %v3966 = vpop.f32.mrf.mxu0
        %v3967 = vadd.f32 0.0, %v3966
        %v3968 = vpop.f32.mrf.mxu0
        %v3969 = vpop.f32.mrf.mxu0
        %v3970 = vadd.f32 0.0, %v3969
        %v3971 = vpop.f32.mrf.mxu0
        %3972 = vmatprep.mubr.bf16.mxu0 0
        %3973 = vmatmul.mubr.bf16.gmra.mxu0 %v3744
        %v3974 = vpop.f32.mrf.mxu0
        %v3975 = vadd.f32 0.0, %v3974
        %v3976 = vpop.f32.mrf.mxu0
        %v3977 = vpop.f32.mrf.mxu0
        %v3978 = vadd.f32 0.0, %v3977
        %v3979 = vpop.f32.mrf.mxu0
        %3980 = vmatprep.mubr.bf16.mxu0 0
        %3981 = vmatmul.mubr.bf16.gmra.mxu0 %v3747
        %v3982 = vpop.f32.mrf.mxu0
        %v3983 = vadd.f32 0.0, %v3982
        %v3984 = vpop.f32.mrf.mxu0
        %v3985 = vpop.f32.mrf.mxu0
        %v3986 = vadd.f32 0.0, %v3985
        %v3987 = vpop.f32.mrf.mxu0
        %3988 = vmatprep.mubr.bf16.mxu0 0
        %3989 = vmatmul.mubr.bf16.gmra.mxu0 %v3750
        %v3990 = vpop.f32.mrf.mxu0
        %v3991 = vadd.f32 0.0, %v3990
        %v3992 = vpop.f32.mrf.mxu0
        %v3993 = vpop.f32.mrf.mxu0
        %v3994 = vadd.f32 0.0, %v3993
        %v3995 = vpop.f32.mrf.mxu0
        %3996 = vmatprep.mubr.bf16.mxu0 0
        %3997 = vmatmul.mubr.bf16.gmra.mxu0 %v3753
        %v3998 = vpop.f32.mrf.mxu0
        %v3999 = vadd.f32 0.0, %v3998
        %v4000 = vpop.f32.mrf.mxu0
        %v4001 = vpop.f32.mrf.mxu0
        %v4002 = vadd.f32 0.0, %v4001
        %v4003 = vpop.f32.mrf.mxu0
        %4004 = vmatprep.mubr.bf16.mxu0 0
        %4005 = vmatmul.mubr.bf16.gmra.mxu0 %v3756
        %v4006 = vpop.f32.mrf.mxu0
        %v4007 = vadd.f32 0.0, %v4006
        %v4008 = vpop.f32.mrf.mxu0
        %v4009 = vpop.f32.mrf.mxu0
        %v4010 = vadd.f32 0.0, %v4009
        %v4011 = vpop.f32.mrf.mxu0
        %4012 = vmatprep.mubr.bf16.mxu0 0
        %4013 = vmatmul.mubr.bf16.gmra.mxu0 %v3759
        %v4014 = vpop.f32.mrf.mxu0
        %v4015 = vadd.f32 0.0, %v4014
        %v4016 = vpop.f32.mrf.mxu0
        %v4017 = vpop.f32.mrf.mxu0
        %v4018 = vadd.f32 0.0, %v4017
        %v4019 = vpop.f32.mrf.mxu0
        %4020 = vmatprep.mubr.bf16.mxu0 0
        %4021 = vmatmul.mubr.bf16.gmra.mxu0 %v3762
        %v4022 = vpop.f32.mrf.mxu0
        %v4023 = vadd.f32 0.0, %v4022
        %v4024 = vpop.f32.mrf.mxu0
        %v4025 = vpop.f32.mrf.mxu0
        %v4026 = vadd.f32 0.0, %v4025
        %v4027 = vpop.f32.mrf.mxu0
        %4028 = vmatprep.mubr.bf16.mxu0 0
        %4029 = vmatmul.mubr.bf16.gmra.mxu0 %v3765
        %v4030 = vpop.f32.mrf.mxu0
        %v4031 = vadd.f32 0.0, %v4030
        %v4032 = vpop.f32.mrf.mxu0
        %v4033 = vpop.f32.mrf.mxu0
        %v4034 = vadd.f32 0.0, %v4033
        %v4035 = vpop.f32.mrf.mxu0
        %4036 = vmatprep.mubr.bf16.mxu0 0
        %4037 = vmatmul.mubr.bf16.gmra.mxu0 %v3768
        %v4038 = vpop.f32.mrf.mxu0
        %v4039 = vadd.f32 0.0, %v4038
        %v4040 = vpop.f32.mrf.mxu0
        %v4041 = vpop.f32.mrf.mxu0
        %v4042 = vadd.f32 0.0, %v4041
        %v4043 = vpop.f32.mrf.mxu0
        %4044 = vmatprep.mubr.bf16.mxu0 0
        %4045 = vmatmul.mubr.bf16.gmra.mxu0 %v3771
        %v4046 = vpop.f32.mrf.mxu0
        %v4047 = vadd.f32 0.0, %v4046
        %v4048 = vpop.f32.mrf.mxu0
        %v4049 = vpop.f32.mrf.mxu0
        %v4050 = vadd.f32 0.0, %v4049
        %v4051 = vpop.f32.mrf.mxu0
        %4052 = vmatprep.mubr.bf16.mxu0 0
        %4053 = vmatmul.mubr.bf16.gmra.mxu0 %v3774
        %v4054 = vpop.f32.mrf.mxu0
        %v4055 = vadd.f32 0.0, %v4054
        %v4056 = vpop.f32.mrf.mxu0
        %v4057 = vpop.f32.mrf.mxu0
        %v4058 = vadd.f32 0.0, %v4057
        %v4059 = vpop.f32.mrf.mxu0
        %4060 = vmatprep.mubr.bf16.mxu0 0
        %4061 = vmatmul.mubr.bf16.gmra.mxu0 %v3777
        %v4062 = vpop.f32.mrf.mxu0
        %v4063 = vadd.f32 0.0, %v4062
        %v4064 = vpop.f32.mrf.mxu0
        %v4065 = vpop.f32.mrf.mxu0
        %v4066 = vadd.f32 0.0, %v4065
        %v4067 = vpop.f32.mrf.mxu0
        %4068 = vmatprep.mubr.bf16.mxu0 0
        %4069 = vmatmul.mubr.bf16.gmra.mxu0 %v3780
        %v4070 = vpop.f32.mrf.mxu0
        %v4071 = vadd.f32 0.0, %v4070
        %v4072 = vpop.f32.mrf.mxu0
        %v4073 = vpop.f32.mrf.mxu0
        %v4074 = vadd.f32 0.0, %v4073
        %v4075 = vpop.f32.mrf.mxu0
        %4076 = vmatprep.mubr.bf16.mxu0 0
        %4077 = vmatmul.mubr.bf16.gmra.mxu0 %v3783
        %v4078 = vpop.f32.mrf.mxu0
        %v4079 = vadd.f32 0.0, %v4078
        %v4080 = vpop.f32.mrf.mxu0
        %v4081 = vpop.f32.mrf.mxu0
        %v4082 = vadd.f32 0.0, %v4081
        %v4083 = vpop.f32.mrf.mxu0
        %4084 = vmatprep.mubr.bf16.mxu0 0
        %4085 = vmatmul.mubr.bf16.gmra.mxu0 %v3786
        %v4086 = vpop.f32.mrf.mxu0
        %v4087 = vadd.f32 0.0, %v4086
        %v4088 = vpop.f32.mrf.mxu0
        %v4089 = vpop.f32.mrf.mxu0
        %v4090 = vadd.f32 0.0, %v4089
        %v4091 = vpop.f32.mrf.mxu0
        %4092 = vmatprep.mubr.bf16.mxu0 0
        %4093 = vmatmul.mubr.bf16.gmra.mxu0 %v3789
        %v4094 = vpop.f32.mrf.mxu0
        %v4095 = vadd.f32 0.0, %v4094
        %v4096 = vpop.f32.mrf.mxu0
        %v4097 = vpop.f32.mrf.mxu0
        %v4098 = vadd.f32 0.0, %v4097
        %v4099 = vpop.f32.mrf.mxu0
        %4100 = vmatprep.mubr.bf16.mxu0 0
        %4101 = vmatmul.mubr.bf16.gmra.mxu0 %v3792
        %v4102 = vpop.f32.mrf.mxu0
        %v4103 = vadd.f32 0.0, %v4102
        %v4104 = vpop.f32.mrf.mxu0
        %v4105 = vpop.f32.mrf.mxu0
        %v4106 = vadd.f32 0.0, %v4105
        %v4107 = vpop.f32.mrf.mxu0
        %4108 = vmatprep.mubr.bf16.mxu0 0
        %4109 = vmatmul.mubr.bf16.gmra.mxu0 %v3795
        %v4110 = vpop.f32.mrf.mxu0
        %v4111 = vadd.f32 0.0, %v4110
        %v4112 = vpop.f32.mrf.mxu0
        %v4113 = vpop.f32.mrf.mxu0
        %v4114 = vadd.f32 0.0, %v4113
        %v4115 = vpop.f32.mrf.mxu0
        %4116 = vmatprep.mubr.bf16.mxu0 0
        %4117 = vmatmul.mubr.bf16.gmra.mxu0 %v3798
        %v4118 = vpop.f32.mrf.mxu0
        %v4119 = vadd.f32 0.0, %v4118
        %v4120 = vpop.f32.mrf.mxu0
        %v4121 = vpop.f32.mrf.mxu0
        %v4122 = vadd.f32 0.0, %v4121
        %v4123 = vpop.f32.mrf.mxu0
        %4124 = vmatprep.mubr.bf16.mxu0 0
        %4125 = vmatmul.mubr.bf16.gmra.mxu0 %v3801
        %v4126 = vpop.f32.mrf.mxu0
        %v4127 = vadd.f32 0.0, %v4126
        %v4128 = vpop.f32.mrf.mxu0
        %v4129 = vpop.f32.mrf.mxu0
        %v4130 = vadd.f32 0.0, %v4129
        %v4131 = vpop.f32.mrf.mxu0
        %4132 = vmatprep.mubr.bf16.mxu0 0
        %4133 = vmatmul.mubr.bf16.gmra.mxu0 %v3804
        %v4134 = vpop.f32.mrf.mxu0
        %v4135 = vadd.f32 0.0, %v4134
        %v4136 = vpop.f32.mrf.mxu0
        %v4137 = vpop.f32.mrf.mxu0
        %v4138 = vadd.f32 0.0, %v4137
        %v4139 = vpop.f32.mrf.mxu0
        %4140 = vmatprep.mubr.bf16.mxu0 0
        %4141 = vmatmul.mubr.bf16.gmra.mxu0 %v3807
        %v4142 = vpop.f32.mrf.mxu0
        %v4143 = vadd.f32 0.0, %v4142
        %v4144 = vpop.f32.mrf.mxu0
        %v4145 = vpop.f32.mrf.mxu0
        %v4146 = vadd.f32 0.0, %v4145
        %v4147 = vpop.f32.mrf.mxu0
        %4148 = vmatprep.mubr.bf16.mxu0 0
        %4149 = vmatmul.mubr.bf16.gmra.mxu0 %v3810
        %v4150 = vpop.f32.mrf.mxu0
        %v4151 = vadd.f32 0.0, %v4150
        %v4152 = vpop.f32.mrf.mxu0
        %v4153 = vpop.f32.mrf.mxu0
        %v4154 = vadd.f32 0.0, %v4153
        %v4155 = vpop.f32.mrf.mxu0
        %4156 = vmatprep.mubr.bf16.mxu0 0
        %4157 = vmatmul.mubr.bf16.gmra.mxu0 %v3813
        %v4158 = vpop.f32.mrf.mxu0
        %v4159 = vadd.f32 0.0, %v4158
        %v4160 = vpop.f32.mrf.mxu0
        %v4161 = vpop.f32.mrf.mxu0
        %v4162 = vadd.f32 0.0, %v4161
        %v4163 = vpop.f32.mrf.mxu0
        %4164 = vmatprep.mubr.bf16.mxu0 0
        %4165 = vmatmul.mubr.bf16.gmra.mxu0 %v3816
        %v4166 = vpop.f32.mrf.mxu0
        %v4167 = vadd.f32 0.0, %v4166
        %v4168 = vpop.f32.mrf.mxu0
        %v4169 = vpop.f32.mrf.mxu0
        %v4170 = vadd.f32 0.0, %v4169
        %v4171 = vpop.f32.mrf.mxu0
        %4172 = vmatprep.mubr.bf16.mxu0 0
        %4173 = vmatmul.mubr.bf16.gmra.mxu0 %v3819
        %v4174 = vpop.f32.mrf.mxu0
        %v4175 = vadd.f32 0.0, %v4174
        %v4176 = vpop.f32.mrf.mxu0
        %v4177 = vpop.f32.mrf.mxu0
        %v4178 = vadd.f32 0.0, %v4177
        %v4179 = vpop.f32.mrf.mxu0
        %4180 = vmatprep.mubr.bf16.mxu0 0
        %4181 = vmatmul.mubr.bf16.gmra.mxu0 %v3822
        %v4182 = vpop.f32.mrf.mxu0
        %v4183 = vadd.f32 0.0, %v4182
        %v4184 = vpop.f32.mrf.mxu0
        %v4185 = vpop.f32.mrf.mxu0
        %v4186 = vadd.f32 0.0, %v4185
        %v4187 = vpop.f32.mrf.mxu0
        %4188 = vmatprep.mubr.bf16.mxu0 0
        %4189 = vmatmul.mubr.bf16.gmra.mxu0 %v3825
        %v4190 = vpop.f32.mrf.mxu0
        %v4191 = vadd.f32 0.0, %v4190
        %v4192 = vpop.f32.mrf.mxu0
        %v4193 = vpop.f32.mrf.mxu0
        %v4194 = vadd.f32 0.0, %v4193
        %v4195 = vpop.f32.mrf.mxu0
        %4196 = vmatprep.mubr.bf16.mxu0 0
        %4197 = vmatmul.mubr.bf16.gmra.mxu0 %v3828
        %v4198 = vpop.f32.mrf.mxu0
        %v4199 = vadd.f32 0.0, %v4198
        %v4200 = vpop.f32.mrf.mxu0
        %v4201 = vpop.f32.mrf.mxu0
        %v4202 = vadd.f32 0.0, %v4201
        %v4203 = vpop.f32.mrf.mxu0
        %4204 = vmatprep.mubr.bf16.mxu0 0
        %4205 = vmatmul.mubr.bf16.gmra.mxu0 %v3831
        %v4206 = vpop.f32.mrf.mxu0
        %v4207 = vadd.f32 0.0, %v4206
        %v4208 = vpop.f32.mrf.mxu0
        %v4209 = vpop.f32.mrf.mxu0
        %v4210 = vadd.f32 0.0, %v4209
        %v4211 = vpop.f32.mrf.mxu0
        %4212 = vmatprep.mubr.bf16.mxu0 0
        %4213 = vmatmul.mubr.bf16.gmra.mxu0 %v3834
        %v4214 = vpop.f32.mrf.mxu0
        %v4215 = vadd.f32 0.0, %v4214
        %v4216 = vpop.f32.mrf.mxu0
        %v4217 = vpop.f32.mrf.mxu0
        %v4218 = vadd.f32 0.0, %v4217
        %v4219 = vpop.f32.mrf.mxu0
        %4220 = vdwg.mxu0
        %v4221 = vld [vmem:[%s883] sm:$0x1]
        %4223 = vset.pattern.permute.xlu0 0
        %4224 = vperm.xlu0 %4223, %v3123
        %v4225 = vpop.permute.xlu0 %4224
        %4228 = vset.pattern.permute.xlu0 0
        %4229 = vperm.xlu0 %4228, %v3124
        %v4230 = vpop.permute.xlu0 %4229
        %4233 = vset.pattern.permute.xlu0 0
        %4234 = vperm.xlu0 %4233, %v3125
        %v4235 = vpop.permute.xlu0 %4234
        %4238 = vset.pattern.permute.xlu0 0
        %4239 = vperm.xlu0 %4238, %v3126
        %v4240 = vpop.permute.xlu0 %4239
        %4243 = vset.pattern.permute.xlu0 0
        %4244 = vperm.xlu0 %4243, %v3127
        %v4245 = vpop.permute.xlu0 %4244
        %4248 = vset.pattern.permute.xlu0 0
        %4249 = vperm.xlu0 %4248, %v3128
        %v4250 = vpop.permute.xlu0 %4249
        %4253 = vset.pattern.permute.xlu0 0
        %4254 = vperm.xlu0 %4253, %v3129
        %v4255 = vpop.permute.xlu0 %4254
        %4258 = vset.pattern.permute.xlu0 0
        %4259 = vperm.xlu0 %4258, %v3130
        %v4260 = vpop.permute.xlu0 %4259
        %4263 = vset.pattern.permute.xlu0 0
        %4264 = vperm.xlu0 %4263, %v3131
        %v4265 = vpop.permute.xlu0 %4264
        %4268 = vset.pattern.permute.xlu0 0
        %4269 = vperm.xlu0 %4268, %v3132
        %v4270 = vpop.permute.xlu0 %4269
        %4273 = vset.pattern.permute.xlu0 0
        %4274 = vperm.xlu0 %4273, %v3133
        %v4275 = vpop.permute.xlu0 %4274
        %4278 = vset.pattern.permute.xlu0 0
        %4279 = vperm.xlu0 %4278, %v3134
        %v4280 = vpop.permute.xlu0 %4279
        %4283 = vset.pattern.permute.xlu0 0
        %4284 = vperm.xlu0 %4283, %v3135
        %v4285 = vpop.permute.xlu0 %4284
        %4288 = vset.pattern.permute.xlu0 0
        %4289 = vperm.xlu0 %4288, %v3136
        %v4290 = vpop.permute.xlu0 %4289
        %4293 = vset.pattern.permute.xlu0 0
        %4294 = vperm.xlu0 %4293, %v3137
        %v4295 = vpop.permute.xlu0 %4294
        %4298 = vset.pattern.permute.xlu0 0
        %4299 = vperm.xlu0 %4298, %v3138
        %v4300 = vpop.permute.xlu0 %4299
        %4303 = vset.pattern.permute.xlu0 0
        %4304 = vperm.xlu0 %4303, %v3139
        %v4305 = vpop.permute.xlu0 %4304
        %4308 = vset.pattern.permute.xlu0 0
        %4309 = vperm.xlu0 %4308, %v3140
        %v4310 = vpop.permute.xlu0 %4309
        %4313 = vset.pattern.permute.xlu0 0
        %4314 = vperm.xlu0 %4313, %v3141
        %v4315 = vpop.permute.xlu0 %4314
        %4318 = vset.pattern.permute.xlu0 0
        %4319 = vperm.xlu0 %4318, %v3142
        %v4320 = vpop.permute.xlu0 %4319
        %4323 = vset.pattern.permute.xlu0 0
        %4324 = vperm.xlu0 %4323, %v3143
        %v4325 = vpop.permute.xlu0 %4324
        %4328 = vset.pattern.permute.xlu0 0
        %4329 = vperm.xlu0 %4328, %v3144
        %v4330 = vpop.permute.xlu0 %4329
        %4333 = vset.pattern.permute.xlu0 0
        %4334 = vperm.xlu0 %4333, %v3145
        %v4335 = vpop.permute.xlu0 %4334
        %4338 = vset.pattern.permute.xlu0 0
        %4339 = vperm.xlu0 %4338, %v3146
        %v4340 = vpop.permute.xlu0 %4339
        %4343 = vset.pattern.permute.xlu0 0
        %4344 = vperm.xlu0 %4343, %v3147
        %v4345 = vpop.permute.xlu0 %4344
        %4348 = vset.pattern.permute.xlu0 0
        %4349 = vperm.xlu0 %4348, %v3148
        %v4350 = vpop.permute.xlu0 %4349
        %4353 = vset.pattern.permute.xlu0 0
        %4354 = vperm.xlu0 %4353, %v3149
        %v4355 = vpop.permute.xlu0 %4354
        %4358 = vset.pattern.permute.xlu0 0
        %4359 = vperm.xlu0 %4358, %v3150
        %v4360 = vpop.permute.xlu0 %4359
        %4363 = vset.pattern.permute.xlu0 0
        %4364 = vperm.xlu0 %4363, %v3151
        %v4365 = vpop.permute.xlu0 %4364
        %4368 = vset.pattern.permute.xlu0 0
        %4369 = vperm.xlu0 %4368, %v3152
        %v4370 = vpop.permute.xlu0 %4369
        %4373 = vset.pattern.permute.xlu0 0
        %4374 = vperm.xlu0 %4373, %v3153
        %v4375 = vpop.permute.xlu0 %4374
        %4378 = vset.pattern.permute.xlu0 0
        %4379 = vperm.xlu0 %4378, %v3154
        %v4380 = vpop.permute.xlu0 %4379
        %4383 = vset.pattern.permute.xlu0 0
        %4384 = vperm.xlu0 %4383, %v3155
        %v4385 = vpop.permute.xlu0 %4384
        %4388 = vset.pattern.permute.xlu0 0
        %4389 = vperm.xlu0 %4388, %v3156
        %v4390 = vpop.permute.xlu0 %4389
        %4393 = vset.pattern.permute.xlu0 0
        %4394 = vperm.xlu0 %4393, %v3157
        %v4395 = vpop.permute.xlu0 %4394
        %4398 = vset.pattern.permute.xlu0 0
        %4399 = vperm.xlu0 %4398, %v3158
        %v4400 = vpop.permute.xlu0 %4399
        %4403 = vset.pattern.permute.xlu0 0
        %4404 = vperm.xlu0 %4403, %v3159
        %v4405 = vpop.permute.xlu0 %4404
        %4408 = vset.pattern.permute.xlu0 0
        %4409 = vperm.xlu0 %4408, %v3160
        %v4410 = vpop.permute.xlu0 %4409
        %4413 = vset.pattern.permute.xlu0 0
        %4414 = vperm.xlu0 %4413, %v3161
        %v4415 = vpop.permute.xlu0 %4414
        %4418 = vset.pattern.permute.xlu0 0
        %4419 = vperm.xlu0 %4418, %v3162
        %v4420 = vpop.permute.xlu0 %4419
        %4423 = vset.pattern.permute.xlu0 0
        %4424 = vperm.xlu0 %4423, %v3163
        %v4425 = vpop.permute.xlu0 %4424
        %4428 = vset.pattern.permute.xlu0 0
        %4429 = vperm.xlu0 %4428, %v3164
        %v4430 = vpop.permute.xlu0 %4429
        %4433 = vset.pattern.permute.xlu0 0
        %4434 = vperm.xlu0 %4433, %v3165
        %v4435 = vpop.permute.xlu0 %4434
        %4438 = vset.pattern.permute.xlu0 0
        %4439 = vperm.xlu0 %4438, %v3166
        %v4440 = vpop.permute.xlu0 %4439
        %4443 = vset.pattern.permute.xlu0 0
        %4444 = vperm.xlu0 %4443, %v3167
        %v4445 = vpop.permute.xlu0 %4444
        %4448 = vset.pattern.permute.xlu0 0
        %4449 = vperm.xlu0 %4448, %v3168
        %v4450 = vpop.permute.xlu0 %4449
        %4453 = vset.pattern.permute.xlu0 0
        %4454 = vperm.xlu0 %4453, %v3169
        %v4455 = vpop.permute.xlu0 %4454
        %4458 = vset.pattern.permute.xlu0 0
        %4459 = vperm.xlu0 %4458, %v3170
        %v4460 = vpop.permute.xlu0 %4459
        %4463 = vset.pattern.permute.xlu0 0
        %4464 = vperm.xlu0 %4463, %v3171
        %v4465 = vpop.permute.xlu0 %4464
        %4468 = vset.pattern.permute.xlu0 0
        %4469 = vperm.xlu0 %4468, %v3172
        %v4470 = vpop.permute.xlu0 %4469
        %4473 = vset.pattern.permute.xlu0 0
        %4474 = vperm.xlu0 %4473, %v3173
        %v4475 = vpop.permute.xlu0 %4474
        %4478 = vset.pattern.permute.xlu0 0
        %4479 = vperm.xlu0 %4478, %v3174
        %v4480 = vpop.permute.xlu0 %4479
        %4483 = vset.pattern.permute.xlu0 0
        %4484 = vperm.xlu0 %4483, %v3175
        %v4485 = vpop.permute.xlu0 %4484
        %4488 = vset.pattern.permute.xlu0 0
        %4489 = vperm.xlu0 %4488, %v3176
        %v4490 = vpop.permute.xlu0 %4489
        %4493 = vset.pattern.permute.xlu0 0
        %4494 = vperm.xlu0 %4493, %v3177
        %v4495 = vpop.permute.xlu0 %4494
        %4498 = vset.pattern.permute.xlu0 0
        %4499 = vperm.xlu0 %4498, %v3178
        %v4500 = vpop.permute.xlu0 %4499
        %4503 = vset.pattern.permute.xlu0 0
        %4504 = vperm.xlu0 %4503, %v3179
        %v4505 = vpop.permute.xlu0 %4504
        %4508 = vset.pattern.permute.xlu0 0
        %4509 = vperm.xlu0 %4508, %v3180
        %v4510 = vpop.permute.xlu0 %4509
        %4513 = vset.pattern.permute.xlu0 0
        %4514 = vperm.xlu0 %4513, %v3181
        %v4515 = vpop.permute.xlu0 %4514
        %4518 = vset.pattern.permute.xlu0 0
        %4519 = vperm.xlu0 %4518, %v3182
        %v4520 = vpop.permute.xlu0 %4519
        %4523 = vset.pattern.permute.xlu0 0
        %4524 = vperm.xlu0 %4523, %v3183
        %v4525 = vpop.permute.xlu0 %4524
        %4528 = vset.pattern.permute.xlu0 0
        %4529 = vperm.xlu0 %4528, %v3184
        %v4530 = vpop.permute.xlu0 %4529
        %4533 = vset.pattern.permute.xlu0 0
        %4534 = vperm.xlu0 %4533, %v3185
        %v4535 = vpop.permute.xlu0 %4534
        %4538 = vset.pattern.permute.xlu0 0
        %4539 = vperm.xlu0 %4538, %v3186
        %v4540 = vpop.permute.xlu0 %4539
        %4543 = vset.pattern.permute.xlu0 0
        %4544 = vperm.xlu0 %4543, %v3187
        %v4545 = vpop.permute.xlu0 %4544
        %4548 = vset.pattern.permute.xlu0 0
        %4549 = vperm.xlu0 %4548, %v3188
        %v4550 = vpop.permute.xlu0 %4549
        %4553 = vset.pattern.permute.xlu0 0
        %4554 = vperm.xlu0 %4553, %v3189
        %v4555 = vpop.permute.xlu0 %4554
        %4558 = vset.pattern.permute.xlu0 0
        %4559 = vperm.xlu0 %4558, %v3190
        %v4560 = vpop.permute.xlu0 %4559
        %4563 = vset.pattern.permute.xlu0 0
        %4564 = vperm.xlu0 %4563, %v3191
        %v4565 = vpop.permute.xlu0 %4564
        %4568 = vset.pattern.permute.xlu0 0
        %4569 = vperm.xlu0 %4568, %v3192
        %v4570 = vpop.permute.xlu0 %4569
        %4573 = vset.pattern.permute.xlu0 0
        %4574 = vperm.xlu0 %4573, %v3193
        %v4575 = vpop.permute.xlu0 %4574
        %4578 = vset.pattern.permute.xlu0 0
        %4579 = vperm.xlu0 %4578, %v3194
        %v4580 = vpop.permute.xlu0 %4579
        %4583 = vset.pattern.permute.xlu0 0
        %4584 = vperm.xlu0 %4583, %v3195
        %v4585 = vpop.permute.xlu0 %4584
        %4588 = vset.pattern.permute.xlu0 0
        %4589 = vperm.xlu0 %4588, %v3196
        %v4590 = vpop.permute.xlu0 %4589
        %4593 = vset.pattern.permute.xlu0 0
        %4594 = vperm.xlu0 %4593, %v3197
        %v4595 = vpop.permute.xlu0 %4594
        %4598 = vset.pattern.permute.xlu0 0
        %4599 = vperm.xlu0 %4598, %v3198
        %v4600 = vpop.permute.xlu0 %4599
        %4603 = vset.pattern.permute.xlu0 0
        %4604 = vperm.xlu0 %4603, %v3199
        %v4605 = vpop.permute.xlu0 %4604
        %4608 = vset.pattern.permute.xlu0 0
        %4609 = vperm.xlu0 %4608, %v3200
        %v4610 = vpop.permute.xlu0 %4609
        %4613 = vset.pattern.permute.xlu0 0
        %4614 = vperm.xlu0 %4613, %v3201
        %v4615 = vpop.permute.xlu0 %4614
        %4618 = vset.pattern.permute.xlu0 0
        %4619 = vperm.xlu0 %4618, %v3202
        %v4620 = vpop.permute.xlu0 %4619
        %4623 = vset.pattern.permute.xlu0 0
        %4624 = vperm.xlu0 %4623, %v3203
        %v4625 = vpop.permute.xlu0 %4624
        %4628 = vset.pattern.permute.xlu0 0
        %4629 = vperm.xlu0 %4628, %v3204
        %v4630 = vpop.permute.xlu0 %4629
        %4633 = vset.pattern.permute.xlu0 0
        %4634 = vperm.xlu0 %4633, %v3205
        %v4635 = vpop.permute.xlu0 %4634
        %4638 = vset.pattern.permute.xlu0 0
        %4639 = vperm.xlu0 %4638, %v3206
        %v4640 = vpop.permute.xlu0 %4639
        %4643 = vset.pattern.permute.xlu0 0
        %4644 = vperm.xlu0 %4643, %v3207
        %v4645 = vpop.permute.xlu0 %4644
        %4648 = vset.pattern.permute.xlu0 0
        %4649 = vperm.xlu0 %4648, %v3208
        %v4650 = vpop.permute.xlu0 %4649
        %4653 = vset.pattern.permute.xlu0 0
        %4654 = vperm.xlu0 %4653, %v3209
        %v4655 = vpop.permute.xlu0 %4654
        %4658 = vset.pattern.permute.xlu0 0
        %4659 = vperm.xlu0 %4658, %v3210
        %v4660 = vpop.permute.xlu0 %4659
        %v4663 = vlaneseq
        %v4664 = vshrl.u32 %v4663, 7
        %v4665 = vsub.s32 0, %v4664
        %v4666 = vrot.slane %v4221, %v4665
        %v4668 = vmul.f32 %v4225, %v4666
        %v4669 = vmul.f32 %v4230, %v4666
        %v4670 = vmul.f32 %v4235, %v4666
        %v4671 = vmul.f32 %v4240, %v4666
        %v4672 = vmul.f32 %v4245, %v4666
        %v4673 = vmul.f32 %v4250, %v4666
        %v4674 = vmul.f32 %v4255, %v4666
        %v4675 = vmul.f32 %v4260, %v4666
        %v4676 = vmul.f32 %v4265, %v4666
        %v4677 = vmul.f32 %v4270, %v4666
        %v4678 = vmul.f32 %v4275, %v4666
        %v4679 = vmul.f32 %v4280, %v4666
        %v4680 = vmul.f32 %v4285, %v4666
        %v4681 = vmul.f32 %v4290, %v4666
        %v4682 = vmul.f32 %v4295, %v4666
        %v4683 = vmul.f32 %v4300, %v4666
        %v4684 = vmul.f32 %v4305, %v4666
        %v4685 = vmul.f32 %v4310, %v4666
        %v4686 = vmul.f32 %v4315, %v4666
        %v4687 = vmul.f32 %v4320, %v4666
        %v4688 = vmul.f32 %v4325, %v4666
        %v4689 = vmul.f32 %v4330, %v4666
        %v4690 = vmul.f32 %v4335, %v4666
        %v4691 = vmul.f32 %v4340, %v4666
        %v4692 = vmul.f32 %v4345, %v4666
        %v4693 = vmul.f32 %v4350, %v4666
        %v4694 = vmul.f32 %v4355, %v4666
        %v4695 = vmul.f32 %v4360, %v4666
        %v4696 = vmul.f32 %v4365, %v4666
        %v4697 = vmul.f32 %v4370, %v4666
        %v4698 = vmul.f32 %v4375, %v4666
        %v4699 = vmul.f32 %v4380, %v4666
        %v4700 = vmul.f32 %v4385, %v4666
        %v4701 = vmul.f32 %v4390, %v4666
        %v4702 = vmul.f32 %v4395, %v4666
        %v4703 = vmul.f32 %v4400, %v4666
        %v4704 = vmul.f32 %v4405, %v4666
        %v4705 = vmul.f32 %v4410, %v4666
        %v4706 = vmul.f32 %v4415, %v4666
        %v4707 = vmul.f32 %v4420, %v4666
        %v4708 = vmul.f32 %v4425, %v4666
        %v4709 = vmul.f32 %v4430, %v4666
        %v4710 = vmul.f32 %v4435, %v4666
        %v4711 = vmul.f32 %v4440, %v4666
        %v4712 = vmul.f32 %v4445, %v4666
        %v4713 = vmul.f32 %v4450, %v4666
        %v4714 = vmul.f32 %v4455, %v4666
        %v4715 = vmul.f32 %v4460, %v4666
        %v4716 = vmul.f32 %v4465, %v4666
        %v4717 = vmul.f32 %v4470, %v4666
        %v4718 = vmul.f32 %v4475, %v4666
        %v4719 = vmul.f32 %v4480, %v4666
        %v4720 = vmul.f32 %v4485, %v4666
        %v4721 = vmul.f32 %v4490, %v4666
        %v4722 = vmul.f32 %v4495, %v4666
        %v4723 = vmul.f32 %v4500, %v4666
        %v4724 = vmul.f32 %v4505, %v4666
        %v4725 = vmul.f32 %v4510, %v4666
        %v4726 = vmul.f32 %v4515, %v4666
        %v4727 = vmul.f32 %v4520, %v4666
        %v4728 = vmul.f32 %v4525, %v4666
        %v4729 = vmul.f32 %v4530, %v4666
        %v4730 = vmul.f32 %v4535, %v4666
        %v4731 = vmul.f32 %v4540, %v4666
        %v4732 = vmul.f32 %v4545, %v4666
        %v4733 = vmul.f32 %v4550, %v4666
        %v4734 = vmul.f32 %v4555, %v4666
        %v4735 = vmul.f32 %v4560, %v4666
        %v4736 = vmul.f32 %v4565, %v4666
        %v4737 = vmul.f32 %v4570, %v4666
        %v4738 = vmul.f32 %v4575, %v4666
        %v4739 = vmul.f32 %v4580, %v4666
        %v4740 = vmul.f32 %v4585, %v4666
        %v4741 = vmul.f32 %v4590, %v4666
        %v4742 = vmul.f32 %v4595, %v4666
        %v4743 = vmul.f32 %v4600, %v4666
        %v4744 = vmul.f32 %v4605, %v4666
        %v4745 = vmul.f32 %v4610, %v4666
        %v4746 = vmul.f32 %v4615, %v4666
        %v4747 = vmul.f32 %v4620, %v4666
        %v4748 = vmul.f32 %v4625, %v4666
        %v4749 = vmul.f32 %v4630, %v4666
        %v4750 = vmul.f32 %v4635, %v4666
        %v4751 = vmul.f32 %v4640, %v4666
        %v4752 = vmul.f32 %v4645, %v4666
        %v4753 = vmul.f32 %v4650, %v4666
        %v4754 = vmul.f32 %v4655, %v4666
        %v4755 = vmul.f32 %v4660, %v4666
        %v4756 = vadd.f32 %v4668, %v3871
        %v4757 = vadd.f32 %v4669, %v3874
        %v4758 = vadd.f32 %v4670, %v3879
        %v4759 = vadd.f32 %v4671, %v3882
        %v4760 = vadd.f32 %v4672, %v3887
        %v4761 = vadd.f32 %v4673, %v3890
        %v4762 = vadd.f32 %v4674, %v3895
        %v4763 = vadd.f32 %v4675, %v3898
        %v4764 = vadd.f32 %v4676, %v3903
        %v4765 = vadd.f32 %v4677, %v3906
        %v4766 = vadd.f32 %v4678, %v3911
        %v4767 = vadd.f32 %v4679, %v3914
        %v4768 = vadd.f32 %v4680, %v3919
        %v4769 = vadd.f32 %v4681, %v3922
        %v4770 = vadd.f32 %v4682, %v3927
        %v4771 = vadd.f32 %v4683, %v3930
        %v4772 = vadd.f32 %v4684, %v3935
        %v4773 = vadd.f32 %v4685, %v3938
        %v4774 = vadd.f32 %v4686, %v3943
        %v4775 = vadd.f32 %v4687, %v3946
        %v4776 = vadd.f32 %v4688, %v3951
        %v4777 = vadd.f32 %v4689, %v3954
        %v4778 = vadd.f32 %v4690, %v3959
        %v4779 = vadd.f32 %v4691, %v3962
        %v4780 = vadd.f32 %v4692, %v3967
        %v4781 = vadd.f32 %v4693, %v3970
        %v4782 = vadd.f32 %v4694, %v3975
        %v4783 = vadd.f32 %v4695, %v3978
        %v4784 = vadd.f32 %v4696, %v3983
        %v4785 = vadd.f32 %v4697, %v3986
        %v4786 = vadd.f32 %v4698, %v3991
        %v4787 = vadd.f32 %v4699, %v3994
        %v4788 = vadd.f32 %v4700, %v3999
        %v4789 = vadd.f32 %v4701, %v4002
        %v4790 = vadd.f32 %v4702, %v4007
        %v4791 = vadd.f32 %v4703, %v4010
        %v4792 = vadd.f32 %v4704, %v4015
        %v4793 = vadd.f32 %v4705, %v4018
        %v4794 = vadd.f32 %v4706, %v4023
        %v4795 = vadd.f32 %v4707, %v4026
        %v4796 = vadd.f32 %v4708, %v4031
        %v4797 = vadd.f32 %v4709, %v4034
        %v4798 = vadd.f32 %v4710, %v4039
        %v4799 = vadd.f32 %v4711, %v4042
        %v4800 = vadd.f32 %v4712, %v4047
        %v4801 = vadd.f32 %v4713, %v4050
        %v4802 = vadd.f32 %v4714, %v4055
        %v4803 = vadd.f32 %v4715, %v4058
        %v4804 = vadd.f32 %v4716, %v4063
        %v4805 = vadd.f32 %v4717, %v4066
        %v4806 = vadd.f32 %v4718, %v4071
        %v4807 = vadd.f32 %v4719, %v4074
        %v4808 = vadd.f32 %v4720, %v4079
        %v4809 = vadd.f32 %v4721, %v4082
        %v4810 = vadd.f32 %v4722, %v4087
        %v4811 = vadd.f32 %v4723, %v4090
        %v4812 = vadd.f32 %v4724, %v4095
        %v4813 = vadd.f32 %v4725, %v4098
        %v4814 = vadd.f32 %v4726, %v4103
        %v4815 = vadd.f32 %v4727, %v4106
        %v4816 = vadd.f32 %v4728, %v4111
        %v4817 = vadd.f32 %v4729, %v4114
        %v4818 = vadd.f32 %v4730, %v4119
        %v4819 = vadd.f32 %v4731, %v4122
        %v4820 = vadd.f32 %v4732, %v4127
        %v4821 = vadd.f32 %v4733, %v4130
        %v4822 = vadd.f32 %v4734, %v4135
        %v4823 = vadd.f32 %v4735, %v4138
        %v4824 = vadd.f32 %v4736, %v4143
        %v4825 = vadd.f32 %v4737, %v4146
        %v4826 = vadd.f32 %v4738, %v4151
        %v4827 = vadd.f32 %v4739, %v4154
        %v4828 = vadd.f32 %v4740, %v4159
        %v4829 = vadd.f32 %v4741, %v4162
        %v4830 = vadd.f32 %v4742, %v4167
        %v4831 = vadd.f32 %v4743, %v4170
        %v4832 = vadd.f32 %v4744, %v4175
        %v4833 = vadd.f32 %v4745, %v4178
        %v4834 = vadd.f32 %v4746, %v4183
        %v4835 = vadd.f32 %v4747, %v4186
        %v4836 = vadd.f32 %v4748, %v4191
        %v4837 = vadd.f32 %v4749, %v4194
        %v4838 = vadd.f32 %v4750, %v4199
        %v4839 = vadd.f32 %v4751, %v4202
        %v4840 = vadd.f32 %v4752, %v4207
        %v4841 = vadd.f32 %v4753, %v4210
        %v4842 = vadd.f32 %v4754, %v4215
        %v4843 = vadd.f32 %v4755, %v4218
        %v4844 = vadd.f32 %v4756, %v3450
        %v4845 = vadd.f32 %v4757, %v3453
        %v4846 = vadd.f32 %v4758, %v3458
        %v4847 = vadd.f32 %v4759, %v3461
        %v4848 = vadd.f32 %v4760, %v3466
        %v4849 = vadd.f32 %v4761, %v3469
        %v4850 = vadd.f32 %v4762, %v3474
        %v4851 = vadd.f32 %v4763, %v3477
        %v4852 = vadd.f32 %v4764, %v3450
        %v4853 = vadd.f32 %v4765, %v3453
        %v4854 = vadd.f32 %v4766, %v3458
        %v4855 = vadd.f32 %v4767, %v3461
        %v4856 = vadd.f32 %v4768, %v3466
        %v4857 = vadd.f32 %v4769, %v3469
        %v4858 = vadd.f32 %v4770, %v3474
        %v4859 = vadd.f32 %v4771, %v3477
        %v4860 = vadd.f32 %v4772, %v3450
        %v4861 = vadd.f32 %v4773, %v3453
        %v4862 = vadd.f32 %v4774, %v3458
        %v4863 = vadd.f32 %v4775, %v3461
        %v4864 = vadd.f32 %v4776, %v3466
        %v4865 = vadd.f32 %v4777, %v3469
        %v4866 = vadd.f32 %v4778, %v3474
        %v4867 = vadd.f32 %v4779, %v3477
        %v4868 = vadd.f32 %v4780, %v3450
        %v4869 = vadd.f32 %v4781, %v3453
        %v4870 = vadd.f32 %v4782, %v3458
        %v4871 = vadd.f32 %v4783, %v3461
        %v4872 = vadd.f32 %v4784, %v3466
        %v4873 = vadd.f32 %v4785, %v3469
        %v4874 = vadd.f32 %v4786, %v3474
        %v4875 = vadd.f32 %v4787, %v3477
        %v4876 = vadd.f32 %v4788, %v3450
        %v4877 = vadd.f32 %v4789, %v3453
        %v4878 = vadd.f32 %v4790, %v3458
        %v4879 = vadd.f32 %v4791, %v3461
        %v4880 = vadd.f32 %v4792, %v3466
        %v4881 = vadd.f32 %v4793, %v3469
        %v4882 = vadd.f32 %v4794, %v3474
        %v4883 = vadd.f32 %v4795, %v3477
        %v4884 = vadd.f32 %v4796, %v3450
        %v4885 = vadd.f32 %v4797, %v3453
        %v4886 = vadd.f32 %v4798, %v3458
        %v4887 = vadd.f32 %v4799, %v3461
        %v4888 = vadd.f32 %v4800, %v3466
        %v4889 = vadd.f32 %v4801, %v3469
        %v4890 = vadd.f32 %v4802, %v3474
        %v4891 = vadd.f32 %v4803, %v3477
        %v4892 = vadd.f32 %v4804, %v3450
        %v4893 = vadd.f32 %v4805, %v3453
        %v4894 = vadd.f32 %v4806, %v3458
        %v4895 = vadd.f32 %v4807, %v3461
        %v4896 = vadd.f32 %v4808, %v3466
        %v4897 = vadd.f32 %v4809, %v3469
        %v4898 = vadd.f32 %v4810, %v3474
        %v4899 = vadd.f32 %v4811, %v3477
        %v4900 = vadd.f32 %v4812, %v3450
        %v4901 = vadd.f32 %v4813, %v3453
        %v4902 = vadd.f32 %v4814, %v3458
        %v4903 = vadd.f32 %v4815, %v3461
        %v4904 = vadd.f32 %v4816, %v3466
        %v4905 = vadd.f32 %v4817, %v3469
        %v4906 = vadd.f32 %v4818, %v3474
        %v4907 = vadd.f32 %v4819, %v3477
        %v4908 = vadd.f32 %v4820, %v3450
        %v4909 = vadd.f32 %v4821, %v3453
        %v4910 = vadd.f32 %v4822, %v3458
        %v4911 = vadd.f32 %v4823, %v3461
        %v4912 = vadd.f32 %v4824, %v3466
        %v4913 = vadd.f32 %v4825, %v3469
        %v4914 = vadd.f32 %v4826, %v3474
        %v4915 = vadd.f32 %v4827, %v3477
        %v4916 = vadd.f32 %v4828, %v3450
        %v4917 = vadd.f32 %v4829, %v3453
        %v4918 = vadd.f32 %v4830, %v3458
        %v4919 = vadd.f32 %v4831, %v3461
        %v4920 = vadd.f32 %v4832, %v3466
        %v4921 = vadd.f32 %v4833, %v3469
        %v4922 = vadd.f32 %v4834, %v3474
        %v4923 = vadd.f32 %v4835, %v3477
        %v4924 = vadd.f32 %v4836, %v3450
        %v4925 = vadd.f32 %v4837, %v3453
        %v4926 = vadd.f32 %v4838, %v3458
        %v4927 = vadd.f32 %v4839, %v3461
        %v4928 = vadd.f32 %v4840, %v3466
        %v4929 = vadd.f32 %v4841, %v3469
        %v4930 = vadd.f32 %v4842, %v3474
        %v4931 = vadd.f32 %v4843, %v3477
        %v4932 = vxor.u32 %v4844, 2147483648
        %v4933 = vxor.u32 %v4845, 2147483648
        %v4934 = vxor.u32 %v4846, 2147483648
        %v4935 = vxor.u32 %v4847, 2147483648
        %v4936 = vxor.u32 %v4848, 2147483648
        %v4937 = vxor.u32 %v4849, 2147483648
        %v4938 = vxor.u32 %v4850, 2147483648
        %v4939 = vxor.u32 %v4851, 2147483648
        %v4940 = vxor.u32 %v4852, 2147483648
        %v4941 = vxor.u32 %v4853, 2147483648
        %v4942 = vxor.u32 %v4854, 2147483648
        %v4943 = vxor.u32 %v4855, 2147483648
        %v4944 = vxor.u32 %v4856, 2147483648
        %v4945 = vxor.u32 %v4857, 2147483648
        %v4946 = vxor.u32 %v4858, 2147483648
        %v4947 = vxor.u32 %v4859, 2147483648
        %v4948 = vxor.u32 %v4860, 2147483648
        %v4949 = vxor.u32 %v4861, 2147483648
        %v4950 = vxor.u32 %v4862, 2147483648
        %v4951 = vxor.u32 %v4863, 2147483648
        %v4952 = vxor.u32 %v4864, 2147483648
        %v4953 = vxor.u32 %v4865, 2147483648
        %v4954 = vxor.u32 %v4866, 2147483648
        %v4955 = vxor.u32 %v4867, 2147483648
        %v4956 = vxor.u32 %v4868, 2147483648
        %v4957 = vxor.u32 %v4869, 2147483648
        %v4958 = vxor.u32 %v4870, 2147483648
        %v4959 = vxor.u32 %v4871, 2147483648
        %v4960 = vxor.u32 %v4872, 2147483648
        %v4961 = vxor.u32 %v4873, 2147483648
        %v4962 = vxor.u32 %v4874, 2147483648
        %v4963 = vxor.u32 %v4875, 2147483648
        %v4964 = vxor.u32 %v4876, 2147483648
        %v4965 = vxor.u32 %v4877, 2147483648
        %v4966 = vxor.u32 %v4878, 2147483648
        %v4967 = vxor.u32 %v4879, 2147483648
        %v4968 = vxor.u32 %v4880, 2147483648
        %v4969 = vxor.u32 %v4881, 2147483648
        %v4970 = vxor.u32 %v4882, 2147483648
        %v4971 = vxor.u32 %v4883, 2147483648
        %v4972 = vxor.u32 %v4884, 2147483648
        %v4973 = vxor.u32 %v4885, 2147483648
        %v4974 = vxor.u32 %v4886, 2147483648
        %v4975 = vxor.u32 %v4887, 2147483648
        %v4976 = vxor.u32 %v4888, 2147483648
        %v4977 = vxor.u32 %v4889, 2147483648
        %v4978 = vxor.u32 %v4890, 2147483648
        %v4979 = vxor.u32 %v4891, 2147483648
        %v4980 = vxor.u32 %v4892, 2147483648
        %v4981 = vxor.u32 %v4893, 2147483648
        %v4982 = vxor.u32 %v4894, 2147483648
        %v4983 = vxor.u32 %v4895, 2147483648
        %v4984 = vxor.u32 %v4896, 2147483648
        %v4985 = vxor.u32 %v4897, 2147483648
        %v4986 = vxor.u32 %v4898, 2147483648
        %v4987 = vxor.u32 %v4899, 2147483648
        %v4988 = vxor.u32 %v4900, 2147483648
        %v4989 = vxor.u32 %v4901, 2147483648
        %v4990 = vxor.u32 %v4902, 2147483648
        %v4991 = vxor.u32 %v4903, 2147483648
        %v4992 = vxor.u32 %v4904, 2147483648
        %v4993 = vxor.u32 %v4905, 2147483648
        %v4994 = vxor.u32 %v4906, 2147483648
        %v4995 = vxor.u32 %v4907, 2147483648
        %v4996 = vxor.u32 %v4908, 2147483648
        %v4997 = vxor.u32 %v4909, 2147483648
        %v4998 = vxor.u32 %v4910, 2147483648
        %v4999 = vxor.u32 %v4911, 2147483648
        %v5000 = vxor.u32 %v4912, 2147483648
        %v5001 = vxor.u32 %v4913, 2147483648
        %v5002 = vxor.u32 %v4914, 2147483648
        %v5003 = vxor.u32 %v4915, 2147483648
        %v5004 = vxor.u32 %v4916, 2147483648
        %v5005 = vxor.u32 %v4917, 2147483648
        %v5006 = vxor.u32 %v4918, 2147483648
        %v5007 = vxor.u32 %v4919, 2147483648
        %v5008 = vxor.u32 %v4920, 2147483648
        %v5009 = vxor.u32 %v4921, 2147483648
        %v5010 = vxor.u32 %v4922, 2147483648
        %v5011 = vxor.u32 %v4923, 2147483648
        %v5012 = vxor.u32 %v4924, 2147483648
        %v5013 = vxor.u32 %v4925, 2147483648
        %v5014 = vxor.u32 %v4926, 2147483648
        %v5015 = vxor.u32 %v4927, 2147483648
        %v5016 = vxor.u32 %v4928, 2147483648
        %v5017 = vxor.u32 %v4929, 2147483648
        %v5018 = vxor.u32 %v4930, 2147483648
        %v5019 = vxor.u32 %v4931, 2147483648
        %v5020 = vmul.f32 %v4932, 1.442695
        %v5021 = vpow.pop %v5020
        %v5022 = vmul.f32 %v4933, 1.442695
        %v5023 = vpow.pop %v5022
        %v5024 = vmul.f32 %v4934, 1.442695
        %v5025 = vpow.pop %v5024
        %v5026 = vmul.f32 %v4935, 1.442695
        %v5027 = vpow.pop %v5026
        %v5028 = vmul.f32 %v4936, 1.442695
        %v5029 = vpow.pop %v5028
        %v5030 = vmul.f32 %v4937, 1.442695
        %v5031 = vpow.pop %v5030
        %v5032 = vmul.f32 %v4938, 1.442695
        %v5033 = vpow.pop %v5032
        %v5034 = vmul.f32 %v4939, 1.442695
        %v5035 = vpow.pop %v5034
        %v5036 = vmul.f32 %v4940, 1.442695
        %v5037 = vpow.pop %v5036
        %v5038 = vmul.f32 %v4941, 1.442695
        %v5039 = vpow.pop %v5038
        %v5040 = vmul.f32 %v4942, 1.442695
        %v5041 = vpow.pop %v5040
        %v5042 = vmul.f32 %v4943, 1.442695
        %v5043 = vpow.pop %v5042
        %v5044 = vmul.f32 %v4944, 1.442695
        %v5045 = vpow.pop %v5044
        %v5046 = vmul.f32 %v4945, 1.442695
        %v5047 = vpow.pop %v5046
        %v5048 = vmul.f32 %v4946, 1.442695
        %v5049 = vpow.pop %v5048
        %v5050 = vmul.f32 %v4947, 1.442695
        %v5051 = vpow.pop %v5050
        %v5052 = vmul.f32 %v4948, 1.442695
        %v5053 = vpow.pop %v5052
        %v5054 = vmul.f32 %v4949, 1.442695
        %v5055 = vpow.pop %v5054
        %v5056 = vmul.f32 %v4950, 1.442695
        %v5057 = vpow.pop %v5056
        %v5058 = vmul.f32 %v4951, 1.442695
        %v5059 = vpow.pop %v5058
        %v5060 = vmul.f32 %v4952, 1.442695
        %v5061 = vpow.pop %v5060
        %v5062 = vmul.f32 %v4953, 1.442695
        %v5063 = vpow.pop %v5062
        %v5064 = vmul.f32 %v4954, 1.442695
        %v5065 = vpow.pop %v5064
        %v5066 = vmul.f32 %v4955, 1.442695
        %v5067 = vpow.pop %v5066
        %v5068 = vmul.f32 %v4956, 1.442695
        %v5069 = vpow.pop %v5068
        %v5070 = vmul.f32 %v4957, 1.442695
        %v5071 = vpow.pop %v5070
        %v5072 = vmul.f32 %v4958, 1.442695
        %v5073 = vpow.pop %v5072
        %v5074 = vmul.f32 %v4959, 1.442695
        %v5075 = vpow.pop %v5074
        %v5076 = vmul.f32 %v4960, 1.442695
        %v5077 = vpow.pop %v5076
        %v5078 = vmul.f32 %v4961, 1.442695
        %v5079 = vpow.pop %v5078
        %v5080 = vmul.f32 %v4962, 1.442695
        %v5081 = vpow.pop %v5080
        %v5082 = vmul.f32 %v4963, 1.442695
        %v5083 = vpow.pop %v5082
        %v5084 = vmul.f32 %v4964, 1.442695
        %v5085 = vpow.pop %v5084
        %v5086 = vmul.f32 %v4965, 1.442695
        %v5087 = vpow.pop %v5086
        %v5088 = vmul.f32 %v4966, 1.442695
        %v5089 = vpow.pop %v5088
        %v5090 = vmul.f32 %v4967, 1.442695
        %v5091 = vpow.pop %v5090
        %v5092 = vmul.f32 %v4968, 1.442695
        %v5093 = vpow.pop %v5092
        %v5094 = vmul.f32 %v4969, 1.442695
        %v5095 = vpow.pop %v5094
        %v5096 = vmul.f32 %v4970, 1.442695
        %v5097 = vpow.pop %v5096
        %v5098 = vmul.f32 %v4971, 1.442695
        %v5099 = vpow.pop %v5098
        %v5100 = vmul.f32 %v4972, 1.442695
        %v5101 = vpow.pop %v5100
        %v5102 = vmul.f32 %v4973, 1.442695
        %v5103 = vpow.pop %v5102
        %v5104 = vmul.f32 %v4974, 1.442695
        %v5105 = vpow.pop %v5104
        %v5106 = vmul.f32 %v4975, 1.442695
        %v5107 = vpow.pop %v5106
        %v5108 = vmul.f32 %v4976, 1.442695
        %v5109 = vpow.pop %v5108
        %v5110 = vmul.f32 %v4977, 1.442695
        %v5111 = vpow.pop %v5110
        %v5112 = vmul.f32 %v4978, 1.442695
        %v5113 = vpow.pop %v5112
        %v5114 = vmul.f32 %v4979, 1.442695
        %v5115 = vpow.pop %v5114
        %v5116 = vmul.f32 %v4980, 1.442695
        %v5117 = vpow.pop %v5116
        %v5118 = vmul.f32 %v4981, 1.442695
        %v5119 = vpow.pop %v5118
        %v5120 = vmul.f32 %v4982, 1.442695
        %v5121 = vpow.pop %v5120
        %v5122 = vmul.f32 %v4983, 1.442695
        %v5123 = vpow.pop %v5122
        %v5124 = vmul.f32 %v4984, 1.442695
        %v5125 = vpow.pop %v5124
        %v5126 = vmul.f32 %v4985, 1.442695
        %v5127 = vpow.pop %v5126
        %v5128 = vmul.f32 %v4986, 1.442695
        %v5129 = vpow.pop %v5128
        %v5130 = vmul.f32 %v4987, 1.442695
        %v5131 = vpow.pop %v5130
        %v5132 = vmul.f32 %v4988, 1.442695
        %v5133 = vpow.pop %v5132
        %v5134 = vmul.f32 %v4989, 1.442695
        %v5135 = vpow.pop %v5134
        %v5136 = vmul.f32 %v4990, 1.442695
        %v5137 = vpow.pop %v5136
        %v5138 = vmul.f32 %v4991, 1.442695
        %v5139 = vpow.pop %v5138
        %v5140 = vmul.f32 %v4992, 1.442695
        %v5141 = vpow.pop %v5140
        %v5142 = vmul.f32 %v4993, 1.442695
        %v5143 = vpow.pop %v5142
        %v5144 = vmul.f32 %v4994, 1.442695
        %v5145 = vpow.pop %v5144
        %v5146 = vmul.f32 %v4995, 1.442695
        %v5147 = vpow.pop %v5146
        %v5148 = vmul.f32 %v4996, 1.442695
        %v5149 = vpow.pop %v5148
        %v5150 = vmul.f32 %v4997, 1.442695
        %v5151 = vpow.pop %v5150
        %v5152 = vmul.f32 %v4998, 1.442695
        %v5153 = vpow.pop %v5152
        %v5154 = vmul.f32 %v4999, 1.442695
        %v5155 = vpow.pop %v5154
        %v5156 = vmul.f32 %v5000, 1.442695
        %v5157 = vpow.pop %v5156
        %v5158 = vmul.f32 %v5001, 1.442695
        %v5159 = vpow.pop %v5158
        %v5160 = vmul.f32 %v5002, 1.442695
        %v5161 = vpow.pop %v5160
        %v5162 = vmul.f32 %v5003, 1.442695
        %v5163 = vpow.pop %v5162
        %v5164 = vmul.f32 %v5004, 1.442695
        %v5165 = vpow.pop %v5164
        %v5166 = vmul.f32 %v5005, 1.442695
        %v5167 = vpow.pop %v5166
        %v5168 = vmul.f32 %v5006, 1.442695
        %v5169 = vpow.pop %v5168
        %v5170 = vmul.f32 %v5007, 1.442695
        %v5171 = vpow.pop %v5170
        %v5172 = vmul.f32 %v5008, 1.442695
        %v5173 = vpow.pop %v5172
        %v5174 = vmul.f32 %v5009, 1.442695
        %v5175 = vpow.pop %v5174
        %v5176 = vmul.f32 %v5010, 1.442695
        %v5177 = vpow.pop %v5176
        %v5178 = vmul.f32 %v5011, 1.442695
        %v5179 = vpow.pop %v5178
        %v5180 = vmul.f32 %v5012, 1.442695
        %v5181 = vpow.pop %v5180
        %v5182 = vmul.f32 %v5013, 1.442695
        %v5183 = vpow.pop %v5182
        %v5184 = vmul.f32 %v5014, 1.442695
        %v5185 = vpow.pop %v5184
        %v5186 = vmul.f32 %v5015, 1.442695
        %v5187 = vpow.pop %v5186
        %v5188 = vmul.f32 %v5016, 1.442695
        %v5189 = vpow.pop %v5188
        %v5190 = vmul.f32 %v5017, 1.442695
        %v5191 = vpow.pop %v5190
        %v5192 = vmul.f32 %v5018, 1.442695
        %v5193 = vpow.pop %v5192
        %v5194 = vmul.f32 %v5019, 1.442695
        %v5195 = vpow.pop %v5194
        %v5196 = vadd.f32 %v5021, 1.0
        %v5197 = vadd.f32 %v5023, 1.0
        %v5198 = vadd.f32 %v5025, 1.0
        %v5199 = vadd.f32 %v5027, 1.0
        %v5200 = vadd.f32 %v5029, 1.0
        %v5201 = vadd.f32 %v5031, 1.0
        %v5202 = vadd.f32 %v5033, 1.0
        %v5203 = vadd.f32 %v5035, 1.0
        %v5204 = vadd.f32 %v5037, 1.0
        %v5205 = vadd.f32 %v5039, 1.0
        %v5206 = vadd.f32 %v5041, 1.0
        %v5207 = vadd.f32 %v5043, 1.0
        %v5208 = vadd.f32 %v5045, 1.0
        %v5209 = vadd.f32 %v5047, 1.0
        %v5210 = vadd.f32 %v5049, 1.0
        %v5211 = vadd.f32 %v5051, 1.0
        %v5212 = vadd.f32 %v5053, 1.0
        %v5213 = vadd.f32 %v5055, 1.0
        %v5214 = vadd.f32 %v5057, 1.0
        %v5215 = vadd.f32 %v5059, 1.0
        %v5216 = vadd.f32 %v5061, 1.0
        %v5217 = vadd.f32 %v5063, 1.0
        %v5218 = vadd.f32 %v5065, 1.0
        %v5219 = vadd.f32 %v5067, 1.0
        %v5220 = vadd.f32 %v5069, 1.0
        %v5221 = vadd.f32 %v5071, 1.0
        %v5222 = vadd.f32 %v5073, 1.0
        %v5223 = vadd.f32 %v5075, 1.0
        %v5224 = vadd.f32 %v5077, 1.0
        %v5225 = vadd.f32 %v5079, 1.0
        %v5226 = vadd.f32 %v5081, 1.0
        %v5227 = vadd.f32 %v5083, 1.0
        %v5228 = vadd.f32 %v5085, 1.0
        %v5229 = vadd.f32 %v5087, 1.0
        %v5230 = vadd.f32 %v5089, 1.0
        %v5231 = vadd.f32 %v5091, 1.0
        %v5232 = vadd.f32 %v5093, 1.0
        %v5233 = vadd.f32 %v5095, 1.0
        %v5234 = vadd.f32 %v5097, 1.0
        %v5235 = vadd.f32 %v5099, 1.0
        %v5236 = vadd.f32 %v5101, 1.0
        %v5237 = vadd.f32 %v5103, 1.0
        %v5238 = vadd.f32 %v5105, 1.0
        %v5239 = vadd.f32 %v5107, 1.0
        %v5240 = vadd.f32 %v5109, 1.0
        %v5241 = vadd.f32 %v5111, 1.0
        %v5242 = vadd.f32 %v5113, 1.0
        %v5243 = vadd.f32 %v5115, 1.0
        %v5244 = vadd.f32 %v5117, 1.0
        %v5245 = vadd.f32 %v5119, 1.0
        %v5246 = vadd.f32 %v5121, 1.0
        %v5247 = vadd.f32 %v5123, 1.0
        %v5248 = vadd.f32 %v5125, 1.0
        %v5249 = vadd.f32 %v5127, 1.0
        %v5250 = vadd.f32 %v5129, 1.0
        %v5251 = vadd.f32 %v5131, 1.0
        %v5252 = vadd.f32 %v5133, 1.0
        %v5253 = vadd.f32 %v5135, 1.0
        %v5254 = vadd.f32 %v5137, 1.0
        %v5255 = vadd.f32 %v5139, 1.0
        %v5256 = vadd.f32 %v5141, 1.0
        %v5257 = vadd.f32 %v5143, 1.0
        %v5258 = vadd.f32 %v5145, 1.0
        %v5259 = vadd.f32 %v5147, 1.0
        %v5260 = vadd.f32 %v5149, 1.0
        %v5261 = vadd.f32 %v5151, 1.0
        %v5262 = vadd.f32 %v5153, 1.0
        %v5263 = vadd.f32 %v5155, 1.0
        %v5264 = vadd.f32 %v5157, 1.0
        %v5265 = vadd.f32 %v5159, 1.0
        %v5266 = vadd.f32 %v5161, 1.0
        %v5267 = vadd.f32 %v5163, 1.0
        %v5268 = vadd.f32 %v5165, 1.0
        %v5269 = vadd.f32 %v5167, 1.0
        %v5270 = vadd.f32 %v5169, 1.0
        %v5271 = vadd.f32 %v5171, 1.0
        %v5272 = vadd.f32 %v5173, 1.0
        %v5273 = vadd.f32 %v5175, 1.0
        %v5274 = vadd.f32 %v5177, 1.0
        %v5275 = vadd.f32 %v5179, 1.0
        %v5276 = vadd.f32 %v5181, 1.0
        %v5277 = vadd.f32 %v5183, 1.0
        %v5278 = vadd.f32 %v5185, 1.0
        %v5279 = vadd.f32 %v5187, 1.0
        %v5280 = vadd.f32 %v5189, 1.0
        %v5281 = vadd.f32 %v5191, 1.0
        %v5282 = vadd.f32 %v5193, 1.0
        %v5283 = vadd.f32 %v5195, 1.0
        %v5284 = vrcp.pop %v5196
        %v5285 = vmul.f32 1.0, %v5284
        %v5286 = vrcp.pop %v5197
        %v5287 = vmul.f32 1.0, %v5286
        %v5288 = vrcp.pop %v5198
        %v5289 = vmul.f32 1.0, %v5288
        %v5290 = vrcp.pop %v5199
        %v5291 = vmul.f32 1.0, %v5290
        %v5292 = vrcp.pop %v5200
        %v5293 = vmul.f32 1.0, %v5292
        %v5294 = vrcp.pop %v5201
        %v5295 = vmul.f32 1.0, %v5294
        %v5296 = vrcp.pop %v5202
        %v5297 = vmul.f32 1.0, %v5296
        %v5298 = vrcp.pop %v5203
        %v5299 = vmul.f32 1.0, %v5298
        %v5300 = vrcp.pop %v5204
        %v5301 = vmul.f32 1.0, %v5300
        %v5302 = vrcp.pop %v5205
        %v5303 = vmul.f32 1.0, %v5302
        %v5304 = vrcp.pop %v5206
        %v5305 = vmul.f32 1.0, %v5304
        %v5306 = vrcp.pop %v5207
        %v5307 = vmul.f32 1.0, %v5306
        %v5308 = vrcp.pop %v5208
        %v5309 = vmul.f32 1.0, %v5308
        %v5310 = vrcp.pop %v5209
        %v5311 = vmul.f32 1.0, %v5310
        %v5312 = vrcp.pop %v5210
        %v5313 = vmul.f32 1.0, %v5312
        %v5314 = vrcp.pop %v5211
        %v5315 = vmul.f32 1.0, %v5314
        %v5316 = vrcp.pop %v5212
        %v5317 = vmul.f32 1.0, %v5316
        %v5318 = vrcp.pop %v5213
        %v5319 = vmul.f32 1.0, %v5318
        %v5320 = vrcp.pop %v5214
        %v5321 = vmul.f32 1.0, %v5320
        %v5322 = vrcp.pop %v5215
        %v5323 = vmul.f32 1.0, %v5322
        %v5324 = vrcp.pop %v5216
        %v5325 = vmul.f32 1.0, %v5324
        %v5326 = vrcp.pop %v5217
        %v5327 = vmul.f32 1.0, %v5326
        %v5328 = vrcp.pop %v5218
        %v5329 = vmul.f32 1.0, %v5328
        %v5330 = vrcp.pop %v5219
        %v5331 = vmul.f32 1.0, %v5330
        %v5332 = vrcp.pop %v5220
        %v5333 = vmul.f32 1.0, %v5332
        %v5334 = vrcp.pop %v5221
        %v5335 = vmul.f32 1.0, %v5334
        %v5336 = vrcp.pop %v5222
        %v5337 = vmul.f32 1.0, %v5336
        %v5338 = vrcp.pop %v5223
        %v5339 = vmul.f32 1.0, %v5338
        %v5340 = vrcp.pop %v5224
        %v5341 = vmul.f32 1.0, %v5340
        %v5342 = vrcp.pop %v5225
        %v5343 = vmul.f32 1.0, %v5342
        %v5344 = vrcp.pop %v5226
        %v5345 = vmul.f32 1.0, %v5344
        %v5346 = vrcp.pop %v5227
        %v5347 = vmul.f32 1.0, %v5346
        %v5348 = vrcp.pop %v5228
        %v5349 = vmul.f32 1.0, %v5348
        %v5350 = vrcp.pop %v5229
        %v5351 = vmul.f32 1.0, %v5350
        %v5352 = vrcp.pop %v5230
        %v5353 = vmul.f32 1.0, %v5352
        %v5354 = vrcp.pop %v5231
        %v5355 = vmul.f32 1.0, %v5354
        %v5356 = vrcp.pop %v5232
        %v5357 = vmul.f32 1.0, %v5356
        %v5358 = vrcp.pop %v5233
        %v5359 = vmul.f32 1.0, %v5358
        %v5360 = vrcp.pop %v5234
        %v5361 = vmul.f32 1.0, %v5360
        %v5362 = vrcp.pop %v5235
        %v5363 = vmul.f32 1.0, %v5362
        %v5364 = vrcp.pop %v5236
        %v5365 = vmul.f32 1.0, %v5364
        %v5366 = vrcp.pop %v5237
        %v5367 = vmul.f32 1.0, %v5366
        %v5368 = vrcp.pop %v5238
        %v5369 = vmul.f32 1.0, %v5368
        %v5370 = vrcp.pop %v5239
        %v5371 = vmul.f32 1.0, %v5370
        %v5372 = vrcp.pop %v5240
        %v5373 = vmul.f32 1.0, %v5372
        %v5374 = vrcp.pop %v5241
        %v5375 = vmul.f32 1.0, %v5374
        %v5376 = vrcp.pop %v5242
        %v5377 = vmul.f32 1.0, %v5376
        %v5378 = vrcp.pop %v5243
        %v5379 = vmul.f32 1.0, %v5378
        %v5380 = vrcp.pop %v5244
        %v5381 = vmul.f32 1.0, %v5380
        %v5382 = vrcp.pop %v5245
        %v5383 = vmul.f32 1.0, %v5382
        %v5384 = vrcp.pop %v5246
        %v5385 = vmul.f32 1.0, %v5384
        %v5386 = vrcp.pop %v5247
        %v5387 = vmul.f32 1.0, %v5386
        %v5388 = vrcp.pop %v5248
        %v5389 = vmul.f32 1.0, %v5388
        %v5390 = vrcp.pop %v5249
        %v5391 = vmul.f32 1.0, %v5390
        %v5392 = vrcp.pop %v5250
        %v5393 = vmul.f32 1.0, %v5392
        %v5394 = vrcp.pop %v5251
        %v5395 = vmul.f32 1.0, %v5394
        %v5396 = vrcp.pop %v5252
        %v5397 = vmul.f32 1.0, %v5396
        %v5398 = vrcp.pop %v5253
        %v5399 = vmul.f32 1.0, %v5398
        %v5400 = vrcp.pop %v5254
        %v5401 = vmul.f32 1.0, %v5400
        %v5402 = vrcp.pop %v5255
        %v5403 = vmul.f32 1.0, %v5402
        %v5404 = vrcp.pop %v5256
        %v5405 = vmul.f32 1.0, %v5404
        %v5406 = vrcp.pop %v5257
        %v5407 = vmul.f32 1.0, %v5406
        %v5408 = vrcp.pop %v5258
        %v5409 = vmul.f32 1.0, %v5408
        %v5410 = vrcp.pop %v5259
        %v5411 = vmul.f32 1.0, %v5410
        %v5412 = vrcp.pop %v5260
        %v5413 = vmul.f32 1.0, %v5412
        %v5414 = vrcp.pop %v5261
        %v5415 = vmul.f32 1.0, %v5414
        %v5416 = vrcp.pop %v5262
        %v5417 = vmul.f32 1.0, %v5416
        %v5418 = vrcp.pop %v5263
        %v5419 = vmul.f32 1.0, %v5418
        %v5420 = vrcp.pop %v5264
        %v5421 = vmul.f32 1.0, %v5420
        %v5422 = vrcp.pop %v5265
        %v5423 = vmul.f32 1.0, %v5422
        %v5424 = vrcp.pop %v5266
        %v5425 = vmul.f32 1.0, %v5424
        %v5426 = vrcp.pop %v5267
        %v5427 = vmul.f32 1.0, %v5426
        %v5428 = vrcp.pop %v5268
        %v5429 = vmul.f32 1.0, %v5428
        %v5430 = vrcp.pop %v5269
        %v5431 = vmul.f32 1.0, %v5430
        %v5432 = vrcp.pop %v5270
        %v5433 = vmul.f32 1.0, %v5432
        %v5434 = vrcp.pop %v5271
        %v5435 = vmul.f32 1.0, %v5434
        %v5436 = vrcp.pop %v5272
        %v5437 = vmul.f32 1.0, %v5436
        %v5438 = vrcp.pop %v5273
        %v5439 = vmul.f32 1.0, %v5438
        %v5440 = vrcp.pop %v5274
        %v5441 = vmul.f32 1.0, %v5440
        %v5442 = vrcp.pop %v5275
        %v5443 = vmul.f32 1.0, %v5442
        %v5444 = vrcp.pop %v5276
        %v5445 = vmul.f32 1.0, %v5444
        %v5446 = vrcp.pop %v5277
        %v5447 = vmul.f32 1.0, %v5446
        %v5448 = vrcp.pop %v5278
        %v5449 = vmul.f32 1.0, %v5448
        %v5450 = vrcp.pop %v5279
        %v5451 = vmul.f32 1.0, %v5450
        %v5452 = vrcp.pop %v5280
        %v5453 = vmul.f32 1.0, %v5452
        %v5454 = vrcp.pop %v5281
        %v5455 = vmul.f32 1.0, %v5454
        %v5456 = vrcp.pop %v5282
        %v5457 = vmul.f32 1.0, %v5456
        %v5458 = vrcp.pop %v5283
        %v5459 = vmul.f32 1.0, %v5458
        %v5460 = vmul.f32 %v4844, %v5285
        %v5461 = vmul.f32 %v4845, %v5287
        %v5462 = vmul.f32 %v4846, %v5289
        %v5463 = vmul.f32 %v4847, %v5291
        %v5464 = vmul.f32 %v4848, %v5293
        %v5465 = vmul.f32 %v4849, %v5295
        %v5466 = vmul.f32 %v4850, %v5297
        %v5467 = vmul.f32 %v4851, %v5299
        %v5468 = vmul.f32 %v4852, %v5301
        %v5469 = vmul.f32 %v4853, %v5303
        %v5470 = vmul.f32 %v4854, %v5305
        %v5471 = vmul.f32 %v4855, %v5307
        %v5472 = vmul.f32 %v4856, %v5309
        %v5473 = vmul.f32 %v4857, %v5311
        %v5474 = vmul.f32 %v4858, %v5313
        %v5475 = vmul.f32 %v4859, %v5315
        %v5476 = vmul.f32 %v4860, %v5317
        %v5477 = vmul.f32 %v4861, %v5319
        %v5478 = vmul.f32 %v4862, %v5321
        %v5479 = vmul.f32 %v4863, %v5323
        %v5480 = vmul.f32 %v4864, %v5325
        %v5481 = vmul.f32 %v4865, %v5327
        %v5482 = vmul.f32 %v4866, %v5329
        %v5483 = vmul.f32 %v4867, %v5331
        %v5484 = vmul.f32 %v4868, %v5333
        %v5485 = vmul.f32 %v4869, %v5335
        %v5486 = vmul.f32 %v4870, %v5337
        %v5487 = vmul.f32 %v4871, %v5339
        %v5488 = vmul.f32 %v4872, %v5341
        %v5489 = vmul.f32 %v4873, %v5343
        %v5490 = vmul.f32 %v4874, %v5345
        %v5491 = vmul.f32 %v4875, %v5347
        %v5492 = vmul.f32 %v4876, %v5349
        %v5493 = vmul.f32 %v4877, %v5351
        %v5494 = vmul.f32 %v4878, %v5353
        %v5495 = vmul.f32 %v4879, %v5355
        %v5496 = vmul.f32 %v4880, %v5357
        %v5497 = vmul.f32 %v4881, %v5359
        %v5498 = vmul.f32 %v4882, %v5361
        %v5499 = vmul.f32 %v4883, %v5363
        %v5500 = vmul.f32 %v4884, %v5365
        %v5501 = vmul.f32 %v4885, %v5367
        %v5502 = vmul.f32 %v4886, %v5369
        %v5503 = vmul.f32 %v4887, %v5371
        %v5504 = vmul.f32 %v4888, %v5373
        %v5505 = vmul.f32 %v4889, %v5375
        %v5506 = vmul.f32 %v4890, %v5377
        %v5507 = vmul.f32 %v4891, %v5379
        %v5508 = vmul.f32 %v4892, %v5381
        %v5509 = vmul.f32 %v4893, %v5383
        %v5510 = vmul.f32 %v4894, %v5385
        %v5511 = vmul.f32 %v4895, %v5387
        %v5512 = vmul.f32 %v4896, %v5389
        %v5513 = vmul.f32 %v4897, %v5391
        %v5514 = vmul.f32 %v4898, %v5393
        %v5515 = vmul.f32 %v4899, %v5395
        %v5516 = vmul.f32 %v4900, %v5397
        %v5517 = vmul.f32 %v4901, %v5399
        %v5518 = vmul.f32 %v4902, %v5401
        %v5519 = vmul.f32 %v4903, %v5403
        %v5520 = vmul.f32 %v4904, %v5405
        %v5521 = vmul.f32 %v4905, %v5407
        %v5522 = vmul.f32 %v4906, %v5409
        %v5523 = vmul.f32 %v4907, %v5411
        %v5524 = vmul.f32 %v4908, %v5413
        %v5525 = vmul.f32 %v4909, %v5415
        %v5526 = vmul.f32 %v4910, %v5417
        %v5527 = vmul.f32 %v4911, %v5419
        %v5528 = vmul.f32 %v4912, %v5421
        %v5529 = vmul.f32 %v4913, %v5423
        %v5530 = vmul.f32 %v4914, %v5425
        %v5531 = vmul.f32 %v4915, %v5427
        %v5532 = vmul.f32 %v4916, %v5429
        %v5533 = vmul.f32 %v4917, %v5431
        %v5534 = vmul.f32 %v4918, %v5433
        %v5535 = vmul.f32 %v4919, %v5435
        %v5536 = vmul.f32 %v4920, %v5437
        %v5537 = vmul.f32 %v4921, %v5439
        %v5538 = vmul.f32 %v4922, %v5441
        %v5539 = vmul.f32 %v4923, %v5443
        %v5540 = vmul.f32 %v4924, %v5445
        %v5541 = vmul.f32 %v4925, %v5447
        %v5542 = vmul.f32 %v4926, %v5449
        %v5543 = vmul.f32 %v4927, %v5451
        %v5544 = vmul.f32 %v4928, %v5453
        %v5545 = vmul.f32 %v4929, %v5455
        %v5546 = vmul.f32 %v4930, %v5457
        %v5547 = vmul.f32 %v4931, %v5459
        %v5548 = vld [vmem:[%s756] sm:$0xf]
        %v5549 = vld [vmem:[%s756 + $0x4] sm:$0xf]
        %v5550 = vld [vmem:[%s756 + $0x8] sm:$0xf]
        %v5551 = vld [vmem:[%s756 + $0xc] sm:$0xf]
        %v5552 = vld [vmem:[%s756 + $0x10] sm:$0xf]
        %v5553 = vld [vmem:[%s756 + $0x14] sm:$0xf]
        %v5554 = vld [vmem:[%s756 + $0x18] sm:$0xf]
        %v5555 = vld [vmem:[%s756 + $0x1c] sm:$0xf]
        %v5556 = vld [vmem:[%s756 + $0x20] sm:$0xf]
        %v5557 = vld [vmem:[%s756 + $0x24] sm:$0xf]
        %v5558 = vld [vmem:[%s756 + $0x28] sm:$0xf]
        %v5559 = vld [vmem:[%s756 + $0x2c] sm:$0xf]
        %v5560 = vld [vmem:[%s756 + $0x30] sm:$0xf]
        %v5561 = vld [vmem:[%s756 + $0x34] sm:$0xf]
        %v5562 = vld [vmem:[%s756 + $0x38] sm:$0xf]
        %v5563 = vld [vmem:[%s756 + $0x3c] sm:$0xf]
        %v5564 = vpack.c.bf16 %v5461, %v5460
        %v5565 = vpack.c.bf16 %v5463, %v5462
        %v5566 = vpack.c.bf16 %v5465, %v5464
        %v5567 = vpack.c.bf16 %v5467, %v5466
        %v5568 = vpack.c.bf16 %v5469, %v5468
        %v5569 = vpack.c.bf16 %v5471, %v5470
        %v5570 = vpack.c.bf16 %v5473, %v5472
        %v5571 = vpack.c.bf16 %v5475, %v5474
        %v5572 = vpack.c.bf16 %v5477, %v5476
        %v5573 = vpack.c.bf16 %v5479, %v5478
        %v5574 = vpack.c.bf16 %v5481, %v5480
        %v5575 = vpack.c.bf16 %v5483, %v5482
        %v5576 = vpack.c.bf16 %v5485, %v5484
        %v5577 = vpack.c.bf16 %v5487, %v5486
        %v5578 = vpack.c.bf16 %v5489, %v5488
        %v5579 = vpack.c.bf16 %v5491, %v5490
        %v5580 = vpack.c.bf16 %v5493, %v5492
        %v5581 = vpack.c.bf16 %v5495, %v5494
        %v5582 = vpack.c.bf16 %v5497, %v5496
        %v5583 = vpack.c.bf16 %v5499, %v5498
        %v5584 = vpack.c.bf16 %v5501, %v5500
        %v5585 = vpack.c.bf16 %v5503, %v5502
        %v5586 = vpack.c.bf16 %v5505, %v5504
        %v5587 = vpack.c.bf16 %v5507, %v5506
        %v5588 = vpack.c.bf16 %v5509, %v5508
        %v5589 = vpack.c.bf16 %v5511, %v5510
        %v5590 = vpack.c.bf16 %v5513, %v5512
        %v5591 = vpack.c.bf16 %v5515, %v5514
        %v5592 = vpack.c.bf16 %v5517, %v5516
        %v5593 = vpack.c.bf16 %v5519, %v5518
        %v5594 = vpack.c.bf16 %v5521, %v5520
        %v5595 = vpack.c.bf16 %v5523, %v5522
        %v5596 = vpack.c.bf16 %v5525, %v5524
        %v5597 = vpack.c.bf16 %v5527, %v5526
        %v5598 = vpack.c.bf16 %v5529, %v5528
        %v5599 = vpack.c.bf16 %v5531, %v5530
        %v5600 = vpack.c.bf16 %v5533, %v5532
        %v5601 = vpack.c.bf16 %v5535, %v5534
        %v5602 = vpack.c.bf16 %v5537, %v5536
        %v5603 = vpack.c.bf16 %v5539, %v5538
        %v5604 = vpack.c.bf16 %v5541, %v5540
        %v5605 = vpack.c.bf16 %v5543, %v5542
        %v5606 = vpack.c.bf16 %v5545, %v5544
        %v5607 = vpack.c.bf16 %v5547, %v5546
        %v5608 = vld [vmem:[%s894] sm:$0x1]
        %v5610 = vlaneseq
        %v5611 = vshrl.u32 %v5610, 7
        %v5612 = vsub.s32 0, %v5611
        %v5613 = vrot.slane %v5608, %v5612
        %v5631 = vunpack.c.l.b16 %v5548
        %v5632 = vunpack.c.l.b16 %v5549
        %v5633 = vunpack.c.l.b16 %v5550
        %v5634 = vunpack.c.l.b16 %v5551
        %v5635 = vunpack.c.l.b16 %v5552
        %v5636 = vunpack.c.l.b16 %v5553
        %v5637 = vunpack.c.l.b16 %v5554
        %v5638 = vunpack.c.l.b16 %v5555
        %v5639 = vunpack.c.l.b16 %v5556
        %v5640 = vunpack.c.l.b16 %v5557
        %v5641 = vunpack.c.l.b16 %v5558
        %v5642 = vunpack.c.l.b16 %v5559
        %v5643 = vunpack.c.l.b16 %v5560
        %v5644 = vunpack.c.l.b16 %v5561
        %v5645 = vunpack.c.l.b16 %v5562
        %v5646 = vunpack.c.l.b16 %v5563
        %v5647 = vpack.c.b16 %v5632, %v5631
        %v5648 = vpack.c.b16 %v5634, %v5633
        %v5649 = vpack.c.b16 %v5636, %v5635
        %v5650 = vpack.c.b16 %v5638, %v5637
        %v5651 = vpack.c.b16 %v5640, %v5639
        %v5652 = vpack.c.b16 %v5642, %v5641
        %v5653 = vpack.c.b16 %v5644, %v5643
        %v5654 = vpack.c.b16 %v5646, %v5645
        %5663 = vmatprep.subr.bf16.mxu0 0
        %5664 = vmatpush1.bf16.msra.mxu0 %v5654
        %5665 = vmatprep.subr.bf16.mxu0 0
        %5666 = vmatpush1.bf16.msra.mxu0 %v5653
        %5667 = vmatprep.subr.bf16.mxu0 0
        %5668 = vmatpush1.bf16.msra.mxu0 %v5652
        %5669 = vmatprep.subr.bf16.mxu0 0
        %5670 = vmatpush1.bf16.msra.mxu0 %v5651
        %5671 = vmatprep.subr.bf16.mxu0 0
        %5672 = vmatpush1.bf16.msra.mxu0 %v5650
        %5673 = vmatprep.subr.bf16.mxu0 0
        %5674 = vmatpush1.bf16.msra.mxu0 %v5649
        %5675 = vmatprep.subr.bf16.mxu0 0
        %5676 = vmatpush1.bf16.msra.mxu0 %v5648
        %5677 = vmatprep.subr.bf16.mxu0 0
        %5678 = vmatpush1.bf16.msra.mxu0 %v5647
        %5679 = vmatprep.subr.bf16.mxu0 0
        %5680 = vmatpush2.bf16.msra.mxu0 0
        %5681 = vmatprep.subr.bf16.mxu0 0
        %5682 = vmatpush2.bf16.msra.mxu0 0
        %5683 = vmatprep.subr.bf16.mxu0 0
        %5684 = vmatpush2.bf16.msra.mxu0 0
        %5685 = vmatprep.subr.bf16.mxu0 0
        %5686 = vmatpush2.bf16.msra.mxu0 0
        %5687 = vmatprep.subr.bf16.mxu0 0
        %5688 = vmatpush2.bf16.msra.mxu0 0
        %5689 = vmatprep.subr.bf16.mxu0 0
        %5690 = vmatpush2.bf16.msra.mxu0 0
        %5691 = vmatprep.subr.bf16.mxu0 0
        %5692 = vmatpush2.bf16.msra.mxu0 0
        %5693 = vmatprep.subr.bf16.mxu0 0
        %5694 = vmatpush2.bf16.msra.mxu0 0
        %5695 = vmatprep.mubr.bf16.mxu0 0
        %5696 = vmatmul.mubr.bf16.gmra.mxu0 %v5564
        %v5697 = vpop.f32.mrf.mxu0
        %v5698 = vadd.f32 %v5613, %v5697
        %v5699 = vpop.f32.mrf.mxu0
        %v5700 = vpop.f32.mrf.mxu0
        %v5701 = vadd.f32 %v5613, %v5700
        %v5702 = vpop.f32.mrf.mxu0
        %5703 = vmatprep.mubr.bf16.mxu0 0
        %5704 = vmatmul.mubr.bf16.gmra.mxu0 %v5565
        %v5705 = vpop.f32.mrf.mxu0
        %v5706 = vadd.f32 %v5613, %v5705
        %v5707 = vpop.f32.mrf.mxu0
        %v5708 = vpop.f32.mrf.mxu0
        %v5709 = vadd.f32 %v5613, %v5708
        %v5710 = vpop.f32.mrf.mxu0
        %5711 = vmatprep.mubr.bf16.mxu0 0
        %5712 = vmatmul.mubr.bf16.gmra.mxu0 %v5566
        %v5713 = vpop.f32.mrf.mxu0
        %v5714 = vadd.f32 %v5613, %v5713
        %v5715 = vpop.f32.mrf.mxu0
        %v5716 = vpop.f32.mrf.mxu0
        %v5717 = vadd.f32 %v5613, %v5716
        %v5718 = vpop.f32.mrf.mxu0
        %5719 = vmatprep.mubr.bf16.mxu0 0
        %5720 = vmatmul.mubr.bf16.gmra.mxu0 %v5567
        %v5721 = vpop.f32.mrf.mxu0
        %v5722 = vadd.f32 %v5613, %v5721
        %v5723 = vpop.f32.mrf.mxu0
        %v5724 = vpop.f32.mrf.mxu0
        %v5725 = vadd.f32 %v5613, %v5724
        %v5726 = vpop.f32.mrf.mxu0
        %5727 = vmatprep.mubr.bf16.mxu0 0
        %5728 = vmatmul.mubr.bf16.gmra.mxu0 %v5568
        %v5729 = vpop.f32.mrf.mxu0
        %v5730 = vadd.f32 %v5613, %v5729
        %v5731 = vpop.f32.mrf.mxu0
        %v5732 = vpop.f32.mrf.mxu0
        %v5733 = vadd.f32 %v5613, %v5732
        %v5734 = vpop.f32.mrf.mxu0
        %5735 = vmatprep.mubr.bf16.mxu0 0
        %5736 = vmatmul.mubr.bf16.gmra.mxu0 %v5569
        %v5737 = vpop.f32.mrf.mxu0
        %v5738 = vadd.f32 %v5613, %v5737
        %v5739 = vpop.f32.mrf.mxu0
        %v5740 = vpop.f32.mrf.mxu0
        %v5741 = vadd.f32 %v5613, %v5740
        %v5742 = vpop.f32.mrf.mxu0
        %5743 = vmatprep.mubr.bf16.mxu0 0
        %5744 = vmatmul.mubr.bf16.gmra.mxu0 %v5570
        %v5745 = vpop.f32.mrf.mxu0
        %v5746 = vadd.f32 %v5613, %v5745
        %v5747 = vpop.f32.mrf.mxu0
        %v5748 = vpop.f32.mrf.mxu0
        %v5749 = vadd.f32 %v5613, %v5748
        %v5750 = vpop.f32.mrf.mxu0
        %5751 = vmatprep.mubr.bf16.mxu0 0
        %5752 = vmatmul.mubr.bf16.gmra.mxu0 %v5571
        %v5753 = vpop.f32.mrf.mxu0
        %v5754 = vadd.f32 %v5613, %v5753
        %v5755 = vpop.f32.mrf.mxu0
        %v5756 = vpop.f32.mrf.mxu0
        %v5757 = vadd.f32 %v5613, %v5756
        %v5758 = vpop.f32.mrf.mxu0
        %5759 = vmatprep.mubr.bf16.mxu0 0
        %5760 = vmatmul.mubr.bf16.gmra.mxu0 %v5572
        %v5761 = vpop.f32.mrf.mxu0
        %v5762 = vadd.f32 %v5613, %v5761
        %v5763 = vpop.f32.mrf.mxu0
        %v5764 = vpop.f32.mrf.mxu0
        %v5765 = vadd.f32 %v5613, %v5764
        %v5766 = vpop.f32.mrf.mxu0
        %5767 = vmatprep.mubr.bf16.mxu0 0
        %5768 = vmatmul.mubr.bf16.gmra.mxu0 %v5573
        %v5769 = vpop.f32.mrf.mxu0
        %v5770 = vadd.f32 %v5613, %v5769
        %v5771 = vpop.f32.mrf.mxu0
        %v5772 = vpop.f32.mrf.mxu0
        %v5773 = vadd.f32 %v5613, %v5772
        %v5774 = vpop.f32.mrf.mxu0
        %5775 = vmatprep.mubr.bf16.mxu0 0
        %5776 = vmatmul.mubr.bf16.gmra.mxu0 %v5574
        %v5777 = vpop.f32.mrf.mxu0
        %v5778 = vadd.f32 %v5613, %v5777
        %v5779 = vpop.f32.mrf.mxu0
        %v5780 = vpop.f32.mrf.mxu0
        %v5781 = vadd.f32 %v5613, %v5780
        %v5782 = vpop.f32.mrf.mxu0
        %5783 = vmatprep.mubr.bf16.mxu0 0
        %5784 = vmatmul.mubr.bf16.gmra.mxu0 %v5575
        %v5785 = vpop.f32.mrf.mxu0
        %v5786 = vadd.f32 %v5613, %v5785
        %v5787 = vpop.f32.mrf.mxu0
        %v5788 = vpop.f32.mrf.mxu0
        %v5789 = vadd.f32 %v5613, %v5788
        %v5790 = vpop.f32.mrf.mxu0
        %5791 = vmatprep.mubr.bf16.mxu0 0
        %5792 = vmatmul.mubr.bf16.gmra.mxu0 %v5576
        %v5793 = vpop.f32.mrf.mxu0
        %v5794 = vadd.f32 %v5613, %v5793
        %v5795 = vpop.f32.mrf.mxu0
        %v5796 = vpop.f32.mrf.mxu0
        %v5797 = vadd.f32 %v5613, %v5796
        %v5798 = vpop.f32.mrf.mxu0
        %5799 = vmatprep.mubr.bf16.mxu0 0
        %5800 = vmatmul.mubr.bf16.gmra.mxu0 %v5577
        %v5801 = vpop.f32.mrf.mxu0
        %v5802 = vadd.f32 %v5613, %v5801
        %v5803 = vpop.f32.mrf.mxu0
        %v5804 = vpop.f32.mrf.mxu0
        %v5805 = vadd.f32 %v5613, %v5804
        %v5806 = vpop.f32.mrf.mxu0
        %5807 = vmatprep.mubr.bf16.mxu0 0
        %5808 = vmatmul.mubr.bf16.gmra.mxu0 %v5578
        %v5809 = vpop.f32.mrf.mxu0
        %v5810 = vadd.f32 %v5613, %v5809
        %v5811 = vpop.f32.mrf.mxu0
        %v5812 = vpop.f32.mrf.mxu0
        %v5813 = vadd.f32 %v5613, %v5812
        %v5814 = vpop.f32.mrf.mxu0
        %5815 = vmatprep.mubr.bf16.mxu0 0
        %5816 = vmatmul.mubr.bf16.gmra.mxu0 %v5579
        %v5817 = vpop.f32.mrf.mxu0
        %v5818 = vadd.f32 %v5613, %v5817
        %v5819 = vpop.f32.mrf.mxu0
        %v5820 = vpop.f32.mrf.mxu0
        %v5821 = vadd.f32 %v5613, %v5820
        %v5822 = vpop.f32.mrf.mxu0
        %5823 = vmatprep.mubr.bf16.mxu0 0
        %5824 = vmatmul.mubr.bf16.gmra.mxu0 %v5580
        %v5825 = vpop.f32.mrf.mxu0
        %v5826 = vadd.f32 %v5613, %v5825
        %v5827 = vpop.f32.mrf.mxu0
        %v5828 = vpop.f32.mrf.mxu0
        %v5829 = vadd.f32 %v5613, %v5828
        %v5830 = vpop.f32.mrf.mxu0
        %5831 = vmatprep.mubr.bf16.mxu0 0
        %5832 = vmatmul.mubr.bf16.gmra.mxu0 %v5581
        %v5833 = vpop.f32.mrf.mxu0
        %v5834 = vadd.f32 %v5613, %v5833
        %v5835 = vpop.f32.mrf.mxu0
        %v5836 = vpop.f32.mrf.mxu0
        %v5837 = vadd.f32 %v5613, %v5836
        %v5838 = vpop.f32.mrf.mxu0
        %5839 = vmatprep.mubr.bf16.mxu0 0
        %5840 = vmatmul.mubr.bf16.gmra.mxu0 %v5582
        %v5841 = vpop.f32.mrf.mxu0
        %v5842 = vadd.f32 %v5613, %v5841
        %v5843 = vpop.f32.mrf.mxu0
        %v5844 = vpop.f32.mrf.mxu0
        %v5845 = vadd.f32 %v5613, %v5844
        %v5846 = vpop.f32.mrf.mxu0
        %5847 = vmatprep.mubr.bf16.mxu0 0
        %5848 = vmatmul.mubr.bf16.gmra.mxu0 %v5583
        %v5849 = vpop.f32.mrf.mxu0
        %v5850 = vadd.f32 %v5613, %v5849
        %v5851 = vpop.f32.mrf.mxu0
        %v5852 = vpop.f32.mrf.mxu0
        %v5853 = vadd.f32 %v5613, %v5852
        %v5854 = vpop.f32.mrf.mxu0
        %5855 = vmatprep.mubr.bf16.mxu0 0
        %5856 = vmatmul.mubr.bf16.gmra.mxu0 %v5584
        %v5857 = vpop.f32.mrf.mxu0
        %v5858 = vadd.f32 %v5613, %v5857
        %v5859 = vpop.f32.mrf.mxu0
        %v5860 = vpop.f32.mrf.mxu0
        %v5861 = vadd.f32 %v5613, %v5860
        %v5862 = vpop.f32.mrf.mxu0
        %5863 = vmatprep.mubr.bf16.mxu0 0
        %5864 = vmatmul.mubr.bf16.gmra.mxu0 %v5585
        %v5865 = vpop.f32.mrf.mxu0
        %v5866 = vadd.f32 %v5613, %v5865
        %v5867 = vpop.f32.mrf.mxu0
        %v5868 = vpop.f32.mrf.mxu0
        %v5869 = vadd.f32 %v5613, %v5868
        %v5870 = vpop.f32.mrf.mxu0
        %5871 = vmatprep.mubr.bf16.mxu0 0
        %5872 = vmatmul.mubr.bf16.gmra.mxu0 %v5586
        %v5873 = vpop.f32.mrf.mxu0
        %v5874 = vadd.f32 %v5613, %v5873
        %v5875 = vpop.f32.mrf.mxu0
        %v5876 = vpop.f32.mrf.mxu0
        %v5877 = vadd.f32 %v5613, %v5876
        %v5878 = vpop.f32.mrf.mxu0
        %5879 = vmatprep.mubr.bf16.mxu0 0
        %5880 = vmatmul.mubr.bf16.gmra.mxu0 %v5587
        %v5881 = vpop.f32.mrf.mxu0
        %v5882 = vadd.f32 %v5613, %v5881
        %v5883 = vpop.f32.mrf.mxu0
        %v5884 = vpop.f32.mrf.mxu0
        %v5885 = vadd.f32 %v5613, %v5884
        %v5886 = vpop.f32.mrf.mxu0
        %5887 = vmatprep.mubr.bf16.mxu0 0
        %5888 = vmatmul.mubr.bf16.gmra.mxu0 %v5588
        %v5889 = vpop.f32.mrf.mxu0
        %v5890 = vadd.f32 %v5613, %v5889
        %v5891 = vpop.f32.mrf.mxu0
        %v5892 = vpop.f32.mrf.mxu0
        %v5893 = vadd.f32 %v5613, %v5892
        %v5894 = vpop.f32.mrf.mxu0
        %5895 = vmatprep.mubr.bf16.mxu0 0
        %5896 = vmatmul.mubr.bf16.gmra.mxu0 %v5589
        %v5897 = vpop.f32.mrf.mxu0
        %v5898 = vadd.f32 %v5613, %v5897
        %v5899 = vpop.f32.mrf.mxu0
        %v5900 = vpop.f32.mrf.mxu0
        %v5901 = vadd.f32 %v5613, %v5900
        %v5902 = vpop.f32.mrf.mxu0
        %5903 = vmatprep.mubr.bf16.mxu0 0
        %5904 = vmatmul.mubr.bf16.gmra.mxu0 %v5590
        %v5905 = vpop.f32.mrf.mxu0
        %v5906 = vadd.f32 %v5613, %v5905
        %v5907 = vpop.f32.mrf.mxu0
        %v5908 = vpop.f32.mrf.mxu0
        %v5909 = vadd.f32 %v5613, %v5908
        %v5910 = vpop.f32.mrf.mxu0
        %5911 = vmatprep.mubr.bf16.mxu0 0
        %5912 = vmatmul.mubr.bf16.gmra.mxu0 %v5591
        %v5913 = vpop.f32.mrf.mxu0
        %v5914 = vadd.f32 %v5613, %v5913
        %v5915 = vpop.f32.mrf.mxu0
        %v5916 = vpop.f32.mrf.mxu0
        %v5917 = vadd.f32 %v5613, %v5916
        %v5918 = vpop.f32.mrf.mxu0
        %5919 = vmatprep.mubr.bf16.mxu0 0
        %5920 = vmatmul.mubr.bf16.gmra.mxu0 %v5592
        %v5921 = vpop.f32.mrf.mxu0
        %v5922 = vadd.f32 %v5613, %v5921
        %v5923 = vpop.f32.mrf.mxu0
        %v5924 = vpop.f32.mrf.mxu0
        %v5925 = vadd.f32 %v5613, %v5924
        %v5926 = vpop.f32.mrf.mxu0
        %5927 = vmatprep.mubr.bf16.mxu0 0
        %5928 = vmatmul.mubr.bf16.gmra.mxu0 %v5593
        %v5929 = vpop.f32.mrf.mxu0
        %v5930 = vadd.f32 %v5613, %v5929
        %v5931 = vpop.f32.mrf.mxu0
        %v5932 = vpop.f32.mrf.mxu0
        %v5933 = vadd.f32 %v5613, %v5932
        %v5934 = vpop.f32.mrf.mxu0
        %5935 = vmatprep.mubr.bf16.mxu0 0
        %5936 = vmatmul.mubr.bf16.gmra.mxu0 %v5594
        %v5937 = vpop.f32.mrf.mxu0
        %v5938 = vadd.f32 %v5613, %v5937
        %v5939 = vpop.f32.mrf.mxu0
        %v5940 = vpop.f32.mrf.mxu0
        %v5941 = vadd.f32 %v5613, %v5940
        %v5942 = vpop.f32.mrf.mxu0
        %5943 = vmatprep.mubr.bf16.mxu0 0
        %5944 = vmatmul.mubr.bf16.gmra.mxu0 %v5595
        %v5945 = vpop.f32.mrf.mxu0
        %v5946 = vadd.f32 %v5613, %v5945
        %v5947 = vpop.f32.mrf.mxu0
        %v5948 = vpop.f32.mrf.mxu0
        %v5949 = vadd.f32 %v5613, %v5948
        %v5950 = vpop.f32.mrf.mxu0
        %5951 = vmatprep.mubr.bf16.mxu0 0
        %5952 = vmatmul.mubr.bf16.gmra.mxu0 %v5596
        %v5953 = vpop.f32.mrf.mxu0
        %v5954 = vadd.f32 %v5613, %v5953
        %v5955 = vpop.f32.mrf.mxu0
        %v5956 = vpop.f32.mrf.mxu0
        %v5957 = vadd.f32 %v5613, %v5956
        %v5958 = vpop.f32.mrf.mxu0
        %5959 = vmatprep.mubr.bf16.mxu0 0
        %5960 = vmatmul.mubr.bf16.gmra.mxu0 %v5597
        %v5961 = vpop.f32.mrf.mxu0
        %v5962 = vadd.f32 %v5613, %v5961
        %v5963 = vpop.f32.mrf.mxu0
        %v5964 = vpop.f32.mrf.mxu0
        %v5965 = vadd.f32 %v5613, %v5964
        %v5966 = vpop.f32.mrf.mxu0
        %5967 = vmatprep.mubr.bf16.mxu0 0
        %5968 = vmatmul.mubr.bf16.gmra.mxu0 %v5598
        %v5969 = vpop.f32.mrf.mxu0
        %v5970 = vadd.f32 %v5613, %v5969
        %v5971 = vpop.f32.mrf.mxu0
        %v5972 = vpop.f32.mrf.mxu0
        %v5973 = vadd.f32 %v5613, %v5972
        %v5974 = vpop.f32.mrf.mxu0
        %5975 = vmatprep.mubr.bf16.mxu0 0
        %5976 = vmatmul.mubr.bf16.gmra.mxu0 %v5599
        %v5977 = vpop.f32.mrf.mxu0
        %v5978 = vadd.f32 %v5613, %v5977
        %v5979 = vpop.f32.mrf.mxu0
        %v5980 = vpop.f32.mrf.mxu0
        %v5981 = vadd.f32 %v5613, %v5980
        %v5982 = vpop.f32.mrf.mxu0
        %5983 = vmatprep.mubr.bf16.mxu0 0
        %5984 = vmatmul.mubr.bf16.gmra.mxu0 %v5600
        %v5985 = vpop.f32.mrf.mxu0
        %v5986 = vadd.f32 %v5613, %v5985
        %v5987 = vpop.f32.mrf.mxu0
        %v5988 = vpop.f32.mrf.mxu0
        %v5989 = vadd.f32 %v5613, %v5988
        %v5990 = vpop.f32.mrf.mxu0
        %5991 = vmatprep.mubr.bf16.mxu0 0
        %5992 = vmatmul.mubr.bf16.gmra.mxu0 %v5601
        %v5993 = vpop.f32.mrf.mxu0
        %v5994 = vadd.f32 %v5613, %v5993
        %v5995 = vpop.f32.mrf.mxu0
        %v5996 = vpop.f32.mrf.mxu0
        %v5997 = vadd.f32 %v5613, %v5996
        %v5998 = vpop.f32.mrf.mxu0
        %5999 = vmatprep.mubr.bf16.mxu0 0
        %6000 = vmatmul.mubr.bf16.gmra.mxu0 %v5602
        %v6001 = vpop.f32.mrf.mxu0
        %v6002 = vadd.f32 %v5613, %v6001
        %v6003 = vpop.f32.mrf.mxu0
        %v6004 = vpop.f32.mrf.mxu0
        %v6005 = vadd.f32 %v5613, %v6004
        %v6006 = vpop.f32.mrf.mxu0
        %6007 = vmatprep.mubr.bf16.mxu0 0
        %6008 = vmatmul.mubr.bf16.gmra.mxu0 %v5603
        %v6009 = vpop.f32.mrf.mxu0
        %v6010 = vadd.f32 %v5613, %v6009
        %v6011 = vpop.f32.mrf.mxu0
        %v6012 = vpop.f32.mrf.mxu0
        %v6013 = vadd.f32 %v5613, %v6012
        %v6014 = vpop.f32.mrf.mxu0
        %6015 = vmatprep.mubr.bf16.mxu0 0
        %6016 = vmatmul.mubr.bf16.gmra.mxu0 %v5604
        %v6017 = vpop.f32.mrf.mxu0
        %v6018 = vadd.f32 %v5613, %v6017
        %v6019 = vpop.f32.mrf.mxu0
        %v6020 = vpop.f32.mrf.mxu0
        %v6021 = vadd.f32 %v5613, %v6020
        %v6022 = vpop.f32.mrf.mxu0
        %6023 = vmatprep.mubr.bf16.mxu0 0
        %6024 = vmatmul.mubr.bf16.gmra.mxu0 %v5605
        %v6025 = vpop.f32.mrf.mxu0
        %v6026 = vadd.f32 %v5613, %v6025
        %v6027 = vpop.f32.mrf.mxu0
        %v6028 = vpop.f32.mrf.mxu0
        %v6029 = vadd.f32 %v5613, %v6028
        %v6030 = vpop.f32.mrf.mxu0
        %6031 = vmatprep.mubr.bf16.mxu0 0
        %6032 = vmatmul.mubr.bf16.gmra.mxu0 %v5606
        %v6033 = vpop.f32.mrf.mxu0
        %v6034 = vadd.f32 %v5613, %v6033
        %v6035 = vpop.f32.mrf.mxu0
        %v6036 = vpop.f32.mrf.mxu0
        %v6037 = vadd.f32 %v5613, %v6036
        %v6038 = vpop.f32.mrf.mxu0
        %6039 = vmatprep.mubr.bf16.mxu0 0
        %6040 = vmatmul.mubr.bf16.gmra.mxu0 %v5607
        %v6041 = vpop.f32.mrf.mxu0
        %v6042 = vadd.f32 %v5613, %v6041
        %v6043 = vpop.f32.mrf.mxu0
        %v6044 = vpop.f32.mrf.mxu0
        %v6045 = vadd.f32 %v5613, %v6044
        %v6046 = vpop.f32.mrf.mxu0
        %6047 = vdwg.mxu0
        %v6048 = vxor.u32 %v5698, 2147483648
        %v6049 = vxor.u32 %v5701, 2147483648
        %v6050 = vxor.u32 %v5706, 2147483648
        %v6051 = vxor.u32 %v5709, 2147483648
        %v6052 = vxor.u32 %v5714, 2147483648
        %v6053 = vxor.u32 %v5717, 2147483648
        %v6054 = vxor.u32 %v5722, 2147483648
        %v6055 = vxor.u32 %v5725, 2147483648
        %v6056 = vxor.u32 %v5730, 2147483648
        %v6057 = vxor.u32 %v5733, 2147483648
        %v6058 = vxor.u32 %v5738, 2147483648
        %v6059 = vxor.u32 %v5741, 2147483648
        %v6060 = vxor.u32 %v5746, 2147483648
        %v6061 = vxor.u32 %v5749, 2147483648
        %v6062 = vxor.u32 %v5754, 2147483648
        %v6063 = vxor.u32 %v5757, 2147483648
        %v6064 = vxor.u32 %v5762, 2147483648
        %v6065 = vxor.u32 %v5765, 2147483648
        %v6066 = vxor.u32 %v5770, 2147483648
        %v6067 = vxor.u32 %v5773, 2147483648
        %v6068 = vxor.u32 %v5778, 2147483648
        %v6069 = vxor.u32 %v5781, 2147483648
        %v6070 = vxor.u32 %v5786, 2147483648
        %v6071 = vxor.u32 %v5789, 2147483648
        %v6072 = vxor.u32 %v5794, 2147483648
        %v6073 = vxor.u32 %v5797, 2147483648
        %v6074 = vxor.u32 %v5802, 2147483648
        %v6075 = vxor.u32 %v5805, 2147483648
        %v6076 = vxor.u32 %v5810, 2147483648
        %v6077 = vxor.u32 %v5813, 2147483648
        %v6078 = vxor.u32 %v5818, 2147483648
        %v6079 = vxor.u32 %v5821, 2147483648
        %v6080 = vxor.u32 %v5826, 2147483648
        %v6081 = vxor.u32 %v5829, 2147483648
        %v6082 = vxor.u32 %v5834, 2147483648
        %v6083 = vxor.u32 %v5837, 2147483648
        %v6084 = vxor.u32 %v5842, 2147483648
        %v6085 = vxor.u32 %v5845, 2147483648
        %v6086 = vxor.u32 %v5850, 2147483648
        %v6087 = vxor.u32 %v5853, 2147483648
        %v6088 = vxor.u32 %v5858, 2147483648
        %v6089 = vxor.u32 %v5861, 2147483648
        %v6090 = vxor.u32 %v5866, 2147483648
        %v6091 = vxor.u32 %v5869, 2147483648
        %v6092 = vxor.u32 %v5874, 2147483648
        %v6093 = vxor.u32 %v5877, 2147483648
        %v6094 = vxor.u32 %v5882, 2147483648
        %v6095 = vxor.u32 %v5885, 2147483648
        %v6096 = vxor.u32 %v5890, 2147483648
        %v6097 = vxor.u32 %v5893, 2147483648
        %v6098 = vxor.u32 %v5898, 2147483648
        %v6099 = vxor.u32 %v5901, 2147483648
        %v6100 = vxor.u32 %v5906, 2147483648
        %v6101 = vxor.u32 %v5909, 2147483648
        %v6102 = vxor.u32 %v5914, 2147483648
        %v6103 = vxor.u32 %v5917, 2147483648
        %v6104 = vxor.u32 %v5922, 2147483648
        %v6105 = vxor.u32 %v5925, 2147483648
        %v6106 = vxor.u32 %v5930, 2147483648
        %v6107 = vxor.u32 %v5933, 2147483648
        %v6108 = vxor.u32 %v5938, 2147483648
        %v6109 = vxor.u32 %v5941, 2147483648
        %v6110 = vxor.u32 %v5946, 2147483648
        %v6111 = vxor.u32 %v5949, 2147483648
        %v6112 = vxor.u32 %v5954, 2147483648
        %v6113 = vxor.u32 %v5957, 2147483648
        %v6114 = vxor.u32 %v5962, 2147483648
        %v6115 = vxor.u32 %v5965, 2147483648
        %v6116 = vxor.u32 %v5970, 2147483648
        %v6117 = vxor.u32 %v5973, 2147483648
        %v6118 = vxor.u32 %v5978, 2147483648
        %v6119 = vxor.u32 %v5981, 2147483648
        %v6120 = vxor.u32 %v5986, 2147483648
        %v6121 = vxor.u32 %v5989, 2147483648
        %v6122 = vxor.u32 %v5994, 2147483648
        %v6123 = vxor.u32 %v5997, 2147483648
        %v6124 = vxor.u32 %v6002, 2147483648
        %v6125 = vxor.u32 %v6005, 2147483648
        %v6126 = vxor.u32 %v6010, 2147483648
        %v6127 = vxor.u32 %v6013, 2147483648
        %v6128 = vxor.u32 %v6018, 2147483648
        %v6129 = vxor.u32 %v6021, 2147483648
        %v6130 = vxor.u32 %v6026, 2147483648
        %v6131 = vxor.u32 %v6029, 2147483648
        %v6132 = vxor.u32 %v6034, 2147483648
        %v6133 = vxor.u32 %v6037, 2147483648
        %v6134 = vxor.u32 %v6042, 2147483648
        %v6135 = vxor.u32 %v6045, 2147483648
        %v6136 = vmul.f32 %v6048, 1.442695
        %v6137 = vpow.pop %v6136
        %v6138 = vmul.f32 %v6049, 1.442695
        %v6139 = vpow.pop %v6138
        %v6140 = vmul.f32 %v6050, 1.442695
        %v6141 = vpow.pop %v6140
        %v6142 = vmul.f32 %v6051, 1.442695
        %v6143 = vpow.pop %v6142
        %v6144 = vmul.f32 %v6052, 1.442695
        %v6145 = vpow.pop %v6144
        %v6146 = vmul.f32 %v6053, 1.442695
        %v6147 = vpow.pop %v6146
        %v6148 = vmul.f32 %v6054, 1.442695
        %v6149 = vpow.pop %v6148
        %v6150 = vmul.f32 %v6055, 1.442695
        %v6151 = vpow.pop %v6150
        %v6152 = vmul.f32 %v6056, 1.442695
        %v6153 = vpow.pop %v6152
        %v6154 = vmul.f32 %v6057, 1.442695
        %v6155 = vpow.pop %v6154
        %v6156 = vmul.f32 %v6058, 1.442695
        %v6157 = vpow.pop %v6156
        %v6158 = vmul.f32 %v6059, 1.442695
        %v6159 = vpow.pop %v6158
        %v6160 = vmul.f32 %v6060, 1.442695
        %v6161 = vpow.pop %v6160
        %v6162 = vmul.f32 %v6061, 1.442695
        %v6163 = vpow.pop %v6162
        %v6164 = vmul.f32 %v6062, 1.442695
        %v6165 = vpow.pop %v6164
        %v6166 = vmul.f32 %v6063, 1.442695
        %v6167 = vpow.pop %v6166
        %v6168 = vmul.f32 %v6064, 1.442695
        %v6169 = vpow.pop %v6168
        %v6170 = vmul.f32 %v6065, 1.442695
        %v6171 = vpow.pop %v6170
        %v6172 = vmul.f32 %v6066, 1.442695
        %v6173 = vpow.pop %v6172
        %v6174 = vmul.f32 %v6067, 1.442695
        %v6175 = vpow.pop %v6174
        %v6176 = vmul.f32 %v6068, 1.442695
        %v6177 = vpow.pop %v6176
        %v6178 = vmul.f32 %v6069, 1.442695
        %v6179 = vpow.pop %v6178
        %v6180 = vmul.f32 %v6070, 1.442695
        %v6181 = vpow.pop %v6180
        %v6182 = vmul.f32 %v6071, 1.442695
        %v6183 = vpow.pop %v6182
        %v6184 = vmul.f32 %v6072, 1.442695
        %v6185 = vpow.pop %v6184
        %v6186 = vmul.f32 %v6073, 1.442695
        %v6187 = vpow.pop %v6186
        %v6188 = vmul.f32 %v6074, 1.442695
        %v6189 = vpow.pop %v6188
        %v6190 = vmul.f32 %v6075, 1.442695
        %v6191 = vpow.pop %v6190
        %v6192 = vmul.f32 %v6076, 1.442695
        %v6193 = vpow.pop %v6192
        %v6194 = vmul.f32 %v6077, 1.442695
        %v6195 = vpow.pop %v6194
        %v6196 = vmul.f32 %v6078, 1.442695
        %v6197 = vpow.pop %v6196
        %v6198 = vmul.f32 %v6079, 1.442695
        %v6199 = vpow.pop %v6198
        %v6200 = vmul.f32 %v6080, 1.442695
        %v6201 = vpow.pop %v6200
        %v6202 = vmul.f32 %v6081, 1.442695
        %v6203 = vpow.pop %v6202
        %v6204 = vmul.f32 %v6082, 1.442695
        %v6205 = vpow.pop %v6204
        %v6206 = vmul.f32 %v6083, 1.442695
        %v6207 = vpow.pop %v6206
        %v6208 = vmul.f32 %v6084, 1.442695
        %v6209 = vpow.pop %v6208
        %v6210 = vmul.f32 %v6085, 1.442695
        %v6211 = vpow.pop %v6210
        %v6212 = vmul.f32 %v6086, 1.442695
        %v6213 = vpow.pop %v6212
        %v6214 = vmul.f32 %v6087, 1.442695
        %v6215 = vpow.pop %v6214
        %v6216 = vmul.f32 %v6088, 1.442695
        %v6217 = vpow.pop %v6216
        %v6218 = vmul.f32 %v6089, 1.442695
        %v6219 = vpow.pop %v6218
        %v6220 = vmul.f32 %v6090, 1.442695
        %v6221 = vpow.pop %v6220
        %v6222 = vmul.f32 %v6091, 1.442695
        %v6223 = vpow.pop %v6222
        %v6224 = vmul.f32 %v6092, 1.442695
        %v6225 = vpow.pop %v6224
        %v6226 = vmul.f32 %v6093, 1.442695
        %v6227 = vpow.pop %v6226
        %v6228 = vmul.f32 %v6094, 1.442695
        %v6229 = vpow.pop %v6228
        %v6230 = vmul.f32 %v6095, 1.442695
        %v6231 = vpow.pop %v6230
        %v6232 = vmul.f32 %v6096, 1.442695
        %v6233 = vpow.pop %v6232
        %v6234 = vmul.f32 %v6097, 1.442695
        %v6235 = vpow.pop %v6234
        %v6236 = vmul.f32 %v6098, 1.442695
        %v6237 = vpow.pop %v6236
        %v6238 = vmul.f32 %v6099, 1.442695
        %v6239 = vpow.pop %v6238
        %v6240 = vmul.f32 %v6100, 1.442695
        %v6241 = vpow.pop %v6240
        %v6242 = vmul.f32 %v6101, 1.442695
        %v6243 = vpow.pop %v6242
        %v6244 = vmul.f32 %v6102, 1.442695
        %v6245 = vpow.pop %v6244
        %v6246 = vmul.f32 %v6103, 1.442695
        %v6247 = vpow.pop %v6246
        %v6248 = vmul.f32 %v6104, 1.442695
        %v6249 = vpow.pop %v6248
        %v6250 = vmul.f32 %v6105, 1.442695
        %v6251 = vpow.pop %v6250
        %v6252 = vmul.f32 %v6106, 1.442695
        %v6253 = vpow.pop %v6252
        %v6254 = vmul.f32 %v6107, 1.442695
        %v6255 = vpow.pop %v6254
        %v6256 = vmul.f32 %v6108, 1.442695
        %v6257 = vpow.pop %v6256
        %v6258 = vmul.f32 %v6109, 1.442695
        %v6259 = vpow.pop %v6258
        %v6260 = vmul.f32 %v6110, 1.442695
        %v6261 = vpow.pop %v6260
        %v6262 = vmul.f32 %v6111, 1.442695
        %v6263 = vpow.pop %v6262
        %v6264 = vmul.f32 %v6112, 1.442695
        %v6265 = vpow.pop %v6264
        %v6266 = vmul.f32 %v6113, 1.442695
        %v6267 = vpow.pop %v6266
        %v6268 = vmul.f32 %v6114, 1.442695
        %v6269 = vpow.pop %v6268
        %v6270 = vmul.f32 %v6115, 1.442695
        %v6271 = vpow.pop %v6270
        %v6272 = vmul.f32 %v6116, 1.442695
        %v6273 = vpow.pop %v6272
        %v6274 = vmul.f32 %v6117, 1.442695
        %v6275 = vpow.pop %v6274
        %v6276 = vmul.f32 %v6118, 1.442695
        %v6277 = vpow.pop %v6276
        %v6278 = vmul.f32 %v6119, 1.442695
        %v6279 = vpow.pop %v6278
        %v6280 = vmul.f32 %v6120, 1.442695
        %v6281 = vpow.pop %v6280
        %v6282 = vmul.f32 %v6121, 1.442695
        %v6283 = vpow.pop %v6282
        %v6284 = vmul.f32 %v6122, 1.442695
        %v6285 = vpow.pop %v6284
        %v6286 = vmul.f32 %v6123, 1.442695
        %v6287 = vpow.pop %v6286
        %v6288 = vmul.f32 %v6124, 1.442695
        %v6289 = vpow.pop %v6288
        %v6290 = vmul.f32 %v6125, 1.442695
        %v6291 = vpow.pop %v6290
        %v6292 = vmul.f32 %v6126, 1.442695
        %v6293 = vpow.pop %v6292
        %v6294 = vmul.f32 %v6127, 1.442695
        %v6295 = vpow.pop %v6294
        %v6296 = vmul.f32 %v6128, 1.442695
        %v6297 = vpow.pop %v6296
        %v6298 = vmul.f32 %v6129, 1.442695
        %v6299 = vpow.pop %v6298
        %v6300 = vmul.f32 %v6130, 1.442695
        %v6301 = vpow.pop %v6300
        %v6302 = vmul.f32 %v6131, 1.442695
        %v6303 = vpow.pop %v6302
        %v6304 = vmul.f32 %v6132, 1.442695
        %v6305 = vpow.pop %v6304
        %v6306 = vmul.f32 %v6133, 1.442695
        %v6307 = vpow.pop %v6306
        %v6308 = vmul.f32 %v6134, 1.442695
        %v6309 = vpow.pop %v6308
        %v6310 = vmul.f32 %v6135, 1.442695
        %v6311 = vpow.pop %v6310
        %v6312 = vadd.f32 %v6137, 1.0
        %v6313 = vadd.f32 %v6139, 1.0
        %v6314 = vadd.f32 %v6141, 1.0
        %v6315 = vadd.f32 %v6143, 1.0
        %v6316 = vadd.f32 %v6145, 1.0
        %v6317 = vadd.f32 %v6147, 1.0
        %v6318 = vadd.f32 %v6149, 1.0
        %v6319 = vadd.f32 %v6151, 1.0
        %v6320 = vadd.f32 %v6153, 1.0
        %v6321 = vadd.f32 %v6155, 1.0
        %v6322 = vadd.f32 %v6157, 1.0
        %v6323 = vadd.f32 %v6159, 1.0
        %v6324 = vadd.f32 %v6161, 1.0
        %v6325 = vadd.f32 %v6163, 1.0
        %v6326 = vadd.f32 %v6165, 1.0
        %v6327 = vadd.f32 %v6167, 1.0
        %v6328 = vadd.f32 %v6169, 1.0
        %v6329 = vadd.f32 %v6171, 1.0
        %v6330 = vadd.f32 %v6173, 1.0
        %v6331 = vadd.f32 %v6175, 1.0
        %v6332 = vadd.f32 %v6177, 1.0
        %v6333 = vadd.f32 %v6179, 1.0
        %v6334 = vadd.f32 %v6181, 1.0
        %v6335 = vadd.f32 %v6183, 1.0
        %v6336 = vadd.f32 %v6185, 1.0
        %v6337 = vadd.f32 %v6187, 1.0
        %v6338 = vadd.f32 %v6189, 1.0
        %v6339 = vadd.f32 %v6191, 1.0
        %v6340 = vadd.f32 %v6193, 1.0
        %v6341 = vadd.f32 %v6195, 1.0
        %v6342 = vadd.f32 %v6197, 1.0
        %v6343 = vadd.f32 %v6199, 1.0
        %v6344 = vadd.f32 %v6201, 1.0
        %v6345 = vadd.f32 %v6203, 1.0
        %v6346 = vadd.f32 %v6205, 1.0
        %v6347 = vadd.f32 %v6207, 1.0
        %v6348 = vadd.f32 %v6209, 1.0
        %v6349 = vadd.f32 %v6211, 1.0
        %v6350 = vadd.f32 %v6213, 1.0
        %v6351 = vadd.f32 %v6215, 1.0
        %v6352 = vadd.f32 %v6217, 1.0
        %v6353 = vadd.f32 %v6219, 1.0
        %v6354 = vadd.f32 %v6221, 1.0
        %v6355 = vadd.f32 %v6223, 1.0
        %v6356 = vadd.f32 %v6225, 1.0
        %v6357 = vadd.f32 %v6227, 1.0
        %v6358 = vadd.f32 %v6229, 1.0
        %v6359 = vadd.f32 %v6231, 1.0
        %v6360 = vadd.f32 %v6233, 1.0
        %v6361 = vadd.f32 %v6235, 1.0
        %v6362 = vadd.f32 %v6237, 1.0
        %v6363 = vadd.f32 %v6239, 1.0
        %v6364 = vadd.f32 %v6241, 1.0
        %v6365 = vadd.f32 %v6243, 1.0
        %v6366 = vadd.f32 %v6245, 1.0
        %v6367 = vadd.f32 %v6247, 1.0
        %v6368 = vadd.f32 %v6249, 1.0
        %v6369 = vadd.f32 %v6251, 1.0
        %v6370 = vadd.f32 %v6253, 1.0
        %v6371 = vadd.f32 %v6255, 1.0
        %v6372 = vadd.f32 %v6257, 1.0
        %v6373 = vadd.f32 %v6259, 1.0
        %v6374 = vadd.f32 %v6261, 1.0
        %v6375 = vadd.f32 %v6263, 1.0
        %v6376 = vadd.f32 %v6265, 1.0
        %v6377 = vadd.f32 %v6267, 1.0
        %v6378 = vadd.f32 %v6269, 1.0
        %v6379 = vadd.f32 %v6271, 1.0
        %v6380 = vadd.f32 %v6273, 1.0
        %v6381 = vadd.f32 %v6275, 1.0
        %v6382 = vadd.f32 %v6277, 1.0
        %v6383 = vadd.f32 %v6279, 1.0
        %v6384 = vadd.f32 %v6281, 1.0
        %v6385 = vadd.f32 %v6283, 1.0
        %v6386 = vadd.f32 %v6285, 1.0
        %v6387 = vadd.f32 %v6287, 1.0
        %v6388 = vadd.f32 %v6289, 1.0
        %v6389 = vadd.f32 %v6291, 1.0
        %v6390 = vadd.f32 %v6293, 1.0
        %v6391 = vadd.f32 %v6295, 1.0
        %v6392 = vadd.f32 %v6297, 1.0
        %v6393 = vadd.f32 %v6299, 1.0
        %v6394 = vadd.f32 %v6301, 1.0
        %v6395 = vadd.f32 %v6303, 1.0
        %v6396 = vadd.f32 %v6305, 1.0
        %v6397 = vadd.f32 %v6307, 1.0
        %v6398 = vadd.f32 %v6309, 1.0
        %v6399 = vadd.f32 %v6311, 1.0
        %v6400 = vrcp.pop %v6312
        %v6401 = vmul.f32 1.0, %v6400
        %v6402 = vrcp.pop %v6313
        %v6403 = vmul.f32 1.0, %v6402
        %v6404 = vrcp.pop %v6314
        %v6405 = vmul.f32 1.0, %v6404
        %v6406 = vrcp.pop %v6315
        %v6407 = vmul.f32 1.0, %v6406
        %v6408 = vrcp.pop %v6316
        %v6409 = vmul.f32 1.0, %v6408
        %v6410 = vrcp.pop %v6317
        %v6411 = vmul.f32 1.0, %v6410
        %v6412 = vrcp.pop %v6318
        %v6413 = vmul.f32 1.0, %v6412
        %v6414 = vrcp.pop %v6319
        %v6415 = vmul.f32 1.0, %v6414
        %v6416 = vrcp.pop %v6320
        %v6417 = vmul.f32 1.0, %v6416
        %v6418 = vrcp.pop %v6321
        %v6419 = vmul.f32 1.0, %v6418
        %v6420 = vrcp.pop %v6322
        %v6421 = vmul.f32 1.0, %v6420
        %v6422 = vrcp.pop %v6323
        %v6423 = vmul.f32 1.0, %v6422
        %v6424 = vrcp.pop %v6324
        %v6425 = vmul.f32 1.0, %v6424
        %v6426 = vrcp.pop %v6325
        %v6427 = vmul.f32 1.0, %v6426
        %v6428 = vrcp.pop %v6326
        %v6429 = vmul.f32 1.0, %v6428
        %v6430 = vrcp.pop %v6327
        %v6431 = vmul.f32 1.0, %v6430
        %v6432 = vrcp.pop %v6328
        %v6433 = vmul.f32 1.0, %v6432
        %v6434 = vrcp.pop %v6329
        %v6435 = vmul.f32 1.0, %v6434
        %v6436 = vrcp.pop %v6330
        %v6437 = vmul.f32 1.0, %v6436
        %v6438 = vrcp.pop %v6331
        %v6439 = vmul.f32 1.0, %v6438
        %v6440 = vrcp.pop %v6332
        %v6441 = vmul.f32 1.0, %v6440
        %v6442 = vrcp.pop %v6333
        %v6443 = vmul.f32 1.0, %v6442
        %v6444 = vrcp.pop %v6334
        %v6445 = vmul.f32 1.0, %v6444
        %v6446 = vrcp.pop %v6335
        %v6447 = vmul.f32 1.0, %v6446
        %v6448 = vrcp.pop %v6336
        %v6449 = vmul.f32 1.0, %v6448
        %v6450 = vrcp.pop %v6337
        %v6451 = vmul.f32 1.0, %v6450
        %v6452 = vrcp.pop %v6338
        %v6453 = vmul.f32 1.0, %v6452
        %v6454 = vrcp.pop %v6339
        %v6455 = vmul.f32 1.0, %v6454
        %v6456 = vrcp.pop %v6340
        %v6457 = vmul.f32 1.0, %v6456
        %v6458 = vrcp.pop %v6341
        %v6459 = vmul.f32 1.0, %v6458
        %v6460 = vrcp.pop %v6342
        %v6461 = vmul.f32 1.0, %v6460
        %v6462 = vrcp.pop %v6343
        %v6463 = vmul.f32 1.0, %v6462
        %v6464 = vrcp.pop %v6344
        %v6465 = vmul.f32 1.0, %v6464
        %v6466 = vrcp.pop %v6345
        %v6467 = vmul.f32 1.0, %v6466
        %v6468 = vrcp.pop %v6346
        %v6469 = vmul.f32 1.0, %v6468
        %v6470 = vrcp.pop %v6347
        %v6471 = vmul.f32 1.0, %v6470
        %v6472 = vrcp.pop %v6348
        %v6473 = vmul.f32 1.0, %v6472
        %v6474 = vrcp.pop %v6349
        %v6475 = vmul.f32 1.0, %v6474
        %v6476 = vrcp.pop %v6350
        %v6477 = vmul.f32 1.0, %v6476
        %v6478 = vrcp.pop %v6351
        %v6479 = vmul.f32 1.0, %v6478
        %v6480 = vrcp.pop %v6352
        %v6481 = vmul.f32 1.0, %v6480
        %v6482 = vrcp.pop %v6353
        %v6483 = vmul.f32 1.0, %v6482
        %v6484 = vrcp.pop %v6354
        %v6485 = vmul.f32 1.0, %v6484
        %v6486 = vrcp.pop %v6355
        %v6487 = vmul.f32 1.0, %v6486
        %v6488 = vrcp.pop %v6356
        %v6489 = vmul.f32 1.0, %v6488
        %v6490 = vrcp.pop %v6357
        %v6491 = vmul.f32 1.0, %v6490
        %v6492 = vrcp.pop %v6358
        %v6493 = vmul.f32 1.0, %v6492
        %v6494 = vrcp.pop %v6359
        %v6495 = vmul.f32 1.0, %v6494
        %v6496 = vrcp.pop %v6360
        %v6497 = vmul.f32 1.0, %v6496
        %v6498 = vrcp.pop %v6361
        %v6499 = vmul.f32 1.0, %v6498
        %v6500 = vrcp.pop %v6362
        %v6501 = vmul.f32 1.0, %v6500
        %v6502 = vrcp.pop %v6363
        %v6503 = vmul.f32 1.0, %v6502
        %v6504 = vrcp.pop %v6364
        %v6505 = vmul.f32 1.0, %v6504
        %v6506 = vrcp.pop %v6365
        %v6507 = vmul.f32 1.0, %v6506
        %v6508 = vrcp.pop %v6366
        %v6509 = vmul.f32 1.0, %v6508
        %v6510 = vrcp.pop %v6367
        %v6511 = vmul.f32 1.0, %v6510
        %v6512 = vrcp.pop %v6368
        %v6513 = vmul.f32 1.0, %v6512
        %v6514 = vrcp.pop %v6369
        %v6515 = vmul.f32 1.0, %v6514
        %v6516 = vrcp.pop %v6370
        %v6517 = vmul.f32 1.0, %v6516
        %v6518 = vrcp.pop %v6371
        %v6519 = vmul.f32 1.0, %v6518
        %v6520 = vrcp.pop %v6372
        %v6521 = vmul.f32 1.0, %v6520
        %v6522 = vrcp.pop %v6373
        %v6523 = vmul.f32 1.0, %v6522
        %v6524 = vrcp.pop %v6374
        %v6525 = vmul.f32 1.0, %v6524
        %v6526 = vrcp.pop %v6375
        %v6527 = vmul.f32 1.0, %v6526
        %v6528 = vrcp.pop %v6376
        %v6529 = vmul.f32 1.0, %v6528
        %v6530 = vrcp.pop %v6377
        %v6531 = vmul.f32 1.0, %v6530
        %v6532 = vrcp.pop %v6378
        %v6533 = vmul.f32 1.0, %v6532
        %v6534 = vrcp.pop %v6379
        %v6535 = vmul.f32 1.0, %v6534
        %v6536 = vrcp.pop %v6380
        %v6537 = vmul.f32 1.0, %v6536
        %v6538 = vrcp.pop %v6381
        %v6539 = vmul.f32 1.0, %v6538
        %v6540 = vrcp.pop %v6382
        %v6541 = vmul.f32 1.0, %v6540
        %v6542 = vrcp.pop %v6383
        %v6543 = vmul.f32 1.0, %v6542
        %v6544 = vrcp.pop %v6384
        %v6545 = vmul.f32 1.0, %v6544
        %v6546 = vrcp.pop %v6385
        %v6547 = vmul.f32 1.0, %v6546
        %v6548 = vrcp.pop %v6386
        %v6549 = vmul.f32 1.0, %v6548
        %v6550 = vrcp.pop %v6387
        %v6551 = vmul.f32 1.0, %v6550
        %v6552 = vrcp.pop %v6388
        %v6553 = vmul.f32 1.0, %v6552
        %v6554 = vrcp.pop %v6389
        %v6555 = vmul.f32 1.0, %v6554
        %v6556 = vrcp.pop %v6390
        %v6557 = vmul.f32 1.0, %v6556
        %v6558 = vrcp.pop %v6391
        %v6559 = vmul.f32 1.0, %v6558
        %v6560 = vrcp.pop %v6392
        %v6561 = vmul.f32 1.0, %v6560
        %v6562 = vrcp.pop %v6393
        %v6563 = vmul.f32 1.0, %v6562
        %v6564 = vrcp.pop %v6394
        %v6565 = vmul.f32 1.0, %v6564
        %v6566 = vrcp.pop %v6395
        %v6567 = vmul.f32 1.0, %v6566
        %v6568 = vrcp.pop %v6396
        %v6569 = vmul.f32 1.0, %v6568
        %v6570 = vrcp.pop %v6397
        %v6571 = vmul.f32 1.0, %v6570
        %v6572 = vrcp.pop %v6398
        %v6573 = vmul.f32 1.0, %v6572
        %v6574 = vrcp.pop %v6399
        %v6575 = vmul.f32 1.0, %v6574
        %v6576 = vmul.f32 %v5698, %v6401
        %v6577 = vmul.f32 %v5701, %v6403
        %v6578 = vmul.f32 %v5706, %v6405
        %v6579 = vmul.f32 %v5709, %v6407
        %v6580 = vmul.f32 %v5714, %v6409
        %v6581 = vmul.f32 %v5717, %v6411
        %v6582 = vmul.f32 %v5722, %v6413
        %v6583 = vmul.f32 %v5725, %v6415
        %v6584 = vmul.f32 %v5730, %v6417
        %v6585 = vmul.f32 %v5733, %v6419
        %v6586 = vmul.f32 %v5738, %v6421
        %v6587 = vmul.f32 %v5741, %v6423
        %v6588 = vmul.f32 %v5746, %v6425
        %v6589 = vmul.f32 %v5749, %v6427
        %v6590 = vmul.f32 %v5754, %v6429
        %v6591 = vmul.f32 %v5757, %v6431
        %v6592 = vmul.f32 %v5762, %v6433
        %v6593 = vmul.f32 %v5765, %v6435
        %v6594 = vmul.f32 %v5770, %v6437
        %v6595 = vmul.f32 %v5773, %v6439
        %v6596 = vmul.f32 %v5778, %v6441
        %v6597 = vmul.f32 %v5781, %v6443
        %v6598 = vmul.f32 %v5786, %v6445
        %v6599 = vmul.f32 %v5789, %v6447
        %v6600 = vmul.f32 %v5794, %v6449
        %v6601 = vmul.f32 %v5797, %v6451
        %v6602 = vmul.f32 %v5802, %v6453
        %v6603 = vmul.f32 %v5805, %v6455
        %v6604 = vmul.f32 %v5810, %v6457
        %v6605 = vmul.f32 %v5813, %v6459
        %v6606 = vmul.f32 %v5818, %v6461
        %v6607 = vmul.f32 %v5821, %v6463
        %v6608 = vmul.f32 %v5826, %v6465
        %v6609 = vmul.f32 %v5829, %v6467
        %v6610 = vmul.f32 %v5834, %v6469
        %v6611 = vmul.f32 %v5837, %v6471
        %v6612 = vmul.f32 %v5842, %v6473
        %v6613 = vmul.f32 %v5845, %v6475
        %v6614 = vmul.f32 %v5850, %v6477
        %v6615 = vmul.f32 %v5853, %v6479
        %v6616 = vmul.f32 %v5858, %v6481
        %v6617 = vmul.f32 %v5861, %v6483
        %v6618 = vmul.f32 %v5866, %v6485
        %v6619 = vmul.f32 %v5869, %v6487
        %v6620 = vmul.f32 %v5874, %v6489
        %v6621 = vmul.f32 %v5877, %v6491
        %v6622 = vmul.f32 %v5882, %v6493
        %v6623 = vmul.f32 %v5885, %v6495
        %v6624 = vmul.f32 %v5890, %v6497
        %v6625 = vmul.f32 %v5893, %v6499
        %v6626 = vmul.f32 %v5898, %v6501
        %v6627 = vmul.f32 %v5901, %v6503
        %v6628 = vmul.f32 %v5906, %v6505
        %v6629 = vmul.f32 %v5909, %v6507
        %v6630 = vmul.f32 %v5914, %v6509
        %v6631 = vmul.f32 %v5917, %v6511
        %v6632 = vmul.f32 %v5922, %v6513
        %v6633 = vmul.f32 %v5925, %v6515
        %v6634 = vmul.f32 %v5930, %v6517
        %v6635 = vmul.f32 %v5933, %v6519
        %v6636 = vmul.f32 %v5938, %v6521
        %v6637 = vmul.f32 %v5941, %v6523
        %v6638 = vmul.f32 %v5946, %v6525
        %v6639 = vmul.f32 %v5949, %v6527
        %v6640 = vmul.f32 %v5954, %v6529
        %v6641 = vmul.f32 %v5957, %v6531
        %v6642 = vmul.f32 %v5962, %v6533
        %v6643 = vmul.f32 %v5965, %v6535
        %v6644 = vmul.f32 %v5970, %v6537
        %v6645 = vmul.f32 %v5973, %v6539
        %v6646 = vmul.f32 %v5978, %v6541
        %v6647 = vmul.f32 %v5981, %v6543
        %v6648 = vmul.f32 %v5986, %v6545
        %v6649 = vmul.f32 %v5989, %v6547
        %v6650 = vmul.f32 %v5994, %v6549
        %v6651 = vmul.f32 %v5997, %v6551
        %v6652 = vmul.f32 %v6002, %v6553
        %v6653 = vmul.f32 %v6005, %v6555
        %v6654 = vmul.f32 %v6010, %v6557
        %v6655 = vmul.f32 %v6013, %v6559
        %v6656 = vmul.f32 %v6018, %v6561
        %v6657 = vmul.f32 %v6021, %v6563
        %v6658 = vmul.f32 %v6026, %v6565
        %v6659 = vmul.f32 %v6029, %v6567
        %v6660 = vmul.f32 %v6034, %v6569
        %v6661 = vmul.f32 %v6037, %v6571
        %v6662 = vmul.f32 %v6042, %v6573
        %v6663 = vmul.f32 %v6045, %v6575
        %v6664 = vunpack.c.l.bf16 %v3035
        %v6665 = vunpack.c.l.bf16 %v3036
        %v6666 = vunpack.c.l.bf16 %v3037
        %v6667 = vunpack.c.l.bf16 %v3038
        %v6668 = vunpack.c.l.bf16 %v3039
        %v6669 = vunpack.c.l.bf16 %v3040
        %v6670 = vunpack.c.l.bf16 %v3041
        %v6671 = vunpack.c.l.bf16 %v3042
        %v6672 = vunpack.c.l.bf16 %v3043
        %v6673 = vunpack.c.l.bf16 %v3044
        %v6674 = vunpack.c.l.bf16 %v3045
        %v6675 = vunpack.c.l.bf16 %v3046
        %v6676 = vunpack.c.l.bf16 %v3047
        %v6677 = vunpack.c.l.bf16 %v3048
        %v6678 = vunpack.c.l.bf16 %v3049
        %v6679 = vunpack.c.l.bf16 %v3050
        %v6680 = vunpack.c.l.bf16 %v3051
        %v6681 = vunpack.c.l.bf16 %v3052
        %v6682 = vunpack.c.l.bf16 %v3053
        %v6683 = vunpack.c.l.bf16 %v3054
        %v6684 = vunpack.c.l.bf16 %v3055
        %v6685 = vunpack.c.l.bf16 %v3056
        %v6686 = vunpack.c.l.bf16 %v3057
        %v6687 = vunpack.c.l.bf16 %v3058
        %v6688 = vunpack.c.l.bf16 %v3059
        %v6689 = vunpack.c.l.bf16 %v3060
        %v6690 = vunpack.c.l.bf16 %v3061
        %v6691 = vunpack.c.l.bf16 %v3062
        %v6692 = vunpack.c.l.bf16 %v3063
        %v6693 = vunpack.c.l.bf16 %v3064
        %v6694 = vunpack.c.l.bf16 %v3065
        %v6695 = vunpack.c.l.bf16 %v3066
        %v6696 = vunpack.c.l.bf16 %v3067
        %v6697 = vunpack.c.l.bf16 %v3068
        %v6698 = vunpack.c.l.bf16 %v3069
        %v6699 = vunpack.c.l.bf16 %v3070
        %v6700 = vunpack.c.l.bf16 %v3071
        %v6701 = vunpack.c.l.bf16 %v3072
        %v6702 = vunpack.c.l.bf16 %v3073
        %v6703 = vunpack.c.l.bf16 %v3074
        %v6704 = vunpack.c.l.bf16 %v3075
        %v6705 = vunpack.c.l.bf16 %v3076
        %v6706 = vunpack.c.l.bf16 %v3077
        %v6707 = vunpack.c.l.bf16 %v3078
        %v6708 = vunpack.c.l.bf16 %v3079
        %v6709 = vunpack.c.l.bf16 %v3080
        %v6710 = vunpack.c.l.bf16 %v3081
        %v6711 = vunpack.c.l.bf16 %v3082
        %v6712 = vunpack.c.l.bf16 %v3083
        %v6713 = vunpack.c.l.bf16 %v3084
        %v6714 = vunpack.c.l.bf16 %v3085
        %v6715 = vunpack.c.l.bf16 %v3086
        %v6716 = vunpack.c.l.bf16 %v3087
        %v6717 = vunpack.c.l.bf16 %v3088
        %v6718 = vunpack.c.l.bf16 %v3089
        %v6719 = vunpack.c.l.bf16 %v3090
        %v6720 = vunpack.c.l.bf16 %v3091
        %v6721 = vunpack.c.l.bf16 %v3092
        %v6722 = vunpack.c.l.bf16 %v3093
        %v6723 = vunpack.c.l.bf16 %v3094
        %v6724 = vunpack.c.l.bf16 %v3095
        %v6725 = vunpack.c.l.bf16 %v3096
        %v6726 = vunpack.c.l.bf16 %v3097
        %v6727 = vunpack.c.l.bf16 %v3098
        %v6728 = vunpack.c.l.bf16 %v3099
        %v6729 = vunpack.c.l.bf16 %v3100
        %v6730 = vunpack.c.l.bf16 %v3101
        %v6731 = vunpack.c.l.bf16 %v3102
        %v6732 = vunpack.c.l.bf16 %v3103
        %v6733 = vunpack.c.l.bf16 %v3104
        %v6734 = vunpack.c.l.bf16 %v3105
        %v6735 = vunpack.c.l.bf16 %v3106
        %v6736 = vunpack.c.l.bf16 %v3107
        %v6737 = vunpack.c.l.bf16 %v3108
        %v6738 = vunpack.c.l.bf16 %v3109
        %v6739 = vunpack.c.l.bf16 %v3110
        %v6740 = vunpack.c.l.bf16 %v3111
        %v6741 = vunpack.c.l.bf16 %v3112
        %v6742 = vunpack.c.l.bf16 %v3113
        %v6743 = vunpack.c.l.bf16 %v3114
        %v6744 = vunpack.c.l.bf16 %v3115
        %v6745 = vunpack.c.l.bf16 %v3116
        %v6746 = vunpack.c.l.bf16 %v3117
        %v6747 = vunpack.c.l.bf16 %v3118
        %v6748 = vunpack.c.l.bf16 %v3119
        %v6749 = vunpack.c.l.bf16 %v3120
        %v6750 = vunpack.c.l.bf16 %v3121
        %v6751 = vunpack.c.l.bf16 %v3122
        %v6753 = vsel %vm1279, %v6664, 0
        %v6756 = vsel %vm1279, %v6665, 0
        %v6759 = vsel %vm1279, %v6666, 0
        %v6762 = vsel %vm1279, %v6667, 0
        %v6765 = vsel %vm1279, %v6668, 0
        %v6768 = vsel %vm1279, %v6669, 0
        %v6771 = vsel %vm1279, %v6670, 0
        %v6774 = vsel %vm1279, %v6671, 0
        %v6777 = vsel %vm1279, %v6672, 0
        %v6780 = vsel %vm1279, %v6673, 0
        %v6783 = vsel %vm1279, %v6674, 0
        %v6786 = vsel %vm1279, %v6675, 0
        %v6789 = vsel %vm1279, %v6676, 0
        %v6792 = vsel %vm1279, %v6677, 0
        %v6795 = vsel %vm1279, %v6678, 0
        %v6798 = vsel %vm1279, %v6679, 0
        %v6801 = vsel %vm1279, %v6680, 0
        %v6804 = vsel %vm1279, %v6681, 0
        %v6807 = vsel %vm1279, %v6682, 0
        %v6810 = vsel %vm1279, %v6683, 0
        %v6813 = vsel %vm1279, %v6684, 0
        %v6816 = vsel %vm1279, %v6685, 0
        %v6819 = vsel %vm1279, %v6686, 0
        %v6822 = vsel %vm1279, %v6687, 0
        %v6825 = vsel %vm1279, %v6688, 0
        %v6828 = vsel %vm1279, %v6689, 0
        %v6831 = vsel %vm1279, %v6690, 0
        %v6834 = vsel %vm1279, %v6691, 0
        %v6837 = vsel %vm1279, %v6692, 0
        %v6840 = vsel %vm1279, %v6693, 0
        %v6843 = vsel %vm1279, %v6694, 0
        %v6846 = vsel %vm1279, %v6695, 0
        %v6849 = vsel %vm1279, %v6696, 0
        %v6852 = vsel %vm1279, %v6697, 0
        %v6855 = vsel %vm1279, %v6698, 0
        %v6858 = vsel %vm1279, %v6699, 0
        %v6861 = vsel %vm1279, %v6700, 0
        %v6864 = vsel %vm1279, %v6701, 0
        %v6867 = vsel %vm1279, %v6702, 0
        %v6870 = vsel %vm1279, %v6703, 0
        %v6873 = vsel %vm1279, %v6704, 0
        %v6876 = vsel %vm1279, %v6705, 0
        %v6879 = vsel %vm1279, %v6706, 0
        %v6882 = vsel %vm1279, %v6707, 0
        %v6885 = vsel %vm1279, %v6708, 0
        %v6888 = vsel %vm1279, %v6709, 0
        %v6891 = vsel %vm1279, %v6710, 0
        %v6894 = vsel %vm1279, %v6711, 0
        %v6897 = vsel %vm1279, %v6712, 0
        %v6900 = vsel %vm1279, %v6713, 0
        %v6903 = vsel %vm1279, %v6714, 0
        %v6906 = vsel %vm1279, %v6715, 0
        %v6909 = vsel %vm1279, %v6716, 0
        %v6912 = vsel %vm1279, %v6717, 0
        %v6915 = vsel %vm1279, %v6718, 0
        %v6918 = vsel %vm1279, %v6719, 0
        %v6921 = vsel %vm1279, %v6720, 0
        %v6924 = vsel %vm1279, %v6721, 0
        %v6927 = vsel %vm1279, %v6722, 0
        %v6930 = vsel %vm1279, %v6723, 0
        %v6933 = vsel %vm1279, %v6724, 0
        %v6936 = vsel %vm1279, %v6725, 0
        %v6939 = vsel %vm1279, %v6726, 0
        %v6942 = vsel %vm1279, %v6727, 0
        %v6945 = vsel %vm1279, %v6728, 0
        %v6948 = vsel %vm1279, %v6729, 0
        %v6951 = vsel %vm1279, %v6730, 0
        %v6954 = vsel %vm1279, %v6731, 0
        %v6957 = vsel %vm1279, %v6732, 0
        %v6960 = vsel %vm1279, %v6733, 0
        %v6963 = vsel %vm1279, %v6734, 0
        %v6966 = vsel %vm1279, %v6735, 0
        %v6969 = vsel %vm1279, %v6736, 0
        %v6972 = vsel %vm1279, %v6737, 0
        %v6975 = vsel %vm1279, %v6738, 0
        %v6978 = vsel %vm1279, %v6739, 0
        %v6981 = vsel %vm1279, %v6740, 0
        %v6984 = vsel %vm1279, %v6741, 0
        %v6987 = vsel %vm1279, %v6742, 0
        %v6990 = vsel %vm1279, %v6743, 0
        %v6993 = vsel %vm1279, %v6744, 0
        %v6996 = vsel %vm1279, %v6745, 0
        %v6999 = vsel %vm1279, %v6746, 0
        %v7002 = vsel %vm1279, %v6747, 0
        %v7005 = vsel %vm1279, %v6748, 0
        %v7008 = vsel %vm1279, %v6749, 0
        %v7011 = vsel %vm1279, %v6750, 0
        %v7014 = vsel %vm1279, %v6751, 0
        %7016 = vmatprep.subr.mxu0 0.0
        %7017 = vmatpush1.msra.mxu0 0.0
        %7018 = vmatprep.subr.mxu0 0.0
        %7019 = vmatpush1.msra.mxu0 0.0
        %7020 = vmatprep.subr.mxu0 0.0
        %7021 = vmatpush1.msra.mxu0 0.0
        %7022 = vmatprep.subr.mxu0 0.0
        %7023 = vmatpush1.msra.mxu0 0.0
        %7024 = vmatprep.subr.mxu0 0.0
        %7025 = vmatpush1.msra.mxu0 0.0
        %7026 = vmatprep.subr.mxu0 0.0
        %7027 = vmatpush1.msra.mxu0 0.0
        %7028 = vmatprep.subr.mxu0 0.0
        %7029 = vmatpush1.msra.mxu0 0.0
        %7030 = vmatprep.subr.mxu0 0.0
        %7031 = vmatpush1.msra.mxu0 0.0
        %7032 = vmatprep.subr.mxu0 0.0
        %7033 = vmatpush1.msra.mxu0 %v1093
        %7034 = vmatprep.subr.mxu0 0.0
        %7035 = vmatpush1.msra.mxu0 %v1092
        %7036 = vmatprep.subr.mxu0 0.0
        %7037 = vmatpush1.msra.mxu0 %v1091
        %7038 = vmatprep.subr.mxu0 0.0
        %7039 = vmatpush1.msra.mxu0 %v1090
        %7040 = vmatprep.subr.mxu0 0.0
        %7041 = vmatpush1.msra.mxu0 %v1089
        %7042 = vmatprep.subr.mxu0 0.0
        %7043 = vmatpush1.msra.mxu0 %v1088
        %7044 = vmatprep.subr.mxu0 0.0
        %7045 = vmatpush1.msra.mxu0 %v1087
        %7046 = vmatprep.subr.mxu0 0.0
        %7047 = vmatpush1.msra.mxu0 %v1086
        %7048 = vmatprep.subr.mxu0 0.0
        %7049 = vmatpush2.msra.mxu0 0.0
        %7050 = vmatprep.subr.mxu0 0.0
        %7051 = vmatpush2.msra.mxu0 0.0
        %7052 = vmatprep.subr.mxu0 0.0
        %7053 = vmatpush2.msra.mxu0 0.0
        %7054 = vmatprep.subr.mxu0 0.0
        %7055 = vmatpush2.msra.mxu0 0.0
        %7056 = vmatprep.subr.mxu0 0.0
        %7057 = vmatpush2.msra.mxu0 0.0
        %7058 = vmatprep.subr.mxu0 0.0
        %7059 = vmatpush2.msra.mxu0 0.0
        %7060 = vmatprep.subr.mxu0 0.0
        %7061 = vmatpush2.msra.mxu0 0.0
        %7062 = vmatprep.subr.mxu0 0.0
        %7063 = vmatpush2.msra.mxu0 0.0
        %7064 = vmatprep.subr.mxu0 0.0
        %7065 = vmatpush2.msra.mxu0 0.0
        %7066 = vmatprep.subr.mxu0 0.0
        %7067 = vmatpush2.msra.mxu0 0.0
        %7068 = vmatprep.subr.mxu0 0.0
        %7069 = vmatpush2.msra.mxu0 0.0
        %7070 = vmatprep.subr.mxu0 0.0
        %7071 = vmatpush2.msra.mxu0 0.0
        %7072 = vmatprep.subr.mxu0 0.0
        %7073 = vmatpush2.msra.mxu0 0.0
        %7074 = vmatprep.subr.mxu0 0.0
        %7075 = vmatpush2.msra.mxu0 0.0
        %7076 = vmatprep.subr.mxu0 0.0
        %7077 = vmatpush2.msra.mxu0 0.0
        %7078 = vmatprep.subr.mxu0 0.0
        %7079 = vmatpush2.msra.mxu0 0.0
        %7080 = vmatprep.mubr.f32.mxu0 0.0
        %7081 = vmatmul.mubr.f32.gmra.mxu0 %v6753
        %v7082 = vpop.f32.mrf.mxu0
        %v7083 = vadd.f32 0.0, %v7082
        %v7084 = vpop.f32.mrf.mxu0
        %7085 = vmatprep.mubr.f32.mxu0 0.0
        %7086 = vmatmul.mubr.f32.gmra.mxu0 %v6756
        %v7087 = vpop.f32.mrf.mxu0
        %v7088 = vadd.f32 0.0, %v7087
        %v7089 = vpop.f32.mrf.mxu0
        %7090 = vmatprep.mubr.f32.mxu0 0.0
        %7091 = vmatmul.mubr.f32.gmra.mxu0 %v6759
        %v7092 = vpop.f32.mrf.mxu0
        %v7093 = vadd.f32 0.0, %v7092
        %v7094 = vpop.f32.mrf.mxu0
        %7095 = vmatprep.mubr.f32.mxu0 0.0
        %7096 = vmatmul.mubr.f32.gmra.mxu0 %v6762
        %v7097 = vpop.f32.mrf.mxu0
        %v7098 = vadd.f32 0.0, %v7097
        %v7099 = vpop.f32.mrf.mxu0
        %7100 = vmatprep.mubr.f32.mxu0 0.0
        %7101 = vmatmul.mubr.f32.gmra.mxu0 %v6765
        %v7102 = vpop.f32.mrf.mxu0
        %v7103 = vadd.f32 0.0, %v7102
        %v7104 = vpop.f32.mrf.mxu0
        %7105 = vmatprep.mubr.f32.mxu0 0.0
        %7106 = vmatmul.mubr.f32.gmra.mxu0 %v6768
        %v7107 = vpop.f32.mrf.mxu0
        %v7108 = vadd.f32 0.0, %v7107
        %v7109 = vpop.f32.mrf.mxu0
        %7110 = vmatprep.mubr.f32.mxu0 0.0
        %7111 = vmatmul.mubr.f32.gmra.mxu0 %v6771
        %v7112 = vpop.f32.mrf.mxu0
        %v7113 = vadd.f32 0.0, %v7112
        %v7114 = vpop.f32.mrf.mxu0
        %7115 = vmatprep.mubr.f32.mxu0 0.0
        %7116 = vmatmul.mubr.f32.gmra.mxu0 %v6774
        %v7117 = vpop.f32.mrf.mxu0
        %v7118 = vadd.f32 0.0, %v7117
        %v7119 = vpop.f32.mrf.mxu0
        %7120 = vmatprep.mubr.f32.mxu0 0.0
        %7121 = vmatmul.mubr.f32.gmra.mxu0 %v6777
        %v7122 = vpop.f32.mrf.mxu0
        %v7123 = vadd.f32 0.0, %v7122
        %v7124 = vpop.f32.mrf.mxu0
        %7125 = vmatprep.mubr.f32.mxu0 0.0
        %7126 = vmatmul.mubr.f32.gmra.mxu0 %v6780
        %v7127 = vpop.f32.mrf.mxu0
        %v7128 = vadd.f32 0.0, %v7127
        %v7129 = vpop.f32.mrf.mxu0
        %7130 = vmatprep.mubr.f32.mxu0 0.0
        %7131 = vmatmul.mubr.f32.gmra.mxu0 %v6783
        %v7132 = vpop.f32.mrf.mxu0
        %v7133 = vadd.f32 0.0, %v7132
        %v7134 = vpop.f32.mrf.mxu0
        %7135 = vmatprep.mubr.f32.mxu0 0.0
        %7136 = vmatmul.mubr.f32.gmra.mxu0 %v6786
        %v7137 = vpop.f32.mrf.mxu0
        %v7138 = vadd.f32 0.0, %v7137
        %v7139 = vpop.f32.mrf.mxu0
        %7140 = vmatprep.mubr.f32.mxu0 0.0
        %7141 = vmatmul.mubr.f32.gmra.mxu0 %v6789
        %v7142 = vpop.f32.mrf.mxu0
        %v7143 = vadd.f32 0.0, %v7142
        %v7144 = vpop.f32.mrf.mxu0
        %7145 = vmatprep.mubr.f32.mxu0 0.0
        %7146 = vmatmul.mubr.f32.gmra.mxu0 %v6792
        %v7147 = vpop.f32.mrf.mxu0
        %v7148 = vadd.f32 0.0, %v7147
        %v7149 = vpop.f32.mrf.mxu0
        %7150 = vmatprep.mubr.f32.mxu0 0.0
        %7151 = vmatmul.mubr.f32.gmra.mxu0 %v6795
        %v7152 = vpop.f32.mrf.mxu0
        %v7153 = vadd.f32 0.0, %v7152
        %v7154 = vpop.f32.mrf.mxu0
        %7155 = vmatprep.mubr.f32.mxu0 0.0
        %7156 = vmatmul.mubr.f32.gmra.mxu0 %v6798
        %v7157 = vpop.f32.mrf.mxu0
        %v7158 = vadd.f32 0.0, %v7157
        %v7159 = vpop.f32.mrf.mxu0
        %7160 = vmatprep.mubr.f32.mxu0 0.0
        %7161 = vmatmul.mubr.f32.gmra.mxu0 %v6801
        %v7162 = vpop.f32.mrf.mxu0
        %v7163 = vadd.f32 0.0, %v7162
        %v7164 = vpop.f32.mrf.mxu0
        %7165 = vmatprep.mubr.f32.mxu0 0.0
        %7166 = vmatmul.mubr.f32.gmra.mxu0 %v6804
        %v7167 = vpop.f32.mrf.mxu0
        %v7168 = vadd.f32 0.0, %v7167
        %v7169 = vpop.f32.mrf.mxu0
        %7170 = vmatprep.mubr.f32.mxu0 0.0
        %7171 = vmatmul.mubr.f32.gmra.mxu0 %v6807
        %v7172 = vpop.f32.mrf.mxu0
        %v7173 = vadd.f32 0.0, %v7172
        %v7174 = vpop.f32.mrf.mxu0
        %7175 = vmatprep.mubr.f32.mxu0 0.0
        %7176 = vmatmul.mubr.f32.gmra.mxu0 %v6810
        %v7177 = vpop.f32.mrf.mxu0
        %v7178 = vadd.f32 0.0, %v7177
        %v7179 = vpop.f32.mrf.mxu0
        %7180 = vmatprep.mubr.f32.mxu0 0.0
        %7181 = vmatmul.mubr.f32.gmra.mxu0 %v6813
        %v7182 = vpop.f32.mrf.mxu0
        %v7183 = vadd.f32 0.0, %v7182
        %v7184 = vpop.f32.mrf.mxu0
        %7185 = vmatprep.mubr.f32.mxu0 0.0
        %7186 = vmatmul.mubr.f32.gmra.mxu0 %v6816
        %v7187 = vpop.f32.mrf.mxu0
        %v7188 = vadd.f32 0.0, %v7187
        %v7189 = vpop.f32.mrf.mxu0
        %7190 = vmatprep.mubr.f32.mxu0 0.0
        %7191 = vmatmul.mubr.f32.gmra.mxu0 %v6819
        %v7192 = vpop.f32.mrf.mxu0
        %v7193 = vadd.f32 0.0, %v7192
        %v7194 = vpop.f32.mrf.mxu0
        %7195 = vmatprep.mubr.f32.mxu0 0.0
        %7196 = vmatmul.mubr.f32.gmra.mxu0 %v6822
        %v7197 = vpop.f32.mrf.mxu0
        %v7198 = vadd.f32 0.0, %v7197
        %v7199 = vpop.f32.mrf.mxu0
        %7200 = vmatprep.mubr.f32.mxu0 0.0
        %7201 = vmatmul.mubr.f32.gmra.mxu0 %v6825
        %v7202 = vpop.f32.mrf.mxu0
        %v7203 = vadd.f32 0.0, %v7202
        %v7204 = vpop.f32.mrf.mxu0
        %7205 = vmatprep.mubr.f32.mxu0 0.0
        %7206 = vmatmul.mubr.f32.gmra.mxu0 %v6828
        %v7207 = vpop.f32.mrf.mxu0
        %v7208 = vadd.f32 0.0, %v7207
        %v7209 = vpop.f32.mrf.mxu0
        %7210 = vmatprep.mubr.f32.mxu0 0.0
        %7211 = vmatmul.mubr.f32.gmra.mxu0 %v6831
        %v7212 = vpop.f32.mrf.mxu0
        %v7213 = vadd.f32 0.0, %v7212
        %v7214 = vpop.f32.mrf.mxu0
        %7215 = vmatprep.mubr.f32.mxu0 0.0
        %7216 = vmatmul.mubr.f32.gmra.mxu0 %v6834
        %v7217 = vpop.f32.mrf.mxu0
        %v7218 = vadd.f32 0.0, %v7217
        %v7219 = vpop.f32.mrf.mxu0
        %7220 = vmatprep.mubr.f32.mxu0 0.0
        %7221 = vmatmul.mubr.f32.gmra.mxu0 %v6837
        %v7222 = vpop.f32.mrf.mxu0
        %v7223 = vadd.f32 0.0, %v7222
        %v7224 = vpop.f32.mrf.mxu0
        %7225 = vmatprep.mubr.f32.mxu0 0.0
        %7226 = vmatmul.mubr.f32.gmra.mxu0 %v6840
        %v7227 = vpop.f32.mrf.mxu0
        %v7228 = vadd.f32 0.0, %v7227
        %v7229 = vpop.f32.mrf.mxu0
        %7230 = vmatprep.mubr.f32.mxu0 0.0
        %7231 = vmatmul.mubr.f32.gmra.mxu0 %v6843
        %v7232 = vpop.f32.mrf.mxu0
        %v7233 = vadd.f32 0.0, %v7232
        %v7234 = vpop.f32.mrf.mxu0
        %7235 = vmatprep.mubr.f32.mxu0 0.0
        %7236 = vmatmul.mubr.f32.gmra.mxu0 %v6846
        %v7237 = vpop.f32.mrf.mxu0
        %v7238 = vadd.f32 0.0, %v7237
        %v7239 = vpop.f32.mrf.mxu0
        %7240 = vmatprep.mubr.f32.mxu0 0.0
        %7241 = vmatmul.mubr.f32.gmra.mxu0 %v6849
        %v7242 = vpop.f32.mrf.mxu0
        %v7243 = vadd.f32 0.0, %v7242
        %v7244 = vpop.f32.mrf.mxu0
        %7245 = vmatprep.mubr.f32.mxu0 0.0
        %7246 = vmatmul.mubr.f32.gmra.mxu0 %v6852
        %v7247 = vpop.f32.mrf.mxu0
        %v7248 = vadd.f32 0.0, %v7247
        %v7249 = vpop.f32.mrf.mxu0
        %7250 = vmatprep.mubr.f32.mxu0 0.0
        %7251 = vmatmul.mubr.f32.gmra.mxu0 %v6855
        %v7252 = vpop.f32.mrf.mxu0
        %v7253 = vadd.f32 0.0, %v7252
        %v7254 = vpop.f32.mrf.mxu0
        %7255 = vmatprep.mubr.f32.mxu0 0.0
        %7256 = vmatmul.mubr.f32.gmra.mxu0 %v6858
        %v7257 = vpop.f32.mrf.mxu0
        %v7258 = vadd.f32 0.0, %v7257
        %v7259 = vpop.f32.mrf.mxu0
        %7260 = vmatprep.mubr.f32.mxu0 0.0
        %7261 = vmatmul.mubr.f32.gmra.mxu0 %v6861
        %v7262 = vpop.f32.mrf.mxu0
        %v7263 = vadd.f32 0.0, %v7262
        %v7264 = vpop.f32.mrf.mxu0
        %7265 = vmatprep.mubr.f32.mxu0 0.0
        %7266 = vmatmul.mubr.f32.gmra.mxu0 %v6864
        %v7267 = vpop.f32.mrf.mxu0
        %v7268 = vadd.f32 0.0, %v7267
        %v7269 = vpop.f32.mrf.mxu0
        %7270 = vmatprep.mubr.f32.mxu0 0.0
        %7271 = vmatmul.mubr.f32.gmra.mxu0 %v6867
        %v7272 = vpop.f32.mrf.mxu0
        %v7273 = vadd.f32 0.0, %v7272
        %v7274 = vpop.f32.mrf.mxu0
        %7275 = vmatprep.mubr.f32.mxu0 0.0
        %7276 = vmatmul.mubr.f32.gmra.mxu0 %v6870
        %v7277 = vpop.f32.mrf.mxu0
        %v7278 = vadd.f32 0.0, %v7277
        %v7279 = vpop.f32.mrf.mxu0
        %7280 = vmatprep.mubr.f32.mxu0 0.0
        %7281 = vmatmul.mubr.f32.gmra.mxu0 %v6873
        %v7282 = vpop.f32.mrf.mxu0
        %v7283 = vadd.f32 0.0, %v7282
        %v7284 = vpop.f32.mrf.mxu0
        %7285 = vmatprep.mubr.f32.mxu0 0.0
        %7286 = vmatmul.mubr.f32.gmra.mxu0 %v6876
        %v7287 = vpop.f32.mrf.mxu0
        %v7288 = vadd.f32 0.0, %v7287
        %v7289 = vpop.f32.mrf.mxu0
        %7290 = vmatprep.mubr.f32.mxu0 0.0
        %7291 = vmatmul.mubr.f32.gmra.mxu0 %v6879
        %v7292 = vpop.f32.mrf.mxu0
        %v7293 = vadd.f32 0.0, %v7292
        %v7294 = vpop.f32.mrf.mxu0
        %7295 = vmatprep.mubr.f32.mxu0 0.0
        %7296 = vmatmul.mubr.f32.gmra.mxu0 %v6882
        %v7297 = vpop.f32.mrf.mxu0
        %v7298 = vadd.f32 0.0, %v7297
        %v7299 = vpop.f32.mrf.mxu0
        %7300 = vmatprep.mubr.f32.mxu0 0.0
        %7301 = vmatmul.mubr.f32.gmra.mxu0 %v6885
        %v7302 = vpop.f32.mrf.mxu0
        %v7303 = vadd.f32 0.0, %v7302
        %v7304 = vpop.f32.mrf.mxu0
        %7305 = vmatprep.mubr.f32.mxu0 0.0
        %7306 = vmatmul.mubr.f32.gmra.mxu0 %v6888
        %v7307 = vpop.f32.mrf.mxu0
        %v7308 = vadd.f32 0.0, %v7307
        %v7309 = vpop.f32.mrf.mxu0
        %7310 = vmatprep.mubr.f32.mxu0 0.0
        %7311 = vmatmul.mubr.f32.gmra.mxu0 %v6891
        %v7312 = vpop.f32.mrf.mxu0
        %v7313 = vadd.f32 0.0, %v7312
        %v7314 = vpop.f32.mrf.mxu0
        %7315 = vmatprep.mubr.f32.mxu0 0.0
        %7316 = vmatmul.mubr.f32.gmra.mxu0 %v6894
        %v7317 = vpop.f32.mrf.mxu0
        %v7318 = vadd.f32 0.0, %v7317
        %v7319 = vpop.f32.mrf.mxu0
        %7320 = vmatprep.mubr.f32.mxu0 0.0
        %7321 = vmatmul.mubr.f32.gmra.mxu0 %v6897
        %v7322 = vpop.f32.mrf.mxu0
        %v7323 = vadd.f32 0.0, %v7322
        %v7324 = vpop.f32.mrf.mxu0
        %7325 = vmatprep.mubr.f32.mxu0 0.0
        %7326 = vmatmul.mubr.f32.gmra.mxu0 %v6900
        %v7327 = vpop.f32.mrf.mxu0
        %v7328 = vadd.f32 0.0, %v7327
        %v7329 = vpop.f32.mrf.mxu0
        %7330 = vmatprep.mubr.f32.mxu0 0.0
        %7331 = vmatmul.mubr.f32.gmra.mxu0 %v6903
        %v7332 = vpop.f32.mrf.mxu0
        %v7333 = vadd.f32 0.0, %v7332
        %v7334 = vpop.f32.mrf.mxu0
        %7335 = vmatprep.mubr.f32.mxu0 0.0
        %7336 = vmatmul.mubr.f32.gmra.mxu0 %v6906
        %v7337 = vpop.f32.mrf.mxu0
        %v7338 = vadd.f32 0.0, %v7337
        %v7339 = vpop.f32.mrf.mxu0
        %7340 = vmatprep.mubr.f32.mxu0 0.0
        %7341 = vmatmul.mubr.f32.gmra.mxu0 %v6909
        %v7342 = vpop.f32.mrf.mxu0
        %v7343 = vadd.f32 0.0, %v7342
        %v7344 = vpop.f32.mrf.mxu0
        %7345 = vmatprep.mubr.f32.mxu0 0.0
        %7346 = vmatmul.mubr.f32.gmra.mxu0 %v6912
        %v7347 = vpop.f32.mrf.mxu0
        %v7348 = vadd.f32 0.0, %v7347
        %v7349 = vpop.f32.mrf.mxu0
        %7350 = vmatprep.mubr.f32.mxu0 0.0
        %7351 = vmatmul.mubr.f32.gmra.mxu0 %v6915
        %v7352 = vpop.f32.mrf.mxu0
        %v7353 = vadd.f32 0.0, %v7352
        %v7354 = vpop.f32.mrf.mxu0
        %7355 = vmatprep.mubr.f32.mxu0 0.0
        %7356 = vmatmul.mubr.f32.gmra.mxu0 %v6918
        %v7357 = vpop.f32.mrf.mxu0
        %v7358 = vadd.f32 0.0, %v7357
        %v7359 = vpop.f32.mrf.mxu0
        %7360 = vmatprep.mubr.f32.mxu0 0.0
        %7361 = vmatmul.mubr.f32.gmra.mxu0 %v6921
        %v7362 = vpop.f32.mrf.mxu0
        %v7363 = vadd.f32 0.0, %v7362
        %v7364 = vpop.f32.mrf.mxu0
        %7365 = vmatprep.mubr.f32.mxu0 0.0
        %7366 = vmatmul.mubr.f32.gmra.mxu0 %v6924
        %v7367 = vpop.f32.mrf.mxu0
        %v7368 = vadd.f32 0.0, %v7367
        %v7369 = vpop.f32.mrf.mxu0
        %7370 = vmatprep.mubr.f32.mxu0 0.0
        %7371 = vmatmul.mubr.f32.gmra.mxu0 %v6927
        %v7372 = vpop.f32.mrf.mxu0
        %v7373 = vadd.f32 0.0, %v7372
        %v7374 = vpop.f32.mrf.mxu0
        %7375 = vmatprep.mubr.f32.mxu0 0.0
        %7376 = vmatmul.mubr.f32.gmra.mxu0 %v6930
        %v7377 = vpop.f32.mrf.mxu0
        %v7378 = vadd.f32 0.0, %v7377
        %v7379 = vpop.f32.mrf.mxu0
        %7380 = vmatprep.mubr.f32.mxu0 0.0
        %7381 = vmatmul.mubr.f32.gmra.mxu0 %v6933
        %v7382 = vpop.f32.mrf.mxu0
        %v7383 = vadd.f32 0.0, %v7382
        %v7384 = vpop.f32.mrf.mxu0
        %7385 = vmatprep.mubr.f32.mxu0 0.0
        %7386 = vmatmul.mubr.f32.gmra.mxu0 %v6936
        %v7387 = vpop.f32.mrf.mxu0
        %v7388 = vadd.f32 0.0, %v7387
        %v7389 = vpop.f32.mrf.mxu0
        %7390 = vmatprep.mubr.f32.mxu0 0.0
        %7391 = vmatmul.mubr.f32.gmra.mxu0 %v6939
        %v7392 = vpop.f32.mrf.mxu0
        %v7393 = vadd.f32 0.0, %v7392
        %v7394 = vpop.f32.mrf.mxu0
        %7395 = vmatprep.mubr.f32.mxu0 0.0
        %7396 = vmatmul.mubr.f32.gmra.mxu0 %v6942
        %v7397 = vpop.f32.mrf.mxu0
        %v7398 = vadd.f32 0.0, %v7397
        %v7399 = vpop.f32.mrf.mxu0
        %7400 = vmatprep.mubr.f32.mxu0 0.0
        %7401 = vmatmul.mubr.f32.gmra.mxu0 %v6945
        %v7402 = vpop.f32.mrf.mxu0
        %v7403 = vadd.f32 0.0, %v7402
        %v7404 = vpop.f32.mrf.mxu0
        %7405 = vmatprep.mubr.f32.mxu0 0.0
        %7406 = vmatmul.mubr.f32.gmra.mxu0 %v6948
        %v7407 = vpop.f32.mrf.mxu0
        %v7408 = vadd.f32 0.0, %v7407
        %v7409 = vpop.f32.mrf.mxu0
        %7410 = vmatprep.mubr.f32.mxu0 0.0
        %7411 = vmatmul.mubr.f32.gmra.mxu0 %v6951
        %v7412 = vpop.f32.mrf.mxu0
        %v7413 = vadd.f32 0.0, %v7412
        %v7414 = vpop.f32.mrf.mxu0
        %7415 = vmatprep.mubr.f32.mxu0 0.0
        %7416 = vmatmul.mubr.f32.gmra.mxu0 %v6954
        %v7417 = vpop.f32.mrf.mxu0
        %v7418 = vadd.f32 0.0, %v7417
        %v7419 = vpop.f32.mrf.mxu0
        %7420 = vmatprep.mubr.f32.mxu0 0.0
        %7421 = vmatmul.mubr.f32.gmra.mxu0 %v6957
        %v7422 = vpop.f32.mrf.mxu0
        %v7423 = vadd.f32 0.0, %v7422
        %v7424 = vpop.f32.mrf.mxu0
        %7425 = vmatprep.mubr.f32.mxu0 0.0
        %7426 = vmatmul.mubr.f32.gmra.mxu0 %v6960
        %v7427 = vpop.f32.mrf.mxu0
        %v7428 = vadd.f32 0.0, %v7427
        %v7429 = vpop.f32.mrf.mxu0
        %7430 = vmatprep.mubr.f32.mxu0 0.0
        %7431 = vmatmul.mubr.f32.gmra.mxu0 %v6963
        %v7432 = vpop.f32.mrf.mxu0
        %v7433 = vadd.f32 0.0, %v7432
        %v7434 = vpop.f32.mrf.mxu0
        %7435 = vmatprep.mubr.f32.mxu0 0.0
        %7436 = vmatmul.mubr.f32.gmra.mxu0 %v6966
        %v7437 = vpop.f32.mrf.mxu0
        %v7438 = vadd.f32 0.0, %v7437
        %v7439 = vpop.f32.mrf.mxu0
        %7440 = vmatprep.mubr.f32.mxu0 0.0
        %7441 = vmatmul.mubr.f32.gmra.mxu0 %v6969
        %v7442 = vpop.f32.mrf.mxu0
        %v7443 = vadd.f32 0.0, %v7442
        %v7444 = vpop.f32.mrf.mxu0
        %7445 = vmatprep.mubr.f32.mxu0 0.0
        %7446 = vmatmul.mubr.f32.gmra.mxu0 %v6972
        %v7447 = vpop.f32.mrf.mxu0
        %v7448 = vadd.f32 0.0, %v7447
        %v7449 = vpop.f32.mrf.mxu0
        %7450 = vmatprep.mubr.f32.mxu0 0.0
        %7451 = vmatmul.mubr.f32.gmra.mxu0 %v6975
        %v7452 = vpop.f32.mrf.mxu0
        %v7453 = vadd.f32 0.0, %v7452
        %v7454 = vpop.f32.mrf.mxu0
        %7455 = vmatprep.mubr.f32.mxu0 0.0
        %7456 = vmatmul.mubr.f32.gmra.mxu0 %v6978
        %v7457 = vpop.f32.mrf.mxu0
        %v7458 = vadd.f32 0.0, %v7457
        %v7459 = vpop.f32.mrf.mxu0
        %7460 = vmatprep.mubr.f32.mxu0 0.0
        %7461 = vmatmul.mubr.f32.gmra.mxu0 %v6981
        %v7462 = vpop.f32.mrf.mxu0
        %v7463 = vadd.f32 0.0, %v7462
        %v7464 = vpop.f32.mrf.mxu0
        %7465 = vmatprep.mubr.f32.mxu0 0.0
        %7466 = vmatmul.mubr.f32.gmra.mxu0 %v6984
        %v7467 = vpop.f32.mrf.mxu0
        %v7468 = vadd.f32 0.0, %v7467
        %v7469 = vpop.f32.mrf.mxu0
        %7470 = vmatprep.mubr.f32.mxu0 0.0
        %7471 = vmatmul.mubr.f32.gmra.mxu0 %v6987
        %v7472 = vpop.f32.mrf.mxu0
        %v7473 = vadd.f32 0.0, %v7472
        %v7474 = vpop.f32.mrf.mxu0
        %7475 = vmatprep.mubr.f32.mxu0 0.0
        %7476 = vmatmul.mubr.f32.gmra.mxu0 %v6990
        %v7477 = vpop.f32.mrf.mxu0
        %v7478 = vadd.f32 0.0, %v7477
        %v7479 = vpop.f32.mrf.mxu0
        %7480 = vmatprep.mubr.f32.mxu0 0.0
        %7481 = vmatmul.mubr.f32.gmra.mxu0 %v6993
        %v7482 = vpop.f32.mrf.mxu0
        %v7483 = vadd.f32 0.0, %v7482
        %v7484 = vpop.f32.mrf.mxu0
        %7485 = vmatprep.mubr.f32.mxu0 0.0
        %7486 = vmatmul.mubr.f32.gmra.mxu0 %v6996
        %v7487 = vpop.f32.mrf.mxu0
        %v7488 = vadd.f32 0.0, %v7487
        %v7489 = vpop.f32.mrf.mxu0
        %7490 = vmatprep.mubr.f32.mxu0 0.0
        %7491 = vmatmul.mubr.f32.gmra.mxu0 %v6999
        %v7492 = vpop.f32.mrf.mxu0
        %v7493 = vadd.f32 0.0, %v7492
        %v7494 = vpop.f32.mrf.mxu0
        %7495 = vmatprep.mubr.f32.mxu0 0.0
        %7496 = vmatmul.mubr.f32.gmra.mxu0 %v7002
        %v7497 = vpop.f32.mrf.mxu0
        %v7498 = vadd.f32 0.0, %v7497
        %v7499 = vpop.f32.mrf.mxu0
        %7500 = vmatprep.mubr.f32.mxu0 0.0
        %7501 = vmatmul.mubr.f32.gmra.mxu0 %v7005
        %v7502 = vpop.f32.mrf.mxu0
        %v7503 = vadd.f32 0.0, %v7502
        %v7504 = vpop.f32.mrf.mxu0
        %7505 = vmatprep.mubr.f32.mxu0 0.0
        %7506 = vmatmul.mubr.f32.gmra.mxu0 %v7008
        %v7507 = vpop.f32.mrf.mxu0
        %v7508 = vadd.f32 0.0, %v7507
        %v7509 = vpop.f32.mrf.mxu0
        %7510 = vmatprep.mubr.f32.mxu0 0.0
        %7511 = vmatmul.mubr.f32.gmra.mxu0 %v7011
        %v7512 = vpop.f32.mrf.mxu0
        %v7513 = vadd.f32 0.0, %v7512
        %v7514 = vpop.f32.mrf.mxu0
        %7515 = vmatprep.mubr.f32.mxu0 0.0
        %7516 = vmatmul.mubr.f32.gmra.mxu0 %v7014
        %v7517 = vpop.f32.mrf.mxu0
        %v7518 = vadd.f32 0.0, %v7517
        %v7519 = vpop.f32.mrf.mxu0
        %7520 = vdwg.mxu0
        %v7521 = vsub.f32 %v7083, %v1086
        %v7522 = vsub.f32 %v7088, %v1087
        %v7523 = vsub.f32 %v7093, %v1088
        %v7524 = vsub.f32 %v7098, %v1089
        %v7525 = vsub.f32 %v7103, %v1090
        %v7526 = vsub.f32 %v7108, %v1091
        %v7527 = vsub.f32 %v7113, %v1092
        %v7528 = vsub.f32 %v7118, %v1093
        %v7529 = vsub.f32 %v7123, %v1086
        %v7530 = vsub.f32 %v7128, %v1087
        %v7531 = vsub.f32 %v7133, %v1088
        %v7532 = vsub.f32 %v7138, %v1089
        %v7533 = vsub.f32 %v7143, %v1090
        %v7534 = vsub.f32 %v7148, %v1091
        %v7535 = vsub.f32 %v7153, %v1092
        %v7536 = vsub.f32 %v7158, %v1093
        %v7537 = vsub.f32 %v7163, %v1086
        %v7538 = vsub.f32 %v7168, %v1087
        %v7539 = vsub.f32 %v7173, %v1088
        %v7540 = vsub.f32 %v7178, %v1089
        %v7541 = vsub.f32 %v7183, %v1090
        %v7542 = vsub.f32 %v7188, %v1091
        %v7543 = vsub.f32 %v7193, %v1092
        %v7544 = vsub.f32 %v7198, %v1093
        %v7545 = vsub.f32 %v7203, %v1086
        %v7546 = vsub.f32 %v7208, %v1087
        %v7547 = vsub.f32 %v7213, %v1088
        %v7548 = vsub.f32 %v7218, %v1089
        %v7549 = vsub.f32 %v7223, %v1090
        %v7550 = vsub.f32 %v7228, %v1091
        %v7551 = vsub.f32 %v7233, %v1092
        %v7552 = vsub.f32 %v7238, %v1093
        %v7553 = vsub.f32 %v7243, %v1086
        %v7554 = vsub.f32 %v7248, %v1087
        %v7555 = vsub.f32 %v7253, %v1088
        %v7556 = vsub.f32 %v7258, %v1089
        %v7557 = vsub.f32 %v7263, %v1090
        %v7558 = vsub.f32 %v7268, %v1091
        %v7559 = vsub.f32 %v7273, %v1092
        %v7560 = vsub.f32 %v7278, %v1093
        %v7561 = vsub.f32 %v7283, %v1086
        %v7562 = vsub.f32 %v7288, %v1087
        %v7563 = vsub.f32 %v7293, %v1088
        %v7564 = vsub.f32 %v7298, %v1089
        %v7565 = vsub.f32 %v7303, %v1090
        %v7566 = vsub.f32 %v7308, %v1091
        %v7567 = vsub.f32 %v7313, %v1092
        %v7568 = vsub.f32 %v7318, %v1093
        %v7569 = vsub.f32 %v7323, %v1086
        %v7570 = vsub.f32 %v7328, %v1087
        %v7571 = vsub.f32 %v7333, %v1088
        %v7572 = vsub.f32 %v7338, %v1089
        %v7573 = vsub.f32 %v7343, %v1090
        %v7574 = vsub.f32 %v7348, %v1091
        %v7575 = vsub.f32 %v7353, %v1092
        %v7576 = vsub.f32 %v7358, %v1093
        %v7577 = vsub.f32 %v7363, %v1086
        %v7578 = vsub.f32 %v7368, %v1087
        %v7579 = vsub.f32 %v7373, %v1088
        %v7580 = vsub.f32 %v7378, %v1089
        %v7581 = vsub.f32 %v7383, %v1090
        %v7582 = vsub.f32 %v7388, %v1091
        %v7583 = vsub.f32 %v7393, %v1092
        %v7584 = vsub.f32 %v7398, %v1093
        %v7585 = vsub.f32 %v7403, %v1086
        %v7586 = vsub.f32 %v7408, %v1087
        %v7587 = vsub.f32 %v7413, %v1088
        %v7588 = vsub.f32 %v7418, %v1089
        %v7589 = vsub.f32 %v7423, %v1090
        %v7590 = vsub.f32 %v7428, %v1091
        %v7591 = vsub.f32 %v7433, %v1092
        %v7592 = vsub.f32 %v7438, %v1093
        %v7593 = vsub.f32 %v7443, %v1086
        %v7594 = vsub.f32 %v7448, %v1087
        %v7595 = vsub.f32 %v7453, %v1088
        %v7596 = vsub.f32 %v7458, %v1089
        %v7597 = vsub.f32 %v7463, %v1090
        %v7598 = vsub.f32 %v7468, %v1091
        %v7599 = vsub.f32 %v7473, %v1092
        %v7600 = vsub.f32 %v7478, %v1093
        %v7601 = vsub.f32 %v7483, %v1086
        %v7602 = vsub.f32 %v7488, %v1087
        %v7603 = vsub.f32 %v7493, %v1088
        %v7604 = vsub.f32 %v7498, %v1089
        %v7605 = vsub.f32 %v7503, %v1090
        %v7606 = vsub.f32 %v7508, %v1091
        %v7607 = vsub.f32 %v7513, %v1092
        %v7608 = vsub.f32 %v7518, %v1093
        %v7609 = vld [vmem:[%s765] sm:$0xf]
        %v7610 = vld [vmem:[%s765 + $0x4] sm:$0xf]
        %v7611 = vld [vmem:[%s765 + $0x8] sm:$0xf]
        %v7612 = vld [vmem:[%s765 + $0xc] sm:$0xf]
        %v7613 = vld [vmem:[%s765 + $0x10] sm:$0xf]
        %v7614 = vld [vmem:[%s765 + $0x14] sm:$0xf]
        %v7615 = vld [vmem:[%s765 + $0x18] sm:$0xf]
        %v7616 = vld [vmem:[%s765 + $0x1c] sm:$0xf]
        %v7617 = vld [vmem:[%s765 + $0x20] sm:$0xf]
        %v7618 = vld [vmem:[%s765 + $0x24] sm:$0xf]
        %v7619 = vld [vmem:[%s765 + $0x28] sm:$0xf]
        %v7620 = vld [vmem:[%s765 + $0x2c] sm:$0xf]
        %v7621 = vld [vmem:[%s765 + $0x30] sm:$0xf]
        %v7622 = vld [vmem:[%s765 + $0x34] sm:$0xf]
        %v7623 = vld [vmem:[%s765 + $0x38] sm:$0xf]
        %v7624 = vld [vmem:[%s765 + $0x3c] sm:$0xf]
        %v7625 = vpack.c.bf16 %v6577, %v6576
        %v7626 = vpack.c.bf16 %v6579, %v6578
        %v7627 = vpack.c.bf16 %v6581, %v6580
        %v7628 = vpack.c.bf16 %v6583, %v6582
        %v7629 = vpack.c.bf16 %v6585, %v6584
        %v7630 = vpack.c.bf16 %v6587, %v6586
        %v7631 = vpack.c.bf16 %v6589, %v6588
        %v7632 = vpack.c.bf16 %v6591, %v6590
        %v7633 = vpack.c.bf16 %v6593, %v6592
        %v7634 = vpack.c.bf16 %v6595, %v6594
        %v7635 = vpack.c.bf16 %v6597, %v6596
        %v7636 = vpack.c.bf16 %v6599, %v6598
        %v7637 = vpack.c.bf16 %v6601, %v6600
        %v7638 = vpack.c.bf16 %v6603, %v6602
        %v7639 = vpack.c.bf16 %v6605, %v6604
        %v7640 = vpack.c.bf16 %v6607, %v6606
        %v7641 = vpack.c.bf16 %v6609, %v6608
        %v7642 = vpack.c.bf16 %v6611, %v6610
        %v7643 = vpack.c.bf16 %v6613, %v6612
        %v7644 = vpack.c.bf16 %v6615, %v6614
        %v7645 = vpack.c.bf16 %v6617, %v6616
        %v7646 = vpack.c.bf16 %v6619, %v6618
        %v7647 = vpack.c.bf16 %v6621, %v6620
        %v7648 = vpack.c.bf16 %v6623, %v6622
        %v7649 = vpack.c.bf16 %v6625, %v6624
        %v7650 = vpack.c.bf16 %v6627, %v6626
        %v7651 = vpack.c.bf16 %v6629, %v6628
        %v7652 = vpack.c.bf16 %v6631, %v6630
        %v7653 = vpack.c.bf16 %v6633, %v6632
        %v7654 = vpack.c.bf16 %v6635, %v6634
        %v7655 = vpack.c.bf16 %v6637, %v6636
        %v7656 = vpack.c.bf16 %v6639, %v6638
        %v7657 = vpack.c.bf16 %v6641, %v6640
        %v7658 = vpack.c.bf16 %v6643, %v6642
        %v7659 = vpack.c.bf16 %v6645, %v6644
        %v7660 = vpack.c.bf16 %v6647, %v6646
        %v7661 = vpack.c.bf16 %v6649, %v6648
        %v7662 = vpack.c.bf16 %v6651, %v6650
        %v7663 = vpack.c.bf16 %v6653, %v6652
        %v7664 = vpack.c.bf16 %v6655, %v6654
        %v7665 = vpack.c.bf16 %v6657, %v6656
        %v7666 = vpack.c.bf16 %v6659, %v6658
        %v7667 = vpack.c.bf16 %v6661, %v6660
        %v7668 = vpack.c.bf16 %v6663, %v6662
        %v7669 = vld [vmem:[%s897] sm:$0x1]
        %v7671 = vlaneseq
        %v7672 = vshrl.u32 %v7671, 7
        %v7673 = vsub.s32 0, %v7672
        %v7674 = vrot.slane %v7669, %v7673
        %v7692 = vunpack.c.l.b16 %v7609
        %v7693 = vunpack.c.l.b16 %v7610
        %v7694 = vunpack.c.l.b16 %v7611
        %v7695 = vunpack.c.l.b16 %v7612
        %v7696 = vunpack.c.l.b16 %v7613
        %v7697 = vunpack.c.l.b16 %v7614
        %v7698 = vunpack.c.l.b16 %v7615
        %v7699 = vunpack.c.l.b16 %v7616
        %v7700 = vunpack.c.l.b16 %v7617
        %v7701 = vunpack.c.l.b16 %v7618
        %v7702 = vunpack.c.l.b16 %v7619
        %v7703 = vunpack.c.l.b16 %v7620
        %v7704 = vunpack.c.l.b16 %v7621
        %v7705 = vunpack.c.l.b16 %v7622
        %v7706 = vunpack.c.l.b16 %v7623
        %v7707 = vunpack.c.l.b16 %v7624
        %v7708 = vpack.c.b16 %v7693, %v7692
        %v7709 = vpack.c.b16 %v7695, %v7694
        %v7710 = vpack.c.b16 %v7697, %v7696
        %v7711 = vpack.c.b16 %v7699, %v7698
        %v7712 = vpack.c.b16 %v7701, %v7700
        %v7713 = vpack.c.b16 %v7703, %v7702
        %v7714 = vpack.c.b16 %v7705, %v7704
        %v7715 = vpack.c.b16 %v7707, %v7706
        %7724 = vmatprep.subr.bf16.mxu0 0
        %7725 = vmatpush1.bf16.msra.mxu0 %v7715
        %7726 = vmatprep.subr.bf16.mxu0 0
        %7727 = vmatpush1.bf16.msra.mxu0 %v7714
        %7728 = vmatprep.subr.bf16.mxu0 0
        %7729 = vmatpush1.bf16.msra.mxu0 %v7713
        %7730 = vmatprep.subr.bf16.mxu0 0
        %7731 = vmatpush1.bf16.msra.mxu0 %v7712
        %7732 = vmatprep.subr.bf16.mxu0 0
        %7733 = vmatpush1.bf16.msra.mxu0 %v7711
        %7734 = vmatprep.subr.bf16.mxu0 0
        %7735 = vmatpush1.bf16.msra.mxu0 %v7710
        %7736 = vmatprep.subr.bf16.mxu0 0
        %7737 = vmatpush1.bf16.msra.mxu0 %v7709
        %7738 = vmatprep.subr.bf16.mxu0 0
        %7739 = vmatpush1.bf16.msra.mxu0 %v7708
        %7740 = vmatprep.subr.bf16.mxu0 0
        %7741 = vmatpush2.bf16.msra.mxu0 0
        %7742 = vmatprep.subr.bf16.mxu0 0
        %7743 = vmatpush2.bf16.msra.mxu0 0
        %7744 = vmatprep.subr.bf16.mxu0 0
        %7745 = vmatpush2.bf16.msra.mxu0 0
        %7746 = vmatprep.subr.bf16.mxu0 0
        %7747 = vmatpush2.bf16.msra.mxu0 0
        %7748 = vmatprep.subr.bf16.mxu0 0
        %7749 = vmatpush2.bf16.msra.mxu0 0
        %7750 = vmatprep.subr.bf16.mxu0 0
        %7751 = vmatpush2.bf16.msra.mxu0 0
        %7752 = vmatprep.subr.bf16.mxu0 0
        %7753 = vmatpush2.bf16.msra.mxu0 0
        %7754 = vmatprep.subr.bf16.mxu0 0
        %7755 = vmatpush2.bf16.msra.mxu0 0
        %7756 = vmatprep.mubr.bf16.mxu0 0
        %7757 = vmatmul.mubr.bf16.gmra.mxu0 %v7625
        %v7758 = vpop.f32.mrf.mxu0
        %v7759 = vadd.f32 %v7674, %v7758
        %v7760 = vpop.f32.mrf.mxu0
        %v7761 = vpop.f32.mrf.mxu0
        %v7762 = vadd.f32 %v7674, %v7761
        %v7763 = vpop.f32.mrf.mxu0
        %7764 = vmatprep.mubr.bf16.mxu0 0
        %7765 = vmatmul.mubr.bf16.gmra.mxu0 %v7626
        %v7766 = vpop.f32.mrf.mxu0
        %v7767 = vadd.f32 %v7674, %v7766
        %v7768 = vpop.f32.mrf.mxu0
        %v7769 = vpop.f32.mrf.mxu0
        %v7770 = vadd.f32 %v7674, %v7769
        %v7771 = vpop.f32.mrf.mxu0
        %7772 = vmatprep.mubr.bf16.mxu0 0
        %7773 = vmatmul.mubr.bf16.gmra.mxu0 %v7627
        %v7774 = vpop.f32.mrf.mxu0
        %v7775 = vadd.f32 %v7674, %v7774
        %v7776 = vpop.f32.mrf.mxu0
        %v7777 = vpop.f32.mrf.mxu0
        %v7778 = vadd.f32 %v7674, %v7777
        %v7779 = vpop.f32.mrf.mxu0
        %7780 = vmatprep.mubr.bf16.mxu0 0
        %7781 = vmatmul.mubr.bf16.gmra.mxu0 %v7628
        %v7782 = vpop.f32.mrf.mxu0
        %v7783 = vadd.f32 %v7674, %v7782
        %v7784 = vpop.f32.mrf.mxu0
        %v7785 = vpop.f32.mrf.mxu0
        %v7786 = vadd.f32 %v7674, %v7785
        %v7787 = vpop.f32.mrf.mxu0
        %7788 = vmatprep.mubr.bf16.mxu0 0
        %7789 = vmatmul.mubr.bf16.gmra.mxu0 %v7629
        %v7790 = vpop.f32.mrf.mxu0
        %v7791 = vadd.f32 %v7674, %v7790
        %v7792 = vpop.f32.mrf.mxu0
        %v7793 = vpop.f32.mrf.mxu0
        %v7794 = vadd.f32 %v7674, %v7793
        %v7795 = vpop.f32.mrf.mxu0
        %7796 = vmatprep.mubr.bf16.mxu0 0
        %7797 = vmatmul.mubr.bf16.gmra.mxu0 %v7630
        %v7798 = vpop.f32.mrf.mxu0
        %v7799 = vadd.f32 %v7674, %v7798
        %v7800 = vpop.f32.mrf.mxu0
        %v7801 = vpop.f32.mrf.mxu0
        %v7802 = vadd.f32 %v7674, %v7801
        %v7803 = vpop.f32.mrf.mxu0
        %7804 = vmatprep.mubr.bf16.mxu0 0
        %7805 = vmatmul.mubr.bf16.gmra.mxu0 %v7631
        %v7806 = vpop.f32.mrf.mxu0
        %v7807 = vadd.f32 %v7674, %v7806
        %v7808 = vpop.f32.mrf.mxu0
        %v7809 = vpop.f32.mrf.mxu0
        %v7810 = vadd.f32 %v7674, %v7809
        %v7811 = vpop.f32.mrf.mxu0
        %7812 = vmatprep.mubr.bf16.mxu0 0
        %7813 = vmatmul.mubr.bf16.gmra.mxu0 %v7632
        %v7814 = vpop.f32.mrf.mxu0
        %v7815 = vadd.f32 %v7674, %v7814
        %v7816 = vpop.f32.mrf.mxu0
        %v7817 = vpop.f32.mrf.mxu0
        %v7818 = vadd.f32 %v7674, %v7817
        %v7819 = vpop.f32.mrf.mxu0
        %7820 = vmatprep.mubr.bf16.mxu0 0
        %7821 = vmatmul.mubr.bf16.gmra.mxu0 %v7633
        %v7822 = vpop.f32.mrf.mxu0
        %v7823 = vadd.f32 %v7674, %v7822
        %v7824 = vpop.f32.mrf.mxu0
        %v7825 = vpop.f32.mrf.mxu0
        %v7826 = vadd.f32 %v7674, %v7825
        %v7827 = vpop.f32.mrf.mxu0
        %7828 = vmatprep.mubr.bf16.mxu0 0
        %7829 = vmatmul.mubr.bf16.gmra.mxu0 %v7634
        %v7830 = vpop.f32.mrf.mxu0
        %v7831 = vadd.f32 %v7674, %v7830
        %v7832 = vpop.f32.mrf.mxu0
        %v7833 = vpop.f32.mrf.mxu0
        %v7834 = vadd.f32 %v7674, %v7833
        %v7835 = vpop.f32.mrf.mxu0
        %7836 = vmatprep.mubr.bf16.mxu0 0
        %7837 = vmatmul.mubr.bf16.gmra.mxu0 %v7635
        %v7838 = vpop.f32.mrf.mxu0
        %v7839 = vadd.f32 %v7674, %v7838
        %v7840 = vpop.f32.mrf.mxu0
        %v7841 = vpop.f32.mrf.mxu0
        %v7842 = vadd.f32 %v7674, %v7841
        %v7843 = vpop.f32.mrf.mxu0
        %7844 = vmatprep.mubr.bf16.mxu0 0
        %7845 = vmatmul.mubr.bf16.gmra.mxu0 %v7636
        %v7846 = vpop.f32.mrf.mxu0
        %v7847 = vadd.f32 %v7674, %v7846
        %v7848 = vpop.f32.mrf.mxu0
        %v7849 = vpop.f32.mrf.mxu0
        %v7850 = vadd.f32 %v7674, %v7849
        %v7851 = vpop.f32.mrf.mxu0
        %7852 = vmatprep.mubr.bf16.mxu0 0
        %7853 = vmatmul.mubr.bf16.gmra.mxu0 %v7637
        %v7854 = vpop.f32.mrf.mxu0
        %v7855 = vadd.f32 %v7674, %v7854
        %v7856 = vpop.f32.mrf.mxu0
        %v7857 = vpop.f32.mrf.mxu0
        %v7858 = vadd.f32 %v7674, %v7857
        %v7859 = vpop.f32.mrf.mxu0
        %7860 = vmatprep.mubr.bf16.mxu0 0
        %7861 = vmatmul.mubr.bf16.gmra.mxu0 %v7638
        %v7862 = vpop.f32.mrf.mxu0
        %v7863 = vadd.f32 %v7674, %v7862
        %v7864 = vpop.f32.mrf.mxu0
        %v7865 = vpop.f32.mrf.mxu0
        %v7866 = vadd.f32 %v7674, %v7865
        %v7867 = vpop.f32.mrf.mxu0
        %7868 = vmatprep.mubr.bf16.mxu0 0
        %7869 = vmatmul.mubr.bf16.gmra.mxu0 %v7639
        %v7870 = vpop.f32.mrf.mxu0
        %v7871 = vadd.f32 %v7674, %v7870
        %v7872 = vpop.f32.mrf.mxu0
        %v7873 = vpop.f32.mrf.mxu0
        %v7874 = vadd.f32 %v7674, %v7873
        %v7875 = vpop.f32.mrf.mxu0
        %7876 = vmatprep.mubr.bf16.mxu0 0
        %7877 = vmatmul.mubr.bf16.gmra.mxu0 %v7640
        %v7878 = vpop.f32.mrf.mxu0
        %v7879 = vadd.f32 %v7674, %v7878
        %v7880 = vpop.f32.mrf.mxu0
        %v7881 = vpop.f32.mrf.mxu0
        %v7882 = vadd.f32 %v7674, %v7881
        %v7883 = vpop.f32.mrf.mxu0
        %7884 = vmatprep.mubr.bf16.mxu0 0
        %7885 = vmatmul.mubr.bf16.gmra.mxu0 %v7641
        %v7886 = vpop.f32.mrf.mxu0
        %v7887 = vadd.f32 %v7674, %v7886
        %v7888 = vpop.f32.mrf.mxu0
        %v7889 = vpop.f32.mrf.mxu0
        %v7890 = vadd.f32 %v7674, %v7889
        %v7891 = vpop.f32.mrf.mxu0
        %7892 = vmatprep.mubr.bf16.mxu0 0
        %7893 = vmatmul.mubr.bf16.gmra.mxu0 %v7642
        %v7894 = vpop.f32.mrf.mxu0
        %v7895 = vadd.f32 %v7674, %v7894
        %v7896 = vpop.f32.mrf.mxu0
        %v7897 = vpop.f32.mrf.mxu0
        %v7898 = vadd.f32 %v7674, %v7897
        %v7899 = vpop.f32.mrf.mxu0
        %7900 = vmatprep.mubr.bf16.mxu0 0
        %7901 = vmatmul.mubr.bf16.gmra.mxu0 %v7643
        %v7902 = vpop.f32.mrf.mxu0
        %v7903 = vadd.f32 %v7674, %v7902
        %v7904 = vpop.f32.mrf.mxu0
        %v7905 = vpop.f32.mrf.mxu0
        %v7906 = vadd.f32 %v7674, %v7905
        %v7907 = vpop.f32.mrf.mxu0
        %7908 = vmatprep.mubr.bf16.mxu0 0
        %7909 = vmatmul.mubr.bf16.gmra.mxu0 %v7644
        %v7910 = vpop.f32.mrf.mxu0
        %v7911 = vadd.f32 %v7674, %v7910
        %v7912 = vpop.f32.mrf.mxu0
        %v7913 = vpop.f32.mrf.mxu0
        %v7914 = vadd.f32 %v7674, %v7913
        %v7915 = vpop.f32.mrf.mxu0
        %7916 = vmatprep.mubr.bf16.mxu0 0
        %7917 = vmatmul.mubr.bf16.gmra.mxu0 %v7645
        %v7918 = vpop.f32.mrf.mxu0
        %v7919 = vadd.f32 %v7674, %v7918
        %v7920 = vpop.f32.mrf.mxu0
        %v7921 = vpop.f32.mrf.mxu0
        %v7922 = vadd.f32 %v7674, %v7921
        %v7923 = vpop.f32.mrf.mxu0
        %7924 = vmatprep.mubr.bf16.mxu0 0
        %7925 = vmatmul.mubr.bf16.gmra.mxu0 %v7646
        %v7926 = vpop.f32.mrf.mxu0
        %v7927 = vadd.f32 %v7674, %v7926
        %v7928 = vpop.f32.mrf.mxu0
        %v7929 = vpop.f32.mrf.mxu0
        %v7930 = vadd.f32 %v7674, %v7929
        %v7931 = vpop.f32.mrf.mxu0
        %7932 = vmatprep.mubr.bf16.mxu0 0
        %7933 = vmatmul.mubr.bf16.gmra.mxu0 %v7647
        %v7934 = vpop.f32.mrf.mxu0
        %v7935 = vadd.f32 %v7674, %v7934
        %v7936 = vpop.f32.mrf.mxu0
        %v7937 = vpop.f32.mrf.mxu0
        %v7938 = vadd.f32 %v7674, %v7937
        %v7939 = vpop.f32.mrf.mxu0
        %7940 = vmatprep.mubr.bf16.mxu0 0
        %7941 = vmatmul.mubr.bf16.gmra.mxu0 %v7648
        %v7942 = vpop.f32.mrf.mxu0
        %v7943 = vadd.f32 %v7674, %v7942
        %v7944 = vpop.f32.mrf.mxu0
        %v7945 = vpop.f32.mrf.mxu0
        %v7946 = vadd.f32 %v7674, %v7945
        %v7947 = vpop.f32.mrf.mxu0
        %7948 = vmatprep.mubr.bf16.mxu0 0
        %7949 = vmatmul.mubr.bf16.gmra.mxu0 %v7649
        %v7950 = vpop.f32.mrf.mxu0
        %v7951 = vadd.f32 %v7674, %v7950
        %v7952 = vpop.f32.mrf.mxu0
        %v7953 = vpop.f32.mrf.mxu0
        %v7954 = vadd.f32 %v7674, %v7953
        %v7955 = vpop.f32.mrf.mxu0
        %7956 = vmatprep.mubr.bf16.mxu0 0
        %7957 = vmatmul.mubr.bf16.gmra.mxu0 %v7650
        %v7958 = vpop.f32.mrf.mxu0
        %v7959 = vadd.f32 %v7674, %v7958
        %v7960 = vpop.f32.mrf.mxu0
        %v7961 = vpop.f32.mrf.mxu0
        %v7962 = vadd.f32 %v7674, %v7961
        %v7963 = vpop.f32.mrf.mxu0
        %7964 = vmatprep.mubr.bf16.mxu0 0
        %7965 = vmatmul.mubr.bf16.gmra.mxu0 %v7651
        %v7966 = vpop.f32.mrf.mxu0
        %v7967 = vadd.f32 %v7674, %v7966
        %v7968 = vpop.f32.mrf.mxu0
        %v7969 = vpop.f32.mrf.mxu0
        %v7970 = vadd.f32 %v7674, %v7969
        %v7971 = vpop.f32.mrf.mxu0
        %7972 = vmatprep.mubr.bf16.mxu0 0
        %7973 = vmatmul.mubr.bf16.gmra.mxu0 %v7652
        %v7974 = vpop.f32.mrf.mxu0
        %v7975 = vadd.f32 %v7674, %v7974
        %v7976 = vpop.f32.mrf.mxu0
        %v7977 = vpop.f32.mrf.mxu0
        %v7978 = vadd.f32 %v7674, %v7977
        %v7979 = vpop.f32.mrf.mxu0
        %7980 = vmatprep.mubr.bf16.mxu0 0
        %7981 = vmatmul.mubr.bf16.gmra.mxu0 %v7653
        %v7982 = vpop.f32.mrf.mxu0
        %v7983 = vadd.f32 %v7674, %v7982
        %v7984 = vpop.f32.mrf.mxu0
        %v7985 = vpop.f32.mrf.mxu0
        %v7986 = vadd.f32 %v7674, %v7985
        %v7987 = vpop.f32.mrf.mxu0
        %7988 = vmatprep.mubr.bf16.mxu0 0
        %7989 = vmatmul.mubr.bf16.gmra.mxu0 %v7654
        %v7990 = vpop.f32.mrf.mxu0
        %v7991 = vadd.f32 %v7674, %v7990
        %v7992 = vpop.f32.mrf.mxu0
        %v7993 = vpop.f32.mrf.mxu0
        %v7994 = vadd.f32 %v7674, %v7993
        %v7995 = vpop.f32.mrf.mxu0
        %7996 = vmatprep.mubr.bf16.mxu0 0
        %7997 = vmatmul.mubr.bf16.gmra.mxu0 %v7655
        %v7998 = vpop.f32.mrf.mxu0
        %v7999 = vadd.f32 %v7674, %v7998
        %v8000 = vpop.f32.mrf.mxu0
        %v8001 = vpop.f32.mrf.mxu0
        %v8002 = vadd.f32 %v7674, %v8001
        %v8003 = vpop.f32.mrf.mxu0
        %8004 = vmatprep.mubr.bf16.mxu0 0
        %8005 = vmatmul.mubr.bf16.gmra.mxu0 %v7656
        %v8006 = vpop.f32.mrf.mxu0
        %v8007 = vadd.f32 %v7674, %v8006
        %v8008 = vpop.f32.mrf.mxu0
        %v8009 = vpop.f32.mrf.mxu0
        %v8010 = vadd.f32 %v7674, %v8009
        %v8011 = vpop.f32.mrf.mxu0
        %8012 = vmatprep.mubr.bf16.mxu0 0
        %8013 = vmatmul.mubr.bf16.gmra.mxu0 %v7657
        %v8014 = vpop.f32.mrf.mxu0
        %v8015 = vadd.f32 %v7674, %v8014
        %v8016 = vpop.f32.mrf.mxu0
        %v8017 = vpop.f32.mrf.mxu0
        %v8018 = vadd.f32 %v7674, %v8017
        %v8019 = vpop.f32.mrf.mxu0
        %8020 = vmatprep.mubr.bf16.mxu0 0
        %8021 = vmatmul.mubr.bf16.gmra.mxu0 %v7658
        %v8022 = vpop.f32.mrf.mxu0
        %v8023 = vadd.f32 %v7674, %v8022
        %v8024 = vpop.f32.mrf.mxu0
        %v8025 = vpop.f32.mrf.mxu0
        %v8026 = vadd.f32 %v7674, %v8025
        %v8027 = vpop.f32.mrf.mxu0
        %8028 = vmatprep.mubr.bf16.mxu0 0
        %8029 = vmatmul.mubr.bf16.gmra.mxu0 %v7659
        %v8030 = vpop.f32.mrf.mxu0
        %v8031 = vadd.f32 %v7674, %v8030
        %v8032 = vpop.f32.mrf.mxu0
        %v8033 = vpop.f32.mrf.mxu0
        %v8034 = vadd.f32 %v7674, %v8033
        %v8035 = vpop.f32.mrf.mxu0
        %8036 = vmatprep.mubr.bf16.mxu0 0
        %8037 = vmatmul.mubr.bf16.gmra.mxu0 %v7660
        %v8038 = vpop.f32.mrf.mxu0
        %v8039 = vadd.f32 %v7674, %v8038
        %v8040 = vpop.f32.mrf.mxu0
        %v8041 = vpop.f32.mrf.mxu0
        %v8042 = vadd.f32 %v7674, %v8041
        %v8043 = vpop.f32.mrf.mxu0
        %8044 = vmatprep.mubr.bf16.mxu0 0
        %8045 = vmatmul.mubr.bf16.gmra.mxu0 %v7661
        %v8046 = vpop.f32.mrf.mxu0
        %v8047 = vadd.f32 %v7674, %v8046
        %v8048 = vpop.f32.mrf.mxu0
        %v8049 = vpop.f32.mrf.mxu0
        %v8050 = vadd.f32 %v7674, %v8049
        %v8051 = vpop.f32.mrf.mxu0
        %8052 = vmatprep.mubr.bf16.mxu0 0
        %8053 = vmatmul.mubr.bf16.gmra.mxu0 %v7662
        %v8054 = vpop.f32.mrf.mxu0
        %v8055 = vadd.f32 %v7674, %v8054
        %v8056 = vpop.f32.mrf.mxu0
        %v8057 = vpop.f32.mrf.mxu0
        %v8058 = vadd.f32 %v7674, %v8057
        %v8059 = vpop.f32.mrf.mxu0
        %8060 = vmatprep.mubr.bf16.mxu0 0
        %8061 = vmatmul.mubr.bf16.gmra.mxu0 %v7663
        %v8062 = vpop.f32.mrf.mxu0
        %v8063 = vadd.f32 %v7674, %v8062
        %v8064 = vpop.f32.mrf.mxu0
        %v8065 = vpop.f32.mrf.mxu0
        %v8066 = vadd.f32 %v7674, %v8065
        %v8067 = vpop.f32.mrf.mxu0
        %8068 = vmatprep.mubr.bf16.mxu0 0
        %8069 = vmatmul.mubr.bf16.gmra.mxu0 %v7664
        %v8070 = vpop.f32.mrf.mxu0
        %v8071 = vadd.f32 %v7674, %v8070
        %v8072 = vpop.f32.mrf.mxu0
        %v8073 = vpop.f32.mrf.mxu0
        %v8074 = vadd.f32 %v7674, %v8073
        %v8075 = vpop.f32.mrf.mxu0
        %8076 = vmatprep.mubr.bf16.mxu0 0
        %8077 = vmatmul.mubr.bf16.gmra.mxu0 %v7665
        %v8078 = vpop.f32.mrf.mxu0
        %v8079 = vadd.f32 %v7674, %v8078
        %v8080 = vpop.f32.mrf.mxu0
        %v8081 = vpop.f32.mrf.mxu0
        %v8082 = vadd.f32 %v7674, %v8081
        %v8083 = vpop.f32.mrf.mxu0
        %8084 = vmatprep.mubr.bf16.mxu0 0
        %8085 = vmatmul.mubr.bf16.gmra.mxu0 %v7666
        %v8086 = vpop.f32.mrf.mxu0
        %v8087 = vadd.f32 %v7674, %v8086
        %v8088 = vpop.f32.mrf.mxu0
        %v8089 = vpop.f32.mrf.mxu0
        %v8090 = vadd.f32 %v7674, %v8089
        %v8091 = vpop.f32.mrf.mxu0
        %8092 = vmatprep.mubr.bf16.mxu0 0
        %8093 = vmatmul.mubr.bf16.gmra.mxu0 %v7667
        %v8094 = vpop.f32.mrf.mxu0
        %v8095 = vadd.f32 %v7674, %v8094
        %v8096 = vpop.f32.mrf.mxu0
        %v8097 = vpop.f32.mrf.mxu0
        %v8098 = vadd.f32 %v7674, %v8097
        %v8099 = vpop.f32.mrf.mxu0
        %8100 = vmatprep.mubr.bf16.mxu0 0
        %8101 = vmatmul.mubr.bf16.gmra.mxu0 %v7668
        %v8102 = vpop.f32.mrf.mxu0
        %v8103 = vadd.f32 %v7674, %v8102
        %v8104 = vpop.f32.mrf.mxu0
        %v8105 = vpop.f32.mrf.mxu0
        %v8106 = vadd.f32 %v7674, %v8105
        %v8107 = vpop.f32.mrf.mxu0
        %8108 = vdwg.mxu0
        %v8109 = vxor.u32 %v7759, 2147483648
        %v8110 = vxor.u32 %v7762, 2147483648
        %v8111 = vxor.u32 %v7767, 2147483648
        %v8112 = vxor.u32 %v7770, 2147483648
        %v8113 = vxor.u32 %v7775, 2147483648
        %v8114 = vxor.u32 %v7778, 2147483648
        %v8115 = vxor.u32 %v7783, 2147483648
        %v8116 = vxor.u32 %v7786, 2147483648
        %v8117 = vxor.u32 %v7791, 2147483648
        %v8118 = vxor.u32 %v7794, 2147483648
        %v8119 = vxor.u32 %v7799, 2147483648
        %v8120 = vxor.u32 %v7802, 2147483648
        %v8121 = vxor.u32 %v7807, 2147483648
        %v8122 = vxor.u32 %v7810, 2147483648
        %v8123 = vxor.u32 %v7815, 2147483648
        %v8124 = vxor.u32 %v7818, 2147483648
        %v8125 = vxor.u32 %v7823, 2147483648
        %v8126 = vxor.u32 %v7826, 2147483648
        %v8127 = vxor.u32 %v7831, 2147483648
        %v8128 = vxor.u32 %v7834, 2147483648
        %v8129 = vxor.u32 %v7839, 2147483648
        %v8130 = vxor.u32 %v7842, 2147483648
        %v8131 = vxor.u32 %v7847, 2147483648
        %v8132 = vxor.u32 %v7850, 2147483648
        %v8133 = vxor.u32 %v7855, 2147483648
        %v8134 = vxor.u32 %v7858, 2147483648
        %v8135 = vxor.u32 %v7863, 2147483648
        %v8136 = vxor.u32 %v7866, 2147483648
        %v8137 = vxor.u32 %v7871, 2147483648
        %v8138 = vxor.u32 %v7874, 2147483648
        %v8139 = vxor.u32 %v7879, 2147483648
        %v8140 = vxor.u32 %v7882, 2147483648
        %v8141 = vxor.u32 %v7887, 2147483648
        %v8142 = vxor.u32 %v7890, 2147483648
        %v8143 = vxor.u32 %v7895, 2147483648
        %v8144 = vxor.u32 %v7898, 2147483648
        %v8145 = vxor.u32 %v7903, 2147483648
        %v8146 = vxor.u32 %v7906, 2147483648
        %v8147 = vxor.u32 %v7911, 2147483648
        %v8148 = vxor.u32 %v7914, 2147483648
        %v8149 = vxor.u32 %v7919, 2147483648
        %v8150 = vxor.u32 %v7922, 2147483648
        %v8151 = vxor.u32 %v7927, 2147483648
        %v8152 = vxor.u32 %v7930, 2147483648
        %v8153 = vxor.u32 %v7935, 2147483648
        %v8154 = vxor.u32 %v7938, 2147483648
        %v8155 = vxor.u32 %v7943, 2147483648
        %v8156 = vxor.u32 %v7946, 2147483648
        %v8157 = vxor.u32 %v7951, 2147483648
        %v8158 = vxor.u32 %v7954, 2147483648
        %v8159 = vxor.u32 %v7959, 2147483648
        %v8160 = vxor.u32 %v7962, 2147483648
        %v8161 = vxor.u32 %v7967, 2147483648
        %v8162 = vxor.u32 %v7970, 2147483648
        %v8163 = vxor.u32 %v7975, 2147483648
        %v8164 = vxor.u32 %v7978, 2147483648
        %v8165 = vxor.u32 %v7983, 2147483648
        %v8166 = vxor.u32 %v7986, 2147483648
        %v8167 = vxor.u32 %v7991, 2147483648
        %v8168 = vxor.u32 %v7994, 2147483648
        %v8169 = vxor.u32 %v7999, 2147483648
        %v8170 = vxor.u32 %v8002, 2147483648
        %v8171 = vxor.u32 %v8007, 2147483648
        %v8172 = vxor.u32 %v8010, 2147483648
        %v8173 = vxor.u32 %v8015, 2147483648
        %v8174 = vxor.u32 %v8018, 2147483648
        %v8175 = vxor.u32 %v8023, 2147483648
        %v8176 = vxor.u32 %v8026, 2147483648
        %v8177 = vxor.u32 %v8031, 2147483648
        %v8178 = vxor.u32 %v8034, 2147483648
        %v8179 = vxor.u32 %v8039, 2147483648
        %v8180 = vxor.u32 %v8042, 2147483648
        %v8181 = vxor.u32 %v8047, 2147483648
        %v8182 = vxor.u32 %v8050, 2147483648
        %v8183 = vxor.u32 %v8055, 2147483648
        %v8184 = vxor.u32 %v8058, 2147483648
        %v8185 = vxor.u32 %v8063, 2147483648
        %v8186 = vxor.u32 %v8066, 2147483648
        %v8187 = vxor.u32 %v8071, 2147483648
        %v8188 = vxor.u32 %v8074, 2147483648
        %v8189 = vxor.u32 %v8079, 2147483648
        %v8190 = vxor.u32 %v8082, 2147483648
        %v8191 = vxor.u32 %v8087, 2147483648
        %v8192 = vxor.u32 %v8090, 2147483648
        %v8193 = vxor.u32 %v8095, 2147483648
        %v8194 = vxor.u32 %v8098, 2147483648
        %v8195 = vxor.u32 %v8103, 2147483648
        %v8196 = vxor.u32 %v8106, 2147483648
        %v8197 = vmul.f32 %v8109, 1.442695
        %v8198 = vpow.pop %v8197
        %v8199 = vmul.f32 %v8110, 1.442695
        %v8200 = vpow.pop %v8199
        %v8201 = vmul.f32 %v8111, 1.442695
        %v8202 = vpow.pop %v8201
        %v8203 = vmul.f32 %v8112, 1.442695
        %v8204 = vpow.pop %v8203
        %v8205 = vmul.f32 %v8113, 1.442695
        %v8206 = vpow.pop %v8205
        %v8207 = vmul.f32 %v8114, 1.442695
        %v8208 = vpow.pop %v8207
        %v8209 = vmul.f32 %v8115, 1.442695
        %v8210 = vpow.pop %v8209
        %v8211 = vmul.f32 %v8116, 1.442695
        %v8212 = vpow.pop %v8211
        %v8213 = vmul.f32 %v8117, 1.442695
        %v8214 = vpow.pop %v8213
        %v8215 = vmul.f32 %v8118, 1.442695
        %v8216 = vpow.pop %v8215
        %v8217 = vmul.f32 %v8119, 1.442695
        %v8218 = vpow.pop %v8217
        %v8219 = vmul.f32 %v8120, 1.442695
        %v8220 = vpow.pop %v8219
        %v8221 = vmul.f32 %v8121, 1.442695
        %v8222 = vpow.pop %v8221
        %v8223 = vmul.f32 %v8122, 1.442695
        %v8224 = vpow.pop %v8223
        %v8225 = vmul.f32 %v8123, 1.442695
        %v8226 = vpow.pop %v8225
        %v8227 = vmul.f32 %v8124, 1.442695
        %v8228 = vpow.pop %v8227
        %v8229 = vmul.f32 %v8125, 1.442695
        %v8230 = vpow.pop %v8229
        %v8231 = vmul.f32 %v8126, 1.442695
        %v8232 = vpow.pop %v8231
        %v8233 = vmul.f32 %v8127, 1.442695
        %v8234 = vpow.pop %v8233
        %v8235 = vmul.f32 %v8128, 1.442695
        %v8236 = vpow.pop %v8235
        %v8237 = vmul.f32 %v8129, 1.442695
        %v8238 = vpow.pop %v8237
        %v8239 = vmul.f32 %v8130, 1.442695
        %v8240 = vpow.pop %v8239
        %v8241 = vmul.f32 %v8131, 1.442695
        %v8242 = vpow.pop %v8241
        %v8243 = vmul.f32 %v8132, 1.442695
        %v8244 = vpow.pop %v8243
        %v8245 = vmul.f32 %v8133, 1.442695
        %v8246 = vpow.pop %v8245
        %v8247 = vmul.f32 %v8134, 1.442695
        %v8248 = vpow.pop %v8247
        %v8249 = vmul.f32 %v8135, 1.442695
        %v8250 = vpow.pop %v8249
        %v8251 = vmul.f32 %v8136, 1.442695
        %v8252 = vpow.pop %v8251
        %v8253 = vmul.f32 %v8137, 1.442695
        %v8254 = vpow.pop %v8253
        %v8255 = vmul.f32 %v8138, 1.442695
        %v8256 = vpow.pop %v8255
        %v8257 = vmul.f32 %v8139, 1.442695
        %v8258 = vpow.pop %v8257
        %v8259 = vmul.f32 %v8140, 1.442695
        %v8260 = vpow.pop %v8259
        %v8261 = vmul.f32 %v8141, 1.442695
        %v8262 = vpow.pop %v8261
        %v8263 = vmul.f32 %v8142, 1.442695
        %v8264 = vpow.pop %v8263
        %v8265 = vmul.f32 %v8143, 1.442695
        %v8266 = vpow.pop %v8265
        %v8267 = vmul.f32 %v8144, 1.442695
        %v8268 = vpow.pop %v8267
        %v8269 = vmul.f32 %v8145, 1.442695
        %v8270 = vpow.pop %v8269
        %v8271 = vmul.f32 %v8146, 1.442695
        %v8272 = vpow.pop %v8271
        %v8273 = vmul.f32 %v8147, 1.442695
        %v8274 = vpow.pop %v8273
        %v8275 = vmul.f32 %v8148, 1.442695
        %v8276 = vpow.pop %v8275
        %v8277 = vmul.f32 %v8149, 1.442695
        %v8278 = vpow.pop %v8277
        %v8279 = vmul.f32 %v8150, 1.442695
        %v8280 = vpow.pop %v8279
        %v8281 = vmul.f32 %v8151, 1.442695
        %v8282 = vpow.pop %v8281
        %v8283 = vmul.f32 %v8152, 1.442695
        %v8284 = vpow.pop %v8283
        %v8285 = vmul.f32 %v8153, 1.442695
        %v8286 = vpow.pop %v8285
        %v8287 = vmul.f32 %v8154, 1.442695
        %v8288 = vpow.pop %v8287
        %v8289 = vmul.f32 %v8155, 1.442695
        %v8290 = vpow.pop %v8289
        %v8291 = vmul.f32 %v8156, 1.442695
        %v8292 = vpow.pop %v8291
        %v8293 = vmul.f32 %v8157, 1.442695
        %v8294 = vpow.pop %v8293
        %v8295 = vmul.f32 %v8158, 1.442695
        %v8296 = vpow.pop %v8295
        %v8297 = vmul.f32 %v8159, 1.442695
        %v8298 = vpow.pop %v8297
        %v8299 = vmul.f32 %v8160, 1.442695
        %v8300 = vpow.pop %v8299
        %v8301 = vmul.f32 %v8161, 1.442695
        %v8302 = vpow.pop %v8301
        %v8303 = vmul.f32 %v8162, 1.442695
        %v8304 = vpow.pop %v8303
        %v8305 = vmul.f32 %v8163, 1.442695
        %v8306 = vpow.pop %v8305
        %v8307 = vmul.f32 %v8164, 1.442695
        %v8308 = vpow.pop %v8307
        %v8309 = vmul.f32 %v8165, 1.442695
        %v8310 = vpow.pop %v8309
        %v8311 = vmul.f32 %v8166, 1.442695
        %v8312 = vpow.pop %v8311
        %v8313 = vmul.f32 %v8167, 1.442695
        %v8314 = vpow.pop %v8313
        %v8315 = vmul.f32 %v8168, 1.442695
        %v8316 = vpow.pop %v8315
        %v8317 = vmul.f32 %v8169, 1.442695
        %v8318 = vpow.pop %v8317
        %v8319 = vmul.f32 %v8170, 1.442695
        %v8320 = vpow.pop %v8319
        %v8321 = vmul.f32 %v8171, 1.442695
        %v8322 = vpow.pop %v8321
        %v8323 = vmul.f32 %v8172, 1.442695
        %v8324 = vpow.pop %v8323
        %v8325 = vmul.f32 %v8173, 1.442695
        %v8326 = vpow.pop %v8325
        %v8327 = vmul.f32 %v8174, 1.442695
        %v8328 = vpow.pop %v8327
        %v8329 = vmul.f32 %v8175, 1.442695
        %v8330 = vpow.pop %v8329
        %v8331 = vmul.f32 %v8176, 1.442695
        %v8332 = vpow.pop %v8331
        %v8333 = vmul.f32 %v8177, 1.442695
        %v8334 = vpow.pop %v8333
        %v8335 = vmul.f32 %v8178, 1.442695
        %v8336 = vpow.pop %v8335
        %v8337 = vmul.f32 %v8179, 1.442695
        %v8338 = vpow.pop %v8337
        %v8339 = vmul.f32 %v8180, 1.442695
        %v8340 = vpow.pop %v8339
        %v8341 = vmul.f32 %v8181, 1.442695
        %v8342 = vpow.pop %v8341
        %v8343 = vmul.f32 %v8182, 1.442695
        %v8344 = vpow.pop %v8343
        %v8345 = vmul.f32 %v8183, 1.442695
        %v8346 = vpow.pop %v8345
        %v8347 = vmul.f32 %v8184, 1.442695
        %v8348 = vpow.pop %v8347
        %v8349 = vmul.f32 %v8185, 1.442695
        %v8350 = vpow.pop %v8349
        %v8351 = vmul.f32 %v8186, 1.442695
        %v8352 = vpow.pop %v8351
        %v8353 = vmul.f32 %v8187, 1.442695
        %v8354 = vpow.pop %v8353
        %v8355 = vmul.f32 %v8188, 1.442695
        %v8356 = vpow.pop %v8355
        %v8357 = vmul.f32 %v8189, 1.442695
        %v8358 = vpow.pop %v8357
        %v8359 = vmul.f32 %v8190, 1.442695
        %v8360 = vpow.pop %v8359
        %v8361 = vmul.f32 %v8191, 1.442695
        %v8362 = vpow.pop %v8361
        %v8363 = vmul.f32 %v8192, 1.442695
        %v8364 = vpow.pop %v8363
        %v8365 = vmul.f32 %v8193, 1.442695
        %v8366 = vpow.pop %v8365
        %v8367 = vmul.f32 %v8194, 1.442695
        %v8368 = vpow.pop %v8367
        %v8369 = vmul.f32 %v8195, 1.442695
        %v8370 = vpow.pop %v8369
        %v8371 = vmul.f32 %v8196, 1.442695
        %v8372 = vpow.pop %v8371
        %v8373 = vadd.f32 %v8198, 1.0
        %v8374 = vadd.f32 %v8200, 1.0
        %v8375 = vadd.f32 %v8202, 1.0
        %v8376 = vadd.f32 %v8204, 1.0
        %v8377 = vadd.f32 %v8206, 1.0
        %v8378 = vadd.f32 %v8208, 1.0
        %v8379 = vadd.f32 %v8210, 1.0
        %v8380 = vadd.f32 %v8212, 1.0
        %v8381 = vadd.f32 %v8214, 1.0
        %v8382 = vadd.f32 %v8216, 1.0
        %v8383 = vadd.f32 %v8218, 1.0
        %v8384 = vadd.f32 %v8220, 1.0
        %v8385 = vadd.f32 %v8222, 1.0
        %v8386 = vadd.f32 %v8224, 1.0
        %v8387 = vadd.f32 %v8226, 1.0
        %v8388 = vadd.f32 %v8228, 1.0
        %v8389 = vadd.f32 %v8230, 1.0
        %v8390 = vadd.f32 %v8232, 1.0
        %v8391 = vadd.f32 %v8234, 1.0
        %v8392 = vadd.f32 %v8236, 1.0
        %v8393 = vadd.f32 %v8238, 1.0
        %v8394 = vadd.f32 %v8240, 1.0
        %v8395 = vadd.f32 %v8242, 1.0
        %v8396 = vadd.f32 %v8244, 1.0
        %v8397 = vadd.f32 %v8246, 1.0
        %v8398 = vadd.f32 %v8248, 1.0
        %v8399 = vadd.f32 %v8250, 1.0
        %v8400 = vadd.f32 %v8252, 1.0
        %v8401 = vadd.f32 %v8254, 1.0
        %v8402 = vadd.f32 %v8256, 1.0
        %v8403 = vadd.f32 %v8258, 1.0
        %v8404 = vadd.f32 %v8260, 1.0
        %v8405 = vadd.f32 %v8262, 1.0
        %v8406 = vadd.f32 %v8264, 1.0
        %v8407 = vadd.f32 %v8266, 1.0
        %v8408 = vadd.f32 %v8268, 1.0
        %v8409 = vadd.f32 %v8270, 1.0
        %v8410 = vadd.f32 %v8272, 1.0
        %v8411 = vadd.f32 %v8274, 1.0
        %v8412 = vadd.f32 %v8276, 1.0
        %v8413 = vadd.f32 %v8278, 1.0
        %v8414 = vadd.f32 %v8280, 1.0
        %v8415 = vadd.f32 %v8282, 1.0
        %v8416 = vadd.f32 %v8284, 1.0
        %v8417 = vadd.f32 %v8286, 1.0
        %v8418 = vadd.f32 %v8288, 1.0
        %v8419 = vadd.f32 %v8290, 1.0
        %v8420 = vadd.f32 %v8292, 1.0
        %v8421 = vadd.f32 %v8294, 1.0
        %v8422 = vadd.f32 %v8296, 1.0
        %v8423 = vadd.f32 %v8298, 1.0
        %v8424 = vadd.f32 %v8300, 1.0
        %v8425 = vadd.f32 %v8302, 1.0
        %v8426 = vadd.f32 %v8304, 1.0
        %v8427 = vadd.f32 %v8306, 1.0
        %v8428 = vadd.f32 %v8308, 1.0
        %v8429 = vadd.f32 %v8310, 1.0
        %v8430 = vadd.f32 %v8312, 1.0
        %v8431 = vadd.f32 %v8314, 1.0
        %v8432 = vadd.f32 %v8316, 1.0
        %v8433 = vadd.f32 %v8318, 1.0
        %v8434 = vadd.f32 %v8320, 1.0
        %v8435 = vadd.f32 %v8322, 1.0
        %v8436 = vadd.f32 %v8324, 1.0
        %v8437 = vadd.f32 %v8326, 1.0
        %v8438 = vadd.f32 %v8328, 1.0
        %v8439 = vadd.f32 %v8330, 1.0
        %v8440 = vadd.f32 %v8332, 1.0
        %v8441 = vadd.f32 %v8334, 1.0
        %v8442 = vadd.f32 %v8336, 1.0
        %v8443 = vadd.f32 %v8338, 1.0
        %v8444 = vadd.f32 %v8340, 1.0
        %v8445 = vadd.f32 %v8342, 1.0
        %v8446 = vadd.f32 %v8344, 1.0
        %v8447 = vadd.f32 %v8346, 1.0
        %v8448 = vadd.f32 %v8348, 1.0
        %v8449 = vadd.f32 %v8350, 1.0
        %v8450 = vadd.f32 %v8352, 1.0
        %v8451 = vadd.f32 %v8354, 1.0
        %v8452 = vadd.f32 %v8356, 1.0
        %v8453 = vadd.f32 %v8358, 1.0
        %v8454 = vadd.f32 %v8360, 1.0
        %v8455 = vadd.f32 %v8362, 1.0
        %v8456 = vadd.f32 %v8364, 1.0
        %v8457 = vadd.f32 %v8366, 1.0
        %v8458 = vadd.f32 %v8368, 1.0
        %v8459 = vadd.f32 %v8370, 1.0
        %v8460 = vadd.f32 %v8372, 1.0
        %v8461 = vrcp.pop %v8373
        %v8462 = vmul.f32 1.0, %v8461
        %v8463 = vrcp.pop %v8374
        %v8464 = vmul.f32 1.0, %v8463
        %v8465 = vrcp.pop %v8375
        %v8466 = vmul.f32 1.0, %v8465
        %v8467 = vrcp.pop %v8376
        %v8468 = vmul.f32 1.0, %v8467
        %v8469 = vrcp.pop %v8377
        %v8470 = vmul.f32 1.0, %v8469
        %v8471 = vrcp.pop %v8378
        %v8472 = vmul.f32 1.0, %v8471
        %v8473 = vrcp.pop %v8379
        %v8474 = vmul.f32 1.0, %v8473
        %v8475 = vrcp.pop %v8380
        %v8476 = vmul.f32 1.0, %v8475
        %v8477 = vrcp.pop %v8381
        %v8478 = vmul.f32 1.0, %v8477
        %v8479 = vrcp.pop %v8382
        %v8480 = vmul.f32 1.0, %v8479
        %v8481 = vrcp.pop %v8383
        %v8482 = vmul.f32 1.0, %v8481
        %v8483 = vrcp.pop %v8384
        %v8484 = vmul.f32 1.0, %v8483
        %v8485 = vrcp.pop %v8385
        %v8486 = vmul.f32 1.0, %v8485
        %v8487 = vrcp.pop %v8386
        %v8488 = vmul.f32 1.0, %v8487
        %v8489 = vrcp.pop %v8387
        %v8490 = vmul.f32 1.0, %v8489
        %v8491 = vrcp.pop %v8388
        %v8492 = vmul.f32 1.0, %v8491
        %v8493 = vrcp.pop %v8389
        %v8494 = vmul.f32 1.0, %v8493
        %v8495 = vrcp.pop %v8390
        %v8496 = vmul.f32 1.0, %v8495
        %v8497 = vrcp.pop %v8391
        %v8498 = vmul.f32 1.0, %v8497
        %v8499 = vrcp.pop %v8392
        %v8500 = vmul.f32 1.0, %v8499
        %v8501 = vrcp.pop %v8393
        %v8502 = vmul.f32 1.0, %v8501
        %v8503 = vrcp.pop %v8394
        %v8504 = vmul.f32 1.0, %v8503
        %v8505 = vrcp.pop %v8395
        %v8506 = vmul.f32 1.0, %v8505
        %v8507 = vrcp.pop %v8396
        %v8508 = vmul.f32 1.0, %v8507
        %v8509 = vrcp.pop %v8397
        %v8510 = vmul.f32 1.0, %v8509
        %v8511 = vrcp.pop %v8398
        %v8512 = vmul.f32 1.0, %v8511
        %v8513 = vrcp.pop %v8399
        %v8514 = vmul.f32 1.0, %v8513
        %v8515 = vrcp.pop %v8400
        %v8516 = vmul.f32 1.0, %v8515
        %v8517 = vrcp.pop %v8401
        %v8518 = vmul.f32 1.0, %v8517
        %v8519 = vrcp.pop %v8402
        %v8520 = vmul.f32 1.0, %v8519
        %v8521 = vrcp.pop %v8403
        %v8522 = vmul.f32 1.0, %v8521
        %v8523 = vrcp.pop %v8404
        %v8524 = vmul.f32 1.0, %v8523
        %v8525 = vrcp.pop %v8405
        %v8526 = vmul.f32 1.0, %v8525
        %v8527 = vrcp.pop %v8406
        %v8528 = vmul.f32 1.0, %v8527
        %v8529 = vrcp.pop %v8407
        %v8530 = vmul.f32 1.0, %v8529
        %v8531 = vrcp.pop %v8408
        %v8532 = vmul.f32 1.0, %v8531
        %v8533 = vrcp.pop %v8409
        %v8534 = vmul.f32 1.0, %v8533
        %v8535 = vrcp.pop %v8410
        %v8536 = vmul.f32 1.0, %v8535
        %v8537 = vrcp.pop %v8411
        %v8538 = vmul.f32 1.0, %v8537
        %v8539 = vrcp.pop %v8412
        %v8540 = vmul.f32 1.0, %v8539
        %v8541 = vrcp.pop %v8413
        %v8542 = vmul.f32 1.0, %v8541
        %v8543 = vrcp.pop %v8414
        %v8544 = vmul.f32 1.0, %v8543
        %v8545 = vrcp.pop %v8415
        %v8546 = vmul.f32 1.0, %v8545
        %v8547 = vrcp.pop %v8416
        %v8548 = vmul.f32 1.0, %v8547
        %v8549 = vrcp.pop %v8417
        %v8550 = vmul.f32 1.0, %v8549
        %v8551 = vrcp.pop %v8418
        %v8552 = vmul.f32 1.0, %v8551
        %v8553 = vrcp.pop %v8419
        %v8554 = vmul.f32 1.0, %v8553
        %v8555 = vrcp.pop %v8420
        %v8556 = vmul.f32 1.0, %v8555
        %v8557 = vrcp.pop %v8421
        %v8558 = vmul.f32 1.0, %v8557
        %v8559 = vrcp.pop %v8422
        %v8560 = vmul.f32 1.0, %v8559
        %v8561 = vrcp.pop %v8423
        %v8562 = vmul.f32 1.0, %v8561
        %v8563 = vrcp.pop %v8424
        %v8564 = vmul.f32 1.0, %v8563
        %v8565 = vrcp.pop %v8425
        %v8566 = vmul.f32 1.0, %v8565
        %v8567 = vrcp.pop %v8426
        %v8568 = vmul.f32 1.0, %v8567
        %v8569 = vrcp.pop %v8427
        %v8570 = vmul.f32 1.0, %v8569
        %v8571 = vrcp.pop %v8428
        %v8572 = vmul.f32 1.0, %v8571
        %v8573 = vrcp.pop %v8429
        %v8574 = vmul.f32 1.0, %v8573
        %v8575 = vrcp.pop %v8430
        %v8576 = vmul.f32 1.0, %v8575
        %v8577 = vrcp.pop %v8431
        %v8578 = vmul.f32 1.0, %v8577
        %v8579 = vrcp.pop %v8432
        %v8580 = vmul.f32 1.0, %v8579
        %v8581 = vrcp.pop %v8433
        %v8582 = vmul.f32 1.0, %v8581
        %v8583 = vrcp.pop %v8434
        %v8584 = vmul.f32 1.0, %v8583
        %v8585 = vrcp.pop %v8435
        %v8586 = vmul.f32 1.0, %v8585
        %v8587 = vrcp.pop %v8436
        %v8588 = vmul.f32 1.0, %v8587
        %v8589 = vrcp.pop %v8437
        %v8590 = vmul.f32 1.0, %v8589
        %v8591 = vrcp.pop %v8438
        %v8592 = vmul.f32 1.0, %v8591
        %v8593 = vrcp.pop %v8439
        %v8594 = vmul.f32 1.0, %v8593
        %v8595 = vrcp.pop %v8440
        %v8596 = vmul.f32 1.0, %v8595
        %v8597 = vrcp.pop %v8441
        %v8598 = vmul.f32 1.0, %v8597
        %v8599 = vrcp.pop %v8442
        %v8600 = vmul.f32 1.0, %v8599
        %v8601 = vrcp.pop %v8443
        %v8602 = vmul.f32 1.0, %v8601
        %v8603 = vrcp.pop %v8444
        %v8604 = vmul.f32 1.0, %v8603
        %v8605 = vrcp.pop %v8445
        %v8606 = vmul.f32 1.0, %v8605
        %v8607 = vrcp.pop %v8446
        %v8608 = vmul.f32 1.0, %v8607
        %v8609 = vrcp.pop %v8447
        %v8610 = vmul.f32 1.0, %v8609
        %v8611 = vrcp.pop %v8448
        %v8612 = vmul.f32 1.0, %v8611
        %v8613 = vrcp.pop %v8449
        %v8614 = vmul.f32 1.0, %v8613
        %v8615 = vrcp.pop %v8450
        %v8616 = vmul.f32 1.0, %v8615
        %v8617 = vrcp.pop %v8451
        %v8618 = vmul.f32 1.0, %v8617
        %v8619 = vrcp.pop %v8452
        %v8620 = vmul.f32 1.0, %v8619
        %v8621 = vrcp.pop %v8453
        %v8622 = vmul.f32 1.0, %v8621
        %v8623 = vrcp.pop %v8454
        %v8624 = vmul.f32 1.0, %v8623
        %v8625 = vrcp.pop %v8455
        %v8626 = vmul.f32 1.0, %v8625
        %v8627 = vrcp.pop %v8456
        %v8628 = vmul.f32 1.0, %v8627
        %v8629 = vrcp.pop %v8457
        %v8630 = vmul.f32 1.0, %v8629
        %v8631 = vrcp.pop %v8458
        %v8632 = vmul.f32 1.0, %v8631
        %v8633 = vrcp.pop %v8459
        %v8634 = vmul.f32 1.0, %v8633
        %v8635 = vrcp.pop %v8460
        %v8636 = vmul.f32 1.0, %v8635
        %v8637 = vmul.f32 %v7759, %v8462
        %v8638 = vmul.f32 %v7762, %v8464
        %v8639 = vmul.f32 %v7767, %v8466
        %v8640 = vmul.f32 %v7770, %v8468
        %v8641 = vmul.f32 %v7775, %v8470
        %v8642 = vmul.f32 %v7778, %v8472
        %v8643 = vmul.f32 %v7783, %v8474
        %v8644 = vmul.f32 %v7786, %v8476
        %v8645 = vmul.f32 %v7791, %v8478
        %v8646 = vmul.f32 %v7794, %v8480
        %v8647 = vmul.f32 %v7799, %v8482
        %v8648 = vmul.f32 %v7802, %v8484
        %v8649 = vmul.f32 %v7807, %v8486
        %v8650 = vmul.f32 %v7810, %v8488
        %v8651 = vmul.f32 %v7815, %v8490
        %v8652 = vmul.f32 %v7818, %v8492
        %v8653 = vmul.f32 %v7823, %v8494
        %v8654 = vmul.f32 %v7826, %v8496
        %v8655 = vmul.f32 %v7831, %v8498
        %v8656 = vmul.f32 %v7834, %v8500
        %v8657 = vmul.f32 %v7839, %v8502
        %v8658 = vmul.f32 %v7842, %v8504
        %v8659 = vmul.f32 %v7847, %v8506
        %v8660 = vmul.f32 %v7850, %v8508
        %v8661 = vmul.f32 %v7855, %v8510
        %v8662 = vmul.f32 %v7858, %v8512
        %v8663 = vmul.f32 %v7863, %v8514
        %v8664 = vmul.f32 %v7866, %v8516
        %v8665 = vmul.f32 %v7871, %v8518
        %v8666 = vmul.f32 %v7874, %v8520
        %v8667 = vmul.f32 %v7879, %v8522
        %v8668 = vmul.f32 %v7882, %v8524
        %v8669 = vmul.f32 %v7887, %v8526
        %v8670 = vmul.f32 %v7890, %v8528
        %v8671 = vmul.f32 %v7895, %v8530
        %v8672 = vmul.f32 %v7898, %v8532
        %v8673 = vmul.f32 %v7903, %v8534
        %v8674 = vmul.f32 %v7906, %v8536
        %v8675 = vmul.f32 %v7911, %v8538
        %v8676 = vmul.f32 %v7914, %v8540
        %v8677 = vmul.f32 %v7919, %v8542
        %v8678 = vmul.f32 %v7922, %v8544
        %v8679 = vmul.f32 %v7927, %v8546
        %v8680 = vmul.f32 %v7930, %v8548
        %v8681 = vmul.f32 %v7935, %v8550
        %v8682 = vmul.f32 %v7938, %v8552
        %v8683 = vmul.f32 %v7943, %v8554
        %v8684 = vmul.f32 %v7946, %v8556
        %v8685 = vmul.f32 %v7951, %v8558
        %v8686 = vmul.f32 %v7954, %v8560
        %v8687 = vmul.f32 %v7959, %v8562
        %v8688 = vmul.f32 %v7962, %v8564
        %v8689 = vmul.f32 %v7967, %v8566
        %v8690 = vmul.f32 %v7970, %v8568
        %v8691 = vmul.f32 %v7975, %v8570
        %v8692 = vmul.f32 %v7978, %v8572
        %v8693 = vmul.f32 %v7983, %v8574
        %v8694 = vmul.f32 %v7986, %v8576
        %v8695 = vmul.f32 %v7991, %v8578
        %v8696 = vmul.f32 %v7994, %v8580
        %v8697 = vmul.f32 %v7999, %v8582
        %v8698 = vmul.f32 %v8002, %v8584
        %v8699 = vmul.f32 %v8007, %v8586
        %v8700 = vmul.f32 %v8010, %v8588
        %v8701 = vmul.f32 %v8015, %v8590
        %v8702 = vmul.f32 %v8018, %v8592
        %v8703 = vmul.f32 %v8023, %v8594
        %v8704 = vmul.f32 %v8026, %v8596
        %v8705 = vmul.f32 %v8031, %v8598
        %v8706 = vmul.f32 %v8034, %v8600
        %v8707 = vmul.f32 %v8039, %v8602
        %v8708 = vmul.f32 %v8042, %v8604
        %v8709 = vmul.f32 %v8047, %v8606
        %v8710 = vmul.f32 %v8050, %v8608
        %v8711 = vmul.f32 %v8055, %v8610
        %v8712 = vmul.f32 %v8058, %v8612
        %v8713 = vmul.f32 %v8063, %v8614
        %v8714 = vmul.f32 %v8066, %v8616
        %v8715 = vmul.f32 %v8071, %v8618
        %v8716 = vmul.f32 %v8074, %v8620
        %v8717 = vmul.f32 %v8079, %v8622
        %v8718 = vmul.f32 %v8082, %v8624
        %v8719 = vmul.f32 %v8087, %v8626
        %v8720 = vmul.f32 %v8090, %v8628
        %v8721 = vmul.f32 %v8095, %v8630
        %v8722 = vmul.f32 %v8098, %v8632
        %v8723 = vmul.f32 %v8103, %v8634
        %v8724 = vmul.f32 %v8106, %v8636
        %v8725 = vld [vmem:[%s900] sm:$0x1]
        %v8727 = vlaneseq
        %v8728 = vshrl.u32 %v8727, 7
        %v8729 = vsub.s32 0, %v8728
        %v8730 = vrot.slane %v8725, %v8729
        %v8732 = vmul.f32 %v8637, %v8730
        %v8733 = vmul.f32 %v8638, %v8730
        %v8734 = vmul.f32 %v8639, %v8730
        %v8735 = vmul.f32 %v8640, %v8730
        %v8736 = vmul.f32 %v8641, %v8730
        %v8737 = vmul.f32 %v8642, %v8730
        %v8738 = vmul.f32 %v8643, %v8730
        %v8739 = vmul.f32 %v8644, %v8730
        %v8740 = vmul.f32 %v8645, %v8730
        %v8741 = vmul.f32 %v8646, %v8730
        %v8742 = vmul.f32 %v8647, %v8730
        %v8743 = vmul.f32 %v8648, %v8730
        %v8744 = vmul.f32 %v8649, %v8730
        %v8745 = vmul.f32 %v8650, %v8730
        %v8746 = vmul.f32 %v8651, %v8730
        %v8747 = vmul.f32 %v8652, %v8730
        %v8748 = vmul.f32 %v8653, %v8730
        %v8749 = vmul.f32 %v8654, %v8730
        %v8750 = vmul.f32 %v8655, %v8730
        %v8751 = vmul.f32 %v8656, %v8730
        %v8752 = vmul.f32 %v8657, %v8730
        %v8753 = vmul.f32 %v8658, %v8730
        %v8754 = vmul.f32 %v8659, %v8730
        %v8755 = vmul.f32 %v8660, %v8730
        %v8756 = vmul.f32 %v8661, %v8730
        %v8757 = vmul.f32 %v8662, %v8730
        %v8758 = vmul.f32 %v8663, %v8730
        %v8759 = vmul.f32 %v8664, %v8730
        %v8760 = vmul.f32 %v8665, %v8730
        %v8761 = vmul.f32 %v8666, %v8730
        %v8762 = vmul.f32 %v8667, %v8730
        %v8763 = vmul.f32 %v8668, %v8730
        %v8764 = vmul.f32 %v8669, %v8730
        %v8765 = vmul.f32 %v8670, %v8730
        %v8766 = vmul.f32 %v8671, %v8730
        %v8767 = vmul.f32 %v8672, %v8730
        %v8768 = vmul.f32 %v8673, %v8730
        %v8769 = vmul.f32 %v8674, %v8730
        %v8770 = vmul.f32 %v8675, %v8730
        %v8771 = vmul.f32 %v8676, %v8730
        %v8772 = vmul.f32 %v8677, %v8730
        %v8773 = vmul.f32 %v8678, %v8730
        %v8774 = vmul.f32 %v8679, %v8730
        %v8775 = vmul.f32 %v8680, %v8730
        %v8776 = vmul.f32 %v8681, %v8730
        %v8777 = vmul.f32 %v8682, %v8730
        %v8778 = vmul.f32 %v8683, %v8730
        %v8779 = vmul.f32 %v8684, %v8730
        %v8780 = vmul.f32 %v8685, %v8730
        %v8781 = vmul.f32 %v8686, %v8730
        %v8782 = vmul.f32 %v8687, %v8730
        %v8783 = vmul.f32 %v8688, %v8730
        %v8784 = vmul.f32 %v8689, %v8730
        %v8785 = vmul.f32 %v8690, %v8730
        %v8786 = vmul.f32 %v8691, %v8730
        %v8787 = vmul.f32 %v8692, %v8730
        %v8788 = vmul.f32 %v8693, %v8730
        %v8789 = vmul.f32 %v8694, %v8730
        %v8790 = vmul.f32 %v8695, %v8730
        %v8791 = vmul.f32 %v8696, %v8730
        %v8792 = vmul.f32 %v8697, %v8730
        %v8793 = vmul.f32 %v8698, %v8730
        %v8794 = vmul.f32 %v8699, %v8730
        %v8795 = vmul.f32 %v8700, %v8730
        %v8796 = vmul.f32 %v8701, %v8730
        %v8797 = vmul.f32 %v8702, %v8730
        %v8798 = vmul.f32 %v8703, %v8730
        %v8799 = vmul.f32 %v8704, %v8730
        %v8800 = vmul.f32 %v8705, %v8730
        %v8801 = vmul.f32 %v8706, %v8730
        %v8802 = vmul.f32 %v8707, %v8730
        %v8803 = vmul.f32 %v8708, %v8730
        %v8804 = vmul.f32 %v8709, %v8730
        %v8805 = vmul.f32 %v8710, %v8730
        %v8806 = vmul.f32 %v8711, %v8730
        %v8807 = vmul.f32 %v8712, %v8730
        %v8808 = vmul.f32 %v8713, %v8730
        %v8809 = vmul.f32 %v8714, %v8730
        %v8810 = vmul.f32 %v8715, %v8730
        %v8811 = vmul.f32 %v8716, %v8730
        %v8812 = vmul.f32 %v8717, %v8730
        %v8813 = vmul.f32 %v8718, %v8730
        %v8814 = vmul.f32 %v8719, %v8730
        %v8815 = vmul.f32 %v8720, %v8730
        %v8816 = vmul.f32 %v8721, %v8730
        %v8817 = vmul.f32 %v8722, %v8730
        %v8818 = vmul.f32 %v8723, %v8730
        %v8819 = vmul.f32 %v8724, %v8730
        %8820 = vadd.xlane.f32.xlu0 %v8732
        %v8821 = vpop.xlane.xlu0 %8820
        %8822 = vadd.xlane.f32.xlu0 %v8733
        %v8823 = vpop.xlane.xlu0 %8822
        %8824 = vadd.xlane.f32.xlu0 %v8734
        %v8825 = vpop.xlane.xlu0 %8824
        %8826 = vadd.xlane.f32.xlu0 %v8735
        %v8827 = vpop.xlane.xlu0 %8826
        %8828 = vadd.xlane.f32.xlu0 %v8736
        %v8829 = vpop.xlane.xlu0 %8828
        %8830 = vadd.xlane.f32.xlu0 %v8737
        %v8831 = vpop.xlane.xlu0 %8830
        %8832 = vadd.xlane.f32.xlu0 %v8738
        %v8833 = vpop.xlane.xlu0 %8832
        %8834 = vadd.xlane.f32.xlu0 %v8739
        %v8835 = vpop.xlane.xlu0 %8834
        %8836 = vadd.xlane.f32.xlu0 %v8740
        %v8837 = vpop.xlane.xlu0 %8836
        %8838 = vadd.xlane.f32.xlu0 %v8741
        %v8839 = vpop.xlane.xlu0 %8838
        %8840 = vadd.xlane.f32.xlu0 %v8742
        %v8841 = vpop.xlane.xlu0 %8840
        %8842 = vadd.xlane.f32.xlu0 %v8743
        %v8843 = vpop.xlane.xlu0 %8842
        %8844 = vadd.xlane.f32.xlu0 %v8744
        %v8845 = vpop.xlane.xlu0 %8844
        %8846 = vadd.xlane.f32.xlu0 %v8745
        %v8847 = vpop.xlane.xlu0 %8846
        %8848 = vadd.xlane.f32.xlu0 %v8746
        %v8849 = vpop.xlane.xlu0 %8848
        %8850 = vadd.xlane.f32.xlu0 %v8747
        %v8851 = vpop.xlane.xlu0 %8850
        %8852 = vadd.xlane.f32.xlu0 %v8748
        %v8853 = vpop.xlane.xlu0 %8852
        %8854 = vadd.xlane.f32.xlu0 %v8749
        %v8855 = vpop.xlane.xlu0 %8854
        %8856 = vadd.xlane.f32.xlu0 %v8750
        %v8857 = vpop.xlane.xlu0 %8856
        %8858 = vadd.xlane.f32.xlu0 %v8751
        %v8859 = vpop.xlane.xlu0 %8858
        %8860 = vadd.xlane.f32.xlu0 %v8752
        %v8861 = vpop.xlane.xlu0 %8860
        %8862 = vadd.xlane.f32.xlu0 %v8753
        %v8863 = vpop.xlane.xlu0 %8862
        %8864 = vadd.xlane.f32.xlu0 %v8754
        %v8865 = vpop.xlane.xlu0 %8864
        %8866 = vadd.xlane.f32.xlu0 %v8755
        %v8867 = vpop.xlane.xlu0 %8866
        %8868 = vadd.xlane.f32.xlu0 %v8756
        %v8869 = vpop.xlane.xlu0 %8868
        %8870 = vadd.xlane.f32.xlu0 %v8757
        %v8871 = vpop.xlane.xlu0 %8870
        %8872 = vadd.xlane.f32.xlu0 %v8758
        %v8873 = vpop.xlane.xlu0 %8872
        %8874 = vadd.xlane.f32.xlu0 %v8759
        %v8875 = vpop.xlane.xlu0 %8874
        %8876 = vadd.xlane.f32.xlu0 %v8760
        %v8877 = vpop.xlane.xlu0 %8876
        %8878 = vadd.xlane.f32.xlu0 %v8761
        %v8879 = vpop.xlane.xlu0 %8878
        %8880 = vadd.xlane.f32.xlu0 %v8762
        %v8881 = vpop.xlane.xlu0 %8880
        %8882 = vadd.xlane.f32.xlu0 %v8763
        %v8883 = vpop.xlane.xlu0 %8882
        %8884 = vadd.xlane.f32.xlu0 %v8764
        %v8885 = vpop.xlane.xlu0 %8884
        %8886 = vadd.xlane.f32.xlu0 %v8765
        %v8887 = vpop.xlane.xlu0 %8886
        %8888 = vadd.xlane.f32.xlu0 %v8766
        %v8889 = vpop.xlane.xlu0 %8888
        %8890 = vadd.xlane.f32.xlu0 %v8767
        %v8891 = vpop.xlane.xlu0 %8890
        %8892 = vadd.xlane.f32.xlu0 %v8768
        %v8893 = vpop.xlane.xlu0 %8892
        %8894 = vadd.xlane.f32.xlu0 %v8769
        %v8895 = vpop.xlane.xlu0 %8894
        %8896 = vadd.xlane.f32.xlu0 %v8770
        %v8897 = vpop.xlane.xlu0 %8896
        %8898 = vadd.xlane.f32.xlu0 %v8771
        %v8899 = vpop.xlane.xlu0 %8898
        %8900 = vadd.xlane.f32.xlu0 %v8772
        %v8901 = vpop.xlane.xlu0 %8900
        %8902 = vadd.xlane.f32.xlu0 %v8773
        %v8903 = vpop.xlane.xlu0 %8902
        %8904 = vadd.xlane.f32.xlu0 %v8774
        %v8905 = vpop.xlane.xlu0 %8904
        %8906 = vadd.xlane.f32.xlu0 %v8775
        %v8907 = vpop.xlane.xlu0 %8906
        %8908 = vadd.xlane.f32.xlu0 %v8776
        %v8909 = vpop.xlane.xlu0 %8908
        %8910 = vadd.xlane.f32.xlu0 %v8777
        %v8911 = vpop.xlane.xlu0 %8910
        %8912 = vadd.xlane.f32.xlu0 %v8778
        %v8913 = vpop.xlane.xlu0 %8912
        %8914 = vadd.xlane.f32.xlu0 %v8779
        %v8915 = vpop.xlane.xlu0 %8914
        %8916 = vadd.xlane.f32.xlu0 %v8780
        %v8917 = vpop.xlane.xlu0 %8916
        %8918 = vadd.xlane.f32.xlu0 %v8781
        %v8919 = vpop.xlane.xlu0 %8918
        %8920 = vadd.xlane.f32.xlu0 %v8782
        %v8921 = vpop.xlane.xlu0 %8920
        %8922 = vadd.xlane.f32.xlu0 %v8783
        %v8923 = vpop.xlane.xlu0 %8922
        %8924 = vadd.xlane.f32.xlu0 %v8784
        %v8925 = vpop.xlane.xlu0 %8924
        %8926 = vadd.xlane.f32.xlu0 %v8785
        %v8927 = vpop.xlane.xlu0 %8926
        %8928 = vadd.xlane.f32.xlu0 %v8786
        %v8929 = vpop.xlane.xlu0 %8928
        %8930 = vadd.xlane.f32.xlu0 %v8787
        %v8931 = vpop.xlane.xlu0 %8930
        %8932 = vadd.xlane.f32.xlu0 %v8788
        %v8933 = vpop.xlane.xlu0 %8932
        %8934 = vadd.xlane.f32.xlu0 %v8789
        %v8935 = vpop.xlane.xlu0 %8934
        %8936 = vadd.xlane.f32.xlu0 %v8790
        %v8937 = vpop.xlane.xlu0 %8936
        %8938 = vadd.xlane.f32.xlu0 %v8791
        %v8939 = vpop.xlane.xlu0 %8938
        %8940 = vadd.xlane.f32.xlu0 %v8792
        %v8941 = vpop.xlane.xlu0 %8940
        %8942 = vadd.xlane.f32.xlu0 %v8793
        %v8943 = vpop.xlane.xlu0 %8942
        %8944 = vadd.xlane.f32.xlu0 %v8794
        %v8945 = vpop.xlane.xlu0 %8944
        %8946 = vadd.xlane.f32.xlu0 %v8795
        %v8947 = vpop.xlane.xlu0 %8946
        %8948 = vadd.xlane.f32.xlu0 %v8796
        %v8949 = vpop.xlane.xlu0 %8948
        %8950 = vadd.xlane.f32.xlu0 %v8797
        %v8951 = vpop.xlane.xlu0 %8950
        %8952 = vadd.xlane.f32.xlu0 %v8798
        %v8953 = vpop.xlane.xlu0 %8952
        %8954 = vadd.xlane.f32.xlu0 %v8799
        %v8955 = vpop.xlane.xlu0 %8954
        %8956 = vadd.xlane.f32.xlu0 %v8800
        %v8957 = vpop.xlane.xlu0 %8956
        %8958 = vadd.xlane.f32.xlu0 %v8801
        %v8959 = vpop.xlane.xlu0 %8958
        %8960 = vadd.xlane.f32.xlu0 %v8802
        %v8961 = vpop.xlane.xlu0 %8960
        %8962 = vadd.xlane.f32.xlu0 %v8803
        %v8963 = vpop.xlane.xlu0 %8962
        %8964 = vadd.xlane.f32.xlu0 %v8804
        %v8965 = vpop.xlane.xlu0 %8964
        %8966 = vadd.xlane.f32.xlu0 %v8805
        %v8967 = vpop.xlane.xlu0 %8966
        %8968 = vadd.xlane.f32.xlu0 %v8806
        %v8969 = vpop.xlane.xlu0 %8968
        %8970 = vadd.xlane.f32.xlu0 %v8807
        %v8971 = vpop.xlane.xlu0 %8970
        %8972 = vadd.xlane.f32.xlu0 %v8808
        %v8973 = vpop.xlane.xlu0 %8972
        %8974 = vadd.xlane.f32.xlu0 %v8809
        %v8975 = vpop.xlane.xlu0 %8974
        %8976 = vadd.xlane.f32.xlu0 %v8810
        %v8977 = vpop.xlane.xlu0 %8976
        %8978 = vadd.xlane.f32.xlu0 %v8811
        %v8979 = vpop.xlane.xlu0 %8978
        %8980 = vadd.xlane.f32.xlu0 %v8812
        %v8981 = vpop.xlane.xlu0 %8980
        %8982 = vadd.xlane.f32.xlu0 %v8813
        %v8983 = vpop.xlane.xlu0 %8982
        %8984 = vadd.xlane.f32.xlu0 %v8814
        %v8985 = vpop.xlane.xlu0 %8984
        %8986 = vadd.xlane.f32.xlu0 %v8815
        %v8987 = vpop.xlane.xlu0 %8986
        %8988 = vadd.xlane.f32.xlu0 %v8816
        %v8989 = vpop.xlane.xlu0 %8988
        %8990 = vadd.xlane.f32.xlu0 %v8817
        %v8991 = vpop.xlane.xlu0 %8990
        %8992 = vadd.xlane.f32.xlu0 %v8818
        %v8993 = vpop.xlane.xlu0 %8992
        %8994 = vadd.xlane.f32.xlu0 %v8819
        %v8995 = vpop.xlane.xlu0 %8994
        %v8996 = vmul.f32 %v7521, %v8821
        %v8997 = vmul.f32 %v7522, %v8823
        %v8998 = vmul.f32 %v7523, %v8825
        %v8999 = vmul.f32 %v7524, %v8827
        %v9000 = vmul.f32 %v7525, %v8829
        %v9001 = vmul.f32 %v7526, %v8831
        %v9002 = vmul.f32 %v7527, %v8833
        %v9003 = vmul.f32 %v7528, %v8835
        %v9004 = vmul.f32 %v7529, %v8837
        %v9005 = vmul.f32 %v7530, %v8839
        %v9006 = vmul.f32 %v7531, %v8841
        %v9007 = vmul.f32 %v7532, %v8843
        %v9008 = vmul.f32 %v7533, %v8845
        %v9009 = vmul.f32 %v7534, %v8847
        %v9010 = vmul.f32 %v7535, %v8849
        %v9011 = vmul.f32 %v7536, %v8851
        %v9012 = vmul.f32 %v7537, %v8853
        %v9013 = vmul.f32 %v7538, %v8855
        %v9014 = vmul.f32 %v7539, %v8857
        %v9015 = vmul.f32 %v7540, %v8859
        %v9016 = vmul.f32 %v7541, %v8861
        %v9017 = vmul.f32 %v7542, %v8863
        %v9018 = vmul.f32 %v7543, %v8865
        %v9019 = vmul.f32 %v7544, %v8867
        %v9020 = vmul.f32 %v7545, %v8869
        %v9021 = vmul.f32 %v7546, %v8871
        %v9022 = vmul.f32 %v7547, %v8873
        %v9023 = vmul.f32 %v7548, %v8875
        %v9024 = vmul.f32 %v7549, %v8877
        %v9025 = vmul.f32 %v7550, %v8879
        %v9026 = vmul.f32 %v7551, %v8881
        %v9027 = vmul.f32 %v7552, %v8883
        %v9028 = vmul.f32 %v7553, %v8885
        %v9029 = vmul.f32 %v7554, %v8887
        %v9030 = vmul.f32 %v7555, %v8889
        %v9031 = vmul.f32 %v7556, %v8891
        %v9032 = vmul.f32 %v7557, %v8893
        %v9033 = vmul.f32 %v7558, %v8895
        %v9034 = vmul.f32 %v7559, %v8897
        %v9035 = vmul.f32 %v7560, %v8899
        %v9036 = vmul.f32 %v7561, %v8901
        %v9037 = vmul.f32 %v7562, %v8903
        %v9038 = vmul.f32 %v7563, %v8905
        %v9039 = vmul.f32 %v7564, %v8907
        %v9040 = vmul.f32 %v7565, %v8909
        %v9041 = vmul.f32 %v7566, %v8911
        %v9042 = vmul.f32 %v7567, %v8913
        %v9043 = vmul.f32 %v7568, %v8915
        %v9044 = vmul.f32 %v7569, %v8917
        %v9045 = vmul.f32 %v7570, %v8919
        %v9046 = vmul.f32 %v7571, %v8921
        %v9047 = vmul.f32 %v7572, %v8923
        %v9048 = vmul.f32 %v7573, %v8925
        %v9049 = vmul.f32 %v7574, %v8927
        %v9050 = vmul.f32 %v7575, %v8929
        %v9051 = vmul.f32 %v7576, %v8931
        %v9052 = vmul.f32 %v7577, %v8933
        %v9053 = vmul.f32 %v7578, %v8935
        %v9054 = vmul.f32 %v7579, %v8937
        %v9055 = vmul.f32 %v7580, %v8939
        %v9056 = vmul.f32 %v7581, %v8941
        %v9057 = vmul.f32 %v7582, %v8943
        %v9058 = vmul.f32 %v7583, %v8945
        %v9059 = vmul.f32 %v7584, %v8947
        %v9060 = vmul.f32 %v7585, %v8949
        %v9061 = vmul.f32 %v7586, %v8951
        %v9062 = vmul.f32 %v7587, %v8953
        %v9063 = vmul.f32 %v7588, %v8955
        %v9064 = vmul.f32 %v7589, %v8957
        %v9065 = vmul.f32 %v7590, %v8959
        %v9066 = vmul.f32 %v7591, %v8961
        %v9067 = vmul.f32 %v7592, %v8963
        %v9068 = vmul.f32 %v7593, %v8965
        %v9069 = vmul.f32 %v7594, %v8967
        %v9070 = vmul.f32 %v7595, %v8969
        %v9071 = vmul.f32 %v7596, %v8971
        %v9072 = vmul.f32 %v7597, %v8973
        %v9073 = vmul.f32 %v7598, %v8975
        %v9074 = vmul.f32 %v7599, %v8977
        %v9075 = vmul.f32 %v7600, %v8979
        %v9076 = vmul.f32 %v7601, %v8981
        %v9077 = vmul.f32 %v7602, %v8983
        %v9078 = vmul.f32 %v7603, %v8985
        %v9079 = vmul.f32 %v7604, %v8987
        %v9080 = vmul.f32 %v7605, %v8989
        %v9081 = vmul.f32 %v7606, %v8991
        %v9082 = vmul.f32 %v7607, %v8993
        %v9083 = vmul.f32 %v7608, %v8995
        %v9084 = vmax.f32 %v8996, -1000.0
        %v9085 = vmax.f32 %v8997, -1000.0
        %v9086 = vmax.f32 %v8998, -1000.0
        %v9087 = vmax.f32 %v8999, -1000.0
        %v9088 = vmax.f32 %v9000, -1000.0
        %v9089 = vmax.f32 %v9001, -1000.0
        %v9090 = vmax.f32 %v9002, -1000.0
        %v9091 = vmax.f32 %v9003, -1000.0
        %v9092 = vmax.f32 %v9004, -1000.0
        %v9093 = vmax.f32 %v9005, -1000.0
        %v9094 = vmax.f32 %v9006, -1000.0
        %v9095 = vmax.f32 %v9007, -1000.0
        %v9096 = vmax.f32 %v9008, -1000.0
        %v9097 = vmax.f32 %v9009, -1000.0
        %v9098 = vmax.f32 %v9010, -1000.0
        %v9099 = vmax.f32 %v9011, -1000.0
        %v9100 = vmax.f32 %v9012, -1000.0
        %v9101 = vmax.f32 %v9013, -1000.0
        %v9102 = vmax.f32 %v9014, -1000.0
        %v9103 = vmax.f32 %v9015, -1000.0
        %v9104 = vmax.f32 %v9016, -1000.0
        %v9105 = vmax.f32 %v9017, -1000.0
        %v9106 = vmax.f32 %v9018, -1000.0
        %v9107 = vmax.f32 %v9019, -1000.0
        %v9108 = vmax.f32 %v9020, -1000.0
        %v9109 = vmax.f32 %v9021, -1000.0
        %v9110 = vmax.f32 %v9022, -1000.0
        %v9111 = vmax.f32 %v9023, -1000.0
        %v9112 = vmax.f32 %v9024, -1000.0
        %v9113 = vmax.f32 %v9025, -1000.0
        %v9114 = vmax.f32 %v9026, -1000.0
        %v9115 = vmax.f32 %v9027, -1000.0
        %v9116 = vmax.f32 %v9028, -1000.0
        %v9117 = vmax.f32 %v9029, -1000.0
        %v9118 = vmax.f32 %v9030, -1000.0
        %v9119 = vmax.f32 %v9031, -1000.0
        %v9120 = vmax.f32 %v9032, -1000.0
        %v9121 = vmax.f32 %v9033, -1000.0
        %v9122 = vmax.f32 %v9034, -1000.0
        %v9123 = vmax.f32 %v9035, -1000.0
        %v9124 = vmax.f32 %v9036, -1000.0
        %v9125 = vmax.f32 %v9037, -1000.0
        %v9126 = vmax.f32 %v9038, -1000.0
        %v9127 = vmax.f32 %v9039, -1000.0
        %v9128 = vmax.f32 %v9040, -1000.0
        %v9129 = vmax.f32 %v9041, -1000.0
        %v9130 = vmax.f32 %v9042, -1000.0
        %v9131 = vmax.f32 %v9043, -1000.0
        %v9132 = vmax.f32 %v9044, -1000.0
        %v9133 = vmax.f32 %v9045, -1000.0
        %v9134 = vmax.f32 %v9046, -1000.0
        %v9135 = vmax.f32 %v9047, -1000.0
        %v9136 = vmax.f32 %v9048, -1000.0
        %v9137 = vmax.f32 %v9049, -1000.0
        %v9138 = vmax.f32 %v9050, -1000.0
        %v9139 = vmax.f32 %v9051, -1000.0
        %v9140 = vmax.f32 %v9052, -1000.0
        %v9141 = vmax.f32 %v9053, -1000.0
        %v9142 = vmax.f32 %v9054, -1000.0
        %v9143 = vmax.f32 %v9055, -1000.0
        %v9144 = vmax.f32 %v9056, -1000.0
        %v9145 = vmax.f32 %v9057, -1000.0
        %v9146 = vmax.f32 %v9058, -1000.0
        %v9147 = vmax.f32 %v9059, -1000.0
        %v9148 = vmax.f32 %v9060, -1000.0
        %v9149 = vmax.f32 %v9061, -1000.0
        %v9150 = vmax.f32 %v9062, -1000.0
        %v9151 = vmax.f32 %v9063, -1000.0
        %v9152 = vmax.f32 %v9064, -1000.0
        %v9153 = vmax.f32 %v9065, -1000.0
        %v9154 = vmax.f32 %v9066, -1000.0
        %v9155 = vmax.f32 %v9067, -1000.0
        %v9156 = vmax.f32 %v9068, -1000.0
        %v9157 = vmax.f32 %v9069, -1000.0
        %v9158 = vmax.f32 %v9070, -1000.0
        %v9159 = vmax.f32 %v9071, -1000.0
        %v9160 = vmax.f32 %v9072, -1000.0
        %v9161 = vmax.f32 %v9073, -1000.0
        %v9162 = vmax.f32 %v9074, -1000.0
        %v9163 = vmax.f32 %v9075, -1000.0
        %v9164 = vmax.f32 %v9076, -1000.0
        %v9165 = vmax.f32 %v9077, -1000.0
        %v9166 = vmax.f32 %v9078, -1000.0
        %v9167 = vmax.f32 %v9079, -1000.0
        %v9168 = vmax.f32 %v9080, -1000.0
        %v9169 = vmax.f32 %v9081, -1000.0
        %v9170 = vmax.f32 %v9082, -1000.0
        %v9171 = vmax.f32 %v9083, -1000.0
        %v9172 = vmin.f32 %v9084, 1000.0
        %v9173 = vmin.f32 %v9085, 1000.0
        %v9174 = vmin.f32 %v9086, 1000.0
        %v9175 = vmin.f32 %v9087, 1000.0
        %v9176 = vmin.f32 %v9088, 1000.0
        %v9177 = vmin.f32 %v9089, 1000.0
        %v9178 = vmin.f32 %v9090, 1000.0
        %v9179 = vmin.f32 %v9091, 1000.0
        %v9180 = vmin.f32 %v9092, 1000.0
        %v9181 = vmin.f32 %v9093, 1000.0
        %v9182 = vmin.f32 %v9094, 1000.0
        %v9183 = vmin.f32 %v9095, 1000.0
        %v9184 = vmin.f32 %v9096, 1000.0
        %v9185 = vmin.f32 %v9097, 1000.0
        %v9186 = vmin.f32 %v9098, 1000.0
        %v9187 = vmin.f32 %v9099, 1000.0
        %v9188 = vmin.f32 %v9100, 1000.0
        %v9189 = vmin.f32 %v9101, 1000.0
        %v9190 = vmin.f32 %v9102, 1000.0
        %v9191 = vmin.f32 %v9103, 1000.0
        %v9192 = vmin.f32 %v9104, 1000.0
        %v9193 = vmin.f32 %v9105, 1000.0
        %v9194 = vmin.f32 %v9106, 1000.0
        %v9195 = vmin.f32 %v9107, 1000.0
        %v9196 = vmin.f32 %v9108, 1000.0
        %v9197 = vmin.f32 %v9109, 1000.0
        %v9198 = vmin.f32 %v9110, 1000.0
        %v9199 = vmin.f32 %v9111, 1000.0
        %v9200 = vmin.f32 %v9112, 1000.0
        %v9201 = vmin.f32 %v9113, 1000.0
        %v9202 = vmin.f32 %v9114, 1000.0
        %v9203 = vmin.f32 %v9115, 1000.0
        %v9204 = vmin.f32 %v9116, 1000.0
        %v9205 = vmin.f32 %v9117, 1000.0
        %v9206 = vmin.f32 %v9118, 1000.0
        %v9207 = vmin.f32 %v9119, 1000.0
        %v9208 = vmin.f32 %v9120, 1000.0
        %v9209 = vmin.f32 %v9121, 1000.0
        %v9210 = vmin.f32 %v9122, 1000.0
        %v9211 = vmin.f32 %v9123, 1000.0
        %v9212 = vmin.f32 %v9124, 1000.0
        %v9213 = vmin.f32 %v9125, 1000.0
        %v9214 = vmin.f32 %v9126, 1000.0
        %v9215 = vmin.f32 %v9127, 1000.0
        %v9216 = vmin.f32 %v9128, 1000.0
        %v9217 = vmin.f32 %v9129, 1000.0
        %v9218 = vmin.f32 %v9130, 1000.0
        %v9219 = vmin.f32 %v9131, 1000.0
        %v9220 = vmin.f32 %v9132, 1000.0
        %v9221 = vmin.f32 %v9133, 1000.0
        %v9222 = vmin.f32 %v9134, 1000.0
        %v9223 = vmin.f32 %v9135, 1000.0
        %v9224 = vmin.f32 %v9136, 1000.0
        %v9225 = vmin.f32 %v9137, 1000.0
        %v9226 = vmin.f32 %v9138, 1000.0
        %v9227 = vmin.f32 %v9139, 1000.0
        %v9228 = vmin.f32 %v9140, 1000.0
        %v9229 = vmin.f32 %v9141, 1000.0
        %v9230 = vmin.f32 %v9142, 1000.0
        %v9231 = vmin.f32 %v9143, 1000.0
        %v9232 = vmin.f32 %v9144, 1000.0
        %v9233 = vmin.f32 %v9145, 1000.0
        %v9234 = vmin.f32 %v9146, 1000.0
        %v9235 = vmin.f32 %v9147, 1000.0
        %v9236 = vmin.f32 %v9148, 1000.0
        %v9237 = vmin.f32 %v9149, 1000.0
        %v9238 = vmin.f32 %v9150, 1000.0
        %v9239 = vmin.f32 %v9151, 1000.0
        %v9240 = vmin.f32 %v9152, 1000.0
        %v9241 = vmin.f32 %v9153, 1000.0
        %v9242 = vmin.f32 %v9154, 1000.0
        %v9243 = vmin.f32 %v9155, 1000.0
        %v9244 = vmin.f32 %v9156, 1000.0
        %v9245 = vmin.f32 %v9157, 1000.0
        %v9246 = vmin.f32 %v9158, 1000.0
        %v9247 = vmin.f32 %v9159, 1000.0
        %v9248 = vmin.f32 %v9160, 1000.0
        %v9249 = vmin.f32 %v9161, 1000.0
        %v9250 = vmin.f32 %v9162, 1000.0
        %v9251 = vmin.f32 %v9163, 1000.0
        %v9252 = vmin.f32 %v9164, 1000.0
        %v9253 = vmin.f32 %v9165, 1000.0
        %v9254 = vmin.f32 %v9166, 1000.0
        %v9255 = vmin.f32 %v9167, 1000.0
        %v9256 = vmin.f32 %v9168, 1000.0
        %v9257 = vmin.f32 %v9169, 1000.0
        %v9258 = vmin.f32 %v9170, 1000.0
        %v9259 = vmin.f32 %v9171, 1000.0
        %v9260 = vadd.f32 %v9172, %v9180
        %v9261 = vadd.f32 %v9260, %v9188
        %v9262 = vadd.f32 %v9261, %v9196
        %v9263 = vadd.f32 %v9262, %v9204
        %v9264 = vadd.f32 %v9263, %v9212
        %v9265 = vadd.f32 %v9264, %v9220
        %v9266 = vadd.f32 %v9265, %v9228
        %v9267 = vadd.f32 %v9266, %v9236
        %v9268 = vadd.f32 %v9267, %v9244
        %v9269 = vadd.f32 %v9268, %v9252
        %v9270 = vadd.f32 %v9173, %v9181
        %v9271 = vadd.f32 %v9270, %v9189
        %v9272 = vadd.f32 %v9271, %v9197
        %v9273 = vadd.f32 %v9272, %v9205
        %v9274 = vadd.f32 %v9273, %v9213
        %v9275 = vadd.f32 %v9274, %v9221
        %v9276 = vadd.f32 %v9275, %v9229
        %v9277 = vadd.f32 %v9276, %v9237
        %v9278 = vadd.f32 %v9277, %v9245
        %v9279 = vadd.f32 %v9278, %v9253
        %v9280 = vadd.f32 %v9174, %v9182
        %v9281 = vadd.f32 %v9280, %v9190
        %v9282 = vadd.f32 %v9281, %v9198
        %v9283 = vadd.f32 %v9282, %v9206
        %v9284 = vadd.f32 %v9283, %v9214
        %v9285 = vadd.f32 %v9284, %v9222
        %v9286 = vadd.f32 %v9285, %v9230
        %v9287 = vadd.f32 %v9286, %v9238
        %v9288 = vadd.f32 %v9287, %v9246
        %v9289 = vadd.f32 %v9288, %v9254
        %v9290 = vadd.f32 %v9175, %v9183
        %v9291 = vadd.f32 %v9290, %v9191
        %v9292 = vadd.f32 %v9291, %v9199
        %v9293 = vadd.f32 %v9292, %v9207
        %v9294 = vadd.f32 %v9293, %v9215
        %v9295 = vadd.f32 %v9294, %v9223
        %v9296 = vadd.f32 %v9295, %v9231
        %v9297 = vadd.f32 %v9296, %v9239
        %v9298 = vadd.f32 %v9297, %v9247
        %v9299 = vadd.f32 %v9298, %v9255
        %v9300 = vadd.f32 %v9176, %v9184
        %v9301 = vadd.f32 %v9300, %v9192
        %v9302 = vadd.f32 %v9301, %v9200
        %v9303 = vadd.f32 %v9302, %v9208
        %v9304 = vadd.f32 %v9303, %v9216
        %v9305 = vadd.f32 %v9304, %v9224
        %v9306 = vadd.f32 %v9305, %v9232
        %v9307 = vadd.f32 %v9306, %v9240
        %v9308 = vadd.f32 %v9307, %v9248
        %v9309 = vadd.f32 %v9308, %v9256
        %v9310 = vadd.f32 %v9177, %v9185
        %v9311 = vadd.f32 %v9310, %v9193
        %v9312 = vadd.f32 %v9311, %v9201
        %v9313 = vadd.f32 %v9312, %v9209
        %v9314 = vadd.f32 %v9313, %v9217
        %v9315 = vadd.f32 %v9314, %v9225
        %v9316 = vadd.f32 %v9315, %v9233
        %v9317 = vadd.f32 %v9316, %v9241
        %v9318 = vadd.f32 %v9317, %v9249
        %v9319 = vadd.f32 %v9318, %v9257
        %v9320 = vadd.f32 %v9178, %v9186
        %v9321 = vadd.f32 %v9320, %v9194
        %v9322 = vadd.f32 %v9321, %v9202
        %v9323 = vadd.f32 %v9322, %v9210
        %v9324 = vadd.f32 %v9323, %v9218
        %v9325 = vadd.f32 %v9324, %v9226
        %v9326 = vadd.f32 %v9325, %v9234
        %v9327 = vadd.f32 %v9326, %v9242
        %v9328 = vadd.f32 %v9327, %v9250
        %v9329 = vadd.f32 %v9328, %v9258
        %v9330 = vadd.f32 %v9179, %v9187
        %v9331 = vadd.f32 %v9330, %v9195
        %v9332 = vadd.f32 %v9331, %v9203
        %v9333 = vadd.f32 %v9332, %v9211
        %v9334 = vadd.f32 %v9333, %v9219
        %v9335 = vadd.f32 %v9334, %v9227
        %v9336 = vadd.f32 %v9335, %v9235
        %v9337 = vadd.f32 %v9336, %v9243
        %v9338 = vadd.f32 %v9337, %v9251
        %v9339 = vadd.f32 %v9338, %v9259
        %v9340 = vmul.f32 %v9269, 0.09090909
        %v9341 = vmul.f32 %v9279, 0.09090909
        %v9342 = vmul.f32 %v9289, 0.09090909
        %v9343 = vmul.f32 %v9299, 0.09090909
        %v9344 = vmul.f32 %v9309, 0.09090909
        %v9345 = vmul.f32 %v9319, 0.09090909
        %v9346 = vmul.f32 %v9329, 0.09090909
        %v9347 = vmul.f32 %v9339, 0.09090909
        %v9348 = vadd.f32 %v6576, %v6584
        %v9349 = vadd.f32 %v9348, %v6592
        %v9350 = vadd.f32 %v9349, %v6600
        %v9351 = vadd.f32 %v9350, %v6608
        %v9352 = vadd.f32 %v9351, %v6616
        %v9353 = vadd.f32 %v9352, %v6624
        %v9354 = vadd.f32 %v9353, %v6632
        %v9355 = vadd.f32 %v9354, %v6640
        %v9356 = vadd.f32 %v9355, %v6648
        %v9357 = vadd.f32 %v9356, %v6656
        %v9358 = vadd.f32 %v6577, %v6585
        %v9359 = vadd.f32 %v9358, %v6593
        %v9360 = vadd.f32 %v9359, %v6601
        %v9361 = vadd.f32 %v9360, %v6609
        %v9362 = vadd.f32 %v9361, %v6617
        %v9363 = vadd.f32 %v9362, %v6625
        %v9364 = vadd.f32 %v9363, %v6633
        %v9365 = vadd.f32 %v9364, %v6641
        %v9366 = vadd.f32 %v9365, %v6649
        %v9367 = vadd.f32 %v9366, %v6657
        %v9368 = vadd.f32 %v6578, %v6586
        %v9369 = vadd.f32 %v9368, %v6594
        %v9370 = vadd.f32 %v9369, %v6602
        %v9371 = vadd.f32 %v9370, %v6610
        %v9372 = vadd.f32 %v9371, %v6618
        %v9373 = vadd.f32 %v9372, %v6626
        %v9374 = vadd.f32 %v9373, %v6634
        %v9375 = vadd.f32 %v9374, %v6642
        %v9376 = vadd.f32 %v9375, %v6650
        %v9377 = vadd.f32 %v9376, %v6658
        %v9378 = vadd.f32 %v6579, %v6587
        %v9379 = vadd.f32 %v9378, %v6595
        %v9380 = vadd.f32 %v9379, %v6603
        %v9381 = vadd.f32 %v9380, %v6611
        %v9382 = vadd.f32 %v9381, %v6619
        %v9383 = vadd.f32 %v9382, %v6627
        %v9384 = vadd.f32 %v9383, %v6635
        %v9385 = vadd.f32 %v9384, %v6643
        %v9386 = vadd.f32 %v9385, %v6651
        %v9387 = vadd.f32 %v9386, %v6659
        %v9388 = vadd.f32 %v6580, %v6588
        %v9389 = vadd.f32 %v9388, %v6596
        %v9390 = vadd.f32 %v9389, %v6604
        %v9391 = vadd.f32 %v9390, %v6612
        %v9392 = vadd.f32 %v9391, %v6620
        %v9393 = vadd.f32 %v9392, %v6628
        %v9394 = vadd.f32 %v9393, %v6636
        %v9395 = vadd.f32 %v9394, %v6644
        %v9396 = vadd.f32 %v9395, %v6652
        %v9397 = vadd.f32 %v9396, %v6660
        %v9398 = vadd.f32 %v6581, %v6589
        %v9399 = vadd.f32 %v9398, %v6597
        %v9400 = vadd.f32 %v9399, %v6605
        %v9401 = vadd.f32 %v9400, %v6613
        %v9402 = vadd.f32 %v9401, %v6621
        %v9403 = vadd.f32 %v9402, %v6629
        %v9404 = vadd.f32 %v9403, %v6637
        %v9405 = vadd.f32 %v9404, %v6645
        %v9406 = vadd.f32 %v9405, %v6653
        %v9407 = vadd.f32 %v9406, %v6661
        %v9408 = vadd.f32 %v6582, %v6590
        %v9409 = vadd.f32 %v9408, %v6598
        %v9410 = vadd.f32 %v9409, %v6606
        %v9411 = vadd.f32 %v9410, %v6614
        %v9412 = vadd.f32 %v9411, %v6622
        %v9413 = vadd.f32 %v9412, %v6630
        %v9414 = vadd.f32 %v9413, %v6638
        %v9415 = vadd.f32 %v9414, %v6646
        %v9416 = vadd.f32 %v9415, %v6654
        %v9417 = vadd.f32 %v9416, %v6662
        %v9418 = vadd.f32 %v6583, %v6591
        %v9419 = vadd.f32 %v9418, %v6599
        %v9420 = vadd.f32 %v9419, %v6607
        %v9421 = vadd.f32 %v9420, %v6615
        %v9422 = vadd.f32 %v9421, %v6623
        %v9423 = vadd.f32 %v9422, %v6631
        %v9424 = vadd.f32 %v9423, %v6639
        %v9425 = vadd.f32 %v9424, %v6647
        %v9426 = vadd.f32 %v9425, %v6655
        %v9427 = vadd.f32 %v9426, %v6663
        %v9428 = vmax.f32 %v1086, -1000.0
        %v9429 = vmax.f32 %v1087, -1000.0
        %v9430 = vmax.f32 %v1088, -1000.0
        %v9431 = vmax.f32 %v1089, -1000.0
        %v9432 = vmax.f32 %v1090, -1000.0
        %v9433 = vmax.f32 %v1091, -1000.0
        %v9434 = vmax.f32 %v1092, -1000.0
        %v9435 = vmax.f32 %v1093, -1000.0
        %v9436 = vmin.f32 %v9428, 1000.0
        %v9437 = vmin.f32 %v9429, 1000.0
        %v9438 = vmin.f32 %v9430, 1000.0
        %v9439 = vmin.f32 %v9431, 1000.0
        %v9440 = vmin.f32 %v9432, 1000.0
        %v9441 = vmin.f32 %v9433, 1000.0
        %v9442 = vmin.f32 %v9434, 1000.0
        %v9443 = vmin.f32 %v9435, 1000.0
        %v9444 = vadd.f32 %v9436, %v9340
        %v9445 = vadd.f32 %v9437, %v9341
        %v9446 = vadd.f32 %v9438, %v9342
        %v9447 = vadd.f32 %v9439, %v9343
        %v9448 = vadd.f32 %v9440, %v9344
        %v9449 = vadd.f32 %v9441, %v9345
        %v9450 = vadd.f32 %v9442, %v9346
        %v9451 = vadd.f32 %v9443, %v9347
        %v9452 = vld [vmem:[%s774] sm:$0xf]
        %v9453 = vld [vmem:[%s774 + $0x4] sm:$0xf]
        %v9454 = vld [vmem:[%s774 + $0x8] sm:$0xf]
        %v9455 = vld [vmem:[%s774 + $0xc] sm:$0xf]
        %v9456 = vld [vmem:[%s774 + $0x10] sm:$0xf]
        %v9457 = vld [vmem:[%s774 + $0x14] sm:$0xf]
        %v9458 = vld [vmem:[%s774 + $0x18] sm:$0xf]
        %v9459 = vld [vmem:[%s774 + $0x1c] sm:$0xf]
        %v9460 = vld [vmem:[%s774 + $0x20] sm:$0xf]
        %v9461 = vld [vmem:[%s774 + $0x24] sm:$0xf]
        %v9462 = vld [vmem:[%s774 + $0x28] sm:$0xf]
        %v9463 = vld [vmem:[%s774 + $0x2c] sm:$0xf]
        %v9464 = vld [vmem:[%s774 + $0x30] sm:$0xf]
        %v9465 = vld [vmem:[%s774 + $0x34] sm:$0xf]
        %v9466 = vld [vmem:[%s774 + $0x38] sm:$0xf]
        %v9467 = vld [vmem:[%s774 + $0x3c] sm:$0xf]
        %v9468 = vld [vmem:[%s774 + $0x40] sm:$0xf]
        %v9469 = vld [vmem:[%s774 + $0x44] sm:$0xf]
        %v9470 = vld [vmem:[%s774 + $0x48] sm:$0xf]
        %v9471 = vld [vmem:[%s774 + $0x4c] sm:$0xf]
        %v9472 = vld [vmem:[%s774 + $0x50] sm:$0xf]
        %v9473 = vld [vmem:[%s774 + $0x54] sm:$0xf]
        %v9474 = vld [vmem:[%s774 + $0x58] sm:$0xf]
        %v9475 = vld [vmem:[%s774 + $0x5c] sm:$0xf]
        %v9476 = vld [vmem:[%s774 + $0x60] sm:$0xf]
        %v9477 = vld [vmem:[%s774 + $0x64] sm:$0xf]
        %v9478 = vld [vmem:[%s774 + $0x68] sm:$0xf]
        %v9479 = vld [vmem:[%s774 + $0x6c] sm:$0xf]
        %v9480 = vld [vmem:[%s774 + $0x70] sm:$0xf]
        %v9481 = vld [vmem:[%s774 + $0x74] sm:$0xf]
        %v9482 = vld [vmem:[%s774 + $0x78] sm:$0xf]
        %v9483 = vld [vmem:[%s774 + $0x7c] sm:$0xf]
        %v9484 = vpack.c.bf16 %v9367, %v9357
        %v9485 = vpack.c.bf16 %v9387, %v9377
        %v9486 = vpack.c.bf16 %v9407, %v9397
        %v9487 = vpack.c.bf16 %v9427, %v9417
        %v9488 = vld [vmem:[%s903] sm:$0x1]
        %v9490 = vlaneseq
        %v9491 = vshrl.u32 %v9490, 7
        %v9492 = vsub.s32 0, %v9491
        %v9493 = vrot.slane %v9488, %v9492
        %v9527 = vunpack.c.l.b16 %v9452
        %v9528 = vunpack.c.l.b16 %v9453
        %v9529 = vunpack.c.l.b16 %v9454
        %v9530 = vunpack.c.l.b16 %v9455
        %v9531 = vunpack.c.l.b16 %v9456
        %v9532 = vunpack.c.l.b16 %v9457
        %v9533 = vunpack.c.l.b16 %v9458
        %v9534 = vunpack.c.l.b16 %v9459
        %v9535 = vunpack.c.l.b16 %v9460
        %v9536 = vunpack.c.l.b16 %v9461
        %v9537 = vunpack.c.l.b16 %v9462
        %v9538 = vunpack.c.l.b16 %v9463
        %v9539 = vunpack.c.l.b16 %v9464
        %v9540 = vunpack.c.l.b16 %v9465
        %v9541 = vunpack.c.l.b16 %v9466
        %v9542 = vunpack.c.l.b16 %v9467
        %v9543 = vunpack.c.l.b16 %v9468
        %v9544 = vunpack.c.l.b16 %v9469
        %v9545 = vunpack.c.l.b16 %v9470
        %v9546 = vunpack.c.l.b16 %v9471
        %v9547 = vunpack.c.l.b16 %v9472
        %v9548 = vunpack.c.l.b16 %v9473
        %v9549 = vunpack.c.l.b16 %v9474
        %v9550 = vunpack.c.l.b16 %v9475
        %v9551 = vunpack.c.l.b16 %v9476
        %v9552 = vunpack.c.l.b16 %v9477
        %v9553 = vunpack.c.l.b16 %v9478
        %v9554 = vunpack.c.l.b16 %v9479
        %v9555 = vunpack.c.l.b16 %v9480
        %v9556 = vunpack.c.l.b16 %v9481
        %v9557 = vunpack.c.l.b16 %v9482
        %v9558 = vunpack.c.l.b16 %v9483
        %v9559 = vpack.c.b16 %v9528, %v9527
        %v9560 = vpack.c.b16 %v9530, %v9529
        %v9561 = vpack.c.b16 %v9532, %v9531
        %v9562 = vpack.c.b16 %v9534, %v9533
        %v9563 = vpack.c.b16 %v9536, %v9535
        %v9564 = vpack.c.b16 %v9538, %v9537
        %v9565 = vpack.c.b16 %v9540, %v9539
        %v9566 = vpack.c.b16 %v9542, %v9541
        %v9567 = vpack.c.b16 %v9544, %v9543
        %v9568 = vpack.c.b16 %v9546, %v9545
        %v9569 = vpack.c.b16 %v9548, %v9547
        %v9570 = vpack.c.b16 %v9550, %v9549
        %v9571 = vpack.c.b16 %v9552, %v9551
        %v9572 = vpack.c.b16 %v9554, %v9553
        %v9573 = vpack.c.b16 %v9556, %v9555
        %v9574 = vpack.c.b16 %v9558, %v9557
        %9591 = vmatprep.subr.bf16.mxu0 0
        %9592 = vmatpush1.bf16.msra.mxu0 %v9566
        %9593 = vmatprep.subr.bf16.mxu0 0
        %9594 = vmatpush1.bf16.msra.mxu0 %v9565
        %9595 = vmatprep.subr.bf16.mxu0 0
        %9596 = vmatpush1.bf16.msra.mxu0 %v9564
        %9597 = vmatprep.subr.bf16.mxu0 0
        %9598 = vmatpush1.bf16.msra.mxu0 %v9563
        %9599 = vmatprep.subr.bf16.mxu0 0
        %9600 = vmatpush1.bf16.msra.mxu0 %v9562
        %9601 = vmatprep.subr.bf16.mxu0 0
        %9602 = vmatpush1.bf16.msra.mxu0 %v9561
        %9603 = vmatprep.subr.bf16.mxu0 0
        %9604 = vmatpush1.bf16.msra.mxu0 %v9560
        %9605 = vmatprep.subr.bf16.mxu0 0
        %9606 = vmatpush1.bf16.msra.mxu0 %v9559
        %9607 = vmatprep.subr.bf16.mxu0 0
        %9608 = vmatpush2.bf16.msra.mxu0 %v9574
        %9609 = vmatprep.subr.bf16.mxu0 0
        %9610 = vmatpush2.bf16.msra.mxu0 %v9573
        %9611 = vmatprep.subr.bf16.mxu0 0
        %9612 = vmatpush2.bf16.msra.mxu0 %v9572
        %9613 = vmatprep.subr.bf16.mxu0 0
        %9614 = vmatpush2.bf16.msra.mxu0 %v9571
        %9615 = vmatprep.subr.bf16.mxu0 0
        %9616 = vmatpush2.bf16.msra.mxu0 %v9570
        %9617 = vmatprep.subr.bf16.mxu0 0
        %9618 = vmatpush2.bf16.msra.mxu0 %v9569
        %9619 = vmatprep.subr.bf16.mxu0 0
        %9620 = vmatpush2.bf16.msra.mxu0 %v9568
        %9621 = vmatprep.subr.bf16.mxu0 0
        %9622 = vmatpush2.bf16.msra.mxu0 %v9567
        %9623 = vmatprep.mubr.bf16.mxu0 %v9484
        %9624 = vmatmul.mubr.bf16.gmra.mxu0 %v3227
        %v9625 = vpop.f32.mrf.mxu0
        %v9626 = vadd.f32 %v9493, %v9625
        %v9627 = vpop.f32.mrf.mxu0
        %v9628 = vpop.f32.mrf.mxu0
        %v9629 = vadd.f32 %v9493, %v9628
        %v9630 = vpop.f32.mrf.mxu0
        %9631 = vmatprep.mubr.bf16.mxu0 %v9485
        %9632 = vmatmul.mubr.bf16.gmra.mxu0 %v3228
        %v9633 = vpop.f32.mrf.mxu0
        %v9634 = vadd.f32 %v9493, %v9633
        %v9635 = vpop.f32.mrf.mxu0
        %v9636 = vpop.f32.mrf.mxu0
        %v9637 = vadd.f32 %v9493, %v9636
        %v9638 = vpop.f32.mrf.mxu0
        %9639 = vmatprep.mubr.bf16.mxu0 %v9486
        %9640 = vmatmul.mubr.bf16.gmra.mxu0 %v3229
        %v9641 = vpop.f32.mrf.mxu0
        %v9642 = vadd.f32 %v9493, %v9641
        %v9643 = vpop.f32.mrf.mxu0
        %v9644 = vpop.f32.mrf.mxu0
        %v9645 = vadd.f32 %v9493, %v9644
        %v9646 = vpop.f32.mrf.mxu0
        %9647 = vmatprep.mubr.bf16.mxu0 %v9487
        %9648 = vmatmul.mubr.bf16.gmra.mxu0 %v3230
        %v9649 = vpop.f32.mrf.mxu0
        %v9650 = vadd.f32 %v9493, %v9649
        %v9651 = vpop.f32.mrf.mxu0
        %v9652 = vpop.f32.mrf.mxu0
        %v9653 = vadd.f32 %v9493, %v9652
        %v9654 = vpop.f32.mrf.mxu0
        %9655 = vdwg.mxu0
        %v9656 = vxor.u32 %v9626, 2147483648
        %v9657 = vxor.u32 %v9629, 2147483648
        %v9658 = vxor.u32 %v9634, 2147483648
        %v9659 = vxor.u32 %v9637, 2147483648
        %v9660 = vxor.u32 %v9642, 2147483648
        %v9661 = vxor.u32 %v9645, 2147483648
        %v9662 = vxor.u32 %v9650, 2147483648
        %v9663 = vxor.u32 %v9653, 2147483648
        %v9664 = vmul.f32 %v9656, 1.442695
        %v9665 = vpow.pop %v9664
        %v9666 = vmul.f32 %v9657, 1.442695
        %v9667 = vpow.pop %v9666
        %v9668 = vmul.f32 %v9658, 1.442695
        %v9669 = vpow.pop %v9668
        %v9670 = vmul.f32 %v9659, 1.442695
        %v9671 = vpow.pop %v9670
        %v9672 = vmul.f32 %v9660, 1.442695
        %v9673 = vpow.pop %v9672
        %v9674 = vmul.f32 %v9661, 1.442695
        %v9675 = vpow.pop %v9674
        %v9676 = vmul.f32 %v9662, 1.442695
        %v9677 = vpow.pop %v9676
        %v9678 = vmul.f32 %v9663, 1.442695
        %v9679 = vpow.pop %v9678
        %v9680 = vadd.f32 %v9665, 1.0
        %v9681 = vadd.f32 %v9667, 1.0
        %v9682 = vadd.f32 %v9669, 1.0
        %v9683 = vadd.f32 %v9671, 1.0
        %v9684 = vadd.f32 %v9673, 1.0
        %v9685 = vadd.f32 %v9675, 1.0
        %v9686 = vadd.f32 %v9677, 1.0
        %v9687 = vadd.f32 %v9679, 1.0
        %v9688 = vrcp.pop %v9680
        %v9689 = vmul.f32 1.0, %v9688
        %v9690 = vrcp.pop %v9681
        %v9691 = vmul.f32 1.0, %v9690
        %v9692 = vrcp.pop %v9682
        %v9693 = vmul.f32 1.0, %v9692
        %v9694 = vrcp.pop %v9683
        %v9695 = vmul.f32 1.0, %v9694
        %v9696 = vrcp.pop %v9684
        %v9697 = vmul.f32 1.0, %v9696
        %v9698 = vrcp.pop %v9685
        %v9699 = vmul.f32 1.0, %v9698
        %v9700 = vrcp.pop %v9686
        %v9701 = vmul.f32 1.0, %v9700
        %v9702 = vrcp.pop %v9687
        %v9703 = vmul.f32 1.0, %v9702
        %v9704 = vmul.f32 %v9626, %v9689
        %v9705 = vmul.f32 %v9629, %v9691
        %v9706 = vmul.f32 %v9634, %v9693
        %v9707 = vmul.f32 %v9637, %v9695
        %v9708 = vmul.f32 %v9642, %v9697
        %v9709 = vmul.f32 %v9645, %v9699
        %v9710 = vmul.f32 %v9650, %v9701
        %v9711 = vmul.f32 %v9653, %v9703
        %v9712 = vld [vmem:[%s783] sm:$0xf]
        %v9713 = vld [vmem:[%s783 + $0x4] sm:$0xf]
        %v9714 = vld [vmem:[%s783 + $0x8] sm:$0xf]
        %v9715 = vld [vmem:[%s783 + $0xc] sm:$0xf]
        %v9716 = vld [vmem:[%s783 + $0x10] sm:$0xf]
        %v9717 = vld [vmem:[%s783 + $0x14] sm:$0xf]
        %v9718 = vld [vmem:[%s783 + $0x18] sm:$0xf]
        %v9719 = vld [vmem:[%s783 + $0x1c] sm:$0xf]
        %v9720 = vld [vmem:[%s783 + $0x20] sm:$0xf]
        %v9721 = vld [vmem:[%s783 + $0x24] sm:$0xf]
        %v9722 = vld [vmem:[%s783 + $0x28] sm:$0xf]
        %v9723 = vld [vmem:[%s783 + $0x2c] sm:$0xf]
        %v9724 = vld [vmem:[%s783 + $0x30] sm:$0xf]
        %v9725 = vld [vmem:[%s783 + $0x34] sm:$0xf]
        %v9726 = vld [vmem:[%s783 + $0x38] sm:$0xf]
        %v9727 = vld [vmem:[%s783 + $0x3c] sm:$0xf]
        %v9728 = vpack.c.bf16 %v9705, %v9704
        %v9729 = vpack.c.bf16 %v9707, %v9706
        %v9730 = vpack.c.bf16 %v9709, %v9708
        %v9731 = vpack.c.bf16 %v9711, %v9710
        %v9748 = vunpack.c.l.b16 %v9712
        %v9749 = vunpack.c.l.b16 %v9713
        %v9750 = vunpack.c.l.b16 %v9714
        %v9751 = vunpack.c.l.b16 %v9715
        %v9752 = vunpack.c.l.b16 %v9716
        %v9753 = vunpack.c.l.b16 %v9717
        %v9754 = vunpack.c.l.b16 %v9718
        %v9755 = vunpack.c.l.b16 %v9719
        %v9756 = vunpack.c.l.b16 %v9720
        %v9757 = vunpack.c.l.b16 %v9721
        %v9758 = vunpack.c.l.b16 %v9722
        %v9759 = vunpack.c.l.b16 %v9723
        %v9760 = vunpack.c.l.b16 %v9724
        %v9761 = vunpack.c.l.b16 %v9725
        %v9762 = vunpack.c.l.b16 %v9726
        %v9763 = vunpack.c.l.b16 %v9727
        %v9764 = vpack.c.b16 %v9749, %v9748
        %v9765 = vpack.c.b16 %v9751, %v9750
        %v9766 = vpack.c.b16 %v9753, %v9752
        %v9767 = vpack.c.b16 %v9755, %v9754
        %v9768 = vpack.c.b16 %v9757, %v9756
        %v9769 = vpack.c.b16 %v9759, %v9758
        %v9770 = vpack.c.b16 %v9761, %v9760
        %v9771 = vpack.c.b16 %v9763, %v9762
        %9780 = vmatprep.subr.bf16.mxu0 0
        %9781 = vmatpush1.bf16.msra.mxu0 %v9771
        %9782 = vmatprep.subr.bf16.mxu0 0
        %9783 = vmatpush1.bf16.msra.mxu0 %v9770
        %9784 = vmatprep.subr.bf16.mxu0 0
        %9785 = vmatpush1.bf16.msra.mxu0 %v9769
        %9786 = vmatprep.subr.bf16.mxu0 0
        %9787 = vmatpush1.bf16.msra.mxu0 %v9768
        %9788 = vmatprep.subr.bf16.mxu0 0
        %9789 = vmatpush1.bf16.msra.mxu0 %v9767
        %9790 = vmatprep.subr.bf16.mxu0 0
        %9791 = vmatpush1.bf16.msra.mxu0 %v9766
        %9792 = vmatprep.subr.bf16.mxu0 0
        %9793 = vmatpush1.bf16.msra.mxu0 %v9765
        %9794 = vmatprep.subr.bf16.mxu0 0
        %9795 = vmatpush1.bf16.msra.mxu0 %v9764
        %9796 = vmatprep.subr.bf16.mxu0 0
        %9797 = vmatpush2.bf16.msra.mxu0 0
        %9798 = vmatprep.subr.bf16.mxu0 0
        %9799 = vmatpush2.bf16.msra.mxu0 0
        %9800 = vmatprep.subr.bf16.mxu0 0
        %9801 = vmatpush2.bf16.msra.mxu0 0
        %9802 = vmatprep.subr.bf16.mxu0 0
        %9803 = vmatpush2.bf16.msra.mxu0 0
        %9804 = vmatprep.subr.bf16.mxu0 0
        %9805 = vmatpush2.bf16.msra.mxu0 0
        %9806 = vmatprep.subr.bf16.mxu0 0
        %9807 = vmatpush2.bf16.msra.mxu0 0
        %9808 = vmatprep.subr.bf16.mxu0 0
        %9809 = vmatpush2.bf16.msra.mxu0 0
        %9810 = vmatprep.subr.bf16.mxu0 0
        %9811 = vmatpush2.bf16.msra.mxu0 0
        %9812 = vmatprep.mubr.bf16.mxu0 0
        %9813 = vmatmul.mubr.bf16.gmra.mxu0 %v9728
        %v9814 = vpop.f32.mrf.mxu0
        %v9815 = vadd.f32 0.0, %v9814
        %v9816 = vpop.f32.mrf.mxu0
        %v9817 = vpop.f32.mrf.mxu0
        %v9818 = vadd.f32 0.0, %v9817
        %v9819 = vpop.f32.mrf.mxu0
        %9820 = vmatprep.mubr.bf16.mxu0 0
        %9821 = vmatmul.mubr.bf16.gmra.mxu0 %v9729
        %v9822 = vpop.f32.mrf.mxu0
        %v9823 = vadd.f32 0.0, %v9822
        %v9824 = vpop.f32.mrf.mxu0
        %v9825 = vpop.f32.mrf.mxu0
        %v9826 = vadd.f32 0.0, %v9825
        %v9827 = vpop.f32.mrf.mxu0
        %9828 = vmatprep.mubr.bf16.mxu0 0
        %9829 = vmatmul.mubr.bf16.gmra.mxu0 %v9730
        %v9830 = vpop.f32.mrf.mxu0
        %v9831 = vadd.f32 0.0, %v9830
        %v9832 = vpop.f32.mrf.mxu0
        %v9833 = vpop.f32.mrf.mxu0
        %v9834 = vadd.f32 0.0, %v9833
        %v9835 = vpop.f32.mrf.mxu0
        %9836 = vmatprep.mubr.bf16.mxu0 0
        %9837 = vmatmul.mubr.bf16.gmra.mxu0 %v9731
        %v9838 = vpop.f32.mrf.mxu0
        %v9839 = vadd.f32 0.0, %v9838
        %v9840 = vpop.f32.mrf.mxu0
        %v9841 = vpop.f32.mrf.mxu0
        %v9842 = vadd.f32 0.0, %v9841
        %v9843 = vpop.f32.mrf.mxu0
        %9844 = vdwg.mxu0
        %v9845 = vadd.f32 %v1094, %v9815
        %v9846 = vadd.f32 %v1095, %v9818
        %v9847 = vadd.f32 %v1096, %v9823
        %v9848 = vadd.f32 %v1097, %v9826
        %v9849 = vadd.f32 %v1098, %v9831
        %v9850 = vadd.f32 %v1099, %v9834
        %v9851 = vadd.f32 %v1100, %v9839
        %v9852 = vadd.f32 %v1101, %v9842
        %v9853 = vld [vmem:[%s906] sm:$0x1]
        %v9855 = vlaneseq
        %v9856 = vshrl.u32 %v9855, 7
        %v9857 = vsub.s32 0, %v9856
        %v9858 = vrot.slane %v9853, %v9857
        %v9860 = vadd.f32 %v9845, %v9858
        %v9861 = vadd.f32 %v9846, %v9858
        %v9862 = vadd.f32 %v9847, %v9858
        %v9863 = vadd.f32 %v9848, %v9858
        %v9864 = vadd.f32 %v9849, %v9858
        %v9865 = vadd.f32 %v9850, %v9858
        %v9866 = vadd.f32 %v9851, %v9858
        %v9867 = vadd.f32 %v9852, %v9858
        %9868 = vst [vmem:[#allocation2] sm:$0xff] %v9444
        %9869 = vst [vmem:[#allocation2 + $0x8] sm:$0xff] %v9445
        %9870 = vst [vmem:[#allocation2 + $0x10] sm:$0xff] %v9446
        %9871 = vst [vmem:[#allocation2 + $0x18] sm:$0xff] %v9447
        %9872 = vst [vmem:[#allocation2 + $0x20] sm:$0xff] %v9448
        %9873 = vst [vmem:[#allocation2 + $0x28] sm:$0xff] %v9449
        %9874 = vst [vmem:[#allocation2 + $0x30] sm:$0xff] %v9450
        %9875 = vst [vmem:[#allocation2 + $0x38] sm:$0xff] %v9451
        %9876 = vst [vmem:[#allocation3] sm:$0xff] %v9860
        %9877 = vst [vmem:[#allocation3 + $0x8] sm:$0xff] %v9861
        %9878 = vst [vmem:[#allocation3 + $0x10] sm:$0xff] %v9862
        %9879 = vst [vmem:[#allocation3 + $0x18] sm:$0xff] %v9863
        %9880 = vst [vmem:[#allocation3 + $0x20] sm:$0xff] %v9864
        %9881 = vst [vmem:[#allocation3 + $0x28] sm:$0xff] %v9865
        %9882 = vst [vmem:[#allocation3 + $0x30] sm:$0xff] %v9866
        %9883 = vst [vmem:[#allocation3 + $0x38] sm:$0xff] %v9867
        %v9884 = vld [vmem:[%s17] sm:$0xff]
        %v9885 = vld [vmem:[%s17 + $0x8] sm:$0xff]
        %v9886 = vld [vmem:[%s17 + $0x10] sm:$0xff]
        %v9887 = vld [vmem:[%s17 + $0x18] sm:$0xff]
        %v9888 = vld [vmem:[%s17 + $0x20] sm:$0xff]
        %v9889 = vld [vmem:[%s17 + $0x28] sm:$0xff]
        %v9890 = vld [vmem:[%s17 + $0x30] sm:$0xff]
        %v9891 = vld [vmem:[%s17 + $0x38] sm:$0xff]
        %v9892 = vld [vmem:[%s17 + $0x40] sm:$0xff]
        %v9893 = vld [vmem:[%s17 + $0x48] sm:$0xff]
        %v9894 = vld [vmem:[%s17 + $0x50] sm:$0xff]
        %v9895 = vld [vmem:[%s17 + $0x58] sm:$0xff]
        %v9896 = vld [vmem:[%s17 + $0x60] sm:$0xff]
        %v9897 = vld [vmem:[%s17 + $0x68] sm:$0xff]
        %v9898 = vld [vmem:[%s17 + $0x70] sm:$0xff]
        %v9899 = vld [vmem:[%s17 + $0x78] sm:$0xff]
        %v9900 = vld [vmem:[%s18] sm:$0xff]
        %v9901 = vld [vmem:[%s18 + $0x8] sm:$0xff]
        %v9902 = vld [vmem:[%s18 + $0x10] sm:$0xff]
        %v9903 = vld [vmem:[%s18 + $0x18] sm:$0xff]
        %v9904 = vld [vmem:[%s18 + $0x20] sm:$0xff]
        %v9905 = vld [vmem:[%s18 + $0x28] sm:$0xff]
        %v9906 = vld [vmem:[%s18 + $0x30] sm:$0xff]
        %v9907 = vld [vmem:[%s18 + $0x38] sm:$0xff]
        %v9908 = vld [vmem:[%s18 + $0x40] sm:$0xff]
        %v9909 = vld [vmem:[%s18 + $0x48] sm:$0xff]
        %v9910 = vld [vmem:[%s18 + $0x50] sm:$0xff]
        %v9911 = vld [vmem:[%s18 + $0x58] sm:$0xff]
        %v9912 = vld [vmem:[%s18 + $0x60] sm:$0xff]
        %v9913 = vld [vmem:[%s18 + $0x68] sm:$0xff]
        %v9914 = vld [vmem:[%s18 + $0x70] sm:$0xff]
        %v9915 = vld [vmem:[%s18 + $0x78] sm:$0xff]
        %9916 = vmatprep.subr.mxu0 0.0
        %9917 = vmatpush1.msra.mxu0 %v9915
        %9918 = vmatprep.subr.mxu0 0.0
        %9919 = vmatpush1.msra.mxu0 %v9914
        %9920 = vmatprep.subr.mxu0 0.0
        %9921 = vmatpush1.msra.mxu0 %v9913
        %9922 = vmatprep.subr.mxu0 0.0
        %9923 = vmatpush1.msra.mxu0 %v9912
        %9924 = vmatprep.subr.mxu0 0.0
        %9925 = vmatpush1.msra.mxu0 %v9911
        %9926 = vmatprep.subr.mxu0 0.0
        %9927 = vmatpush1.msra.mxu0 %v9910
        %9928 = vmatprep.subr.mxu0 0.0
        %9929 = vmatpush1.msra.mxu0 %v9909
        %9930 = vmatprep.subr.mxu0 0.0
        %9931 = vmatpush1.msra.mxu0 %v9908
        %9932 = vmatprep.subr.mxu0 0.0
        %9933 = vmatpush1.msra.mxu0 %v9907
        %9934 = vmatprep.subr.mxu0 0.0
        %9935 = vmatpush1.msra.mxu0 %v9906
        %9936 = vmatprep.subr.mxu0 0.0
        %9937 = vmatpush1.msra.mxu0 %v9905
        %9938 = vmatprep.subr.mxu0 0.0
        %9939 = vmatpush1.msra.mxu0 %v9904
        %9940 = vmatprep.subr.mxu0 0.0
        %9941 = vmatpush1.msra.mxu0 %v9903
        %9942 = vmatprep.subr.mxu0 0.0
        %9943 = vmatpush1.msra.mxu0 %v9902
        %9944 = vmatprep.subr.mxu0 0.0
        %9945 = vmatpush1.msra.mxu0 %v9901
        %9946 = vmatprep.subr.mxu0 0.0
        %9947 = vmatpush1.msra.mxu0 %v9900
        %9948 = vmatprep.subr.mxu0 0.0
        %9949 = vmatpush2.msra.mxu0 0.0
        %9950 = vmatprep.subr.mxu0 0.0
        %9951 = vmatpush2.msra.mxu0 0.0
        %9952 = vmatprep.subr.mxu0 0.0
        %9953 = vmatpush2.msra.mxu0 0.0
        %9954 = vmatprep.subr.mxu0 0.0
        %9955 = vmatpush2.msra.mxu0 0.0
        %9956 = vmatprep.subr.mxu0 0.0
        %9957 = vmatpush2.msra.mxu0 0.0
        %9958 = vmatprep.subr.mxu0 0.0
        %9959 = vmatpush2.msra.mxu0 0.0
        %9960 = vmatprep.subr.mxu0 0.0
        %9961 = vmatpush2.msra.mxu0 0.0
        %9962 = vmatprep.subr.mxu0 0.0
        %9963 = vmatpush2.msra.mxu0 0.0
        %9964 = vmatprep.subr.mxu0 0.0
        %9965 = vmatpush2.msra.mxu0 0.0
        %9966 = vmatprep.subr.mxu0 0.0
        %9967 = vmatpush2.msra.mxu0 0.0
        %9968 = vmatprep.subr.mxu0 0.0
        %9969 = vmatpush2.msra.mxu0 0.0
        %9970 = vmatprep.subr.mxu0 0.0
        %9971 = vmatpush2.msra.mxu0 0.0
        %9972 = vmatprep.subr.mxu0 0.0
        %9973 = vmatpush2.msra.mxu0 0.0
        %9974 = vmatprep.subr.mxu0 0.0
        %9975 = vmatpush2.msra.mxu0 0.0
        %9976 = vmatprep.subr.mxu0 0.0
        %9977 = vmatpush2.msra.mxu0 0.0
        %9978 = vmatprep.subr.mxu0 0.0
        %9979 = vmatpush2.msra.mxu0 0.0
        %9980 = vmatprep.mubr.f32.mxu0 0.0
        %9981 = vmatmul.mubr.f32.gmra.mxu0 %v9444
        %v9982 = vpop.f32.mrf.mxu0
        %v9983 = vadd.f32 0.0, %v9982
        %v9984 = vpop.f32.mrf.mxu0
        %9985 = vmatprep.mubr.f32.mxu0 0.0
        %9986 = vmatmul.mubr.f32.gmra.mxu0 %v9445
        %v9987 = vpop.f32.mrf.mxu0
        %v9988 = vadd.f32 0.0, %v9987
        %v9989 = vpop.f32.mrf.mxu0
        %9990 = vmatprep.mubr.f32.mxu0 0.0
        %9991 = vmatmul.mubr.f32.gmra.mxu0 %v9446
        %v9992 = vpop.f32.mrf.mxu0
        %v9993 = vadd.f32 0.0, %v9992
        %v9994 = vpop.f32.mrf.mxu0
        %9995 = vmatprep.mubr.f32.mxu0 0.0
        %9996 = vmatmul.mubr.f32.gmra.mxu0 %v9447
        %v9997 = vpop.f32.mrf.mxu0
        %v9998 = vadd.f32 0.0, %v9997
        %v9999 = vpop.f32.mrf.mxu0
        %10000 = vmatprep.mubr.f32.mxu0 0.0
        %10001 = vmatmul.mubr.f32.gmra.mxu0 %v9448
        %v10002 = vpop.f32.mrf.mxu0
        %v10003 = vadd.f32 0.0, %v10002
        %v10004 = vpop.f32.mrf.mxu0
        %10005 = vmatprep.mubr.f32.mxu0 0.0
        %10006 = vmatmul.mubr.f32.gmra.mxu0 %v9449
        %v10007 = vpop.f32.mrf.mxu0
        %v10008 = vadd.f32 0.0, %v10007
        %v10009 = vpop.f32.mrf.mxu0
        %10010 = vmatprep.mubr.f32.mxu0 0.0
        %10011 = vmatmul.mubr.f32.gmra.mxu0 %v9450
        %v10012 = vpop.f32.mrf.mxu0
        %v10013 = vadd.f32 0.0, %v10012
        %v10014 = vpop.f32.mrf.mxu0
        %10015 = vmatprep.mubr.f32.mxu0 0.0
        %10016 = vmatmul.mubr.f32.gmra.mxu0 %v9451
        %v10017 = vpop.f32.mrf.mxu0
        %v10018 = vadd.f32 0.0, %v10017
        %v10019 = vpop.f32.mrf.mxu0
        %10020 = vdwg.mxu0
        %10021 = vmatprep.subr.mxu0 0.0
        %10022 = vmatpush1.msra.mxu0 %v9899
        %10023 = vmatprep.subr.mxu0 0.0
        %10024 = vmatpush1.msra.mxu0 %v9898
        %10025 = vmatprep.subr.mxu0 0.0
        %10026 = vmatpush1.msra.mxu0 %v9897
        %10027 = vmatprep.subr.mxu0 0.0
        %10028 = vmatpush1.msra.mxu0 %v9896
        %10029 = vmatprep.subr.mxu0 0.0
        %10030 = vmatpush1.msra.mxu0 %v9895
        %10031 = vmatprep.subr.mxu0 0.0
        %10032 = vmatpush1.msra.mxu0 %v9894
        %10033 = vmatprep.subr.mxu0 0.0
        %10034 = vmatpush1.msra.mxu0 %v9893
        %10035 = vmatprep.subr.mxu0 0.0
        %10036 = vmatpush1.msra.mxu0 %v9892
        %10037 = vmatprep.subr.mxu0 0.0
        %10038 = vmatpush1.msra.mxu0 %v9891
        %10039 = vmatprep.subr.mxu0 0.0
        %10040 = vmatpush1.msra.mxu0 %v9890
        %10041 = vmatprep.subr.mxu0 0.0
        %10042 = vmatpush1.msra.mxu0 %v9889
        %10043 = vmatprep.subr.mxu0 0.0
        %10044 = vmatpush1.msra.mxu0 %v9888
        %10045 = vmatprep.subr.mxu0 0.0
        %10046 = vmatpush1.msra.mxu0 %v9887
        %10047 = vmatprep.subr.mxu0 0.0
        %10048 = vmatpush1.msra.mxu0 %v9886
        %10049 = vmatprep.subr.mxu0 0.0
        %10050 = vmatpush1.msra.mxu0 %v9885
        %10051 = vmatprep.subr.mxu0 0.0
        %10052 = vmatpush1.msra.mxu0 %v9884
        %10053 = vmatprep.subr.mxu0 0.0
        %10054 = vmatpush2.msra.mxu0 0.0
        %10055 = vmatprep.subr.mxu0 0.0
        %10056 = vmatpush2.msra.mxu0 0.0
        %10057 = vmatprep.subr.mxu0 0.0
        %10058 = vmatpush2.msra.mxu0 0.0
        %10059 = vmatprep.subr.mxu0 0.0
        %10060 = vmatpush2.msra.mxu0 0.0
        %10061 = vmatprep.subr.mxu0 0.0
        %10062 = vmatpush2.msra.mxu0 0.0
        %10063 = vmatprep.subr.mxu0 0.0
        %10064 = vmatpush2.msra.mxu0 0.0
        %10065 = vmatprep.subr.mxu0 0.0
        %10066 = vmatpush2.msra.mxu0 0.0
        %10067 = vmatprep.subr.mxu0 0.0
        %10068 = vmatpush2.msra.mxu0 0.0
        %10069 = vmatprep.subr.mxu0 0.0
        %10070 = vmatpush2.msra.mxu0 0.0
        %10071 = vmatprep.subr.mxu0 0.0
        %10072 = vmatpush2.msra.mxu0 0.0
        %10073 = vmatprep.subr.mxu0 0.0
        %10074 = vmatpush2.msra.mxu0 0.0
        %10075 = vmatprep.subr.mxu0 0.0
        %10076 = vmatpush2.msra.mxu0 0.0
        %10077 = vmatprep.subr.mxu0 0.0
        %10078 = vmatpush2.msra.mxu0 0.0
        %10079 = vmatprep.subr.mxu0 0.0
        %10080 = vmatpush2.msra.mxu0 0.0
        %10081 = vmatprep.subr.mxu0 0.0
        %10082 = vmatpush2.msra.mxu0 0.0
        %10083 = vmatprep.subr.mxu0 0.0
        %10084 = vmatpush2.msra.mxu0 0.0
        %10085 = vmatprep.mubr.f32.mxu0 0.0
        %10086 = vmatmul.mubr.f32.gmra.mxu0 %v9860
        %v10087 = vpop.f32.mrf.mxu0
        %v10088 = vadd.f32 %v9983, %v10087
        %v10089 = vpop.f32.mrf.mxu0
        %10090 = vmatprep.mubr.f32.mxu0 0.0
        %10091 = vmatmul.mubr.f32.gmra.mxu0 %v9861
        %v10092 = vpop.f32.mrf.mxu0
        %v10093 = vadd.f32 %v9988, %v10092
        %v10094 = vpop.f32.mrf.mxu0
        %10095 = vmatprep.mubr.f32.mxu0 0.0
        %10096 = vmatmul.mubr.f32.gmra.mxu0 %v9862
        %v10097 = vpop.f32.mrf.mxu0
        %v10098 = vadd.f32 %v9993, %v10097
        %v10099 = vpop.f32.mrf.mxu0
        %10100 = vmatprep.mubr.f32.mxu0 0.0
        %10101 = vmatmul.mubr.f32.gmra.mxu0 %v9863
        %v10102 = vpop.f32.mrf.mxu0
        %v10103 = vadd.f32 %v9998, %v10102
        %v10104 = vpop.f32.mrf.mxu0
        %10105 = vmatprep.mubr.f32.mxu0 0.0
        %10106 = vmatmul.mubr.f32.gmra.mxu0 %v9864
        %v10107 = vpop.f32.mrf.mxu0
        %v10108 = vadd.f32 %v10003, %v10107
        %v10109 = vpop.f32.mrf.mxu0
        %10110 = vmatprep.mubr.f32.mxu0 0.0
        %10111 = vmatmul.mubr.f32.gmra.mxu0 %v9865
        %v10112 = vpop.f32.mrf.mxu0
        %v10113 = vadd.f32 %v10008, %v10112
        %v10114 = vpop.f32.mrf.mxu0
        %10115 = vmatprep.mubr.f32.mxu0 0.0
        %10116 = vmatmul.mubr.f32.gmra.mxu0 %v9866
        %v10117 = vpop.f32.mrf.mxu0
        %v10118 = vadd.f32 %v10013, %v10117
        %v10119 = vpop.f32.mrf.mxu0
        %10120 = vmatprep.mubr.f32.mxu0 0.0
        %10121 = vmatmul.mubr.f32.gmra.mxu0 %v9867
        %v10122 = vpop.f32.mrf.mxu0
        %v10123 = vadd.f32 %v10018, %v10122
        %v10124 = vpop.f32.mrf.mxu0
        %10125 = vdwg.mxu0
        %v10126 = vld [vmem:[%s19] sm:$0x1]
        %v10128 = vlaneseq
        %v10129 = vshrl.u32 %v10128, 7
        %v10130 = vsub.s32 0, %v10129
        %v10131 = vrot.slane %v10126, %v10130
        %v10133 = vadd.f32 %v10088, %v10131
        %v10134 = vadd.f32 %v10093, %v10131
        %v10135 = vadd.f32 %v10098, %v10131
        %v10136 = vadd.f32 %v10103, %v10131
        %v10137 = vadd.f32 %v10108, %v10131
        %v10138 = vadd.f32 %v10113, %v10131
        %v10139 = vadd.f32 %v10118, %v10131
        %v10140 = vadd.f32 %v10123, %v10131
        %vm10141 = vcmask 31744
        %10142 = vst.msk [vmem:[%s20] sm:$0xff] %vm10141, %v10133
        %10143 = vst.msk [vmem:[%s20 + $0x8] sm:$0xff] %vm10141, %v10134
        %10144 = vst.msk [vmem:[%s20 + $0x10] sm:$0xff] %vm10141, %v10135
        %10145 = vst.msk [vmem:[%s20 + $0x18] sm:$0xff] %vm10141, %v10136
        %10146 = vst.msk [vmem:[%s20 + $0x20] sm:$0xff] %vm10141, %v10137
        %10147 = vst.msk [vmem:[%s20 + $0x28] sm:$0xff] %vm10141, %v10138
        %10148 = vst.msk [vmem:[%s20 + $0x30] sm:$0xff] %vm10141, %v10139
        %10149 = vst.msk [vmem:[%s20 + $0x38] sm:$0xff] %vm10141, %v10140
        // Predicated region
        $region125: #{egnn_forward.1} parent=99 // pred_check
          %p10150 = pneg %p538
        $region126: #{egnn_forward.1} parent=99 // pred_check_branch
          %10152 = sbr.rel (%p10150) target = $region128
        $region127: #{egnn_forward.1} parent=99 // pred_region
          _
        $region128: #{egnn_forward.1} parent=99 // pred_fallthru
          _
        // Predicated region
        $region129: #{egnn_forward.1} parent=99 // pred_check
          %p10153 = pneg %p538
        $region130: #{egnn_forward.1} parent=99 // pred_check_branch
          %10155 = sbr.rel (%p10153) target = $region132
        $region131: #{egnn_forward.1} parent=99 // pred_region
          _
        $region132: #{egnn_forward.1} parent=99 // pred_fallthru
          _
      $region100: #{egnn_forward.1} parent=5 // pred_fallthru
        _
      %p10156 = scmp.le.s32.totalorder 2, %s35
      // Predicated region
      $region133: #{egnn_forward.1} parent=5 // pred_check
        %p10157 = pneg %p10156
      $region134: #{egnn_forward.1} parent=5 // pred_check_branch
        %10159 = sbr.rel (%p10157) target = $region136
      $region135: #{egnn_forward.1} parent=5 // pred_region
        %s10160 = ssub.s32 %s35, 2
      $region136: #{egnn_forward.1} parent=5 // pred_fallthru
        _
    $region6: #{egnn_forward.1} parent=1 // loop_footer
      %s39 = sadd.s32 1, %s35
    $region7: #{egnn_forward.1} parent=1 // loop_footer_branch
      %34 = sbr.rel target = $region3
    $region8: #{egnn_forward.1} parent=1 // loop_exit
      _
    %10161 = vsyncpa [#allocation7], 1
    %s10162 = scalar_lea.sflag [#allocation7], 1
    %10163 = vsyncpa %s10162, 1
    %10164 = vsyncpa [#allocation9], 1
    %s10165 = scalar_lea.sflag [#allocation9], 1
    %10166 = vsyncpa %s10165, 1
    %10167 = vsyncpa [#allocation12], 1
    %s10168 = scalar_lea.sflag [#allocation12], 1
    %10169 = vsyncpa %s10168, 1

</llo_original>
